<compile_context>
chip_gen: v7x
topology: tpu7x:2x2x1
jax: 0.10.0
libtpu: 0.0.40
codegen_flags: <defaults>
</compile_context>

<pallas_src>
import functools

import jax
import jax.numpy as jnp
from jax.experimental import pallas as pl
from jax.experimental.pallas import tpu as pltpu

LN_EPS = 1e-5
_SQRT_2_OVER_PI = 0.7978845608028654


def _layernorm(v, g, b):
    mu = jnp.mean(v, axis=-1, keepdims=True)
    var = jnp.mean((v - mu) ** 2, axis=-1, keepdims=True)
    return (v - mu) * jax.lax.rsqrt(var + LN_EPS) * g + b


def _gelu(x):
    # TODO(synk): PyTorch nn.GELU() is erf-exact; tanh approximation used here
    # (Mosaic-safe, ~1e-3 max abs difference on the hidden activations).
    return 0.5 * x * (1.0 + jnp.tanh(_SQRT_2_OVER_PI * (x + 0.044715 * x * x * x)))


def encoder_kernel(x_ref,
                   n1g_ref, n1b_ref, wqkv_ref, wout_ref, bout_ref,
                   n2g_ref, n2b_ref, w1_ref, b1_ref, w2_ref, b2_ref,
                   c1_ref, c2_ref,
                   ca_a1_ref, ca_b1_ref, ca_a2_ref, ca_b2_ref,
                   o_ref, qslab, vslab, pslab,
                   *, depth, batch, n, heads, dim_head, scale):
    f32, bf16 = jnp.float32, jnp.bfloat16
    inner = heads * dim_head
    bn = batch * n
    bhn = batch * heads * n

    x = x_ref[...]                                   # (bn, d) residual stream, f32

    # Block-structured slabs: zero ONCE; only the (always identical) nonzero
    # block positions are rewritten each layer, so the padding stays zero.
    qslab[...] = jnp.zeros_like(qslab)
    vslab[...] = jnp.zeros_like(vslab)
    pslab[...] = jnp.zeros_like(pslab)

    # Conv helpers, hoisted out of the depth loop (JAX does not CSE these).
    zcol = jnp.zeros((bhn, 1), f32)
    zrow = jnp.zeros((1, n), f32)
    row = jax.lax.broadcasted_iota(jnp.int32, (bhn, n), 0)
    has_up = ((row % n) != 0).astype(f32)            # row i-1 exists inside the map
    has_dn = ((row % n) != (n - 1)).astype(f32)      # row i+1 exists inside the map

    def dw_conv(dd, cp):
        """Depthwise 3x3 conv (padding=1) + folded BN + ReLU on the stacked
        (bhn, n) attention maps.  cp[:, 0:9] = per-row 3x3 taps (row-major),
        cp[:, 9] = bias.  Shifts are zero-guarded slice+concat (XLU/VPU work),
        not MXU shift-matrix matmuls."""
        ym = jnp.concatenate([zcol, dd[:, :n - 1]], axis=1)      # dd[:, j-1]
        yp = jnp.concatenate([dd[:, 1:], zcol], axis=1)          # dd[:, j+1]

        def z(ki):  # column-weighted sum for row tap ki
            return (cp[:, 3 * ki + 0:3 * ki + 1] * ym
                    + cp[:, 3 * ki + 1:3 * ki + 2] * dd
                    + cp[:, 3 * ki + 2:3 * ki + 3] * yp)

        z0, z1, z2 = z(0), z(1), z(2)
        rm = jnp.concatenate([zrow, z0[:bhn - 1, :]], axis=0) * has_up   # z0[i-1]
        rp = jnp.concatenate([z2[1:, :], zrow], axis=0) * has_dn         # z2[i+1]
        return jnp.maximum(cp[:, 9:10] + z1 + rm + rp, 0.0)

    for l in range(depth):
        # ---- LayerNorm 1 + fused QKV projection (bf16 MXU, f32 accumulate) ----
        xn = _layernorm(x, n1g_ref[l], n1b_ref[l])
        qkv = jnp.dot(xn.astype(bf16), wqkv_ref[l],
                      preferred_element_type=f32).astype(bf16)   # (bn, 3*inner)

        # ---- build block-structured slabs; qkv is dead after this point ----
        for b in range(batch):
            for h in range(heads):
                g = b * heads + h
                qslab[g * n:(g + 1) * n, g * dim_head:(g + 1) * dim_head] = \
                    qkv[b * n:(b + 1) * n, h * dim_head:(h + 1) * dim_head]
        for h in range(heads):
            vslab[h * bn:(h + 1) * bn, h * dim_head:(h + 1) * dim_head] = \
                qkv[:, 2 * inner + h * dim_head:2 * inner + (h + 1) * dim_head]
        kslab = jnp.concatenate(
            [qkv[b * n:(b + 1) * n, inner:2 * inner] for b in range(batch)],
            axis=1)                                              # (n, batch*heads*dh)

        # ---- q.k^T for ALL (batch, head) pairs in ONE MXU matmul ----
        dots = jax.lax.dot_general(
            qslab[...], kslab, (((1,), (1,)), ((), ())),
            preferred_element_type=f32) * scale                  # (bhn, n)

        # ---- spatial_conv: two [dwconv3x3 + BN(folded) + ReLU] blocks ----
        y = dw_conv(dots, c1_ref[l])
        y = dw_conv(y, c2_ref[l])

        # ---- channel attention (adaptive avg-pool + folded 1x1 convs) ----
        colavg = jnp.broadcast_to(jnp.mean(y, axis=-1, keepdims=True), (bhn, n))
        hid = jnp.maximum(
            jnp.dot(ca_a1_ref[l], colavg, preferred_element_type=f32)
            + ca_b1_ref[l], 0.0)
        cw = jax.nn.sigmoid(
            jnp.dot(ca_a2_ref[l], hid, preferred_element_type=f32)
            + ca_b2_ref[l])
        a = y * cw

        # ---- softmax over the key axis (lane axis) ----
        a = a - jnp.max(a, axis=-1, keepdims=True)
        e = jnp.exp(a)
        p = e * pl.reciprocal(jnp.sum(e, axis=-1, keepdims=True), approx=True)

        # ---- attn @ v for ALL (batch, head) pairs in ONE matmul; result lands
        #      directly in concat-head layout for a plain wout projection ----
        for b in range(batch):
            for h in range(heads):
                g = b * heads + h
                pslab[b * n:(b + 1) * n, h * bn + b * n:h * bn + (b + 1) * n] = \
                    p[g * n:(g + 1) * n, :].astype(bf16)
        attn = jnp.dot(pslab[...], vslab[...],
                       preferred_element_type=f32)               # (bn, inner)
        x = x + (jnp.dot(attn.astype(bf16), wout_ref[l],
                         preferred_element_type=f32) + bout_ref[l])

        # ---- LayerNorm 2 + FFN + residual ----
        x2n = _layernorm(x, n2g_ref[l], n2b_ref[l])
        h1 = _gelu(jnp.dot(x2n.astype(bf16), w1_ref[l],
                           preferred_element_type=f32) + b1_ref[l])
        x = x + (jnp.dot(h1.astype(bf16), w2_ref[l],
                         preferred_element_type=f32) + b2_ref[l])

    o_ref[...] = x.astype(o_ref.dtype)


def _build_packed_params(layer_params, batch, n, heads, dim_head):
    """Stack per-layer params over depth and precompute derived matrices."""
    bhn = batch * heads * n
    hh = heads // 2
    hidx = (jnp.arange(bhn) // n) % heads            # head id per stacked row
    bidx = jnp.arange(bhn) // (heads * n)            # batch id per stacked row
    same_b = (bidx[:, None] == bidx[None, :]).astype(jnp.float32)

    packed = {k: jnp.stack([p[k] for p in layer_params], axis=0)
              for k in ("n1g", "n1b", "bout", "n2g", "n2b", "b1", "b2")}
    # matmul weights are shipped to VMEM in bf16 (MXU-native; f32 accumulate).
    for k in ("wqkv", "wout", "w1", "w2"):
        packed[k] = jnp.stack([p[k] for p in layer_params],
                              axis=0).astype(jnp.bfloat16)

    c1, c2 = [], []
    ca_a1, ca_b1, ca_a2, ca_b2 = [], [], [], []
    for p in layer_params:
        # depthwise-conv taps + folded-BN bias, packed along the lane axis
        for (wname, bname, dst) in (("c1w", "c1b", c1), ("c2w", "c2b", c2)):
            cp = jnp.zeros((bhn, 16), jnp.float32)
            cp = cp.at[:, :9].set(p[wname][hidx])
            cp = cp.at[:, 9].set(p[bname][hidx])
            dst.append(cp)

        # channel attention (pool + 1x1 convs) folded into block matrices on
        # the stacked (batch*heads*n) row space
        ca1w_pad = jnp.zeros((heads, heads), jnp.float32).at[:hh, :].set(p["ca1w"])
        ca1b_pad = jnp.zeros((heads,), jnp.float32).at[:hh].set(p["ca1b"])
        ca2w_pad = jnp.zeros((heads, heads), jnp.float32).at[:, :hh].set(p["ca2w"])
        ca_a1.append(ca1w_pad[hidx[:, None], hidx[None, :]] * same_b / n)
        ca_b1.append(ca1b_pad[hidx][:, None])
        ca_a2.append(ca2w_pad[hidx[:, None], hidx[None, :]] * same_b / n)
        ca_b2.append(p["ca2b"][hidx][:, None])

    packed["c1"] = jnp.stack(c1)
    packed["c2"] = jnp.stack(c2)
    packed["ca_a1"] = jnp.stack(ca_a1)
    packed["ca_b1"] = jnp.stack(ca_b1)
    packed["ca_a2"] = jnp.stack(ca_a2)
    packed["ca_b2"] = jnp.stack(ca_b2)
    return packed


def transformer_encoder(x, layer_params, heads, dim_head):
    batch, n, d = x.shape
    depth = len(layer_params)
    inner = heads * dim_head
    packed = _build_packed_params(layer_params, batch, n, heads, dim_head)

    arg_names = ["n1g", "n1b", "wqkv", "wout", "bout", "n2g", "n2b",
                 "w1", "b1", "w2", "b2", "c1", "c2",
                 "ca_a1", "ca_b1", "ca_a2", "ca_b2"]
    args = [x.reshape(batch * n, d)] + [packed[k] for k in arg_names]

    kernel = functools.partial(
        encoder_kernel, depth=depth, batch=batch, n=n, heads=heads,
        dim_head=dim_head, scale=float(dim_head) ** -0.5)

    vmem = pl.BlockSpec(memory_space=pltpu.MemorySpace.VMEM)
    out2d = pl.pallas_call(
        kernel,
        out_shape=jax.ShapeDtypeStruct((batch * n, d), jnp.float32),
        in_specs=[vmem] * len(args),
        out_specs=vmem,
        scratch_shapes=[
            pltpu.VMEM((batch * heads * n, batch * heads * dim_head),
                       jnp.bfloat16),                                # block-diag Q slab
            pltpu.VMEM((heads * batch * n, inner), jnp.bfloat16),    # head-blocked V slab
            pltpu.VMEM((batch * n, heads * batch * n), jnp.bfloat16),  # batch-blocked P slab
        ],
    )(*args)
    return out2d.reshape(batch, n, d)


def make_layer_params(key, dim, heads, dim_head, mlp_dim):
    inner = heads * dim_head
    ks = jax.random.split(key, 16)
    f = lambda k, shape, s=0.02: jax.random.normal(k, shape, jnp.float32) * s

    p = {
        "n1g": jnp.ones((1, dim), jnp.float32),
        "n1b": jnp.zeros((1, dim), jnp.float32),
        "wqkv": f(ks[0], (dim, 3 * inner)),
        "wout": f(ks[1], (inner, dim)),
        "bout": f(ks[2], (1, dim)),
        "n2g": jnp.ones((1, dim), jnp.float32),
        "n2b": jnp.zeros((1, dim), jnp.float32),
        "w1": f(ks[3], (dim, mlp_dim)),
        "b1": f(ks[4], (1, mlp_dim)),
        "w2": f(ks[5], (mlp_dim, dim)),
        "b2": f(ks[6], (1, dim)),
        "ca1w": f(ks[7], (heads // 2, heads), 0.1),
        "ca1b": f(ks[8], (heads // 2,), 0.1),
        "ca2w": f(ks[9], (heads, heads // 2), 0.1),
        "ca2b": f(ks[10], (heads,), 0.1),
    }

    # Depthwise conv weights + eval-mode BatchNorm fold (PyTorch defaults:
    # running_mean=0, running_var=1, gamma=1, beta=0, eps=1e-5).
    conv1_w = f(ks[11], (heads, 3, 3), 0.1)
    conv1_b = f(ks[12], (heads,), 0.1)
    conv2_w = f(ks[13], (heads, 3, 3), 0.1)
    conv2_b = f(ks[14], (heads,), 0.1)
    bn_scale = 1.0 / jnp.sqrt(1.0 + 1e-5)
    p["c1w"] = (conv1_w * bn_scale).reshape(heads, 9)
    p["c1b"] = conv1_b * bn_scale
    p["c2w"] = (conv2_w * bn_scale).reshape(heads, 9)
    p["c2b"] = conv2_b * bn_scale
    return p


def reference_forward(x, layer_params, heads, dim_head):
    """Pure-JAX f32 reference of the same math (used to validate the kernel)."""
    batch, n, d = x.shape
    inner = heads * dim_head
    scale = float(dim_head) ** -0.5
    for p in layer_params:
        xn = _layernorm(x, p["n1g"], p["n1b"])
        qkv = xn @ p["wqkv"]

        def split(t):
            return t.reshape(batch, n, heads, dim_head).transpose(0, 2, 1, 3)

        q = split(qkv[..., :inner])
        k = split(qkv[..., inner:2 * inner])
        v = split(qkv[..., 2 * inner:])
        y = jnp.einsum("bhnd,bhmd->bhnm", q, k) * scale
        for wname, bname in (("c1w", "c1b"), ("c2w", "c2b")):
            w33 = p[wname].reshape(heads, 3, 3)
            ypad = jnp.pad(y, ((0, 0), (0, 0), (1, 1), (1, 1)))
            acc = jnp.broadcast_to(p[bname][None, :, None, None], y.shape)
            for ki in range(3):
                for kj in range(3):
                    acc = acc + (w33[None, :, ki, kj, None, None]
                                 * ypad[:, :, ki:ki + n, kj:kj + n])
            y = jnp.maximum(acc, 0.0)
        pooled = jnp.mean(y, axis=(2, 3))
        hidden = jnp.maximum(pooled @ p["ca1w"].T + p["ca1b"], 0.0)
        cw = jax.nn.sigmoid(hidden @ p["ca2w"].T + p["ca2b"])
        y = y * cw[:, :, None, None]
        attn = jax.nn.softmax(y, axis=-1)
        out = jnp.einsum("bhnm,bhmd->bhnd", attn, v)
        out = out.transpose(0, 2, 1, 3).reshape(batch, n, inner)
        x = x + out @ p["wout"] + p["bout"]
        x2n = _layernorm(x, p["n2g"], p["n2b"])
        h1 = _gelu(x2n @ p["w1"] + p["b1"])
        x = x + h1 @ p["w2"] + p["b2"]
    return x


if __name__ == "__main__":
    DIM, DEPTH, HEADS, DIM_HEAD, MLP_DIM = 32, 3, 3, 64, 256
    B, N = 2, 8

    key = jax.random.PRNGKey(0)
    key, xk = jax.random.split(key)
    x = jax.random.normal(xk, (B, N, DIM), jnp.float32)

    layer_params = []
    for _ in range(DEPTH):
        key, lk = jax.random.split(key)
        layer_params.append(make_layer_params(lk, DIM, HEADS, DIM_HEAD, MLP_DIM))

    out = transformer_encoder(x, layer_params, HEADS, DIM_HEAD)
    out = jax.block_until_ready(out)
    assert out.shape == (B, N, DIM)
    assert bool(jnp.all(jnp.isfinite(out)))

    ref = reference_forward(x, layer_params, HEADS, DIM_HEAD)
    # tolerance accounts for bf16 MXU operands + tanh-GELU + approx-reciprocal
    # softmax vs the exact-f32 reference (observed error is O(1e-3) or below).
    max_err = float(jnp.max(jnp.abs(out - ref)))
    assert max_err < 3e-3, f"kernel vs reference mismatch: {max_err}"
    print("KERNEL_OK")
</pallas_src>

<mosaic_0001>
module attributes {stable_mosaic.version = 11 : i64} {
  func.func @encoder_kernel(%arg0: memref<16x32xf32, #tpu.memory_space<vmem>>, %arg1: memref<3x1x32xf32, #tpu.memory_space<vmem>>, %arg2: memref<3x1x32xf32, #tpu.memory_space<vmem>>, %arg3: memref<3x32x576xbf16, #tpu.memory_space<vmem>>, %arg4: memref<3x192x32xbf16, #tpu.memory_space<vmem>>, %arg5: memref<3x1x32xf32, #tpu.memory_space<vmem>>, %arg6: memref<3x1x32xf32, #tpu.memory_space<vmem>>, %arg7: memref<3x1x32xf32, #tpu.memory_space<vmem>>, %arg8: memref<3x32x256xbf16, #tpu.memory_space<vmem>>, %arg9: memref<3x1x256xf32, #tpu.memory_space<vmem>>, %arg10: memref<3x256x32xbf16, #tpu.memory_space<vmem>>, %arg11: memref<3x1x32xf32, #tpu.memory_space<vmem>>, %arg12: memref<3x48x16xf32, #tpu.memory_space<vmem>>, %arg13: memref<3x48x16xf32, #tpu.memory_space<vmem>>, %arg14: memref<3x48x48xf32, #tpu.memory_space<vmem>>, %arg15: memref<3x48x1xf32, #tpu.memory_space<vmem>>, %arg16: memref<3x48x48xf32, #tpu.memory_space<vmem>>, %arg17: memref<3x48x1xf32, #tpu.memory_space<vmem>>, %arg18: memref<16x32xf32, #tpu.memory_space<vmem>>, %arg19: memref<48x384xbf16, #tpu.memory_space<vmem>>, %arg20: memref<48x192xbf16, #tpu.memory_space<vmem>>, %arg21: memref<16x48xbf16, #tpu.memory_space<vmem>>) attributes {dimension_semantics = [], scalar_prefetch = 0 : i64, scratch_operands = 3 : i64, tpu.core_type = #tpu.core_type<tc>} {
    %c0 = arith.constant 0 : index
    %c0_0 = arith.constant 0 : index
    %0 = vector.load %arg0[%c0, %c0_0] : memref<16x32xf32, #tpu.memory_space<vmem>>, vector<16x32xf32>
    %cst = arith.constant 0.000000e+00 : bf16
    %1 = vector.broadcast %cst : bf16 to vector<48x384xbf16>
    %c0_1 = arith.constant 0 : index
    %c0_2 = arith.constant 0 : index
    %2 = vector.load %arg19[%c0_1, %c0_2] : memref<48x384xbf16, #tpu.memory_space<vmem>>, vector<48x384xbf16>
    tpu.vector_store %arg19[%c0_1, %c0_2], %1 {strides = array<i32>} : memref<48x384xbf16, #tpu.memory_space<vmem>>, vector<48x384xbf16>,
    %cst_3 = arith.constant 0.000000e+00 : bf16
    %3 = vector.broadcast %cst_3 : bf16 to vector<48x192xbf16>
    %c0_4 = arith.constant 0 : index
    %c0_5 = arith.constant 0 : index
    %4 = vector.load %arg20[%c0_4, %c0_5] : memref<48x192xbf16, #tpu.memory_space<vmem>>, vector<48x192xbf16>
    tpu.vector_store %arg20[%c0_4, %c0_5], %3 {strides = array<i32>} : memref<48x192xbf16, #tpu.memory_space<vmem>>, vector<48x192xbf16>,
    %cst_6 = arith.constant 0.000000e+00 : bf16
    %5 = vector.broadcast %cst_6 : bf16 to vector<16x48xbf16>
    %c0_7 = arith.constant 0 : index
    %c0_8 = arith.constant 0 : index
    %6 = vector.load %arg21[%c0_7, %c0_8] : memref<16x48xbf16, #tpu.memory_space<vmem>>, vector<16x48xbf16>
    tpu.vector_store %arg21[%c0_7, %c0_8], %5 {strides = array<i32>} : memref<16x48xbf16, #tpu.memory_space<vmem>>, vector<16x48xbf16>,
    %cst_9 = arith.constant 0.000000e+00 : f32
    %7 = vector.broadcast %cst_9 : f32 to vector<48x1xf32>
    %cst_10 = arith.constant 0.000000e+00 : f32
    %8 = vector.broadcast %cst_10 : f32 to vector<1x8xf32>
    %9 = tpu.iota {dimensions = array<i32: 0>} : vector<48x8xi32>
    %c8_i32 = arith.constant 8 : i32
    %c0_i32 = arith.constant 0 : i32
    %10 = arith.cmpi eq, %c8_i32, %c0_i32 : i32
    %c1_i32 = arith.constant 1 : i32
    %11 = arith.select %10, %c1_i32, %c8_i32 : i32
    %12 = vector.broadcast %11 : i32 to vector<48x8xi32>
    %13 = arith.remsi %9, %12 : vector<48x8xi32>
    %c0_i32_11 = arith.constant 0 : i32
    %14 = vector.broadcast %c0_i32_11 : i32 to vector<48x8xi32>
    %15 = arith.cmpi ne, %13, %14 : vector<48x8xi32>
    %c0_i32_12 = arith.constant 0 : i32
    %16 = vector.broadcast %c0_i32_12 : i32 to vector<48x8xi32>
    %17 = arith.cmpi slt, %13, %16 : vector<48x8xi32>
    %c0_i32_13 = arith.constant 0 : i32
    %18 = arith.cmpi slt, %11, %c0_i32_13 : i32
    %19 = vector.broadcast %18 : i1 to vector<48x8xi1>
    %20 = vector.broadcast %19 : vector<48x8xi1> to vector<48x8xi1>
    %21 = arith.xori %17, %20 : vector<48x8xi1>
    %22 = arith.andi %21, %15 : vector<48x8xi1>
    %23 = vector.broadcast %11 : i32 to vector<48x8xi32>
    %24 = arith.addi %13, %23 : vector<48x8xi32>
    %25 = arith.select %22, %24, %13 : vector<48x8xi1>, vector<48x8xi32>
    %c0_i32_14 = arith.constant 0 : i32
    %26 = vector.broadcast %c0_i32_14 : i32 to vector<48x8xi32>
    %27 = arith.cmpi ne, %25, %26 : vector<48x8xi32>
    %28 = arith.extui %27 : vector<48x8xi1> to vector<48x8xi32>
    %29 = arith.sitofp %28 : vector<48x8xi32> to vector<48x8xf32>
    %c8_i32_15 = arith.constant 8 : i32
    %c0_i32_16 = arith.constant 0 : i32
    %30 = arith.cmpi eq, %c8_i32_15, %c0_i32_16 : i32
    %c1_i32_17 = arith.constant 1 : i32
    %31 = arith.select %30, %c1_i32_17, %c8_i32_15 : i32
    %32 = vector.broadcast %31 : i32 to vector<48x8xi32>
    %33 = arith.remsi %9, %32 : vector<48x8xi32>
    %c0_i32_18 = arith.constant 0 : i32
    %34 = vector.broadcast %c0_i32_18 : i32 to vector<48x8xi32>
    %35 = arith.cmpi ne, %33, %34 : vector<48x8xi32>
    %c0_i32_19 = arith.constant 0 : i32
    %36 = vector.broadcast %c0_i32_19 : i32 to vector<48x8xi32>
    %37 = arith.cmpi slt, %33, %36 : vector<48x8xi32>
    %c0_i32_20 = arith.constant 0 : i32
    %38 = arith.cmpi slt, %31, %c0_i32_20 : i32
    %39 = vector.broadcast %38 : i1 to vector<48x8xi1>
    %40 = vector.broadcast %39 : vector<48x8xi1> to vector<48x8xi1>
    %41 = arith.xori %37, %40 : vector<48x8xi1>
    %42 = arith.andi %41, %35 : vector<48x8xi1>
    %43 = vector.broadcast %31 : i32 to vector<48x8xi32>
    %44 = arith.addi %33, %43 : vector<48x8xi32>
    %45 = arith.select %42, %44, %33 : vector<48x8xi1>, vector<48x8xi32>
    %c7_i32 = arith.constant 7 : i32
    %46 = vector.broadcast %c7_i32 : i32 to vector<48x8xi32>
    %47 = arith.cmpi ne, %45, %46 : vector<48x8xi32>
    %48 = arith.extui %47 : vector<48x8xi1> to vector<48x8xi32>
    %49 = arith.sitofp %48 : vector<48x8xi32> to vector<48x8xf32>
    %c0_21 = arith.constant 0 : index
    %c0_22 = arith.constant 0 : index
    %c0_23 = arith.constant 0 : index
    %50 = vector.load %arg1[%c0_21, %c0_22, %c0_23] : memref<3x1x32xf32, #tpu.memory_space<vmem>>, vector<1x1x32xf32>
    %51 = vector.shape_cast %50 : vector<1x1x32xf32> to vector<1x32xf32>
    %c0_24 = arith.constant 0 : index
    %c0_25 = arith.constant 0 : index
    %c0_26 = arith.constant 0 : index
    %52 = vector.load %arg2[%c0_24, %c0_25, %c0_26] : memref<3x1x32xf32, #tpu.memory_space<vmem>>, vector<1x1x32xf32>
    %53 = vector.shape_cast %52 : vector<1x1x32xf32> to vector<1x32xf32>
    %cst_27 = arith.constant dense<0.000000e+00> : vector<16xf32>
    %54 = vector.multi_reduction <add>, %0, %cst_27 [1] : vector<16x32xf32> to vector<16xf32>
    %55 = vector.shape_cast %54 : vector<16xf32> to vector<16x1xf32>
    %cst_28 = arith.constant 3.200000e+01 : f32
    %56 = vector.broadcast %cst_28 : f32 to vector<16x1xf32>
    %57 = arith.divf %55, %56 : vector<16x1xf32>
    %58 = vector.broadcast %57 : vector<16x1xf32> to vector<16x32xf32>
    %59 = arith.subf %0, %58 : vector<16x32xf32>
    %60 = arith.mulf %59, %59 : vector<16x32xf32>
    %cst_29 = arith.constant dense<0.000000e+00> : vector<16xf32>
    %61 = vector.multi_reduction <add>, %60, %cst_29 [1] : vector<16x32xf32> to vector<16xf32>
    %62 = vector.shape_cast %61 : vector<16xf32> to vector<16x1xf32>
    %cst_30 = arith.constant 3.200000e+01 : f32
    %63 = vector.broadcast %cst_30 : f32 to vector<16x1xf32>
    %64 = arith.divf %62, %63 : vector<16x1xf32>
    %65 = vector.broadcast %57 : vector<16x1xf32> to vector<16x32xf32>
    %66 = arith.subf %0, %65 : vector<16x32xf32>
    %cst_31 = arith.constant 9.99999974E-6 : f32
    %67 = vector.broadcast %cst_31 : f32 to vector<16x1xf32>
    %68 = arith.addf %64, %67 : vector<16x1xf32>
    %69 = math.rsqrt %68 : vector<16x1xf32>
    %70 = vector.broadcast %69 : vector<16x1xf32> to vector<16x32xf32>
    %71 = arith.mulf %66, %70 : vector<16x32xf32>
    %72 = vector.broadcast %51 : vector<1x32xf32> to vector<16x32xf32>
    %73 = arith.mulf %71, %72 : vector<16x32xf32>
    %74 = vector.broadcast %53 : vector<1x32xf32> to vector<16x32xf32>
    %75 = arith.addf %73, %74 : vector<16x32xf32>
    %76 = arith.truncf %75 : vector<16x32xf32> to vector<16x32xbf16>
    %c0_32 = arith.constant 0 : index
    %c0_33 = arith.constant 0 : index
    %c0_34 = arith.constant 0 : index
    %77 = vector.load %arg3[%c0_32, %c0_33, %c0_34] : memref<3x32x576xbf16, #tpu.memory_space<vmem>>, vector<1x32x576xbf16>
    %78 = vector.shape_cast %77 : vector<1x32x576xbf16> to vector<32x576xbf16>
    %cst_35 = arith.constant dense<0.000000e+00> : vector<16x576xf32>
    %79 = tpu.matmul %76, %78, %cst_35 {dimension_numbers = #tpu.dot_dimension_numbers<[1], [0], [0], [1], [0, 0, 1, 1], [], []>} : vector<16x32xbf16>, vector<32x576xbf16>, vector<16x576xf32> -> vector<16x576xf32>
    %80 = arith.truncf %79 : vector<16x576xf32> to vector<16x576xbf16>
    %81 = vector.extract_strided_slice %80 {offsets = [0, 0], sizes = [8, 64], strides = [1, 1]} : vector<16x576xbf16> to vector<8x64xbf16>
    %c0_36 = arith.constant 0 : index
    %c0_37 = arith.constant 0 : index
    %82 = vector.load %arg19[%c0_36, %c0_37] : memref<48x384xbf16, #tpu.memory_space<vmem>>, vector<8x64xbf16>
    tpu.vector_store %arg19[%c0_36, %c0_37], %81 {strides = array<i32>} : memref<48x384xbf16, #tpu.memory_space<vmem>>, vector<8x64xbf16>,
    %83 = vector.extract_strided_slice %80 {offsets = [0, 64], sizes = [8, 64], strides = [1, 1]} : vector<16x576xbf16> to vector<8x64xbf16>
    %c8 = arith.constant 8 : index
    %c64 = arith.constant 64 : index
    %84 = vector.load %arg19[%c8, %c64] : memref<48x384xbf16, #tpu.memory_space<vmem>>, vector<8x64xbf16>
    tpu.vector_store %arg19[%c8, %c64], %83 {strides = array<i32>} : memref<48x384xbf16, #tpu.memory_space<vmem>>, vector<8x64xbf16>,
    %85 = vector.extract_strided_slice %80 {offsets = [0, 128], sizes = [8, 64], strides = [1, 1]} : vector<16x576xbf16> to vector<8x64xbf16>
    %c16 = arith.constant 16 : index
    %c128 = arith.constant 128 : index
    %86 = vector.load %arg19[%c16, %c128] : memref<48x384xbf16, #tpu.memory_space<vmem>>, vector<8x64xbf16>
    tpu.vector_store %arg19[%c16, %c128], %85 {strides = array<i32>} : memref<48x384xbf16, #tpu.memory_space<vmem>>, vector<8x64xbf16>,
    %87 = vector.extract_strided_slice %80 {offsets = [8, 0], sizes = [8, 64], strides = [1, 1]} : vector<16x576xbf16> to vector<8x64xbf16>
    %c24 = arith.constant 24 : index
    %c192 = arith.constant 192 : index
    %88 = vector.load %arg19[%c24, %c192] : memref<48x384xbf16, #tpu.memory_space<vmem>>, vector<8x64xbf16>
    tpu.vector_store %arg19[%c24, %c192], %87 {strides = array<i32>} : memref<48x384xbf16, #tpu.memory_space<vmem>>, vector<8x64xbf16>,
    %89 = vector.extract_strided_slice %80 {offsets = [8, 64], sizes = [8, 64], strides = [1, 1]} : vector<16x576xbf16> to vector<8x64xbf16>
    %c32 = arith.constant 32 : index
    %c256 = arith.constant 256 : index
    %90 = vector.load %arg19[%c32, %c256] : memref<48x384xbf16, #tpu.memory_space<vmem>>, vector<8x64xbf16>
    tpu.vector_store %arg19[%c32, %c256], %89 {strides = array<i32>} : memref<48x384xbf16, #tpu.memory_space<vmem>>, vector<8x64xbf16>,
    %91 = vector.extract_strided_slice %80 {offsets = [8, 128], sizes = [8, 64], strides = [1, 1]} : vector<16x576xbf16> to vector<8x64xbf16>
    %c40 = arith.constant 40 : index
    %c320 = arith.constant 320 : index
    %92 = vector.load %arg19[%c40, %c320] : memref<48x384xbf16, #tpu.memory_space<vmem>>, vector<8x64xbf16>
    tpu.vector_store %arg19[%c40, %c320], %91 {strides = array<i32>} : memref<48x384xbf16, #tpu.memory_space<vmem>>, vector<8x64xbf16>,
    %93 = vector.extract_strided_slice %80 {offsets = [0, 384], sizes = [16, 64], strides = [1, 1]} : vector<16x576xbf16> to vector<16x64xbf16>
    %c0_38 = arith.constant 0 : index
    %c0_39 = arith.constant 0 : index
    %94 = vector.load %arg20[%c0_38, %c0_39] : memref<48x192xbf16, #tpu.memory_space<vmem>>, vector<16x64xbf16>
    tpu.vector_store %arg20[%c0_38, %c0_39], %93 {strides = array<i32>} : memref<48x192xbf16, #tpu.memory_space<vmem>>, vector<16x64xbf16>,
    %95 = vector.extract_strided_slice %80 {offsets = [0, 448], sizes = [16, 64], strides = [1, 1]} : vector<16x576xbf16> to vector<16x64xbf16>
    %c16_40 = arith.constant 16 : index
    %c64_41 = arith.constant 64 : index
    %96 = vector.load %arg20[%c16_40, %c64_41] : memref<48x192xbf16, #tpu.memory_space<vmem>>, vector<16x64xbf16>
    tpu.vector_store %arg20[%c16_40, %c64_41], %95 {strides = array<i32>} : memref<48x192xbf16, #tpu.memory_space<vmem>>, vector<16x64xbf16>,
    %97 = vector.extract_strided_slice %80 {offsets = [0, 512], sizes = [16, 64], strides = [1, 1]} : vector<16x576xbf16> to vector<16x64xbf16>
    %c32_42 = arith.constant 32 : index
    %c128_43 = arith.constant 128 : index
    %98 = vector.load %arg20[%c32_42, %c128_43] : memref<48x192xbf16, #tpu.memory_space<vmem>>, vector<16x64xbf16>
    tpu.vector_store %arg20[%c32_42, %c128_43], %97 {strides = array<i32>} : memref<48x192xbf16, #tpu.memory_space<vmem>>, vector<16x64xbf16>,
    %99 = vector.extract_strided_slice %80 {offsets = [0, 192], sizes = [8, 192], strides = [1, 1]} : vector<16x576xbf16> to vector<8x192xbf16>
    %100 = vector.extract_strided_slice %80 {offsets = [8, 192], sizes = [8, 192], strides = [1, 1]} : vector<16x576xbf16> to vector<8x192xbf16>
    %101 = tpu.concatenate %99, %100 in 1 : vector<8x192xbf16>, vector<8x192xbf16> -> vector<8x384xbf16>
    %c0_44 = arith.constant 0 : index
    %c0_45 = arith.constant 0 : index
    %102 = vector.load %arg19[%c0_44, %c0_45] : memref<48x384xbf16, #tpu.memory_space<vmem>>, vector<48x384xbf16>
    %cst_46 = arith.constant dense<0.000000e+00> : vector<48x8xf32>
    %103 = tpu.matmul %102, %101, %cst_46 {dimension_numbers = #tpu.dot_dimension_numbers<[1], [1], [0], [0], [0, 0, 1, 0], [], []>} : vector<48x384xbf16>, vector<8x384xbf16>, vector<48x8xf32> -> vector<48x8xf32>
    %cst_47 = arith.constant 1.250000e-01 : f32
    %104 = vector.broadcast %cst_47 : f32 to vector<48x8xf32>
    %105 = arith.mulf %103, %104 : vector<48x8xf32>
    %c0_48 = arith.constant 0 : index
    %c0_49 = arith.constant 0 : index
    %c0_50 = arith.constant 0 : index
    %106 = vector.load %arg12[%c0_48, %c0_49, %c0_50] : memref<3x48x16xf32, #tpu.memory_space<vmem>>, vector<1x48x16xf32>
    %107 = vector.shape_cast %106 : vector<1x48x16xf32> to vector<48x16xf32>
    %108 = vector.extract_strided_slice %105 {offsets = [0, 0], sizes = [48, 7], strides = [1, 1]} : vector<48x8xf32> to vector<48x7xf32>
    %109 = tpu.concatenate %7, %108 in 1 : vector<48x1xf32>, vector<48x7xf32> -> vector<48x8xf32>
    %110 = vector.extract_strided_slice %105 {offsets = [0, 1], sizes = [48, 7], strides = [1, 1]} : vector<48x8xf32> to vector<48x7xf32>
    %111 = tpu.concatenate %110, %7 in 1 : vector<48x7xf32>, vector<48x1xf32> -> vector<48x8xf32>
    %112 = vector.extract_strided_slice %107 {offsets = [0, 0], sizes = [48, 1], strides = [1, 1]} : vector<48x16xf32> to vector<48x1xf32>
    %113 = vector.broadcast %112 : vector<48x1xf32> to vector<48x8xf32>
    %114 = arith.mulf %113, %109 : vector<48x8xf32>
    %115 = vector.extract_strided_slice %107 {offsets = [0, 1], sizes = [48, 1], strides = [1, 1]} : vector<48x16xf32> to vector<48x1xf32>
    %116 = vector.broadcast %115 : vector<48x1xf32> to vector<48x8xf32>
    %117 = arith.mulf %116, %105 : vector<48x8xf32>
    %118 = arith.addf %114, %117 : vector<48x8xf32>
    %119 = vector.extract_strided_slice %107 {offsets = [0, 2], sizes = [48, 1], strides = [1, 1]} : vector<48x16xf32> to vector<48x1xf32>
    %120 = vector.broadcast %119 : vector<48x1xf32> to vector<48x8xf32>
    %121 = arith.mulf %120, %111 : vector<48x8xf32>
    %122 = arith.addf %118, %121 : vector<48x8xf32>
    %123 = vector.extract_strided_slice %107 {offsets = [0, 3], sizes = [48, 1], strides = [1, 1]} : vector<48x16xf32> to vector<48x1xf32>
    %124 = vector.broadcast %123 : vector<48x1xf32> to vector<48x8xf32>
    %125 = arith.mulf %124, %109 : vector<48x8xf32>
    %126 = vector.extract_strided_slice %107 {offsets = [0, 4], sizes = [48, 1], strides = [1, 1]} : vector<48x16xf32> to vector<48x1xf32>
    %127 = vector.broadcast %126 : vector<48x1xf32> to vector<48x8xf32>
    %128 = arith.mulf %127, %105 : vector<48x8xf32>
    %129 = arith.addf %125, %128 : vector<48x8xf32>
    %130 = vector.extract_strided_slice %107 {offsets = [0, 5], sizes = [48, 1], strides = [1, 1]} : vector<48x16xf32> to vector<48x1xf32>
    %131 = vector.broadcast %130 : vector<48x1xf32> to vector<48x8xf32>
    %132 = arith.mulf %131, %111 : vector<48x8xf32>
    %133 = arith.addf %129, %132 : vector<48x8xf32>
    %134 = vector.extract_strided_slice %107 {offsets = [0, 6], sizes = [48, 1], strides = [1, 1]} : vector<48x16xf32> to vector<48x1xf32>
    %135 = vector.broadcast %134 : vector<48x1xf32> to vector<48x8xf32>
    %136 = arith.mulf %135, %109 : vector<48x8xf32>
    %137 = vector.extract_strided_slice %107 {offsets = [0, 7], sizes = [48, 1], strides = [1, 1]} : vector<48x16xf32> to vector<48x1xf32>
    %138 = vector.broadcast %137 : vector<48x1xf32> to vector<48x8xf32>
    %139 = arith.mulf %138, %105 : vector<48x8xf32>
    %140 = arith.addf %136, %139 : vector<48x8xf32>
    %141 = vector.extract_strided_slice %107 {offsets = [0, 8], sizes = [48, 1], strides = [1, 1]} : vector<48x16xf32> to vector<48x1xf32>
    %142 = vector.broadcast %141 : vector<48x1xf32> to vector<48x8xf32>
    %143 = arith.mulf %142, %111 : vector<48x8xf32>
    %144 = arith.addf %140, %143 : vector<48x8xf32>
    %145 = vector.extract_strided_slice %122 {offsets = [0, 0], sizes = [47, 8], strides = [1, 1]} : vector<48x8xf32> to vector<47x8xf32>
    %146 = tpu.concatenate %8, %145 in 0 : vector<1x8xf32>, vector<47x8xf32> -> vector<48x8xf32>
    %147 = arith.mulf %146, %29 : vector<48x8xf32>
    %148 = vector.extract_strided_slice %144 {offsets = [1, 0], sizes = [47, 8], strides = [1, 1]} : vector<48x8xf32> to vector<47x8xf32>
    %149 = tpu.concatenate %148, %8 in 0 : vector<47x8xf32>, vector<1x8xf32> -> vector<48x8xf32>
    %150 = arith.mulf %149, %49 : vector<48x8xf32>
    %151 = vector.extract_strided_slice %107 {offsets = [0, 9], sizes = [48, 1], strides = [1, 1]} : vector<48x16xf32> to vector<48x1xf32>
    %152 = vector.broadcast %151 : vector<48x1xf32> to vector<48x8xf32>
    %153 = arith.addf %152, %133 : vector<48x8xf32>
    %154 = arith.addf %153, %147 : vector<48x8xf32>
    %155 = arith.addf %154, %150 : vector<48x8xf32>
    %cst_51 = arith.constant 0.000000e+00 : f32
    %156 = vector.broadcast %cst_51 : f32 to vector<48x8xf32>
    %157 = arith.maximumf %155, %156 : vector<48x8xf32>
    %c0_52 = arith.constant 0 : index
    %c0_53 = arith.constant 0 : index
    %c0_54 = arith.constant 0 : index
    %158 = vector.load %arg13[%c0_52, %c0_53, %c0_54] : memref<3x48x16xf32, #tpu.memory_space<vmem>>, vector<1x48x16xf32>
    %159 = vector.shape_cast %158 : vector<1x48x16xf32> to vector<48x16xf32>
    %160 = vector.extract_strided_slice %157 {offsets = [0, 0], sizes = [48, 7], strides = [1, 1]} : vector<48x8xf32> to vector<48x7xf32>
    %161 = tpu.concatenate %7, %160 in 1 : vector<48x1xf32>, vector<48x7xf32> -> vector<48x8xf32>
    %162 = vector.extract_strided_slice %157 {offsets = [0, 1], sizes = [48, 7], strides = [1, 1]} : vector<48x8xf32> to vector<48x7xf32>
    %163 = tpu.concatenate %162, %7 in 1 : vector<48x7xf32>, vector<48x1xf32> -> vector<48x8xf32>
    %164 = vector.extract_strided_slice %159 {offsets = [0, 0], sizes = [48, 1], strides = [1, 1]} : vector<48x16xf32> to vector<48x1xf32>
    %165 = vector.broadcast %164 : vector<48x1xf32> to vector<48x8xf32>
    %166 = arith.mulf %165, %161 : vector<48x8xf32>
    %167 = vector.extract_strided_slice %159 {offsets = [0, 1], sizes = [48, 1], strides = [1, 1]} : vector<48x16xf32> to vector<48x1xf32>
    %168 = vector.broadcast %167 : vector<48x1xf32> to vector<48x8xf32>
    %169 = arith.mulf %168, %157 : vector<48x8xf32>
    %170 = arith.addf %166, %169 : vector<48x8xf32>
    %171 = vector.extract_strided_slice %159 {offsets = [0, 2], sizes = [48, 1], strides = [1, 1]} : vector<48x16xf32> to vector<48x1xf32>
    %172 = vector.broadcast %171 : vector<48x1xf32> to vector<48x8xf32>
    %173 = arith.mulf %172, %163 : vector<48x8xf32>
    %174 = arith.addf %170, %173 : vector<48x8xf32>
    %175 = vector.extract_strided_slice %159 {offsets = [0, 3], sizes = [48, 1], strides = [1, 1]} : vector<48x16xf32> to vector<48x1xf32>
    %176 = vector.broadcast %175 : vector<48x1xf32> to vector<48x8xf32>
    %177 = arith.mulf %176, %161 : vector<48x8xf32>
    %178 = vector.extract_strided_slice %159 {offsets = [0, 4], sizes = [48, 1], strides = [1, 1]} : vector<48x16xf32> to vector<48x1xf32>
    %179 = vector.broadcast %178 : vector<48x1xf32> to vector<48x8xf32>
    %180 = arith.mulf %179, %157 : vector<48x8xf32>
    %181 = arith.addf %177, %180 : vector<48x8xf32>
    %182 = vector.extract_strided_slice %159 {offsets = [0, 5], sizes = [48, 1], strides = [1, 1]} : vector<48x16xf32> to vector<48x1xf32>
    %183 = vector.broadcast %182 : vector<48x1xf32> to vector<48x8xf32>
    %184 = arith.mulf %183, %163 : vector<48x8xf32>
    %185 = arith.addf %181, %184 : vector<48x8xf32>
    %186 = vector.extract_strided_slice %159 {offsets = [0, 6], sizes = [48, 1], strides = [1, 1]} : vector<48x16xf32> to vector<48x1xf32>
    %187 = vector.broadcast %186 : vector<48x1xf32> to vector<48x8xf32>
    %188 = arith.mulf %187, %161 : vector<48x8xf32>
    %189 = vector.extract_strided_slice %159 {offsets = [0, 7], sizes = [48, 1], strides = [1, 1]} : vector<48x16xf32> to vector<48x1xf32>
    %190 = vector.broadcast %189 : vector<48x1xf32> to vector<48x8xf32>
    %191 = arith.mulf %190, %157 : vector<48x8xf32>
    %192 = arith.addf %188, %191 : vector<48x8xf32>
    %193 = vector.extract_strided_slice %159 {offsets = [0, 8], sizes = [48, 1], strides = [1, 1]} : vector<48x16xf32> to vector<48x1xf32>
    %194 = vector.broadcast %193 : vector<48x1xf32> to vector<48x8xf32>
    %195 = arith.mulf %194, %163 : vector<48x8xf32>
    %196 = arith.addf %192, %195 : vector<48x8xf32>
    %197 = vector.extract_strided_slice %174 {offsets = [0, 0], sizes = [47, 8], strides = [1, 1]} : vector<48x8xf32> to vector<47x8xf32>
    %198 = tpu.concatenate %8, %197 in 0 : vector<1x8xf32>, vector<47x8xf32> -> vector<48x8xf32>
    %199 = arith.mulf %198, %29 : vector<48x8xf32>
    %200 = vector.extract_strided_slice %196 {offsets = [1, 0], sizes = [47, 8], strides = [1, 1]} : vector<48x8xf32> to vector<47x8xf32>
    %201 = tpu.concatenate %200, %8 in 0 : vector<47x8xf32>, vector<1x8xf32> -> vector<48x8xf32>
    %202 = arith.mulf %201, %49 : vector<48x8xf32>
    %203 = vector.extract_strided_slice %159 {offsets = [0, 9], sizes = [48, 1], strides = [1, 1]} : vector<48x16xf32> to vector<48x1xf32>
    %204 = vector.broadcast %203 : vector<48x1xf32> to vector<48x8xf32>
    %205 = arith.addf %204, %185 : vector<48x8xf32>
    %206 = arith.addf %205, %199 : vector<48x8xf32>
    %207 = arith.addf %206, %202 : vector<48x8xf32>
    %cst_55 = arith.constant 0.000000e+00 : f32
    %208 = vector.broadcast %cst_55 : f32 to vector<48x8xf32>
    %209 = arith.maximumf %207, %208 : vector<48x8xf32>
    %cst_56 = arith.constant dense<0.000000e+00> : vector<48xf32>
    %210 = vector.multi_reduction <add>, %209, %cst_56 [1] : vector<48x8xf32> to vector<48xf32>
    %211 = vector.shape_cast %210 : vector<48xf32> to vector<48x1xf32>
    %cst_57 = arith.constant 8.000000e+00 : f32
    %212 = vector.broadcast %cst_57 : f32 to vector<48x1xf32>
    %213 = arith.divf %211, %212 : vector<48x1xf32>
    %214 = vector.shape_cast %213 : vector<48x1xf32> to vector<48x1xf32>
    %215 = vector.broadcast %214 : vector<48x1xf32> to vector<48x8xf32>
    %c0_58 = arith.constant 0 : index
    %c0_59 = arith.constant 0 : index
    %c0_60 = arith.constant 0 : index
    %216 = vector.load %arg14[%c0_58, %c0_59, %c0_60] : memref<3x48x48xf32, #tpu.memory_space<vmem>>, vector<1x48x48xf32>
    %217 = vector.shape_cast %216 : vector<1x48x48xf32> to vector<48x48xf32>
    %cst_61 = arith.constant dense<0.000000e+00> : vector<48x8xf32>
    %218 = tpu.matmul %217, %215, %cst_61 {dimension_numbers = #tpu.dot_dimension_numbers<[1], [0], [0], [1], [0, 0, 1, 1], [], []>} : vector<48x48xf32>, vector<48x8xf32>, vector<48x8xf32> -> vector<48x8xf32>
    %c0_62 = arith.constant 0 : index
    %c0_63 = arith.constant 0 : index
    %c0_64 = arith.constant 0 : index
    %219 = vector.load %arg15[%c0_62, %c0_63, %c0_64] : memref<3x48x1xf32, #tpu.memory_space<vmem>>, vector<1x48x1xf32>
    %220 = vector.shape_cast %219 : vector<1x48x1xf32> to vector<48x1xf32>
    %221 = vector.broadcast %220 : vector<48x1xf32> to vector<48x8xf32>
    %222 = arith.addf %218, %221 : vector<48x8xf32>
    %cst_65 = arith.constant 0.000000e+00 : f32
    %223 = vector.broadcast %cst_65 : f32 to vector<48x8xf32>
    %224 = arith.maximumf %222, %223 : vector<48x8xf32>
    %c0_66 = arith.constant 0 : index
    %c0_67 = arith.constant 0 : index
    %c0_68 = arith.constant 0 : index
    %225 = vector.load %arg16[%c0_66, %c0_67, %c0_68] : memref<3x48x48xf32, #tpu.memory_space<vmem>>, vector<1x48x48xf32>
    %226 = vector.shape_cast %225 : vector<1x48x48xf32> to vector<48x48xf32>
    %cst_69 = arith.constant dense<0.000000e+00> : vector<48x8xf32>
    %227 = tpu.matmul %226, %224, %cst_69 {dimension_numbers = #tpu.dot_dimension_numbers<[1], [0], [0], [1], [0, 0, 1, 1], [], []>} : vector<48x48xf32>, vector<48x8xf32>, vector<48x8xf32> -> vector<48x8xf32>
    %c0_70 = arith.constant 0 : index
    %c0_71 = arith.constant 0 : index
    %c0_72 = arith.constant 0 : index
    %228 = vector.load %arg17[%c0_70, %c0_71, %c0_72] : memref<3x48x1xf32, #tpu.memory_space<vmem>>, vector<1x48x1xf32>
    %229 = vector.shape_cast %228 : vector<1x48x1xf32> to vector<48x1xf32>
    %230 = vector.broadcast %229 : vector<48x1xf32> to vector<48x8xf32>
    %231 = arith.addf %227, %230 : vector<48x8xf32>
    %232 = arith.negf %231 : vector<48x8xf32>
    %233 = math.exp %232 : vector<48x8xf32>
    %cst_73 = arith.constant 1.000000e+00 : f32
    %234 = vector.broadcast %cst_73 : f32 to vector<48x8xf32>
    %235 = arith.addf %234, %233 : vector<48x8xf32>
    %236 = arith.divf %234, %235 : vector<48x8xf32>
    %237 = arith.mulf %209, %236 : vector<48x8xf32>
    %cst_74 = arith.constant dense<0xFF800000> : vector<48xf32>
    %238 = vector.multi_reduction <maximumf>, %237, %cst_74 [1] : vector<48x8xf32> to vector<48xf32>
    %239 = vector.shape_cast %238 : vector<48xf32> to vector<48x1xf32>
    %240 = vector.broadcast %239 : vector<48x1xf32> to vector<48x8xf32>
    %241 = arith.subf %237, %240 : vector<48x8xf32>
    %242 = math.exp %241 : vector<48x8xf32>
    %cst_75 = arith.constant dense<0.000000e+00> : vector<48xf32>
    %243 = vector.multi_reduction <add>, %242, %cst_75 [1] : vector<48x8xf32> to vector<48xf32>
    %244 = vector.shape_cast %243 : vector<48xf32> to vector<48x1xf32>
    %245 = tpu.reciprocal %244 {approx = true} : vector<48x1xf32> -> vector<48x1xf32>
    %246 = vector.broadcast %245 : vector<48x1xf32> to vector<48x8xf32>
    %247 = arith.mulf %242, %246 : vector<48x8xf32>
    %248 = vector.extract_strided_slice %247 {offsets = [0, 0], sizes = [8, 8], strides = [1, 1]} : vector<48x8xf32> to vector<8x8xf32>
    %249 = arith.truncf %248 : vector<8x8xf32> to vector<8x8xbf16>
    %c0_76 = arith.constant 0 : index
    %c0_77 = arith.constant 0 : index
    %250 = vector.load %arg21[%c0_76, %c0_77] : memref<16x48xbf16, #tpu.memory_space<vmem>>, vector<8x8xbf16>
    tpu.vector_store %arg21[%c0_76, %c0_77], %249 {strides = array<i32>} : memref<16x48xbf16, #tpu.memory_space<vmem>>, vector<8x8xbf16>,
    %251 = vector.extract_strided_slice %247 {offsets = [8, 0], sizes = [8, 8], strides = [1, 1]} : vector<48x8xf32> to vector<8x8xf32>
    %252 = arith.truncf %251 : vector<8x8xf32> to vector<8x8xbf16>
    %c0_78 = arith.constant 0 : index
    %c16_79 = arith.constant 16 : index
    %253 = vector.load %arg21[%c0_78, %c16_79] : memref<16x48xbf16, #tpu.memory_space<vmem>>, vector<8x8xbf16>
    tpu.vector_store %arg21[%c0_78, %c16_79], %252 {strides = array<i32>} : memref<16x48xbf16, #tpu.memory_space<vmem>>, vector<8x8xbf16>,
    %254 = vector.extract_strided_slice %247 {offsets = [16, 0], sizes = [8, 8], strides = [1, 1]} : vector<48x8xf32> to vector<8x8xf32>
    %255 = arith.truncf %254 : vector<8x8xf32> to vector<8x8xbf16>
    %c0_80 = arith.constant 0 : index
    %c32_81 = arith.constant 32 : index
    %256 = vector.load %arg21[%c0_80, %c32_81] : memref<16x48xbf16, #tpu.memory_space<vmem>>, vector<8x8xbf16>
    tpu.vector_store %arg21[%c0_80, %c32_81], %255 {strides = array<i32>} : memref<16x48xbf16, #tpu.memory_space<vmem>>, vector<8x8xbf16>,
    %257 = vector.extract_strided_slice %247 {offsets = [24, 0], sizes = [8, 8], strides = [1, 1]} : vector<48x8xf32> to vector<8x8xf32>
    %258 = arith.truncf %257 : vector<8x8xf32> to vector<8x8xbf16>
    %c8_82 = arith.constant 8 : index
    %c8_83 = arith.constant 8 : index
    %259 = vector.load %arg21[%c8_82, %c8_83] : memref<16x48xbf16, #tpu.memory_space<vmem>>, vector<8x8xbf16>
    tpu.vector_store %arg21[%c8_82, %c8_83], %258 {strides = array<i32>} : memref<16x48xbf16, #tpu.memory_space<vmem>>, vector<8x8xbf16>,
    %260 = vector.extract_strided_slice %247 {offsets = [32, 0], sizes = [8, 8], strides = [1, 1]} : vector<48x8xf32> to vector<8x8xf32>
    %261 = arith.truncf %260 : vector<8x8xf32> to vector<8x8xbf16>
    %c8_84 = arith.constant 8 : index
    %c24_85 = arith.constant 24 : index
    %262 = vector.load %arg21[%c8_84, %c24_85] : memref<16x48xbf16, #tpu.memory_space<vmem>>, vector<8x8xbf16>
    tpu.vector_store %arg21[%c8_84, %c24_85], %261 {strides = array<i32>} : memref<16x48xbf16, #tpu.memory_space<vmem>>, vector<8x8xbf16>,
    %263 = vector.extract_strided_slice %247 {offsets = [40, 0], sizes = [8, 8], strides = [1, 1]} : vector<48x8xf32> to vector<8x8xf32>
    %264 = arith.truncf %263 : vector<8x8xf32> to vector<8x8xbf16>
    %c8_86 = arith.constant 8 : index
    %c40_87 = arith.constant 40 : index
    %265 = vector.load %arg21[%c8_86, %c40_87] : memref<16x48xbf16, #tpu.memory_space<vmem>>, vector<8x8xbf16>
    tpu.vector_store %arg21[%c8_86, %c40_87], %264 {strides = array<i32>} : memref<16x48xbf16, #tpu.memory_space<vmem>>, vector<8x8xbf16>,
    %c0_88 = arith.constant 0 : index
    %c0_89 = arith.constant 0 : index
    %266 = vector.load %arg21[%c0_88, %c0_89] : memref<16x48xbf16, #tpu.memory_space<vmem>>, vector<16x48xbf16>
    %c0_90 = arith.constant 0 : index
    %c0_91 = arith.constant 0 : index
    %267 = vector.load %arg20[%c0_90, %c0_91] : memref<48x192xbf16, #tpu.memory_space<vmem>>, vector<48x192xbf16>
    %cst_92 = arith.constant dense<0.000000e+00> : vector<16x192xf32>
    %268 = tpu.matmul %266, %267, %cst_92 {dimension_numbers = #tpu.dot_dimension_numbers<[1], [0], [0], [1], [0, 0, 1, 1], [], []>} : vector<16x48xbf16>, vector<48x192xbf16>, vector<16x192xf32> -> vector<16x192xf32>
    %269 = arith.truncf %268 : vector<16x192xf32> to vector<16x192xbf16>
    %c0_93 = arith.constant 0 : index
    %c0_94 = arith.constant 0 : index
    %c0_95 = arith.constant 0 : index
    %270 = vector.load %arg4[%c0_93, %c0_94, %c0_95] : memref<3x192x32xbf16, #tpu.memory_space<vmem>>, vector<1x192x32xbf16>
    %271 = vector.shape_cast %270 : vector<1x192x32xbf16> to vector<192x32xbf16>
    %cst_96 = arith.constant dense<0.000000e+00> : vector<16x32xf32>
    %272 = tpu.matmul %269, %271, %cst_96 {dimension_numbers = #tpu.dot_dimension_numbers<[1], [0], [0], [1], [0, 0, 1, 1], [], []>} : vector<16x192xbf16>, vector<192x32xbf16>, vector<16x32xf32> -> vector<16x32xf32>
    %c0_97 = arith.constant 0 : index
    %c0_98 = arith.constant 0 : index
    %c0_99 = arith.constant 0 : index
    %273 = vector.load %arg5[%c0_97, %c0_98, %c0_99] : memref<3x1x32xf32, #tpu.memory_space<vmem>>, vector<1x1x32xf32>
    %274 = vector.shape_cast %273 : vector<1x1x32xf32> to vector<1x32xf32>
    %275 = vector.broadcast %274 : vector<1x32xf32> to vector<16x32xf32>
    %276 = arith.addf %272, %275 : vector<16x32xf32>
    %277 = arith.addf %0, %276 : vector<16x32xf32>
    %c0_100 = arith.constant 0 : index
    %c0_101 = arith.constant 0 : index
    %c0_102 = arith.constant 0 : index
    %278 = vector.load %arg6[%c0_100, %c0_101, %c0_102] : memref<3x1x32xf32, #tpu.memory_space<vmem>>, vector<1x1x32xf32>
    %279 = vector.shape_cast %278 : vector<1x1x32xf32> to vector<1x32xf32>
    %c0_103 = arith.constant 0 : index
    %c0_104 = arith.constant 0 : index
    %c0_105 = arith.constant 0 : index
    %280 = vector.load %arg7[%c0_103, %c0_104, %c0_105] : memref<3x1x32xf32, #tpu.memory_space<vmem>>, vector<1x1x32xf32>
    %281 = vector.shape_cast %280 : vector<1x1x32xf32> to vector<1x32xf32>
    %cst_106 = arith.constant dense<0.000000e+00> : vector<16xf32>
    %282 = vector.multi_reduction <add>, %277, %cst_106 [1] : vector<16x32xf32> to vector<16xf32>
    %283 = vector.shape_cast %282 : vector<16xf32> to vector<16x1xf32>
    %cst_107 = arith.constant 3.200000e+01 : f32
    %284 = vector.broadcast %cst_107 : f32 to vector<16x1xf32>
    %285 = arith.divf %283, %284 : vector<16x1xf32>
    %286 = vector.broadcast %285 : vector<16x1xf32> to vector<16x32xf32>
    %287 = arith.subf %277, %286 : vector<16x32xf32>
    %288 = arith.mulf %287, %287 : vector<16x32xf32>
    %cst_108 = arith.constant dense<0.000000e+00> : vector<16xf32>
    %289 = vector.multi_reduction <add>, %288, %cst_108 [1] : vector<16x32xf32> to vector<16xf32>
    %290 = vector.shape_cast %289 : vector<16xf32> to vector<16x1xf32>
    %cst_109 = arith.constant 3.200000e+01 : f32
    %291 = vector.broadcast %cst_109 : f32 to vector<16x1xf32>
    %292 = arith.divf %290, %291 : vector<16x1xf32>
    %293 = vector.broadcast %285 : vector<16x1xf32> to vector<16x32xf32>
    %294 = arith.subf %277, %293 : vector<16x32xf32>
    %cst_110 = arith.constant 9.99999974E-6 : f32
    %295 = vector.broadcast %cst_110 : f32 to vector<16x1xf32>
    %296 = arith.addf %292, %295 : vector<16x1xf32>
    %297 = math.rsqrt %296 : vector<16x1xf32>
    %298 = vector.broadcast %297 : vector<16x1xf32> to vector<16x32xf32>
    %299 = arith.mulf %294, %298 : vector<16x32xf32>
    %300 = vector.broadcast %279 : vector<1x32xf32> to vector<16x32xf32>
    %301 = arith.mulf %299, %300 : vector<16x32xf32>
    %302 = vector.broadcast %281 : vector<1x32xf32> to vector<16x32xf32>
    %303 = arith.addf %301, %302 : vector<16x32xf32>
    %304 = arith.truncf %303 : vector<16x32xf32> to vector<16x32xbf16>
    %c0_111 = arith.constant 0 : index
    %c0_112 = arith.constant 0 : index
    %c0_113 = arith.constant 0 : index
    %305 = vector.load %arg8[%c0_111, %c0_112, %c0_113] : memref<3x32x256xbf16, #tpu.memory_space<vmem>>, vector<1x32x256xbf16>
    %306 = vector.shape_cast %305 : vector<1x32x256xbf16> to vector<32x256xbf16>
    %cst_114 = arith.constant dense<0.000000e+00> : vector<16x256xf32>
    %307 = tpu.matmul %304, %306, %cst_114 {dimension_numbers = #tpu.dot_dimension_numbers<[1], [0], [0], [1], [0, 0, 1, 1], [], []>} : vector<16x32xbf16>, vector<32x256xbf16>, vector<16x256xf32> -> vector<16x256xf32>
    %c0_115 = arith.constant 0 : index
    %c0_116 = arith.constant 0 : index
    %c0_117 = arith.constant 0 : index
    %308 = vector.load %arg9[%c0_115, %c0_116, %c0_117] : memref<3x1x256xf32, #tpu.memory_space<vmem>>, vector<1x1x256xf32>
    %309 = vector.shape_cast %308 : vector<1x1x256xf32> to vector<1x256xf32>
    %310 = vector.broadcast %309 : vector<1x256xf32> to vector<16x256xf32>
    %311 = arith.addf %307, %310 : vector<16x256xf32>
    %cst_118 = arith.constant 5.000000e-01 : f32
    %312 = vector.broadcast %cst_118 : f32 to vector<16x256xf32>
    %313 = arith.mulf %312, %311 : vector<16x256xf32>
    %cst_119 = arith.constant 4.471500e-02 : f32
    %314 = vector.broadcast %cst_119 : f32 to vector<16x256xf32>
    %315 = arith.mulf %314, %311 : vector<16x256xf32>
    %316 = arith.mulf %315, %311 : vector<16x256xf32>
    %317 = arith.mulf %316, %311 : vector<16x256xf32>
    %318 = arith.addf %311, %317 : vector<16x256xf32>
    %cst_120 = arith.constant 0.797884583 : f32
    %319 = vector.broadcast %cst_120 : f32 to vector<16x256xf32>
    %320 = arith.mulf %319, %318 : vector<16x256xf32>
    %321 = math.tanh %320 : vector<16x256xf32>
    %cst_121 = arith.constant 1.000000e+00 : f32
    %322 = vector.broadcast %cst_121 : f32 to vector<16x256xf32>
    %323 = arith.addf %322, %321 : vector<16x256xf32>
    %324 = arith.mulf %313, %323 : vector<16x256xf32>
    %325 = arith.truncf %324 : vector<16x256xf32> to vector<16x256xbf16>
    %c0_122 = arith.constant 0 : index
    %c0_123 = arith.constant 0 : index
    %c0_124 = arith.constant 0 : index
    %326 = vector.load %arg10[%c0_122, %c0_123, %c0_124] : memref<3x256x32xbf16, #tpu.memory_space<vmem>>, vector<1x256x32xbf16>
    %327 = vector.shape_cast %326 : vector<1x256x32xbf16> to vector<256x32xbf16>
    %cst_125 = arith.constant dense<0.000000e+00> : vector<16x32xf32>
    %328 = tpu.matmul %325, %327, %cst_125 {dimension_numbers = #tpu.dot_dimension_numbers<[1], [0], [0], [1], [0, 0, 1, 1], [], []>} : vector<16x256xbf16>, vector<256x32xbf16>, vector<16x32xf32> -> vector<16x32xf32>
    %c0_126 = arith.constant 0 : index
    %c0_127 = arith.constant 0 : index
    %c0_128 = arith.constant 0 : index
    %329 = vector.load %arg11[%c0_126, %c0_127, %c0_128] : memref<3x1x32xf32, #tpu.memory_space<vmem>>, vector<1x1x32xf32>
    %330 = vector.shape_cast %329 : vector<1x1x32xf32> to vector<1x32xf32>
    %331 = vector.broadcast %330 : vector<1x32xf32> to vector<16x32xf32>
    %332 = arith.addf %328, %331 : vector<16x32xf32>
    %333 = arith.addf %277, %332 : vector<16x32xf32>
    %c1 = arith.constant 1 : index
    %c0_129 = arith.constant 0 : index
    %c0_130 = arith.constant 0 : index
    %334 = vector.load %arg1[%c1, %c0_129, %c0_130] : memref<3x1x32xf32, #tpu.memory_space<vmem>>, vector<1x1x32xf32>
    %335 = vector.shape_cast %334 : vector<1x1x32xf32> to vector<1x32xf32>
    %c1_131 = arith.constant 1 : index
    %c0_132 = arith.constant 0 : index
    %c0_133 = arith.constant 0 : index
    %336 = vector.load %arg2[%c1_131, %c0_132, %c0_133] : memref<3x1x32xf32, #tpu.memory_space<vmem>>, vector<1x1x32xf32>
    %337 = vector.shape_cast %336 : vector<1x1x32xf32> to vector<1x32xf32>
    %cst_134 = arith.constant dense<0.000000e+00> : vector<16xf32>
    %338 = vector.multi_reduction <add>, %333, %cst_134 [1] : vector<16x32xf32> to vector<16xf32>
    %339 = vector.shape_cast %338 : vector<16xf32> to vector<16x1xf32>
    %cst_135 = arith.constant 3.200000e+01 : f32
    %340 = vector.broadcast %cst_135 : f32 to vector<16x1xf32>
    %341 = arith.divf %339, %340 : vector<16x1xf32>
    %342 = vector.broadcast %341 : vector<16x1xf32> to vector<16x32xf32>
    %343 = arith.subf %333, %342 : vector<16x32xf32>
    %344 = arith.mulf %343, %343 : vector<16x32xf32>
    %cst_136 = arith.constant dense<0.000000e+00> : vector<16xf32>
    %345 = vector.multi_reduction <add>, %344, %cst_136 [1] : vector<16x32xf32> to vector<16xf32>
    %346 = vector.shape_cast %345 : vector<16xf32> to vector<16x1xf32>
    %cst_137 = arith.constant 3.200000e+01 : f32
    %347 = vector.broadcast %cst_137 : f32 to vector<16x1xf32>
    %348 = arith.divf %346, %347 : vector<16x1xf32>
    %349 = vector.broadcast %341 : vector<16x1xf32> to vector<16x32xf32>
    %350 = arith.subf %333, %349 : vector<16x32xf32>
    %cst_138 = arith.constant 9.99999974E-6 : f32
    %351 = vector.broadcast %cst_138 : f32 to vector<16x1xf32>
    %352 = arith.addf %348, %351 : vector<16x1xf32>
    %353 = math.rsqrt %352 : vector<16x1xf32>
    %354 = vector.broadcast %353 : vector<16x1xf32> to vector<16x32xf32>
    %355 = arith.mulf %350, %354 : vector<16x32xf32>
    %356 = vector.broadcast %335 : vector<1x32xf32> to vector<16x32xf32>
    %357 = arith.mulf %355, %356 : vector<16x32xf32>
    %358 = vector.broadcast %337 : vector<1x32xf32> to vector<16x32xf32>
    %359 = arith.addf %357, %358 : vector<16x32xf32>
    %360 = arith.truncf %359 : vector<16x32xf32> to vector<16x32xbf16>
    %c1_139 = arith.constant 1 : index
    %c0_140 = arith.constant 0 : index
    %c0_141 = arith.constant 0 : index
    %361 = vector.load %arg3[%c1_139, %c0_140, %c0_141] : memref<3x32x576xbf16, #tpu.memory_space<vmem>>, vector<1x32x576xbf16>
    %362 = vector.shape_cast %361 : vector<1x32x576xbf16> to vector<32x576xbf16>
    %cst_142 = arith.constant dense<0.000000e+00> : vector<16x576xf32>
    %363 = tpu.matmul %360, %362, %cst_142 {dimension_numbers = #tpu.dot_dimension_numbers<[1], [0], [0], [1], [0, 0, 1, 1], [], []>} : vector<16x32xbf16>, vector<32x576xbf16>, vector<16x576xf32> -> vector<16x576xf32>
    %364 = arith.truncf %363 : vector<16x576xf32> to vector<16x576xbf16>
    %365 = vector.extract_strided_slice %364 {offsets = [0, 0], sizes = [8, 64], strides = [1, 1]} : vector<16x576xbf16> to vector<8x64xbf16>
    %c0_143 = arith.constant 0 : index
    %c0_144 = arith.constant 0 : index
    %366 = vector.load %arg19[%c0_143, %c0_144] : memref<48x384xbf16, #tpu.memory_space<vmem>>, vector<8x64xbf16>
    tpu.vector_store %arg19[%c0_143, %c0_144], %365 {strides = array<i32>} : memref<48x384xbf16, #tpu.memory_space<vmem>>, vector<8x64xbf16>,
    %367 = vector.extract_strided_slice %364 {offsets = [0, 64], sizes = [8, 64], strides = [1, 1]} : vector<16x576xbf16> to vector<8x64xbf16>
    %c8_145 = arith.constant 8 : index
    %c64_146 = arith.constant 64 : index
    %368 = vector.load %arg19[%c8_145, %c64_146] : memref<48x384xbf16, #tpu.memory_space<vmem>>, vector<8x64xbf16>
    tpu.vector_store %arg19[%c8_145, %c64_146], %367 {strides = array<i32>} : memref<48x384xbf16, #tpu.memory_space<vmem>>, vector<8x64xbf16>,
    %369 = vector.extract_strided_slice %364 {offsets = [0, 128], sizes = [8, 64], strides = [1, 1]} : vector<16x576xbf16> to vector<8x64xbf16>
    %c16_147 = arith.constant 16 : index
    %c128_148 = arith.constant 128 : index
    %370 = vector.load %arg19[%c16_147, %c128_148] : memref<48x384xbf16, #tpu.memory_space<vmem>>, vector<8x64xbf16>
    tpu.vector_store %arg19[%c16_147, %c128_148], %369 {strides = array<i32>} : memref<48x384xbf16, #tpu.memory_space<vmem>>, vector<8x64xbf16>,
    %371 = vector.extract_strided_slice %364 {offsets = [8, 0], sizes = [8, 64], strides = [1, 1]} : vector<16x576xbf16> to vector<8x64xbf16>
    %c24_149 = arith.constant 24 : index
    %c192_150 = arith.constant 192 : index
    %372 = vector.load %arg19[%c24_149, %c192_150] : memref<48x384xbf16, #tpu.memory_space<vmem>>, vector<8x64xbf16>
    tpu.vector_store %arg19[%c24_149, %c192_150], %371 {strides = array<i32>} : memref<48x384xbf16, #tpu.memory_space<vmem>>, vector<8x64xbf16>,
    %373 = vector.extract_strided_slice %364 {offsets = [8, 64], sizes = [8, 64], strides = [1, 1]} : vector<16x576xbf16> to vector<8x64xbf16>
    %c32_151 = arith.constant 32 : index
    %c256_152 = arith.constant 256 : index
    %374 = vector.load %arg19[%c32_151, %c256_152] : memref<48x384xbf16, #tpu.memory_space<vmem>>, vector<8x64xbf16>
    tpu.vector_store %arg19[%c32_151, %c256_152], %373 {strides = array<i32>} : memref<48x384xbf16, #tpu.memory_space<vmem>>, vector<8x64xbf16>,
    %375 = vector.extract_strided_slice %364 {offsets = [8, 128], sizes = [8, 64], strides = [1, 1]} : vector<16x576xbf16> to vector<8x64xbf16>
    %c40_153 = arith.constant 40 : index
    %c320_154 = arith.constant 320 : index
    %376 = vector.load %arg19[%c40_153, %c320_154] : memref<48x384xbf16, #tpu.memory_space<vmem>>, vector<8x64xbf16>
    tpu.vector_store %arg19[%c40_153, %c320_154], %375 {strides = array<i32>} : memref<48x384xbf16, #tpu.memory_space<vmem>>, vector<8x64xbf16>,
    %377 = vector.extract_strided_slice %364 {offsets = [0, 384], sizes = [16, 64], strides = [1, 1]} : vector<16x576xbf16> to vector<16x64xbf16>
    %c0_155 = arith.constant 0 : index
    %c0_156 = arith.constant 0 : index
    %378 = vector.load %arg20[%c0_155, %c0_156] : memref<48x192xbf16, #tpu.memory_space<vmem>>, vector<16x64xbf16>
    tpu.vector_store %arg20[%c0_155, %c0_156], %377 {strides = array<i32>} : memref<48x192xbf16, #tpu.memory_space<vmem>>, vector<16x64xbf16>,
    %379 = vector.extract_strided_slice %364 {offsets = [0, 448], sizes = [16, 64], strides = [1, 1]} : vector<16x576xbf16> to vector<16x64xbf16>
    %c16_157 = arith.constant 16 : index
    %c64_158 = arith.constant 64 : index
    %380 = vector.load %arg20[%c16_157, %c64_158] : memref<48x192xbf16, #tpu.memory_space<vmem>>, vector<16x64xbf16>
    tpu.vector_store %arg20[%c16_157, %c64_158], %379 {strides = array<i32>} : memref<48x192xbf16, #tpu.memory_space<vmem>>, vector<16x64xbf16>,
    %381 = vector.extract_strided_slice %364 {offsets = [0, 512], sizes = [16, 64], strides = [1, 1]} : vector<16x576xbf16> to vector<16x64xbf16>
    %c32_159 = arith.constant 32 : index
    %c128_160 = arith.constant 128 : index
    %382 = vector.load %arg20[%c32_159, %c128_160] : memref<48x192xbf16, #tpu.memory_space<vmem>>, vector<16x64xbf16>
    tpu.vector_store %arg20[%c32_159, %c128_160], %381 {strides = array<i32>} : memref<48x192xbf16, #tpu.memory_space<vmem>>, vector<16x64xbf16>,
    %383 = vector.extract_strided_slice %364 {offsets = [0, 192], sizes = [8, 192], strides = [1, 1]} : vector<16x576xbf16> to vector<8x192xbf16>
    %384 = vector.extract_strided_slice %364 {offsets = [8, 192], sizes = [8, 192], strides = [1, 1]} : vector<16x576xbf16> to vector<8x192xbf16>
    %385 = tpu.concatenate %383, %384 in 1 : vector<8x192xbf16>, vector<8x192xbf16> -> vector<8x384xbf16>
    %c0_161 = arith.constant 0 : index
    %c0_162 = arith.constant 0 : index
    %386 = vector.load %arg19[%c0_161, %c0_162] : memref<48x384xbf16, #tpu.memory_space<vmem>>, vector<48x384xbf16>
    %cst_163 = arith.constant dense<0.000000e+00> : vector<48x8xf32>
    %387 = tpu.matmul %386, %385, %cst_163 {dimension_numbers = #tpu.dot_dimension_numbers<[1], [1], [0], [0], [0, 0, 1, 0], [], []>} : vector<48x384xbf16>, vector<8x384xbf16>, vector<48x8xf32> -> vector<48x8xf32>
    %cst_164 = arith.constant 1.250000e-01 : f32
    %388 = vector.broadcast %cst_164 : f32 to vector<48x8xf32>
    %389 = arith.mulf %387, %388 : vector<48x8xf32>
    %c1_165 = arith.constant 1 : index
    %c0_166 = arith.constant 0 : index
    %c0_167 = arith.constant 0 : index
    %390 = vector.load %arg12[%c1_165, %c0_166, %c0_167] : memref<3x48x16xf32, #tpu.memory_space<vmem>>, vector<1x48x16xf32>
    %391 = vector.shape_cast %390 : vector<1x48x16xf32> to vector<48x16xf32>
    %392 = vector.extract_strided_slice %389 {offsets = [0, 0], sizes = [48, 7], strides = [1, 1]} : vector<48x8xf32> to vector<48x7xf32>
    %393 = tpu.concatenate %7, %392 in 1 : vector<48x1xf32>, vector<48x7xf32> -> vector<48x8xf32>
    %394 = vector.extract_strided_slice %389 {offsets = [0, 1], sizes = [48, 7], strides = [1, 1]} : vector<48x8xf32> to vector<48x7xf32>
    %395 = tpu.concatenate %394, %7 in 1 : vector<48x7xf32>, vector<48x1xf32> -> vector<48x8xf32>
    %396 = vector.extract_strided_slice %391 {offsets = [0, 0], sizes = [48, 1], strides = [1, 1]} : vector<48x16xf32> to vector<48x1xf32>
    %397 = vector.broadcast %396 : vector<48x1xf32> to vector<48x8xf32>
    %398 = arith.mulf %397, %393 : vector<48x8xf32>
    %399 = vector.extract_strided_slice %391 {offsets = [0, 1], sizes = [48, 1], strides = [1, 1]} : vector<48x16xf32> to vector<48x1xf32>
    %400 = vector.broadcast %399 : vector<48x1xf32> to vector<48x8xf32>
    %401 = arith.mulf %400, %389 : vector<48x8xf32>
    %402 = arith.addf %398, %401 : vector<48x8xf32>
    %403 = vector.extract_strided_slice %391 {offsets = [0, 2], sizes = [48, 1], strides = [1, 1]} : vector<48x16xf32> to vector<48x1xf32>
    %404 = vector.broadcast %403 : vector<48x1xf32> to vector<48x8xf32>
    %405 = arith.mulf %404, %395 : vector<48x8xf32>
    %406 = arith.addf %402, %405 : vector<48x8xf32>
    %407 = vector.extract_strided_slice %391 {offsets = [0, 3], sizes = [48, 1], strides = [1, 1]} : vector<48x16xf32> to vector<48x1xf32>
    %408 = vector.broadcast %407 : vector<48x1xf32> to vector<48x8xf32>
    %409 = arith.mulf %408, %393 : vector<48x8xf32>
    %410 = vector.extract_strided_slice %391 {offsets = [0, 4], sizes = [48, 1], strides = [1, 1]} : vector<48x16xf32> to vector<48x1xf32>
    %411 = vector.broadcast %410 : vector<48x1xf32> to vector<48x8xf32>
    %412 = arith.mulf %411, %389 : vector<48x8xf32>
    %413 = arith.addf %409, %412 : vector<48x8xf32>
    %414 = vector.extract_strided_slice %391 {offsets = [0, 5], sizes = [48, 1], strides = [1, 1]} : vector<48x16xf32> to vector<48x1xf32>
    %415 = vector.broadcast %414 : vector<48x1xf32> to vector<48x8xf32>
    %416 = arith.mulf %415, %395 : vector<48x8xf32>
    %417 = arith.addf %413, %416 : vector<48x8xf32>
    %418 = vector.extract_strided_slice %391 {offsets = [0, 6], sizes = [48, 1], strides = [1, 1]} : vector<48x16xf32> to vector<48x1xf32>
    %419 = vector.broadcast %418 : vector<48x1xf32> to vector<48x8xf32>
    %420 = arith.mulf %419, %393 : vector<48x8xf32>
    %421 = vector.extract_strided_slice %391 {offsets = [0, 7], sizes = [48, 1], strides = [1, 1]} : vector<48x16xf32> to vector<48x1xf32>
    %422 = vector.broadcast %421 : vector<48x1xf32> to vector<48x8xf32>
    %423 = arith.mulf %422, %389 : vector<48x8xf32>
    %424 = arith.addf %420, %423 : vector<48x8xf32>
    %425 = vector.extract_strided_slice %391 {offsets = [0, 8], sizes = [48, 1], strides = [1, 1]} : vector<48x16xf32> to vector<48x1xf32>
    %426 = vector.broadcast %425 : vector<48x1xf32> to vector<48x8xf32>
    %427 = arith.mulf %426, %395 : vector<48x8xf32>
    %428 = arith.addf %424, %427 : vector<48x8xf32>
    %429 = vector.extract_strided_slice %406 {offsets = [0, 0], sizes = [47, 8], strides = [1, 1]} : vector<48x8xf32> to vector<47x8xf32>
    %430 = tpu.concatenate %8, %429 in 0 : vector<1x8xf32>, vector<47x8xf32> -> vector<48x8xf32>
    %431 = arith.mulf %430, %29 : vector<48x8xf32>
    %432 = vector.extract_strided_slice %428 {offsets = [1, 0], sizes = [47, 8], strides = [1, 1]} : vector<48x8xf32> to vector<47x8xf32>
    %433 = tpu.concatenate %432, %8 in 0 : vector<47x8xf32>, vector<1x8xf32> -> vector<48x8xf32>
    %434 = arith.mulf %433, %49 : vector<48x8xf32>
    %435 = vector.extract_strided_slice %391 {offsets = [0, 9], sizes = [48, 1], strides = [1, 1]} : vector<48x16xf32> to vector<48x1xf32>
    %436 = vector.broadcast %435 : vector<48x1xf32> to vector<48x8xf32>
    %437 = arith.addf %436, %417 : vector<48x8xf32>
    %438 = arith.addf %437, %431 : vector<48x8xf32>
    %439 = arith.addf %438, %434 : vector<48x8xf32>
    %cst_168 = arith.constant 0.000000e+00 : f32
    %440 = vector.broadcast %cst_168 : f32 to vector<48x8xf32>
    %441 = arith.maximumf %439, %440 : vector<48x8xf32>
    %c1_169 = arith.constant 1 : index
    %c0_170 = arith.constant 0 : index
    %c0_171 = arith.constant 0 : index
    %442 = vector.load %arg13[%c1_169, %c0_170, %c0_171] : memref<3x48x16xf32, #tpu.memory_space<vmem>>, vector<1x48x16xf32>
    %443 = vector.shape_cast %442 : vector<1x48x16xf32> to vector<48x16xf32>
    %444 = vector.extract_strided_slice %441 {offsets = [0, 0], sizes = [48, 7], strides = [1, 1]} : vector<48x8xf32> to vector<48x7xf32>
    %445 = tpu.concatenate %7, %444 in 1 : vector<48x1xf32>, vector<48x7xf32> -> vector<48x8xf32>
    %446 = vector.extract_strided_slice %441 {offsets = [0, 1], sizes = [48, 7], strides = [1, 1]} : vector<48x8xf32> to vector<48x7xf32>
    %447 = tpu.concatenate %446, %7 in 1 : vector<48x7xf32>, vector<48x1xf32> -> vector<48x8xf32>
    %448 = vector.extract_strided_slice %443 {offsets = [0, 0], sizes = [48, 1], strides = [1, 1]} : vector<48x16xf32> to vector<48x1xf32>
    %449 = vector.broadcast %448 : vector<48x1xf32> to vector<48x8xf32>
    %450 = arith.mulf %449, %445 : vector<48x8xf32>
    %451 = vector.extract_strided_slice %443 {offsets = [0, 1], sizes = [48, 1], strides = [1, 1]} : vector<48x16xf32> to vector<48x1xf32>
    %452 = vector.broadcast %451 : vector<48x1xf32> to vector<48x8xf32>
    %453 = arith.mulf %452, %441 : vector<48x8xf32>
    %454 = arith.addf %450, %453 : vector<48x8xf32>
    %455 = vector.extract_strided_slice %443 {offsets = [0, 2], sizes = [48, 1], strides = [1, 1]} : vector<48x16xf32> to vector<48x1xf32>
    %456 = vector.broadcast %455 : vector<48x1xf32> to vector<48x8xf32>
    %457 = arith.mulf %456, %447 : vector<48x8xf32>
    %458 = arith.addf %454, %457 : vector<48x8xf32>
    %459 = vector.extract_strided_slice %443 {offsets = [0, 3], sizes = [48, 1], strides = [1, 1]} : vector<48x16xf32> to vector<48x1xf32>
    %460 = vector.broadcast %459 : vector<48x1xf32> to vector<48x8xf32>
    %461 = arith.mulf %460, %445 : vector<48x8xf32>
    %462 = vector.extract_strided_slice %443 {offsets = [0, 4], sizes = [48, 1], strides = [1, 1]} : vector<48x16xf32> to vector<48x1xf32>
    %463 = vector.broadcast %462 : vector<48x1xf32> to vector<48x8xf32>
    %464 = arith.mulf %463, %441 : vector<48x8xf32>
    %465 = arith.addf %461, %464 : vector<48x8xf32>
    %466 = vector.extract_strided_slice %443 {offsets = [0, 5], sizes = [48, 1], strides = [1, 1]} : vector<48x16xf32> to vector<48x1xf32>
    %467 = vector.broadcast %466 : vector<48x1xf32> to vector<48x8xf32>
    %468 = arith.mulf %467, %447 : vector<48x8xf32>
    %469 = arith.addf %465, %468 : vector<48x8xf32>
    %470 = vector.extract_strided_slice %443 {offsets = [0, 6], sizes = [48, 1], strides = [1, 1]} : vector<48x16xf32> to vector<48x1xf32>
    %471 = vector.broadcast %470 : vector<48x1xf32> to vector<48x8xf32>
    %472 = arith.mulf %471, %445 : vector<48x8xf32>
    %473 = vector.extract_strided_slice %443 {offsets = [0, 7], sizes = [48, 1], strides = [1, 1]} : vector<48x16xf32> to vector<48x1xf32>
    %474 = vector.broadcast %473 : vector<48x1xf32> to vector<48x8xf32>
    %475 = arith.mulf %474, %441 : vector<48x8xf32>
    %476 = arith.addf %472, %475 : vector<48x8xf32>
    %477 = vector.extract_strided_slice %443 {offsets = [0, 8], sizes = [48, 1], strides = [1, 1]} : vector<48x16xf32> to vector<48x1xf32>
    %478 = vector.broadcast %477 : vector<48x1xf32> to vector<48x8xf32>
    %479 = arith.mulf %478, %447 : vector<48x8xf32>
    %480 = arith.addf %476, %479 : vector<48x8xf32>
    %481 = vector.extract_strided_slice %458 {offsets = [0, 0], sizes = [47, 8], strides = [1, 1]} : vector<48x8xf32> to vector<47x8xf32>
    %482 = tpu.concatenate %8, %481 in 0 : vector<1x8xf32>, vector<47x8xf32> -> vector<48x8xf32>
    %483 = arith.mulf %482, %29 : vector<48x8xf32>
    %484 = vector.extract_strided_slice %480 {offsets = [1, 0], sizes = [47, 8], strides = [1, 1]} : vector<48x8xf32> to vector<47x8xf32>
    %485 = tpu.concatenate %484, %8 in 0 : vector<47x8xf32>, vector<1x8xf32> -> vector<48x8xf32>
    %486 = arith.mulf %485, %49 : vector<48x8xf32>
    %487 = vector.extract_strided_slice %443 {offsets = [0, 9], sizes = [48, 1], strides = [1, 1]} : vector<48x16xf32> to vector<48x1xf32>
    %488 = vector.broadcast %487 : vector<48x1xf32> to vector<48x8xf32>
    %489 = arith.addf %488, %469 : vector<48x8xf32>
    %490 = arith.addf %489, %483 : vector<48x8xf32>
    %491 = arith.addf %490, %486 : vector<48x8xf32>
    %cst_172 = arith.constant 0.000000e+00 : f32
    %492 = vector.broadcast %cst_172 : f32 to vector<48x8xf32>
    %493 = arith.maximumf %491, %492 : vector<48x8xf32>
    %cst_173 = arith.constant dense<0.000000e+00> : vector<48xf32>
    %494 = vector.multi_reduction <add>, %493, %cst_173 [1] : vector<48x8xf32> to vector<48xf32>
    %495 = vector.shape_cast %494 : vector<48xf32> to vector<48x1xf32>
    %cst_174 = arith.constant 8.000000e+00 : f32
    %496 = vector.broadcast %cst_174 : f32 to vector<48x1xf32>
    %497 = arith.divf %495, %496 : vector<48x1xf32>
    %498 = vector.shape_cast %497 : vector<48x1xf32> to vector<48x1xf32>
    %499 = vector.broadcast %498 : vector<48x1xf32> to vector<48x8xf32>
    %c1_175 = arith.constant 1 : index
    %c0_176 = arith.constant 0 : index
    %c0_177 = arith.constant 0 : index
    %500 = vector.load %arg14[%c1_175, %c0_176, %c0_177] : memref<3x48x48xf32, #tpu.memory_space<vmem>>, vector<1x48x48xf32>
    %501 = vector.shape_cast %500 : vector<1x48x48xf32> to vector<48x48xf32>
    %cst_178 = arith.constant dense<0.000000e+00> : vector<48x8xf32>
    %502 = tpu.matmul %501, %499, %cst_178 {dimension_numbers = #tpu.dot_dimension_numbers<[1], [0], [0], [1], [0, 0, 1, 1], [], []>} : vector<48x48xf32>, vector<48x8xf32>, vector<48x8xf32> -> vector<48x8xf32>
    %c1_179 = arith.constant 1 : index
    %c0_180 = arith.constant 0 : index
    %c0_181 = arith.constant 0 : index
    %503 = vector.load %arg15[%c1_179, %c0_180, %c0_181] : memref<3x48x1xf32, #tpu.memory_space<vmem>>, vector<1x48x1xf32>
    %504 = vector.shape_cast %503 : vector<1x48x1xf32> to vector<48x1xf32>
    %505 = vector.broadcast %504 : vector<48x1xf32> to vector<48x8xf32>
    %506 = arith.addf %502, %505 : vector<48x8xf32>
    %cst_182 = arith.constant 0.000000e+00 : f32
    %507 = vector.broadcast %cst_182 : f32 to vector<48x8xf32>
    %508 = arith.maximumf %506, %507 : vector<48x8xf32>
    %c1_183 = arith.constant 1 : index
    %c0_184 = arith.constant 0 : index
    %c0_185 = arith.constant 0 : index
    %509 = vector.load %arg16[%c1_183, %c0_184, %c0_185] : memref<3x48x48xf32, #tpu.memory_space<vmem>>, vector<1x48x48xf32>
    %510 = vector.shape_cast %509 : vector<1x48x48xf32> to vector<48x48xf32>
    %cst_186 = arith.constant dense<0.000000e+00> : vector<48x8xf32>
    %511 = tpu.matmul %510, %508, %cst_186 {dimension_numbers = #tpu.dot_dimension_numbers<[1], [0], [0], [1], [0, 0, 1, 1], [], []>} : vector<48x48xf32>, vector<48x8xf32>, vector<48x8xf32> -> vector<48x8xf32>
    %c1_187 = arith.constant 1 : index
    %c0_188 = arith.constant 0 : index
    %c0_189 = arith.constant 0 : index
    %512 = vector.load %arg17[%c1_187, %c0_188, %c0_189] : memref<3x48x1xf32, #tpu.memory_space<vmem>>, vector<1x48x1xf32>
    %513 = vector.shape_cast %512 : vector<1x48x1xf32> to vector<48x1xf32>
    %514 = vector.broadcast %513 : vector<48x1xf32> to vector<48x8xf32>
    %515 = arith.addf %511, %514 : vector<48x8xf32>
    %516 = arith.negf %515 : vector<48x8xf32>
    %517 = math.exp %516 : vector<48x8xf32>
    %cst_190 = arith.constant 1.000000e+00 : f32
    %518 = vector.broadcast %cst_190 : f32 to vector<48x8xf32>
    %519 = arith.addf %518, %517 : vector<48x8xf32>
    %520 = arith.divf %518, %519 : vector<48x8xf32>
    %521 = arith.mulf %493, %520 : vector<48x8xf32>
    %cst_191 = arith.constant dense<0xFF800000> : vector<48xf32>
    %522 = vector.multi_reduction <maximumf>, %521, %cst_191 [1] : vector<48x8xf32> to vector<48xf32>
    %523 = vector.shape_cast %522 : vector<48xf32> to vector<48x1xf32>
    %524 = vector.broadcast %523 : vector<48x1xf32> to vector<48x8xf32>
    %525 = arith.subf %521, %524 : vector<48x8xf32>
    %526 = math.exp %525 : vector<48x8xf32>
    %cst_192 = arith.constant dense<0.000000e+00> : vector<48xf32>
    %527 = vector.multi_reduction <add>, %526, %cst_192 [1] : vector<48x8xf32> to vector<48xf32>
    %528 = vector.shape_cast %527 : vector<48xf32> to vector<48x1xf32>
    %529 = tpu.reciprocal %528 {approx = true} : vector<48x1xf32> -> vector<48x1xf32>
    %530 = vector.broadcast %529 : vector<48x1xf32> to vector<48x8xf32>
    %531 = arith.mulf %526, %530 : vector<48x8xf32>
    %532 = vector.extract_strided_slice %531 {offsets = [0, 0], sizes = [8, 8], strides = [1, 1]} : vector<48x8xf32> to vector<8x8xf32>
    %533 = arith.truncf %532 : vector<8x8xf32> to vector<8x8xbf16>
    %c0_193 = arith.constant 0 : index
    %c0_194 = arith.constant 0 : index
    %534 = vector.load %arg21[%c0_193, %c0_194] : memref<16x48xbf16, #tpu.memory_space<vmem>>, vector<8x8xbf16>
    tpu.vector_store %arg21[%c0_193, %c0_194], %533 {strides = array<i32>} : memref<16x48xbf16, #tpu.memory_space<vmem>>, vector<8x8xbf16>,
    %535 = vector.extract_strided_slice %531 {offsets = [8, 0], sizes = [8, 8], strides = [1, 1]} : vector<48x8xf32> to vector<8x8xf32>
    %536 = arith.truncf %535 : vector<8x8xf32> to vector<8x8xbf16>
    %c0_195 = arith.constant 0 : index
    %c16_196 = arith.constant 16 : index
    %537 = vector.load %arg21[%c0_195, %c16_196] : memref<16x48xbf16, #tpu.memory_space<vmem>>, vector<8x8xbf16>
    tpu.vector_store %arg21[%c0_195, %c16_196], %536 {strides = array<i32>} : memref<16x48xbf16, #tpu.memory_space<vmem>>, vector<8x8xbf16>,
    %538 = vector.extract_strided_slice %531 {offsets = [16, 0], sizes = [8, 8], strides = [1, 1]} : vector<48x8xf32> to vector<8x8xf32>
    %539 = arith.truncf %538 : vector<8x8xf32> to vector<8x8xbf16>
    %c0_197 = arith.constant 0 : index
    %c32_198 = arith.constant 32 : index
    %540 = vector.load %arg21[%c0_197, %c32_198] : memref<16x48xbf16, #tpu.memory_space<vmem>>, vector<8x8xbf16>
    tpu.vector_store %arg21[%c0_197, %c32_198], %539 {strides = array<i32>} : memref<16x48xbf16, #tpu.memory_space<vmem>>, vector<8x8xbf16>,
    %541 = vector.extract_strided_slice %531 {offsets = [24, 0], sizes = [8, 8], strides = [1, 1]} : vector<48x8xf32> to vector<8x8xf32>
    %542 = arith.truncf %541 : vector<8x8xf32> to vector<8x8xbf16>
    %c8_199 = arith.constant 8 : index
    %c8_200 = arith.constant 8 : index
    %543 = vector.load %arg21[%c8_199, %c8_200] : memref<16x48xbf16, #tpu.memory_space<vmem>>, vector<8x8xbf16>
    tpu.vector_store %arg21[%c8_199, %c8_200], %542 {strides = array<i32>} : memref<16x48xbf16, #tpu.memory_space<vmem>>, vector<8x8xbf16>,
    %544 = vector.extract_strided_slice %531 {offsets = [32, 0], sizes = [8, 8], strides = [1, 1]} : vector<48x8xf32> to vector<8x8xf32>
    %545 = arith.truncf %544 : vector<8x8xf32> to vector<8x8xbf16>
    %c8_201 = arith.constant 8 : index
    %c24_202 = arith.constant 24 : index
    %546 = vector.load %arg21[%c8_201, %c24_202] : memref<16x48xbf16, #tpu.memory_space<vmem>>, vector<8x8xbf16>
    tpu.vector_store %arg21[%c8_201, %c24_202], %545 {strides = array<i32>} : memref<16x48xbf16, #tpu.memory_space<vmem>>, vector<8x8xbf16>,
    %547 = vector.extract_strided_slice %531 {offsets = [40, 0], sizes = [8, 8], strides = [1, 1]} : vector<48x8xf32> to vector<8x8xf32>
    %548 = arith.truncf %547 : vector<8x8xf32> to vector<8x8xbf16>
    %c8_203 = arith.constant 8 : index
    %c40_204 = arith.constant 40 : index
    %549 = vector.load %arg21[%c8_203, %c40_204] : memref<16x48xbf16, #tpu.memory_space<vmem>>, vector<8x8xbf16>
    tpu.vector_store %arg21[%c8_203, %c40_204], %548 {strides = array<i32>} : memref<16x48xbf16, #tpu.memory_space<vmem>>, vector<8x8xbf16>,
    %c0_205 = arith.constant 0 : index
    %c0_206 = arith.constant 0 : index
    %550 = vector.load %arg21[%c0_205, %c0_206] : memref<16x48xbf16, #tpu.memory_space<vmem>>, vector<16x48xbf16>
    %c0_207 = arith.constant 0 : index
    %c0_208 = arith.constant 0 : index
    %551 = vector.load %arg20[%c0_207, %c0_208] : memref<48x192xbf16, #tpu.memory_space<vmem>>, vector<48x192xbf16>
    %cst_209 = arith.constant dense<0.000000e+00> : vector<16x192xf32>
    %552 = tpu.matmul %550, %551, %cst_209 {dimension_numbers = #tpu.dot_dimension_numbers<[1], [0], [0], [1], [0, 0, 1, 1], [], []>} : vector<16x48xbf16>, vector<48x192xbf16>, vector<16x192xf32> -> vector<16x192xf32>
    %553 = arith.truncf %552 : vector<16x192xf32> to vector<16x192xbf16>
    %c1_210 = arith.constant 1 : index
    %c0_211 = arith.constant 0 : index
    %c0_212 = arith.constant 0 : index
    %554 = vector.load %arg4[%c1_210, %c0_211, %c0_212] : memref<3x192x32xbf16, #tpu.memory_space<vmem>>, vector<1x192x32xbf16>
    %555 = vector.shape_cast %554 : vector<1x192x32xbf16> to vector<192x32xbf16>
    %cst_213 = arith.constant dense<0.000000e+00> : vector<16x32xf32>
    %556 = tpu.matmul %553, %555, %cst_213 {dimension_numbers = #tpu.dot_dimension_numbers<[1], [0], [0], [1], [0, 0, 1, 1], [], []>} : vector<16x192xbf16>, vector<192x32xbf16>, vector<16x32xf32> -> vector<16x32xf32>
    %c1_214 = arith.constant 1 : index
    %c0_215 = arith.constant 0 : index
    %c0_216 = arith.constant 0 : index
    %557 = vector.load %arg5[%c1_214, %c0_215, %c0_216] : memref<3x1x32xf32, #tpu.memory_space<vmem>>, vector<1x1x32xf32>
    %558 = vector.shape_cast %557 : vector<1x1x32xf32> to vector<1x32xf32>
    %559 = vector.broadcast %558 : vector<1x32xf32> to vector<16x32xf32>
    %560 = arith.addf %556, %559 : vector<16x32xf32>
    %561 = arith.addf %333, %560 : vector<16x32xf32>
    %c1_217 = arith.constant 1 : index
    %c0_218 = arith.constant 0 : index
    %c0_219 = arith.constant 0 : index
    %562 = vector.load %arg6[%c1_217, %c0_218, %c0_219] : memref<3x1x32xf32, #tpu.memory_space<vmem>>, vector<1x1x32xf32>
    %563 = vector.shape_cast %562 : vector<1x1x32xf32> to vector<1x32xf32>
    %c1_220 = arith.constant 1 : index
    %c0_221 = arith.constant 0 : index
    %c0_222 = arith.constant 0 : index
    %564 = vector.load %arg7[%c1_220, %c0_221, %c0_222] : memref<3x1x32xf32, #tpu.memory_space<vmem>>, vector<1x1x32xf32>
    %565 = vector.shape_cast %564 : vector<1x1x32xf32> to vector<1x32xf32>
    %cst_223 = arith.constant dense<0.000000e+00> : vector<16xf32>
    %566 = vector.multi_reduction <add>, %561, %cst_223 [1] : vector<16x32xf32> to vector<16xf32>
    %567 = vector.shape_cast %566 : vector<16xf32> to vector<16x1xf32>
    %cst_224 = arith.constant 3.200000e+01 : f32
    %568 = vector.broadcast %cst_224 : f32 to vector<16x1xf32>
    %569 = arith.divf %567, %568 : vector<16x1xf32>
    %570 = vector.broadcast %569 : vector<16x1xf32> to vector<16x32xf32>
    %571 = arith.subf %561, %570 : vector<16x32xf32>
    %572 = arith.mulf %571, %571 : vector<16x32xf32>
    %cst_225 = arith.constant dense<0.000000e+00> : vector<16xf32>
    %573 = vector.multi_reduction <add>, %572, %cst_225 [1] : vector<16x32xf32> to vector<16xf32>
    %574 = vector.shape_cast %573 : vector<16xf32> to vector<16x1xf32>
    %cst_226 = arith.constant 3.200000e+01 : f32
    %575 = vector.broadcast %cst_226 : f32 to vector<16x1xf32>
    %576 = arith.divf %574, %575 : vector<16x1xf32>
    %577 = vector.broadcast %569 : vector<16x1xf32> to vector<16x32xf32>
    %578 = arith.subf %561, %577 : vector<16x32xf32>
    %cst_227 = arith.constant 9.99999974E-6 : f32
    %579 = vector.broadcast %cst_227 : f32 to vector<16x1xf32>
    %580 = arith.addf %576, %579 : vector<16x1xf32>
    %581 = math.rsqrt %580 : vector<16x1xf32>
    %582 = vector.broadcast %581 : vector<16x1xf32> to vector<16x32xf32>
    %583 = arith.mulf %578, %582 : vector<16x32xf32>
    %584 = vector.broadcast %563 : vector<1x32xf32> to vector<16x32xf32>
    %585 = arith.mulf %583, %584 : vector<16x32xf32>
    %586 = vector.broadcast %565 : vector<1x32xf32> to vector<16x32xf32>
    %587 = arith.addf %585, %586 : vector<16x32xf32>
    %588 = arith.truncf %587 : vector<16x32xf32> to vector<16x32xbf16>
    %c1_228 = arith.constant 1 : index
    %c0_229 = arith.constant 0 : index
    %c0_230 = arith.constant 0 : index
    %589 = vector.load %arg8[%c1_228, %c0_229, %c0_230] : memref<3x32x256xbf16, #tpu.memory_space<vmem>>, vector<1x32x256xbf16>
    %590 = vector.shape_cast %589 : vector<1x32x256xbf16> to vector<32x256xbf16>
    %cst_231 = arith.constant dense<0.000000e+00> : vector<16x256xf32>
    %591 = tpu.matmul %588, %590, %cst_231 {dimension_numbers = #tpu.dot_dimension_numbers<[1], [0], [0], [1], [0, 0, 1, 1], [], []>} : vector<16x32xbf16>, vector<32x256xbf16>, vector<16x256xf32> -> vector<16x256xf32>
    %c1_232 = arith.constant 1 : index
    %c0_233 = arith.constant 0 : index
    %c0_234 = arith.constant 0 : index
    %592 = vector.load %arg9[%c1_232, %c0_233, %c0_234] : memref<3x1x256xf32, #tpu.memory_space<vmem>>, vector<1x1x256xf32>
    %593 = vector.shape_cast %592 : vector<1x1x256xf32> to vector<1x256xf32>
    %594 = vector.broadcast %593 : vector<1x256xf32> to vector<16x256xf32>
    %595 = arith.addf %591, %594 : vector<16x256xf32>
    %cst_235 = arith.constant 5.000000e-01 : f32
    %596 = vector.broadcast %cst_235 : f32 to vector<16x256xf32>
    %597 = arith.mulf %596, %595 : vector<16x256xf32>
    %cst_236 = arith.constant 4.471500e-02 : f32
    %598 = vector.broadcast %cst_236 : f32 to vector<16x256xf32>
    %599 = arith.mulf %598, %595 : vector<16x256xf32>
    %600 = arith.mulf %599, %595 : vector<16x256xf32>
    %601 = arith.mulf %600, %595 : vector<16x256xf32>
    %602 = arith.addf %595, %601 : vector<16x256xf32>
    %cst_237 = arith.constant 0.797884583 : f32
    %603 = vector.broadcast %cst_237 : f32 to vector<16x256xf32>
    %604 = arith.mulf %603, %602 : vector<16x256xf32>
    %605 = math.tanh %604 : vector<16x256xf32>
    %cst_238 = arith.constant 1.000000e+00 : f32
    %606 = vector.broadcast %cst_238 : f32 to vector<16x256xf32>
    %607 = arith.addf %606, %605 : vector<16x256xf32>
    %608 = arith.mulf %597, %607 : vector<16x256xf32>
    %609 = arith.truncf %608 : vector<16x256xf32> to vector<16x256xbf16>
    %c1_239 = arith.constant 1 : index
    %c0_240 = arith.constant 0 : index
    %c0_241 = arith.constant 0 : index
    %610 = vector.load %arg10[%c1_239, %c0_240, %c0_241] : memref<3x256x32xbf16, #tpu.memory_space<vmem>>, vector<1x256x32xbf16>
    %611 = vector.shape_cast %610 : vector<1x256x32xbf16> to vector<256x32xbf16>
    %cst_242 = arith.constant dense<0.000000e+00> : vector<16x32xf32>
    %612 = tpu.matmul %609, %611, %cst_242 {dimension_numbers = #tpu.dot_dimension_numbers<[1], [0], [0], [1], [0, 0, 1, 1], [], []>} : vector<16x256xbf16>, vector<256x32xbf16>, vector<16x32xf32> -> vector<16x32xf32>
    %c1_243 = arith.constant 1 : index
    %c0_244 = arith.constant 0 : index
    %c0_245 = arith.constant 0 : index
    %613 = vector.load %arg11[%c1_243, %c0_244, %c0_245] : memref<3x1x32xf32, #tpu.memory_space<vmem>>, vector<1x1x32xf32>
    %614 = vector.shape_cast %613 : vector<1x1x32xf32> to vector<1x32xf32>
    %615 = vector.broadcast %614 : vector<1x32xf32> to vector<16x32xf32>
    %616 = arith.addf %612, %615 : vector<16x32xf32>
    %617 = arith.addf %561, %616 : vector<16x32xf32>
    %c2 = arith.constant 2 : index
    %c0_246 = arith.constant 0 : index
    %c0_247 = arith.constant 0 : index
    %618 = vector.load %arg1[%c2, %c0_246, %c0_247] : memref<3x1x32xf32, #tpu.memory_space<vmem>>, vector<1x1x32xf32>
    %619 = vector.shape_cast %618 : vector<1x1x32xf32> to vector<1x32xf32>
    %c2_248 = arith.constant 2 : index
    %c0_249 = arith.constant 0 : index
    %c0_250 = arith.constant 0 : index
    %620 = vector.load %arg2[%c2_248, %c0_249, %c0_250] : memref<3x1x32xf32, #tpu.memory_space<vmem>>, vector<1x1x32xf32>
    %621 = vector.shape_cast %620 : vector<1x1x32xf32> to vector<1x32xf32>
    %cst_251 = arith.constant dense<0.000000e+00> : vector<16xf32>
    %622 = vector.multi_reduction <add>, %617, %cst_251 [1] : vector<16x32xf32> to vector<16xf32>
    %623 = vector.shape_cast %622 : vector<16xf32> to vector<16x1xf32>
    %cst_252 = arith.constant 3.200000e+01 : f32
    %624 = vector.broadcast %cst_252 : f32 to vector<16x1xf32>
    %625 = arith.divf %623, %624 : vector<16x1xf32>
    %626 = vector.broadcast %625 : vector<16x1xf32> to vector<16x32xf32>
    %627 = arith.subf %617, %626 : vector<16x32xf32>
    %628 = arith.mulf %627, %627 : vector<16x32xf32>
    %cst_253 = arith.constant dense<0.000000e+00> : vector<16xf32>
    %629 = vector.multi_reduction <add>, %628, %cst_253 [1] : vector<16x32xf32> to vector<16xf32>
    %630 = vector.shape_cast %629 : vector<16xf32> to vector<16x1xf32>
    %cst_254 = arith.constant 3.200000e+01 : f32
    %631 = vector.broadcast %cst_254 : f32 to vector<16x1xf32>
    %632 = arith.divf %630, %631 : vector<16x1xf32>
    %633 = vector.broadcast %625 : vector<16x1xf32> to vector<16x32xf32>
    %634 = arith.subf %617, %633 : vector<16x32xf32>
    %cst_255 = arith.constant 9.99999974E-6 : f32
    %635 = vector.broadcast %cst_255 : f32 to vector<16x1xf32>
    %636 = arith.addf %632, %635 : vector<16x1xf32>
    %637 = math.rsqrt %636 : vector<16x1xf32>
    %638 = vector.broadcast %637 : vector<16x1xf32> to vector<16x32xf32>
    %639 = arith.mulf %634, %638 : vector<16x32xf32>
    %640 = vector.broadcast %619 : vector<1x32xf32> to vector<16x32xf32>
    %641 = arith.mulf %639, %640 : vector<16x32xf32>
    %642 = vector.broadcast %621 : vector<1x32xf32> to vector<16x32xf32>
    %643 = arith.addf %641, %642 : vector<16x32xf32>
    %644 = arith.truncf %643 : vector<16x32xf32> to vector<16x32xbf16>
    %c2_256 = arith.constant 2 : index
    %c0_257 = arith.constant 0 : index
    %c0_258 = arith.constant 0 : index
    %645 = vector.load %arg3[%c2_256, %c0_257, %c0_258] : memref<3x32x576xbf16, #tpu.memory_space<vmem>>, vector<1x32x576xbf16>
    %646 = vector.shape_cast %645 : vector<1x32x576xbf16> to vector<32x576xbf16>
    %cst_259 = arith.constant dense<0.000000e+00> : vector<16x576xf32>
    %647 = tpu.matmul %644, %646, %cst_259 {dimension_numbers = #tpu.dot_dimension_numbers<[1], [0], [0], [1], [0, 0, 1, 1], [], []>} : vector<16x32xbf16>, vector<32x576xbf16>, vector<16x576xf32> -> vector<16x576xf32>
    %648 = arith.truncf %647 : vector<16x576xf32> to vector<16x576xbf16>
    %649 = vector.extract_strided_slice %648 {offsets = [0, 0], sizes = [8, 64], strides = [1, 1]} : vector<16x576xbf16> to vector<8x64xbf16>
    %c0_260 = arith.constant 0 : index
    %c0_261 = arith.constant 0 : index
    %650 = vector.load %arg19[%c0_260, %c0_261] : memref<48x384xbf16, #tpu.memory_space<vmem>>, vector<8x64xbf16>
    tpu.vector_store %arg19[%c0_260, %c0_261], %649 {strides = array<i32>} : memref<48x384xbf16, #tpu.memory_space<vmem>>, vector<8x64xbf16>,
    %651 = vector.extract_strided_slice %648 {offsets = [0, 64], sizes = [8, 64], strides = [1, 1]} : vector<16x576xbf16> to vector<8x64xbf16>
    %c8_262 = arith.constant 8 : index
    %c64_263 = arith.constant 64 : index
    %652 = vector.load %arg19[%c8_262, %c64_263] : memref<48x384xbf16, #tpu.memory_space<vmem>>, vector<8x64xbf16>
    tpu.vector_store %arg19[%c8_262, %c64_263], %651 {strides = array<i32>} : memref<48x384xbf16, #tpu.memory_space<vmem>>, vector<8x64xbf16>,
    %653 = vector.extract_strided_slice %648 {offsets = [0, 128], sizes = [8, 64], strides = [1, 1]} : vector<16x576xbf16> to vector<8x64xbf16>
    %c16_264 = arith.constant 16 : index
    %c128_265 = arith.constant 128 : index
    %654 = vector.load %arg19[%c16_264, %c128_265] : memref<48x384xbf16, #tpu.memory_space<vmem>>, vector<8x64xbf16>
    tpu.vector_store %arg19[%c16_264, %c128_265], %653 {strides = array<i32>} : memref<48x384xbf16, #tpu.memory_space<vmem>>, vector<8x64xbf16>,
    %655 = vector.extract_strided_slice %648 {offsets = [8, 0], sizes = [8, 64], strides = [1, 1]} : vector<16x576xbf16> to vector<8x64xbf16>
    %c24_266 = arith.constant 24 : index
    %c192_267 = arith.constant 192 : index
    %656 = vector.load %arg19[%c24_266, %c192_267] : memref<48x384xbf16, #tpu.memory_space<vmem>>, vector<8x64xbf16>
    tpu.vector_store %arg19[%c24_266, %c192_267], %655 {strides = array<i32>} : memref<48x384xbf16, #tpu.memory_space<vmem>>, vector<8x64xbf16>,
    %657 = vector.extract_strided_slice %648 {offsets = [8, 64], sizes = [8, 64], strides = [1, 1]} : vector<16x576xbf16> to vector<8x64xbf16>
    %c32_268 = arith.constant 32 : index
    %c256_269 = arith.constant 256 : index
    %658 = vector.load %arg19[%c32_268, %c256_269] : memref<48x384xbf16, #tpu.memory_space<vmem>>, vector<8x64xbf16>
    tpu.vector_store %arg19[%c32_268, %c256_269], %657 {strides = array<i32>} : memref<48x384xbf16, #tpu.memory_space<vmem>>, vector<8x64xbf16>,
    %659 = vector.extract_strided_slice %648 {offsets = [8, 128], sizes = [8, 64], strides = [1, 1]} : vector<16x576xbf16> to vector<8x64xbf16>
    %c40_270 = arith.constant 40 : index
    %c320_271 = arith.constant 320 : index
    %660 = vector.load %arg19[%c40_270, %c320_271] : memref<48x384xbf16, #tpu.memory_space<vmem>>, vector<8x64xbf16>
    tpu.vector_store %arg19[%c40_270, %c320_271], %659 {strides = array<i32>} : memref<48x384xbf16, #tpu.memory_space<vmem>>, vector<8x64xbf16>,
    %661 = vector.extract_strided_slice %648 {offsets = [0, 384], sizes = [16, 64], strides = [1, 1]} : vector<16x576xbf16> to vector<16x64xbf16>
    %c0_272 = arith.constant 0 : index
    %c0_273 = arith.constant 0 : index
    %662 = vector.load %arg20[%c0_272, %c0_273] : memref<48x192xbf16, #tpu.memory_space<vmem>>, vector<16x64xbf16>
    tpu.vector_store %arg20[%c0_272, %c0_273], %661 {strides = array<i32>} : memref<48x192xbf16, #tpu.memory_space<vmem>>, vector<16x64xbf16>,
    %663 = vector.extract_strided_slice %648 {offsets = [0, 448], sizes = [16, 64], strides = [1, 1]} : vector<16x576xbf16> to vector<16x64xbf16>
    %c16_274 = arith.constant 16 : index
    %c64_275 = arith.constant 64 : index
    %664 = vector.load %arg20[%c16_274, %c64_275] : memref<48x192xbf16, #tpu.memory_space<vmem>>, vector<16x64xbf16>
    tpu.vector_store %arg20[%c16_274, %c64_275], %663 {strides = array<i32>} : memref<48x192xbf16, #tpu.memory_space<vmem>>, vector<16x64xbf16>,
    %665 = vector.extract_strided_slice %648 {offsets = [0, 512], sizes = [16, 64], strides = [1, 1]} : vector<16x576xbf16> to vector<16x64xbf16>
    %c32_276 = arith.constant 32 : index
    %c128_277 = arith.constant 128 : index
    %666 = vector.load %arg20[%c32_276, %c128_277] : memref<48x192xbf16, #tpu.memory_space<vmem>>, vector<16x64xbf16>
    tpu.vector_store %arg20[%c32_276, %c128_277], %665 {strides = array<i32>} : memref<48x192xbf16, #tpu.memory_space<vmem>>, vector<16x64xbf16>,
    %667 = vector.extract_strided_slice %648 {offsets = [0, 192], sizes = [8, 192], strides = [1, 1]} : vector<16x576xbf16> to vector<8x192xbf16>
    %668 = vector.extract_strided_slice %648 {offsets = [8, 192], sizes = [8, 192], strides = [1, 1]} : vector<16x576xbf16> to vector<8x192xbf16>
    %669 = tpu.concatenate %667, %668 in 1 : vector<8x192xbf16>, vector<8x192xbf16> -> vector<8x384xbf16>
    %c0_278 = arith.constant 0 : index
    %c0_279 = arith.constant 0 : index
    %670 = vector.load %arg19[%c0_278, %c0_279] : memref<48x384xbf16, #tpu.memory_space<vmem>>, vector<48x384xbf16>
    %cst_280 = arith.constant dense<0.000000e+00> : vector<48x8xf32>
    %671 = tpu.matmul %670, %669, %cst_280 {dimension_numbers = #tpu.dot_dimension_numbers<[1], [1], [0], [0], [0, 0, 1, 0], [], []>} : vector<48x384xbf16>, vector<8x384xbf16>, vector<48x8xf32> -> vector<48x8xf32>
    %cst_281 = arith.constant 1.250000e-01 : f32
    %672 = vector.broadcast %cst_281 : f32 to vector<48x8xf32>
    %673 = arith.mulf %671, %672 : vector<48x8xf32>
    %c2_282 = arith.constant 2 : index
    %c0_283 = arith.constant 0 : index
    %c0_284 = arith.constant 0 : index
    %674 = vector.load %arg12[%c2_282, %c0_283, %c0_284] : memref<3x48x16xf32, #tpu.memory_space<vmem>>, vector<1x48x16xf32>
    %675 = vector.shape_cast %674 : vector<1x48x16xf32> to vector<48x16xf32>
    %676 = vector.extract_strided_slice %673 {offsets = [0, 0], sizes = [48, 7], strides = [1, 1]} : vector<48x8xf32> to vector<48x7xf32>
    %677 = tpu.concatenate %7, %676 in 1 : vector<48x1xf32>, vector<48x7xf32> -> vector<48x8xf32>
    %678 = vector.extract_strided_slice %673 {offsets = [0, 1], sizes = [48, 7], strides = [1, 1]} : vector<48x8xf32> to vector<48x7xf32>
    %679 = tpu.concatenate %678, %7 in 1 : vector<48x7xf32>, vector<48x1xf32> -> vector<48x8xf32>
    %680 = vector.extract_strided_slice %675 {offsets = [0, 0], sizes = [48, 1], strides = [1, 1]} : vector<48x16xf32> to vector<48x1xf32>
    %681 = vector.broadcast %680 : vector<48x1xf32> to vector<48x8xf32>
    %682 = arith.mulf %681, %677 : vector<48x8xf32>
    %683 = vector.extract_strided_slice %675 {offsets = [0, 1], sizes = [48, 1], strides = [1, 1]} : vector<48x16xf32> to vector<48x1xf32>
    %684 = vector.broadcast %683 : vector<48x1xf32> to vector<48x8xf32>
    %685 = arith.mulf %684, %673 : vector<48x8xf32>
    %686 = arith.addf %682, %685 : vector<48x8xf32>
    %687 = vector.extract_strided_slice %675 {offsets = [0, 2], sizes = [48, 1], strides = [1, 1]} : vector<48x16xf32> to vector<48x1xf32>
    %688 = vector.broadcast %687 : vector<48x1xf32> to vector<48x8xf32>
    %689 = arith.mulf %688, %679 : vector<48x8xf32>
    %690 = arith.addf %686, %689 : vector<48x8xf32>
    %691 = vector.extract_strided_slice %675 {offsets = [0, 3], sizes = [48, 1], strides = [1, 1]} : vector<48x16xf32> to vector<48x1xf32>
    %692 = vector.broadcast %691 : vector<48x1xf32> to vector<48x8xf32>
    %693 = arith.mulf %692, %677 : vector<48x8xf32>
    %694 = vector.extract_strided_slice %675 {offsets = [0, 4], sizes = [48, 1], strides = [1, 1]} : vector<48x16xf32> to vector<48x1xf32>
    %695 = vector.broadcast %694 : vector<48x1xf32> to vector<48x8xf32>
    %696 = arith.mulf %695, %673 : vector<48x8xf32>
    %697 = arith.addf %693, %696 : vector<48x8xf32>
    %698 = vector.extract_strided_slice %675 {offsets = [0, 5], sizes = [48, 1], strides = [1, 1]} : vector<48x16xf32> to vector<48x1xf32>
    %699 = vector.broadcast %698 : vector<48x1xf32> to vector<48x8xf32>
    %700 = arith.mulf %699, %679 : vector<48x8xf32>
    %701 = arith.addf %697, %700 : vector<48x8xf32>
    %702 = vector.extract_strided_slice %675 {offsets = [0, 6], sizes = [48, 1], strides = [1, 1]} : vector<48x16xf32> to vector<48x1xf32>
    %703 = vector.broadcast %702 : vector<48x1xf32> to vector<48x8xf32>
    %704 = arith.mulf %703, %677 : vector<48x8xf32>
    %705 = vector.extract_strided_slice %675 {offsets = [0, 7], sizes = [48, 1], strides = [1, 1]} : vector<48x16xf32> to vector<48x1xf32>
    %706 = vector.broadcast %705 : vector<48x1xf32> to vector<48x8xf32>
    %707 = arith.mulf %706, %673 : vector<48x8xf32>
    %708 = arith.addf %704, %707 : vector<48x8xf32>
    %709 = vector.extract_strided_slice %675 {offsets = [0, 8], sizes = [48, 1], strides = [1, 1]} : vector<48x16xf32> to vector<48x1xf32>
    %710 = vector.broadcast %709 : vector<48x1xf32> to vector<48x8xf32>
    %711 = arith.mulf %710, %679 : vector<48x8xf32>
    %712 = arith.addf %708, %711 : vector<48x8xf32>
    %713 = vector.extract_strided_slice %690 {offsets = [0, 0], sizes = [47, 8], strides = [1, 1]} : vector<48x8xf32> to vector<47x8xf32>
    %714 = tpu.concatenate %8, %713 in 0 : vector<1x8xf32>, vector<47x8xf32> -> vector<48x8xf32>
    %715 = arith.mulf %714, %29 : vector<48x8xf32>
    %716 = vector.extract_strided_slice %712 {offsets = [1, 0], sizes = [47, 8], strides = [1, 1]} : vector<48x8xf32> to vector<47x8xf32>
    %717 = tpu.concatenate %716, %8 in 0 : vector<47x8xf32>, vector<1x8xf32> -> vector<48x8xf32>
    %718 = arith.mulf %717, %49 : vector<48x8xf32>
    %719 = vector.extract_strided_slice %675 {offsets = [0, 9], sizes = [48, 1], strides = [1, 1]} : vector<48x16xf32> to vector<48x1xf32>
    %720 = vector.broadcast %719 : vector<48x1xf32> to vector<48x8xf32>
    %721 = arith.addf %720, %701 : vector<48x8xf32>
    %722 = arith.addf %721, %715 : vector<48x8xf32>
    %723 = arith.addf %722, %718 : vector<48x8xf32>
    %cst_285 = arith.constant 0.000000e+00 : f32
    %724 = vector.broadcast %cst_285 : f32 to vector<48x8xf32>
    %725 = arith.maximumf %723, %724 : vector<48x8xf32>
    %c2_286 = arith.constant 2 : index
    %c0_287 = arith.constant 0 : index
    %c0_288 = arith.constant 0 : index
    %726 = vector.load %arg13[%c2_286, %c0_287, %c0_288] : memref<3x48x16xf32, #tpu.memory_space<vmem>>, vector<1x48x16xf32>
    %727 = vector.shape_cast %726 : vector<1x48x16xf32> to vector<48x16xf32>
    %728 = vector.extract_strided_slice %725 {offsets = [0, 0], sizes = [48, 7], strides = [1, 1]} : vector<48x8xf32> to vector<48x7xf32>
    %729 = tpu.concatenate %7, %728 in 1 : vector<48x1xf32>, vector<48x7xf32> -> vector<48x8xf32>
    %730 = vector.extract_strided_slice %725 {offsets = [0, 1], sizes = [48, 7], strides = [1, 1]} : vector<48x8xf32> to vector<48x7xf32>
    %731 = tpu.concatenate %730, %7 in 1 : vector<48x7xf32>, vector<48x1xf32> -> vector<48x8xf32>
    %732 = vector.extract_strided_slice %727 {offsets = [0, 0], sizes = [48, 1], strides = [1, 1]} : vector<48x16xf32> to vector<48x1xf32>
    %733 = vector.broadcast %732 : vector<48x1xf32> to vector<48x8xf32>
    %734 = arith.mulf %733, %729 : vector<48x8xf32>
    %735 = vector.extract_strided_slice %727 {offsets = [0, 1], sizes = [48, 1], strides = [1, 1]} : vector<48x16xf32> to vector<48x1xf32>
    %736 = vector.broadcast %735 : vector<48x1xf32> to vector<48x8xf32>
    %737 = arith.mulf %736, %725 : vector<48x8xf32>
    %738 = arith.addf %734, %737 : vector<48x8xf32>
    %739 = vector.extract_strided_slice %727 {offsets = [0, 2], sizes = [48, 1], strides = [1, 1]} : vector<48x16xf32> to vector<48x1xf32>
    %740 = vector.broadcast %739 : vector<48x1xf32> to vector<48x8xf32>
    %741 = arith.mulf %740, %731 : vector<48x8xf32>
    %742 = arith.addf %738, %741 : vector<48x8xf32>
    %743 = vector.extract_strided_slice %727 {offsets = [0, 3], sizes = [48, 1], strides = [1, 1]} : vector<48x16xf32> to vector<48x1xf32>
    %744 = vector.broadcast %743 : vector<48x1xf32> to vector<48x8xf32>
    %745 = arith.mulf %744, %729 : vector<48x8xf32>
    %746 = vector.extract_strided_slice %727 {offsets = [0, 4], sizes = [48, 1], strides = [1, 1]} : vector<48x16xf32> to vector<48x1xf32>
    %747 = vector.broadcast %746 : vector<48x1xf32> to vector<48x8xf32>
    %748 = arith.mulf %747, %725 : vector<48x8xf32>
    %749 = arith.addf %745, %748 : vector<48x8xf32>
    %750 = vector.extract_strided_slice %727 {offsets = [0, 5], sizes = [48, 1], strides = [1, 1]} : vector<48x16xf32> to vector<48x1xf32>
    %751 = vector.broadcast %750 : vector<48x1xf32> to vector<48x8xf32>
    %752 = arith.mulf %751, %731 : vector<48x8xf32>
    %753 = arith.addf %749, %752 : vector<48x8xf32>
    %754 = vector.extract_strided_slice %727 {offsets = [0, 6], sizes = [48, 1], strides = [1, 1]} : vector<48x16xf32> to vector<48x1xf32>
    %755 = vector.broadcast %754 : vector<48x1xf32> to vector<48x8xf32>
    %756 = arith.mulf %755, %729 : vector<48x8xf32>
    %757 = vector.extract_strided_slice %727 {offsets = [0, 7], sizes = [48, 1], strides = [1, 1]} : vector<48x16xf32> to vector<48x1xf32>
    %758 = vector.broadcast %757 : vector<48x1xf32> to vector<48x8xf32>
    %759 = arith.mulf %758, %725 : vector<48x8xf32>
    %760 = arith.addf %756, %759 : vector<48x8xf32>
    %761 = vector.extract_strided_slice %727 {offsets = [0, 8], sizes = [48, 1], strides = [1, 1]} : vector<48x16xf32> to vector<48x1xf32>
    %762 = vector.broadcast %761 : vector<48x1xf32> to vector<48x8xf32>
    %763 = arith.mulf %762, %731 : vector<48x8xf32>
    %764 = arith.addf %760, %763 : vector<48x8xf32>
    %765 = vector.extract_strided_slice %742 {offsets = [0, 0], sizes = [47, 8], strides = [1, 1]} : vector<48x8xf32> to vector<47x8xf32>
    %766 = tpu.concatenate %8, %765 in 0 : vector<1x8xf32>, vector<47x8xf32> -> vector<48x8xf32>
    %767 = arith.mulf %766, %29 : vector<48x8xf32>
    %768 = vector.extract_strided_slice %764 {offsets = [1, 0], sizes = [47, 8], strides = [1, 1]} : vector<48x8xf32> to vector<47x8xf32>
    %769 = tpu.concatenate %768, %8 in 0 : vector<47x8xf32>, vector<1x8xf32> -> vector<48x8xf32>
    %770 = arith.mulf %769, %49 : vector<48x8xf32>
    %771 = vector.extract_strided_slice %727 {offsets = [0, 9], sizes = [48, 1], strides = [1, 1]} : vector<48x16xf32> to vector<48x1xf32>
    %772 = vector.broadcast %771 : vector<48x1xf32> to vector<48x8xf32>
    %773 = arith.addf %772, %753 : vector<48x8xf32>
    %774 = arith.addf %773, %767 : vector<48x8xf32>
    %775 = arith.addf %774, %770 : vector<48x8xf32>
    %cst_289 = arith.constant 0.000000e+00 : f32
    %776 = vector.broadcast %cst_289 : f32 to vector<48x8xf32>
    %777 = arith.maximumf %775, %776 : vector<48x8xf32>
    %cst_290 = arith.constant dense<0.000000e+00> : vector<48xf32>
    %778 = vector.multi_reduction <add>, %777, %cst_290 [1] : vector<48x8xf32> to vector<48xf32>
    %779 = vector.shape_cast %778 : vector<48xf32> to vector<48x1xf32>
    %cst_291 = arith.constant 8.000000e+00 : f32
    %780 = vector.broadcast %cst_291 : f32 to vector<48x1xf32>
    %781 = arith.divf %779, %780 : vector<48x1xf32>
    %782 = vector.shape_cast %781 : vector<48x1xf32> to vector<48x1xf32>
    %783 = vector.broadcast %782 : vector<48x1xf32> to vector<48x8xf32>
    %c2_292 = arith.constant 2 : index
    %c0_293 = arith.constant 0 : index
    %c0_294 = arith.constant 0 : index
    %784 = vector.load %arg14[%c2_292, %c0_293, %c0_294] : memref<3x48x48xf32, #tpu.memory_space<vmem>>, vector<1x48x48xf32>
    %785 = vector.shape_cast %784 : vector<1x48x48xf32> to vector<48x48xf32>
    %cst_295 = arith.constant dense<0.000000e+00> : vector<48x8xf32>
    %786 = tpu.matmul %785, %783, %cst_295 {dimension_numbers = #tpu.dot_dimension_numbers<[1], [0], [0], [1], [0, 0, 1, 1], [], []>} : vector<48x48xf32>, vector<48x8xf32>, vector<48x8xf32> -> vector<48x8xf32>
    %c2_296 = arith.constant 2 : index
    %c0_297 = arith.constant 0 : index
    %c0_298 = arith.constant 0 : index
    %787 = vector.load %arg15[%c2_296, %c0_297, %c0_298] : memref<3x48x1xf32, #tpu.memory_space<vmem>>, vector<1x48x1xf32>
    %788 = vector.shape_cast %787 : vector<1x48x1xf32> to vector<48x1xf32>
    %789 = vector.broadcast %788 : vector<48x1xf32> to vector<48x8xf32>
    %790 = arith.addf %786, %789 : vector<48x8xf32>
    %cst_299 = arith.constant 0.000000e+00 : f32
    %791 = vector.broadcast %cst_299 : f32 to vector<48x8xf32>
    %792 = arith.maximumf %790, %791 : vector<48x8xf32>
    %c2_300 = arith.constant 2 : index
    %c0_301 = arith.constant 0 : index
    %c0_302 = arith.constant 0 : index
    %793 = vector.load %arg16[%c2_300, %c0_301, %c0_302] : memref<3x48x48xf32, #tpu.memory_space<vmem>>, vector<1x48x48xf32>
    %794 = vector.shape_cast %793 : vector<1x48x48xf32> to vector<48x48xf32>
    %cst_303 = arith.constant dense<0.000000e+00> : vector<48x8xf32>
    %795 = tpu.matmul %794, %792, %cst_303 {dimension_numbers = #tpu.dot_dimension_numbers<[1], [0], [0], [1], [0, 0, 1, 1], [], []>} : vector<48x48xf32>, vector<48x8xf32>, vector<48x8xf32> -> vector<48x8xf32>
    %c2_304 = arith.constant 2 : index
    %c0_305 = arith.constant 0 : index
    %c0_306 = arith.constant 0 : index
    %796 = vector.load %arg17[%c2_304, %c0_305, %c0_306] : memref<3x48x1xf32, #tpu.memory_space<vmem>>, vector<1x48x1xf32>
    %797 = vector.shape_cast %796 : vector<1x48x1xf32> to vector<48x1xf32>
    %798 = vector.broadcast %797 : vector<48x1xf32> to vector<48x8xf32>
    %799 = arith.addf %795, %798 : vector<48x8xf32>
    %800 = arith.negf %799 : vector<48x8xf32>
    %801 = math.exp %800 : vector<48x8xf32>
    %cst_307 = arith.constant 1.000000e+00 : f32
    %802 = vector.broadcast %cst_307 : f32 to vector<48x8xf32>
    %803 = arith.addf %802, %801 : vector<48x8xf32>
    %804 = arith.divf %802, %803 : vector<48x8xf32>
    %805 = arith.mulf %777, %804 : vector<48x8xf32>
    %cst_308 = arith.constant dense<0xFF800000> : vector<48xf32>
    %806 = vector.multi_reduction <maximumf>, %805, %cst_308 [1] : vector<48x8xf32> to vector<48xf32>
    %807 = vector.shape_cast %806 : vector<48xf32> to vector<48x1xf32>
    %808 = vector.broadcast %807 : vector<48x1xf32> to vector<48x8xf32>
    %809 = arith.subf %805, %808 : vector<48x8xf32>
    %810 = math.exp %809 : vector<48x8xf32>
    %cst_309 = arith.constant dense<0.000000e+00> : vector<48xf32>
    %811 = vector.multi_reduction <add>, %810, %cst_309 [1] : vector<48x8xf32> to vector<48xf32>
    %812 = vector.shape_cast %811 : vector<48xf32> to vector<48x1xf32>
    %813 = tpu.reciprocal %812 {approx = true} : vector<48x1xf32> -> vector<48x1xf32>
    %814 = vector.broadcast %813 : vector<48x1xf32> to vector<48x8xf32>
    %815 = arith.mulf %810, %814 : vector<48x8xf32>
    %816 = vector.extract_strided_slice %815 {offsets = [0, 0], sizes = [8, 8], strides = [1, 1]} : vector<48x8xf32> to vector<8x8xf32>
    %817 = arith.truncf %816 : vector<8x8xf32> to vector<8x8xbf16>
    %c0_310 = arith.constant 0 : index
    %c0_311 = arith.constant 0 : index
    %818 = vector.load %arg21[%c0_310, %c0_311] : memref<16x48xbf16, #tpu.memory_space<vmem>>, vector<8x8xbf16>
    tpu.vector_store %arg21[%c0_310, %c0_311], %817 {strides = array<i32>} : memref<16x48xbf16, #tpu.memory_space<vmem>>, vector<8x8xbf16>,
    %819 = vector.extract_strided_slice %815 {offsets = [8, 0], sizes = [8, 8], strides = [1, 1]} : vector<48x8xf32> to vector<8x8xf32>
    %820 = arith.truncf %819 : vector<8x8xf32> to vector<8x8xbf16>
    %c0_312 = arith.constant 0 : index
    %c16_313 = arith.constant 16 : index
    %821 = vector.load %arg21[%c0_312, %c16_313] : memref<16x48xbf16, #tpu.memory_space<vmem>>, vector<8x8xbf16>
    tpu.vector_store %arg21[%c0_312, %c16_313], %820 {strides = array<i32>} : memref<16x48xbf16, #tpu.memory_space<vmem>>, vector<8x8xbf16>,
    %822 = vector.extract_strided_slice %815 {offsets = [16, 0], sizes = [8, 8], strides = [1, 1]} : vector<48x8xf32> to vector<8x8xf32>
    %823 = arith.truncf %822 : vector<8x8xf32> to vector<8x8xbf16>
    %c0_314 = arith.constant 0 : index
    %c32_315 = arith.constant 32 : index
    %824 = vector.load %arg21[%c0_314, %c32_315] : memref<16x48xbf16, #tpu.memory_space<vmem>>, vector<8x8xbf16>
    tpu.vector_store %arg21[%c0_314, %c32_315], %823 {strides = array<i32>} : memref<16x48xbf16, #tpu.memory_space<vmem>>, vector<8x8xbf16>,
    %825 = vector.extract_strided_slice %815 {offsets = [24, 0], sizes = [8, 8], strides = [1, 1]} : vector<48x8xf32> to vector<8x8xf32>
    %826 = arith.truncf %825 : vector<8x8xf32> to vector<8x8xbf16>
    %c8_316 = arith.constant 8 : index
    %c8_317 = arith.constant 8 : index
    %827 = vector.load %arg21[%c8_316, %c8_317] : memref<16x48xbf16, #tpu.memory_space<vmem>>, vector<8x8xbf16>
    tpu.vector_store %arg21[%c8_316, %c8_317], %826 {strides = array<i32>} : memref<16x48xbf16, #tpu.memory_space<vmem>>, vector<8x8xbf16>,
    %828 = vector.extract_strided_slice %815 {offsets = [32, 0], sizes = [8, 8], strides = [1, 1]} : vector<48x8xf32> to vector<8x8xf32>
    %829 = arith.truncf %828 : vector<8x8xf32> to vector<8x8xbf16>
    %c8_318 = arith.constant 8 : index
    %c24_319 = arith.constant 24 : index
    %830 = vector.load %arg21[%c8_318, %c24_319] : memref<16x48xbf16, #tpu.memory_space<vmem>>, vector<8x8xbf16>
    tpu.vector_store %arg21[%c8_318, %c24_319], %829 {strides = array<i32>} : memref<16x48xbf16, #tpu.memory_space<vmem>>, vector<8x8xbf16>,
    %831 = vector.extract_strided_slice %815 {offsets = [40, 0], sizes = [8, 8], strides = [1, 1]} : vector<48x8xf32> to vector<8x8xf32>
    %832 = arith.truncf %831 : vector<8x8xf32> to vector<8x8xbf16>
    %c8_320 = arith.constant 8 : index
    %c40_321 = arith.constant 40 : index
    %833 = vector.load %arg21[%c8_320, %c40_321] : memref<16x48xbf16, #tpu.memory_space<vmem>>, vector<8x8xbf16>
    tpu.vector_store %arg21[%c8_320, %c40_321], %832 {strides = array<i32>} : memref<16x48xbf16, #tpu.memory_space<vmem>>, vector<8x8xbf16>,
    %c0_322 = arith.constant 0 : index
    %c0_323 = arith.constant 0 : index
    %834 = vector.load %arg21[%c0_322, %c0_323] : memref<16x48xbf16, #tpu.memory_space<vmem>>, vector<16x48xbf16>
    %c0_324 = arith.constant 0 : index
    %c0_325 = arith.constant 0 : index
    %835 = vector.load %arg20[%c0_324, %c0_325] : memref<48x192xbf16, #tpu.memory_space<vmem>>, vector<48x192xbf16>
    %cst_326 = arith.constant dense<0.000000e+00> : vector<16x192xf32>
    %836 = tpu.matmul %834, %835, %cst_326 {dimension_numbers = #tpu.dot_dimension_numbers<[1], [0], [0], [1], [0, 0, 1, 1], [], []>} : vector<16x48xbf16>, vector<48x192xbf16>, vector<16x192xf32> -> vector<16x192xf32>
    %837 = arith.truncf %836 : vector<16x192xf32> to vector<16x192xbf16>
    %c2_327 = arith.constant 2 : index
    %c0_328 = arith.constant 0 : index
    %c0_329 = arith.constant 0 : index
    %838 = vector.load %arg4[%c2_327, %c0_328, %c0_329] : memref<3x192x32xbf16, #tpu.memory_space<vmem>>, vector<1x192x32xbf16>
    %839 = vector.shape_cast %838 : vector<1x192x32xbf16> to vector<192x32xbf16>
    %cst_330 = arith.constant dense<0.000000e+00> : vector<16x32xf32>
    %840 = tpu.matmul %837, %839, %cst_330 {dimension_numbers = #tpu.dot_dimension_numbers<[1], [0], [0], [1], [0, 0, 1, 1], [], []>} : vector<16x192xbf16>, vector<192x32xbf16>, vector<16x32xf32> -> vector<16x32xf32>
    %c2_331 = arith.constant 2 : index
    %c0_332 = arith.constant 0 : index
    %c0_333 = arith.constant 0 : index
    %841 = vector.load %arg5[%c2_331, %c0_332, %c0_333] : memref<3x1x32xf32, #tpu.memory_space<vmem>>, vector<1x1x32xf32>
    %842 = vector.shape_cast %841 : vector<1x1x32xf32> to vector<1x32xf32>
    %843 = vector.broadcast %842 : vector<1x32xf32> to vector<16x32xf32>
    %844 = arith.addf %840, %843 : vector<16x32xf32>
    %845 = arith.addf %617, %844 : vector<16x32xf32>
    %c2_334 = arith.constant 2 : index
    %c0_335 = arith.constant 0 : index
    %c0_336 = arith.constant 0 : index
    %846 = vector.load %arg6[%c2_334, %c0_335, %c0_336] : memref<3x1x32xf32, #tpu.memory_space<vmem>>, vector<1x1x32xf32>
    %847 = vector.shape_cast %846 : vector<1x1x32xf32> to vector<1x32xf32>
    %c2_337 = arith.constant 2 : index
    %c0_338 = arith.constant 0 : index
    %c0_339 = arith.constant 0 : index
    %848 = vector.load %arg7[%c2_337, %c0_338, %c0_339] : memref<3x1x32xf32, #tpu.memory_space<vmem>>, vector<1x1x32xf32>
    %849 = vector.shape_cast %848 : vector<1x1x32xf32> to vector<1x32xf32>
    %cst_340 = arith.constant dense<0.000000e+00> : vector<16xf32>
    %850 = vector.multi_reduction <add>, %845, %cst_340 [1] : vector<16x32xf32> to vector<16xf32>
    %851 = vector.shape_cast %850 : vector<16xf32> to vector<16x1xf32>
    %cst_341 = arith.constant 3.200000e+01 : f32
    %852 = vector.broadcast %cst_341 : f32 to vector<16x1xf32>
    %853 = arith.divf %851, %852 : vector<16x1xf32>
    %854 = vector.broadcast %853 : vector<16x1xf32> to vector<16x32xf32>
    %855 = arith.subf %845, %854 : vector<16x32xf32>
    %856 = arith.mulf %855, %855 : vector<16x32xf32>
    %cst_342 = arith.constant dense<0.000000e+00> : vector<16xf32>
    %857 = vector.multi_reduction <add>, %856, %cst_342 [1] : vector<16x32xf32> to vector<16xf32>
    %858 = vector.shape_cast %857 : vector<16xf32> to vector<16x1xf32>
    %cst_343 = arith.constant 3.200000e+01 : f32
    %859 = vector.broadcast %cst_343 : f32 to vector<16x1xf32>
    %860 = arith.divf %858, %859 : vector<16x1xf32>
    %861 = vector.broadcast %853 : vector<16x1xf32> to vector<16x32xf32>
    %862 = arith.subf %845, %861 : vector<16x32xf32>
    %cst_344 = arith.constant 9.99999974E-6 : f32
    %863 = vector.broadcast %cst_344 : f32 to vector<16x1xf32>
    %864 = arith.addf %860, %863 : vector<16x1xf32>
    %865 = math.rsqrt %864 : vector<16x1xf32>
    %866 = vector.broadcast %865 : vector<16x1xf32> to vector<16x32xf32>
    %867 = arith.mulf %862, %866 : vector<16x32xf32>
    %868 = vector.broadcast %847 : vector<1x32xf32> to vector<16x32xf32>
    %869 = arith.mulf %867, %868 : vector<16x32xf32>
    %870 = vector.broadcast %849 : vector<1x32xf32> to vector<16x32xf32>
    %871 = arith.addf %869, %870 : vector<16x32xf32>
    %872 = arith.truncf %871 : vector<16x32xf32> to vector<16x32xbf16>
    %c2_345 = arith.constant 2 : index
    %c0_346 = arith.constant 0 : index
    %c0_347 = arith.constant 0 : index
    %873 = vector.load %arg8[%c2_345, %c0_346, %c0_347] : memref<3x32x256xbf16, #tpu.memory_space<vmem>>, vector<1x32x256xbf16>
    %874 = vector.shape_cast %873 : vector<1x32x256xbf16> to vector<32x256xbf16>
    %cst_348 = arith.constant dense<0.000000e+00> : vector<16x256xf32>
    %875 = tpu.matmul %872, %874, %cst_348 {dimension_numbers = #tpu.dot_dimension_numbers<[1], [0], [0], [1], [0, 0, 1, 1], [], []>} : vector<16x32xbf16>, vector<32x256xbf16>, vector<16x256xf32> -> vector<16x256xf32>
    %c2_349 = arith.constant 2 : index
    %c0_350 = arith.constant 0 : index
    %c0_351 = arith.constant 0 : index
    %876 = vector.load %arg9[%c2_349, %c0_350, %c0_351] : memref<3x1x256xf32, #tpu.memory_space<vmem>>, vector<1x1x256xf32>
    %877 = vector.shape_cast %876 : vector<1x1x256xf32> to vector<1x256xf32>
    %878 = vector.broadcast %877 : vector<1x256xf32> to vector<16x256xf32>
    %879 = arith.addf %875, %878 : vector<16x256xf32>
    %cst_352 = arith.constant 5.000000e-01 : f32
    %880 = vector.broadcast %cst_352 : f32 to vector<16x256xf32>
    %881 = arith.mulf %880, %879 : vector<16x256xf32>
    %cst_353 = arith.constant 4.471500e-02 : f32
    %882 = vector.broadcast %cst_353 : f32 to vector<16x256xf32>
    %883 = arith.mulf %882, %879 : vector<16x256xf32>
    %884 = arith.mulf %883, %879 : vector<16x256xf32>
    %885 = arith.mulf %884, %879 : vector<16x256xf32>
    %886 = arith.addf %879, %885 : vector<16x256xf32>
    %cst_354 = arith.constant 0.797884583 : f32
    %887 = vector.broadcast %cst_354 : f32 to vector<16x256xf32>
    %888 = arith.mulf %887, %886 : vector<16x256xf32>
    %889 = math.tanh %888 : vector<16x256xf32>
    %cst_355 = arith.constant 1.000000e+00 : f32
    %890 = vector.broadcast %cst_355 : f32 to vector<16x256xf32>
    %891 = arith.addf %890, %889 : vector<16x256xf32>
    %892 = arith.mulf %881, %891 : vector<16x256xf32>
    %893 = arith.truncf %892 : vector<16x256xf32> to vector<16x256xbf16>
    %c2_356 = arith.constant 2 : index
    %c0_357 = arith.constant 0 : index
    %c0_358 = arith.constant 0 : index
    %894 = vector.load %arg10[%c2_356, %c0_357, %c0_358] : memref<3x256x32xbf16, #tpu.memory_space<vmem>>, vector<1x256x32xbf16>
    %895 = vector.shape_cast %894 : vector<1x256x32xbf16> to vector<256x32xbf16>
    %cst_359 = arith.constant dense<0.000000e+00> : vector<16x32xf32>
    %896 = tpu.matmul %893, %895, %cst_359 {dimension_numbers = #tpu.dot_dimension_numbers<[1], [0], [0], [1], [0, 0, 1, 1], [], []>} : vector<16x256xbf16>, vector<256x32xbf16>, vector<16x32xf32> -> vector<16x32xf32>
    %c2_360 = arith.constant 2 : index
    %c0_361 = arith.constant 0 : index
    %c0_362 = arith.constant 0 : index
    %897 = vector.load %arg11[%c2_360, %c0_361, %c0_362] : memref<3x1x32xf32, #tpu.memory_space<vmem>>, vector<1x1x32xf32>
    %898 = vector.shape_cast %897 : vector<1x1x32xf32> to vector<1x32xf32>
    %899 = vector.broadcast %898 : vector<1x32xf32> to vector<16x32xf32>
    %900 = arith.addf %896, %899 : vector<16x32xf32>
    %901 = arith.addf %845, %900 : vector<16x32xf32>
    %c0_363 = arith.constant 0 : index
    %c0_364 = arith.constant 0 : index
    %902 = vector.load %arg18[%c0_363, %c0_364] : memref<16x32xf32, #tpu.memory_space<vmem>>, vector<16x32xf32>
    tpu.vector_store %arg18[%c0_363, %c0_364], %901 {strides = array<i32>} : memref<16x32xf32, #tpu.memory_space<vmem>>, vector<16x32xf32>,
    return
  }
}

</mosaic_0001>

<llo_original>
// kernel: tpu_custom_call.1
$region0: #{tpu_custom_call.1}
  #allocation0 [shape = 'u32[]', space=smem, size = 0x4, offset = 0x4, fixed_abs, tag = 'smem constant byte address 0x4 - core index']
  #allocation1 [shape = 'u32[144,128]{1,0:T(1,128)}', space=vmem, size = 0x12000, scoped, tag = 'internal scratch']
  #allocation2 [shape = 'bf16[48,384]{1,0:T(16,128)(2,1)}', space=vmem, size = 0x9000, scoped, tag = 'scratch operand']
  #allocation3 [shape = 'bf16[48,192]{1,0:T(16,128)(2,1)}', space=vmem, size = 0x6000, scoped, tag = 'scratch operand']
  #allocation4 [shape = 'bf16[16,48]{1,0:T(16,128)(2,1)}', space=vmem, size = 0x1000, scoped, tag = 'scratch operand']
  %s0 = inlined_call_operand.vmem [shape: f32[16,32], index: 0, kind: input, shape index: {}]
  %s1 = inlined_call_operand.vmem [shape: f32[3,1,32], index: 1, kind: input, shape index: {}]
  %s2 = inlined_call_operand.vmem [shape: f32[3,1,32], index: 2, kind: input, shape index: {}]
  %s3 = inlined_call_operand.vmem [shape: bf16[3,32,576], index: 3, kind: input, shape index: {}]
  %s4 = inlined_call_operand.vmem [shape: bf16[3,192,32], index: 4, kind: input, shape index: {}]
  %s5 = inlined_call_operand.vmem [shape: f32[3,1,32], index: 5, kind: input, shape index: {}]
  %s6 = inlined_call_operand.vmem [shape: f32[3,1,32], index: 6, kind: input, shape index: {}]
  %s7 = inlined_call_operand.vmem [shape: f32[3,1,32], index: 7, kind: input, shape index: {}]
  %s8 = inlined_call_operand.vmem [shape: bf16[3,32,256], index: 8, kind: input, shape index: {}]
  %s9 = inlined_call_operand.vmem [shape: f32[3,1,256], index: 9, kind: input, shape index: {}]
  %s10 = inlined_call_operand.vmem [shape: bf16[3,256,32], index: 10, kind: input, shape index: {}]
  %s11 = inlined_call_operand.vmem [shape: f32[3,1,32], index: 11, kind: input, shape index: {}]
  %s12 = inlined_call_operand.vmem [shape: f32[3,48,16], index: 12, kind: input, shape index: {}]
  %s13 = inlined_call_operand.vmem [shape: f32[3,48,16], index: 13, kind: input, shape index: {}]
  %s14 = inlined_call_operand.vmem [shape: f32[3,48,48], index: 14, kind: input, shape index: {}]
  %s15 = inlined_call_operand.vmem [shape: f32[3,48,1], index: 15, kind: input, shape index: {}]
  %s16 = inlined_call_operand.vmem [shape: f32[3,48,48], index: 16, kind: input, shape index: {}]
  %s17 = inlined_call_operand.vmem [shape: f32[3,48,1], index: 17, kind: input, shape index: {}]
  %s18 = inlined_call_operand.hbm [shape: f32[16,32], index: 18, kind: output, shape index: {}]
  %s19 = sld [smem:[#allocation0]]
  $region82: #{tpu_custom_call.1} parent=0
    _
  %s21 = ssub.s32 1, %s19
  %s22 = scalar_select 0, %s21, %s19
  $region1: #{tpu_custom_call.1} parent=0
    #allocation5 [shape = 'u8[8192]{0}', space=vmem, size = 0x2000, scoped, tag = 'output window, operand 0, single buffered']
    #allocation6 [shape = 's32[1]{0}', space=sflag, size = 0x4, scoped, tag = 'scoped memory for tpu_custom_call.1']
    %23 = vsyncpa [#allocation6], 0
    // Predicated region
    $region2: #{tpu_custom_call.1} parent=1 // pred_check
      _
    $region3: #{tpu_custom_call.1} parent=1 // pred_check_branch
      %25 = sbr.rel (0) target = $region5
    $region4: #{tpu_custom_call.1} parent=1 // pred_region
      _
    $region5: #{tpu_custom_call.1} parent=1 // pred_fallthru
      _
    // Predicated region
    $region6: #{tpu_custom_call.1} parent=1 // pred_check
      _
    $region7: #{tpu_custom_call.1} parent=1 // pred_check_branch
      %27 = sbr.rel (0) target = $region9
    $region8: #{tpu_custom_call.1} parent=1 // pred_region
      _
    $region9: #{tpu_custom_call.1} parent=1 // pred_fallthru
      _
    // Predicated region
    $region10: #{tpu_custom_call.1} parent=1 // pred_check
      _
    $region11: #{tpu_custom_call.1} parent=1 // pred_check_branch
      %29 = sbr.rel (0) target = $region13
    $region12: #{tpu_custom_call.1} parent=1 // pred_region
      _
    $region13: #{tpu_custom_call.1} parent=1 // pred_fallthru
      _
    // Predicated region
    $region14: #{tpu_custom_call.1} parent=1 // pred_check
      _
    $region15: #{tpu_custom_call.1} parent=1 // pred_check_branch
      %31 = sbr.rel (0) target = $region17
    $region16: #{tpu_custom_call.1} parent=1 // pred_region
      _
    $region17: #{tpu_custom_call.1} parent=1 // pred_fallthru
      _
    // Predicated region
    $region18: #{tpu_custom_call.1} parent=1 // pred_check
      _
    $region19: #{tpu_custom_call.1} parent=1 // pred_check_branch
      %33 = sbr.rel (0) target = $region21
    $region20: #{tpu_custom_call.1} parent=1 // pred_region
      _
    $region21: #{tpu_custom_call.1} parent=1 // pred_fallthru
      _
    // Predicated region
    $region22: #{tpu_custom_call.1} parent=1 // pred_check
      _
    $region23: #{tpu_custom_call.1} parent=1 // pred_check_branch
      %35 = sbr.rel (0) target = $region25
    $region24: #{tpu_custom_call.1} parent=1 // pred_region
      _
    $region25: #{tpu_custom_call.1} parent=1 // pred_fallthru
      _
    // Predicated region
    $region26: #{tpu_custom_call.1} parent=1 // pred_check
      _
    $region27: #{tpu_custom_call.1} parent=1 // pred_check_branch
      %37 = sbr.rel (0) target = $region29
    $region28: #{tpu_custom_call.1} parent=1 // pred_region
      _
    $region29: #{tpu_custom_call.1} parent=1 // pred_fallthru
      _
    // Predicated region
    $region30: #{tpu_custom_call.1} parent=1 // pred_check
      _
    $region31: #{tpu_custom_call.1} parent=1 // pred_check_branch
      %39 = sbr.rel (0) target = $region33
    $region32: #{tpu_custom_call.1} parent=1 // pred_region
      _
    $region33: #{tpu_custom_call.1} parent=1 // pred_fallthru
      _
    // Predicated region
    $region34: #{tpu_custom_call.1} parent=1 // pred_check
      _
    $region35: #{tpu_custom_call.1} parent=1 // pred_check_branch
      %41 = sbr.rel (0) target = $region37
    $region36: #{tpu_custom_call.1} parent=1 // pred_region
      _
    $region37: #{tpu_custom_call.1} parent=1 // pred_fallthru
      _
    // Predicated region
    $region38: #{tpu_custom_call.1} parent=1 // pred_check
      _
    $region39: #{tpu_custom_call.1} parent=1 // pred_check_branch
      %43 = sbr.rel (0) target = $region41
    $region40: #{tpu_custom_call.1} parent=1 // pred_region
      _
    $region41: #{tpu_custom_call.1} parent=1 // pred_fallthru
      _
    // Predicated region
    $region42: #{tpu_custom_call.1} parent=1 // pred_check
      _
    $region43: #{tpu_custom_call.1} parent=1 // pred_check_branch
      %45 = sbr.rel (0) target = $region45
    $region44: #{tpu_custom_call.1} parent=1 // pred_region
      _
    $region45: #{tpu_custom_call.1} parent=1 // pred_fallthru
      _
    // Predicated region
    $region46: #{tpu_custom_call.1} parent=1 // pred_check
      _
    $region47: #{tpu_custom_call.1} parent=1 // pred_check_branch
      %47 = sbr.rel (0) target = $region49
    $region48: #{tpu_custom_call.1} parent=1 // pred_region
      _
    $region49: #{tpu_custom_call.1} parent=1 // pred_fallthru
      _
    // Predicated region
    $region50: #{tpu_custom_call.1} parent=1 // pred_check
      _
    $region51: #{tpu_custom_call.1} parent=1 // pred_check_branch
      %49 = sbr.rel (0) target = $region53
    $region52: #{tpu_custom_call.1} parent=1 // pred_region
      _
    $region53: #{tpu_custom_call.1} parent=1 // pred_fallthru
      _
    // Predicated region
    $region54: #{tpu_custom_call.1} parent=1 // pred_check
      _
    $region55: #{tpu_custom_call.1} parent=1 // pred_check_branch
      %51 = sbr.rel (0) target = $region57
    $region56: #{tpu_custom_call.1} parent=1 // pred_region
      _
    $region57: #{tpu_custom_call.1} parent=1 // pred_fallthru
      _
    // Predicated region
    $region58: #{tpu_custom_call.1} parent=1 // pred_check
      _
    $region59: #{tpu_custom_call.1} parent=1 // pred_check_branch
      %53 = sbr.rel (0) target = $region61
    $region60: #{tpu_custom_call.1} parent=1 // pred_region
      _
    $region61: #{tpu_custom_call.1} parent=1 // pred_fallthru
      _
    // Predicated region
    $region62: #{tpu_custom_call.1} parent=1 // pred_check
      _
    $region63: #{tpu_custom_call.1} parent=1 // pred_check_branch
      %55 = sbr.rel (0) target = $region65
    $region64: #{tpu_custom_call.1} parent=1 // pred_region
      _
    $region65: #{tpu_custom_call.1} parent=1 // pred_fallthru
      _
    // Predicated region
    $region66: #{tpu_custom_call.1} parent=1 // pred_check
      _
    $region67: #{tpu_custom_call.1} parent=1 // pred_check_branch
      %57 = sbr.rel (0) target = $region69
    $region68: #{tpu_custom_call.1} parent=1 // pred_region
      _
    $region69: #{tpu_custom_call.1} parent=1 // pred_fallthru
      _
    // Predicated region
    $region70: #{tpu_custom_call.1} parent=1 // pred_check
      _
    $region71: #{tpu_custom_call.1} parent=1 // pred_check_branch
      %59 = sbr.rel (0) target = $region73
    $region72: #{tpu_custom_call.1} parent=1 // pred_region
      _
    $region73: #{tpu_custom_call.1} parent=1 // pred_fallthru
      _
    %v61 = vld [vmem:[%s0] sm:$0xff]
    %v62 = vld [vmem:[%s0 + $0x8] sm:$0xff]
    %63 = vst [vmem:[#allocation2] sm:$0xff] 0
    %64 = vst [vmem:[#allocation2 + $0x8] sm:$0xff] 0
    %65 = vst [vmem:[#allocation2 + $0x10] sm:$0xff] 0
    %66 = vst [vmem:[#allocation2 + $0x18] sm:$0xff] 0
    %67 = vst [vmem:[#allocation2 + $0x20] sm:$0xff] 0
    %68 = vst [vmem:[#allocation2 + $0x28] sm:$0xff] 0
    %69 = vst [vmem:[#allocation2 + $0x30] sm:$0xff] 0
    %70 = vst [vmem:[#allocation2 + $0x38] sm:$0xff] 0
    %71 = vst [vmem:[#allocation2 + $0x40] sm:$0xff] 0
    %72 = vst [vmem:[#allocation3] sm:$0xff] 0
    %vm73 = vcmask 523264
    %74 = vst.msk [vmem:[#allocation3 + $0x8] sm:$0xff] %vm73, 0
    %75 = vst [vmem:[#allocation3 + $0x10] sm:$0xff] 0
    %76 = vst.msk [vmem:[#allocation3 + $0x18] sm:$0xff] %vm73, 0
    %77 = vst [vmem:[#allocation3 + $0x20] sm:$0xff] 0
    %78 = vst.msk [vmem:[#allocation3 + $0x28] sm:$0xff] %vm73, 0
    %vm79 = vcmask 392192
    %80 = vst.msk [vmem:[#allocation4] sm:$0xff] %vm79, 0
    %v81 = vlaneseq
    %v82 = vshrl.u32 %v81, 7
    %v83 = vadd.s32 %v82, 8
    %v84 = vadd.s32 %v82, 16
    %v85 = vadd.s32 %v82, 24
    %v86 = vadd.s32 %v82, 32
    %v87 = vadd.s32 %v82, 40
    %vm88 = vcmp.lt.s32.totalorder %v82, 0
    %v89 = vsub.s32 0, %v82
    %v90 = vsel %vm88, %v89, %v82
    %v91 = vshrl.u32 %v90, 3
    %v92 = vand.u32 %v90, 7
    %v93 = vsub.s32 0, %v92
    %v94 = vsel %vm88, %v93, %v92
    %vm95 = vcmp.lt.s32.totalorder %v83, 0
    %v96 = vsub.s32 0, %v83
    %v97 = vsel %vm95, %v96, %v83
    %v98 = vshrl.u32 %v97, 3
    %v99 = vand.u32 %v97, 7
    %v100 = vsub.s32 0, %v99
    %v101 = vsel %vm95, %v100, %v99
    %vm102 = vcmp.lt.s32.totalorder %v84, 0
    %v103 = vsub.s32 0, %v84
    %v104 = vsel %vm102, %v103, %v84
    %v105 = vshrl.u32 %v104, 3
    %v106 = vand.u32 %v104, 7
    %v107 = vsub.s32 0, %v106
    %v108 = vsel %vm102, %v107, %v106
    %vm109 = vcmp.lt.s32.totalorder %v85, 0
    %v110 = vsub.s32 0, %v85
    %v111 = vsel %vm109, %v110, %v85
    %v112 = vshrl.u32 %v111, 3
    %v113 = vand.u32 %v111, 7
    %v114 = vsub.s32 0, %v113
    %v115 = vsel %vm109, %v114, %v113
    %vm116 = vcmp.lt.s32.totalorder %v86, 0
    %v117 = vsub.s32 0, %v86
    %v118 = vsel %vm116, %v117, %v86
    %v119 = vshrl.u32 %v118, 3
    %v120 = vand.u32 %v118, 7
    %v121 = vsub.s32 0, %v120
    %v122 = vsel %vm116, %v121, %v120
    %vm123 = vcmp.lt.s32.totalorder %v87, 0
    %v124 = vsub.s32 0, %v87
    %v125 = vsel %vm123, %v124, %v87
    %v126 = vshrl.u32 %v125, 3
    %v127 = vand.u32 %v125, 7
    %v128 = vsub.s32 0, %v127
    %v129 = vsel %vm123, %v128, %v127
    %vm130 = vcmp.ne.s32.totalorder %v94, 0
    %vm131 = vcmp.ne.s32.totalorder %v101, 0
    %vm132 = vcmp.ne.s32.totalorder %v108, 0
    %vm133 = vcmp.ne.s32.totalorder %v115, 0
    %vm134 = vcmp.ne.s32.totalorder %v122, 0
    %vm135 = vcmp.ne.s32.totalorder %v129, 0
    %vm136 = vcmp.lt.s32.totalorder %v94, 0
    %vm137 = vcmp.lt.s32.totalorder %v101, 0
    %vm138 = vcmp.lt.s32.totalorder %v108, 0
    %vm139 = vcmp.lt.s32.totalorder %v115, 0
    %vm140 = vcmp.lt.s32.totalorder %v122, 0
    %vm141 = vcmp.lt.s32.totalorder %v129, 0
    %vm142 = vmand %vm136, %vm130
    %vm143 = vmand %vm137, %vm131
    %vm144 = vmand %vm138, %vm132
    %vm145 = vmand %vm139, %vm133
    %vm146 = vmand %vm140, %vm134
    %vm147 = vmand %vm141, %vm135
    %v148 = vadd.s32 %v94, 8
    %v149 = vadd.s32 %v101, 8
    %v150 = vadd.s32 %v108, 8
    %v151 = vadd.s32 %v115, 8
    %v152 = vadd.s32 %v122, 8
    %v153 = vadd.s32 %v129, 8
    %v154 = vsel %vm142, %v148, %v94
    %v155 = vsel %vm143, %v149, %v101
    %v156 = vsel %vm144, %v150, %v108
    %v157 = vsel %vm145, %v151, %v115
    %v158 = vsel %vm146, %v152, %v122
    %v159 = vsel %vm147, %v153, %v129
    %vm160 = vcmp.ne.s32.totalorder %v154, 0
    %vm161 = vcmp.ne.s32.totalorder %v155, 0
    %vm162 = vcmp.ne.s32.totalorder %v156, 0
    %vm163 = vcmp.ne.s32.totalorder %v157, 0
    %vm164 = vcmp.ne.s32.totalorder %v158, 0
    %vm165 = vcmp.ne.s32.totalorder %v159, 0
    %v166 = vsel %vm160, 1, 0
    %v167 = vsel %vm161, 1, 0
    %v168 = vsel %vm162, 1, 0
    %v169 = vsel %vm163, 1, 0
    %v170 = vsel %vm164, 1, 0
    %v171 = vsel %vm165, 1, 0
    %v172 = vcvt.s32.f32 %v166
    %v173 = vcvt.s32.f32 %v167
    %v174 = vcvt.s32.f32 %v168
    %v175 = vcvt.s32.f32 %v169
    %v176 = vcvt.s32.f32 %v170
    %v177 = vcvt.s32.f32 %v171
    %vm178 = vcmp.ne.s32.totalorder %v154, 7
    %vm179 = vcmp.ne.s32.totalorder %v155, 7
    %vm180 = vcmp.ne.s32.totalorder %v156, 7
    %vm181 = vcmp.ne.s32.totalorder %v157, 7
    %vm182 = vcmp.ne.s32.totalorder %v158, 7
    %vm183 = vcmp.ne.s32.totalorder %v159, 7
    %v184 = vsel %vm178, 1, 0
    %v185 = vsel %vm179, 1, 0
    %v186 = vsel %vm180, 1, 0
    %v187 = vsel %vm181, 1, 0
    %v188 = vsel %vm182, 1, 0
    %v189 = vsel %vm183, 1, 0
    %v190 = vcvt.s32.f32 %v184
    %v191 = vcvt.s32.f32 %v185
    %v192 = vcvt.s32.f32 %v186
    %v193 = vcvt.s32.f32 %v187
    %v194 = vcvt.s32.f32 %v188
    %v195 = vcvt.s32.f32 %v189
    %v196 = vld [vmem:[%s1] sm:$0x1]
    %v197 = vld [vmem:[%s2] sm:$0x1]
    %vm198 = vcmask 261120
    %v199 = vsel %vm198, %v61, 0.0
    %200 = vadd.xlane.f32.xlu0 %v199
    %v201 = vpop.xlane.xlu0 %200
    %v202 = vsel %vm198, %v62, 0.0
    %203 = vadd.xlane.f32.xlu0 %v202
    %v204 = vpop.xlane.xlu0 %203
    %v205 = vrcp.pop 32.0
    %v206 = vmul.f32 %v201, %v205
    %v207 = vmul.f32 %v204, %v205
    %v208 = vsub.f32 %v61, %v206
    %v209 = vsub.f32 %v62, %v207
    %v210 = vmul.f32 %v208, %v208
    %v211 = vmul.f32 %v209, %v209
    %v212 = vsel %vm198, %v210, 0.0
    %213 = vadd.xlane.f32.xlu0 %v212
    %v214 = vpop.xlane.xlu0 %213
    %v215 = vsel %vm198, %v211, 0.0
    %216 = vadd.xlane.f32.xlu0 %v215
    %v217 = vpop.xlane.xlu0 %216
    %v218 = vmul.f32 %v214, %v205
    %v219 = vmul.f32 %v217, %v205
    %v220 = vadd.f32 %v218, 1e-05
    %v221 = vadd.f32 %v219, 1e-05
    %v222 = vrsqrt.pop %v220
    %v223 = vrsqrt.pop %v221
    %v224 = vmul.f32 %v208, %v222
    %v225 = vmul.f32 %v209, %v223
    %v227 = vlaneseq
    %v228 = vshrl.u32 %v227, 7
    %v229 = vsub.s32 0, %v228
    %v230 = vrot.slane %v196, %v229
    %v232 = vmul.f32 %v224, %v230
    %v233 = vmul.f32 %v225, %v230
    %v235 = vlaneseq
    %v236 = vshrl.u32 %v235, 7
    %v237 = vsub.s32 0, %v236
    %v238 = vrot.slane %v197, %v237
    %v240 = vadd.f32 %v232, %v238
    %v241 = vadd.f32 %v233, %v238
    %v242 = vpack.c.bf16 %v241, %v240
    %v243 = vld [vmem:[%s3] sm:$0xff]
    %v244 = vld [vmem:[%s3 + $0x8] sm:$0xff]
    %v245 = vld [vmem:[%s3 + $0x10] sm:$0xf]
    %v246 = vld [vmem:[%s3 + $0x14] sm:$0xff]
    %v247 = vld [vmem:[%s3 + $0x1c] sm:$0xff]
    %v248 = vld [vmem:[%s3 + $0x24] sm:$0xf]
    %v249 = vld [vmem:[%s3 + $0x28] sm:$0xff]
    %v250 = vld [vmem:[%s3 + $0x30] sm:$0xff]
    %v251 = vld [vmem:[%s3 + $0x38] sm:$0xf]
    %v252 = vld [vmem:[%s3 + $0x3c] sm:$0xff]
    %v253 = vld [vmem:[%s3 + $0x44] sm:$0xff]
    %v254 = vld [vmem:[%s3 + $0x4c] sm:$0xf]
    %v267 = vunpack.c.l.b16 %v243
    %v268 = vunpack.c.h.b16 %v243
    %v269 = vunpack.c.l.b16 %v244
    %v270 = vunpack.c.h.b16 %v244
    %v271 = vunpack.c.l.b16 %v245
    %v272 = vunpack.c.l.b16 %v246
    %v273 = vunpack.c.h.b16 %v246
    %v274 = vunpack.c.l.b16 %v247
    %v275 = vunpack.c.h.b16 %v247
    %v276 = vunpack.c.l.b16 %v248
    %v277 = vunpack.c.l.b16 %v249
    %v278 = vunpack.c.h.b16 %v249
    %v279 = vunpack.c.l.b16 %v250
    %v280 = vunpack.c.h.b16 %v250
    %v281 = vunpack.c.l.b16 %v251
    %v282 = vunpack.c.l.b16 %v252
    %v283 = vunpack.c.h.b16 %v252
    %v284 = vunpack.c.l.b16 %v253
    %v285 = vunpack.c.h.b16 %v253
    %v286 = vunpack.c.l.b16 %v254
    %v287 = vpack.c.b16 %v272, %v267
    %v288 = vpack.c.b16 %v273, %v268
    %v289 = vpack.c.b16 %v274, %v269
    %v290 = vpack.c.b16 %v275, %v270
    %v291 = vpack.c.b16 %v276, %v271
    %v292 = vpack.c.b16 %v282, %v277
    %v293 = vpack.c.b16 %v283, %v278
    %v294 = vpack.c.b16 %v284, %v279
    %v295 = vpack.c.b16 %v285, %v280
    %v296 = vpack.c.b16 %v286, %v281
    %v308 = vsel %vm198, %v242, 0
    %310 = vmatprep.subr.bf16.mxu0 %v288
    %311 = vmatpush1.bf16.msra.mxu0 %v287
    %312 = vmatprep.subr.bf16.mxu0 %v293
    %313 = vmatpush1.bf16.msra.mxu0 %v292
    %314 = vmatprep.subr.bf16.mxu0 0
    %315 = vmatpush1.bf16.msra.mxu0 0
    %316 = vmatprep.subr.bf16.mxu0 0
    %317 = vmatpush1.bf16.msra.mxu0 0
    %318 = vmatprep.subr.bf16.mxu0 0
    %319 = vmatpush1.bf16.msra.mxu0 0
    %320 = vmatprep.subr.bf16.mxu0 0
    %321 = vmatpush1.bf16.msra.mxu0 0
    %322 = vmatprep.subr.bf16.mxu0 0
    %323 = vmatpush1.bf16.msra.mxu0 0
    %324 = vmatprep.subr.bf16.mxu0 0
    %325 = vmatpush1.bf16.msra.mxu0 0
    %326 = vmatprep.subr.bf16.mxu0 0
    %327 = vmatpush1.bf16.msra.mxu0 0
    %328 = vmatprep.subr.bf16.mxu0 0
    %329 = vmatpush1.bf16.msra.mxu0 0
    %330 = vmatprep.subr.bf16.mxu0 0
    %331 = vmatpush1.bf16.msra.mxu0 0
    %332 = vmatprep.subr.bf16.mxu0 0
    %333 = vmatpush1.bf16.msra.mxu0 0
    %334 = vmatprep.subr.bf16.mxu0 0
    %335 = vmatpush1.bf16.msra.mxu0 0
    %336 = vmatprep.subr.bf16.mxu0 0
    %337 = vmatpush1.bf16.msra.mxu0 0
    %338 = vmatprep.subr.bf16.mxu0 0
    %339 = vmatpush1.bf16.msra.mxu0 0
    %340 = vmatprep.subr.bf16.mxu0 0
    %341 = vmatpush1.bf16.msra.mxu0 0
    %342 = vmatprep.mubr.bf16.mxu0 0
    %343 = vmatmul.mubr.bf16.gmra.mrb[0].mxu0 %v308
    %v344 = vpop.f32.mrb[0].mxu0
    %v345 = vadd.f32 0.0, %v344
    %v346 = vpop.f32.mrb[0].mxu0
    %v347 = vadd.f32 0.0, %v346
    %v348 = vpop.f32.mrb[0].mxu0
    %v349 = vadd.f32 0.0, %v348
    %v350 = vpop.f32.mrb[0].mxu0
    %v351 = vadd.f32 0.0, %v350
    %352 = vdwg.mxu0
    %353 = vmatprep.subr.bf16.mxu0 %v290
    %354 = vmatpush1.bf16.msra.mxu0 %v289
    %355 = vmatprep.subr.bf16.mxu0 %v295
    %356 = vmatpush1.bf16.msra.mxu0 %v294
    %357 = vmatprep.subr.bf16.mxu0 0
    %358 = vmatpush1.bf16.msra.mxu0 0
    %359 = vmatprep.subr.bf16.mxu0 0
    %360 = vmatpush1.bf16.msra.mxu0 0
    %361 = vmatprep.subr.bf16.mxu0 0
    %362 = vmatpush1.bf16.msra.mxu0 0
    %363 = vmatprep.subr.bf16.mxu0 0
    %364 = vmatpush1.bf16.msra.mxu0 0
    %365 = vmatprep.subr.bf16.mxu0 0
    %366 = vmatpush1.bf16.msra.mxu0 0
    %367 = vmatprep.subr.bf16.mxu0 0
    %368 = vmatpush1.bf16.msra.mxu0 0
    %369 = vmatprep.subr.bf16.mxu0 0
    %370 = vmatpush1.bf16.msra.mxu0 0
    %371 = vmatprep.subr.bf16.mxu0 0
    %372 = vmatpush1.bf16.msra.mxu0 0
    %373 = vmatprep.subr.bf16.mxu0 0
    %374 = vmatpush1.bf16.msra.mxu0 0
    %375 = vmatprep.subr.bf16.mxu0 0
    %376 = vmatpush1.bf16.msra.mxu0 0
    %377 = vmatprep.subr.bf16.mxu0 0
    %378 = vmatpush1.bf16.msra.mxu0 0
    %379 = vmatprep.subr.bf16.mxu0 0
    %380 = vmatpush1.bf16.msra.mxu0 0
    %381 = vmatprep.subr.bf16.mxu0 0
    %382 = vmatpush1.bf16.msra.mxu0 0
    %383 = vmatprep.subr.bf16.mxu0 0
    %384 = vmatpush1.bf16.msra.mxu0 0
    %385 = vmatprep.mubr.bf16.mxu0 0
    %386 = vmatmul.mubr.bf16.gmra.mrb[0].mxu0 %v308
    %v387 = vpop.f32.mrb[0].mxu0
    %v388 = vadd.f32 0.0, %v387
    %v389 = vpop.f32.mrb[0].mxu0
    %v390 = vadd.f32 0.0, %v389
    %v391 = vpop.f32.mrb[0].mxu0
    %v392 = vadd.f32 0.0, %v391
    %v393 = vpop.f32.mrb[0].mxu0
    %v394 = vadd.f32 0.0, %v393
    %395 = vdwg.mxu0
    %396 = vmatprep.subr.bf16.mxu0 0
    %397 = vmatpush1.bf16.msra.mxu0 %v291
    %398 = vmatprep.subr.bf16.mxu0 0
    %399 = vmatpush1.bf16.msra.mxu0 %v296
    %400 = vmatprep.subr.bf16.mxu0 0
    %401 = vmatpush1.bf16.msra.mxu0 0
    %402 = vmatprep.subr.bf16.mxu0 0
    %403 = vmatpush1.bf16.msra.mxu0 0
    %404 = vmatprep.subr.bf16.mxu0 0
    %405 = vmatpush1.bf16.msra.mxu0 0
    %406 = vmatprep.subr.bf16.mxu0 0
    %407 = vmatpush1.bf16.msra.mxu0 0
    %408 = vmatprep.subr.bf16.mxu0 0
    %409 = vmatpush1.bf16.msra.mxu0 0
    %410 = vmatprep.subr.bf16.mxu0 0
    %411 = vmatpush1.bf16.msra.mxu0 0
    %412 = vmatprep.subr.bf16.mxu0 0
    %413 = vmatpush1.bf16.msra.mxu0 0
    %414 = vmatprep.subr.bf16.mxu0 0
    %415 = vmatpush1.bf16.msra.mxu0 0
    %416 = vmatprep.subr.bf16.mxu0 0
    %417 = vmatpush1.bf16.msra.mxu0 0
    %418 = vmatprep.subr.bf16.mxu0 0
    %419 = vmatpush1.bf16.msra.mxu0 0
    %420 = vmatprep.subr.bf16.mxu0 0
    %421 = vmatpush1.bf16.msra.mxu0 0
    %422 = vmatprep.subr.bf16.mxu0 0
    %423 = vmatpush1.bf16.msra.mxu0 0
    %424 = vmatprep.subr.bf16.mxu0 0
    %425 = vmatpush1.bf16.msra.mxu0 0
    %426 = vmatprep.subr.bf16.mxu0 0
    %427 = vmatpush1.bf16.msra.mxu0 0
    %428 = vmatprep.mubr.bf16.mxu0 0
    %429 = vmatmul.mubr.bf16.gmra.mrb[0].mxu0 %v308
    %v430 = vpop.f32.mrb[0].mxu0
    %v431 = vadd.f32 0.0, %v430
    %v432 = vpop.f32.mrb[0].mxu0
    %v433 = vpop.f32.mrb[0].mxu0
    %v434 = vadd.f32 0.0, %v433
    %v435 = vpop.f32.mrb[0].mxu0
    %436 = vdwg.mxu0
    %v437 = vpack.c.bf16 %v349, %v345
    %v438 = vpack.c.bf16 %v351, %v347
    %v439 = vpack.c.bf16 %v392, %v388
    %v440 = vpack.c.bf16 %v394, %v390
    %v441 = vpack.c.bf16 %v434, %v431
    %vm442 = vcmask 519168
    %443 = vst.msk [vmem:[#allocation2] sm:$0xf] %vm442, %v437
    %v445 = vrot.slane %v437, 4
    %vm447 = vcmask 1048068
    %448 = vst.msk [vmem:[#allocation2] sm:$0xf0] %vm447, %v445
    %449 = vst.msk [vmem:[#allocation2 + $0x20] sm:$0xf] %vm442, %v438
    %450 = vrot.lane.b32.xlu0 %v437, 64
    %v451 = vpop.permute.xlu0 %450
    %453 = vst.msk [vmem:[#allocation2 + $0x20] sm:$0xf0] %vm447, %v451
    %454 = vrot.lane.b32.xlu0 %v445, 64
    %v455 = vpop.permute.xlu0 %454
    %457 = vst.msk [vmem:[#allocation2 + $0x40] sm:$0xf] %vm442, %v455
    %459 = vrot.lane.b32.xlu0 %v438, 64
    %v460 = vpop.permute.xlu0 %459
    %462 = vst.msk [vmem:[#allocation2 + $0x40] sm:$0xf0] %vm447, %v460
    %463 = vst.msk [vmem:[#allocation3] sm:$0xff] %vm73, %v440
    %vm464 = vcmask 1048064
    %465 = vst.msk [vmem:[#allocation3 + $0x10] sm:$0xff] %vm464, %v440
    %466 = vst.msk [vmem:[#allocation3 + $0x28] sm:$0xff] %vm73, %v441
    %468 = vrot.lane.b32.xlu0 %v439, 64
    %v469 = vpop.permute.xlu0 %468
    %vm470 = vcmask 523264
    %v471 = vsel %vm470, %v460, %v469
    %v473 = vrot.slane %v438, 4
    %v474 = vrot.slane %v439, 4
    %v478 = vsel %vm73, %v469, %v473
    %v480 = vld [vmem:[#allocation2] sm:$0xff]
    %v481 = vld [vmem:[#allocation2 + $0x8] sm:$0xff]
    %v482 = vld [vmem:[#allocation2 + $0x10] sm:$0xff]
    %v483 = vld [vmem:[#allocation2 + $0x18] sm:$0xff]
    %v484 = vld [vmem:[#allocation2 + $0x20] sm:$0xff]
    %v485 = vld [vmem:[#allocation2 + $0x28] sm:$0xff]
    %v486 = vld [vmem:[#allocation2 + $0x30] sm:$0xff]
    %v487 = vld [vmem:[#allocation2 + $0x38] sm:$0xff]
    %v488 = vld [vmem:[#allocation2 + $0x40] sm:$0xff]
    %489 = vmatprep.subr.bf16.mxu0 %v478
    %490 = vmatpush1.bf16.xpose.msra.mxu0 %v471
    %491 = vmatprep.subr.bf16.mxu0 0
    %492 = vmatpush1.bf16.xpose.msra.mxu0 0
    %493 = vmatprep.subr.bf16.mxu0 0
    %494 = vmatpush1.bf16.xpose.msra.mxu0 0
    %495 = vmatprep.subr.bf16.mxu0 0
    %496 = vmatpush1.bf16.xpose.msra.mxu0 0
    %497 = vmatprep.subr.bf16.mxu0 0
    %498 = vmatpush1.bf16.xpose.msra.mxu0 0
    %499 = vmatprep.subr.bf16.mxu0 0
    %500 = vmatpush1.bf16.xpose.msra.mxu0 0
    %501 = vmatprep.subr.bf16.mxu0 0
    %502 = vmatpush1.bf16.xpose.msra.mxu0 0
    %503 = vmatprep.subr.bf16.mxu0 0
    %504 = vmatpush1.bf16.xpose.msra.mxu0 0
    %505 = vmatprep.subr.bf16.mxu0 0
    %506 = vmatpush1.bf16.xpose.msra.mxu0 0
    %507 = vmatprep.subr.bf16.mxu0 0
    %508 = vmatpush1.bf16.xpose.msra.mxu0 0
    %509 = vmatprep.subr.bf16.mxu0 0
    %510 = vmatpush1.bf16.xpose.msra.mxu0 0
    %511 = vmatprep.subr.bf16.mxu0 0
    %512 = vmatpush1.bf16.xpose.msra.mxu0 0
    %513 = vmatprep.subr.bf16.mxu0 0
    %514 = vmatpush1.bf16.xpose.msra.mxu0 0
    %515 = vmatprep.subr.bf16.mxu0 0
    %516 = vmatpush1.bf16.xpose.msra.mxu0 0
    %517 = vmatprep.subr.bf16.mxu0 0
    %518 = vmatpush1.bf16.xpose.msra.mxu0 0
    %519 = vmatprep.subr.bf16.mxu0 0
    %520 = vmatpush1.bf16.xpose.msra.mxu0 0
    %521 = vmatprep.mubr.bf16.mxu0 %v481
    %522 = vmatmul.mubr.bf16.gmra.mrb[0].mxu0 %v480
    %v523 = vpop.f32.mrb[0].mxu0
    %v524 = vadd.f32 0.0, %v523
    %v525 = vpop.f32.mrb[0].mxu0
    %v526 = vpop.f32.mrb[0].mxu0
    %v527 = vadd.f32 0.0, %v526
    %v528 = vpop.f32.mrb[0].mxu0
    %529 = vmatprep.mubr.bf16.mxu0 %v484
    %530 = vmatmul.mubr.bf16.gmra.mrb[0].mxu0 %v483
    %v531 = vpop.f32.mrb[0].mxu0
    %v532 = vadd.f32 0.0, %v531
    %v533 = vpop.f32.mrb[0].mxu0
    %v534 = vpop.f32.mrb[0].mxu0
    %v535 = vadd.f32 0.0, %v534
    %v536 = vpop.f32.mrb[0].mxu0
    %537 = vmatprep.mubr.bf16.mxu0 %v487
    %538 = vmatmul.mubr.bf16.gmra.mrb[0].mxu0 %v486
    %v539 = vpop.f32.mrb[0].mxu0
    %v540 = vadd.f32 0.0, %v539
    %v541 = vpop.f32.mrb[0].mxu0
    %v542 = vpop.f32.mrb[0].mxu0
    %v543 = vadd.f32 0.0, %v542
    %v544 = vpop.f32.mrb[0].mxu0
    %545 = vdwg.mxu0
    %546 = vmatprep.subr.bf16.mxu0 0
    %547 = vmatpush1.bf16.xpose.msra.mxu0 %v474
    %548 = vmatprep.subr.bf16.mxu0 0
    %549 = vmatpush1.bf16.xpose.msra.mxu0 0
    %550 = vmatprep.subr.bf16.mxu0 0
    %551 = vmatpush1.bf16.xpose.msra.mxu0 0
    %552 = vmatprep.subr.bf16.mxu0 0
    %553 = vmatpush1.bf16.xpose.msra.mxu0 0
    %554 = vmatprep.subr.bf16.mxu0 0
    %555 = vmatpush1.bf16.xpose.msra.mxu0 0
    %556 = vmatprep.subr.bf16.mxu0 0
    %557 = vmatpush1.bf16.xpose.msra.mxu0 0
    %558 = vmatprep.subr.bf16.mxu0 0
    %559 = vmatpush1.bf16.xpose.msra.mxu0 0
    %560 = vmatprep.subr.bf16.mxu0 0
    %561 = vmatpush1.bf16.xpose.msra.mxu0 0
    %562 = vmatprep.subr.bf16.mxu0 0
    %563 = vmatpush1.bf16.xpose.msra.mxu0 0
    %564 = vmatprep.subr.bf16.mxu0 0
    %565 = vmatpush1.bf16.xpose.msra.mxu0 0
    %566 = vmatprep.subr.bf16.mxu0 0
    %567 = vmatpush1.bf16.xpose.msra.mxu0 0
    %568 = vmatprep.subr.bf16.mxu0 0
    %569 = vmatpush1.bf16.xpose.msra.mxu0 0
    %570 = vmatprep.subr.bf16.mxu0 0
    %571 = vmatpush1.bf16.xpose.msra.mxu0 0
    %572 = vmatprep.subr.bf16.mxu0 0
    %573 = vmatpush1.bf16.xpose.msra.mxu0 0
    %574 = vmatprep.subr.bf16.mxu0 0
    %575 = vmatpush1.bf16.xpose.msra.mxu0 0
    %576 = vmatprep.subr.bf16.mxu0 0
    %577 = vmatpush1.bf16.xpose.msra.mxu0 0
    %578 = vmatprep.mubr.bf16.mxu0 0
    %579 = vmatmul.mubr.bf16.gmra.mrb[0].mxu0 %v482
    %v580 = vpop.f32.mrb[0].mxu0
    %v581 = vadd.f32 %v524, %v580
    %v582 = vpop.f32.mrb[0].mxu0
    %v583 = vpop.f32.mrb[0].mxu0
    %v584 = vadd.f32 %v527, %v583
    %v585 = vpop.f32.mrb[0].mxu0
    %586 = vmatprep.mubr.bf16.mxu0 0
    %587 = vmatmul.mubr.bf16.gmra.mrb[0].mxu0 %v485
    %v588 = vpop.f32.mrb[0].mxu0
    %v589 = vadd.f32 %v532, %v588
    %v590 = vpop.f32.mrb[0].mxu0
    %v591 = vpop.f32.mrb[0].mxu0
    %v592 = vadd.f32 %v535, %v591
    %v593 = vpop.f32.mrb[0].mxu0
    %594 = vmatprep.mubr.bf16.mxu0 0
    %595 = vmatmul.mubr.bf16.gmra.mrb[0].mxu0 %v488
    %v596 = vpop.f32.mrb[0].mxu0
    %v597 = vadd.f32 %v540, %v596
    %v598 = vpop.f32.mrb[0].mxu0
    %v599 = vpop.f32.mrb[0].mxu0
    %v600 = vadd.f32 %v543, %v599
    %v601 = vpop.f32.mrb[0].mxu0
    %602 = vdwg.mxu0
    %v603 = vmul.f32 %v581, 0.125
    %v604 = vmul.f32 %v584, 0.125
    %v605 = vmul.f32 %v589, 0.125
    %v606 = vmul.f32 %v592, 0.125
    %v607 = vmul.f32 %v597, 0.125
    %v608 = vmul.f32 %v600, 0.125
    %v609 = vld [vmem:[%s12] sm:$0xff]
    %v610 = vld [vmem:[%s12 + $0x8] sm:$0xff]
    %v611 = vld [vmem:[%s12 + $0x10] sm:$0xff]
    %v612 = vld [vmem:[%s12 + $0x18] sm:$0xff]
    %v613 = vld [vmem:[%s12 + $0x20] sm:$0xff]
    %v614 = vld [vmem:[%s12 + $0x28] sm:$0xff]
    %621 = vrot.lane.b32.xlu0 %v603, 1
    %v622 = vpop.permute.xlu0 %621
    %623 = vrot.lane.b32.xlu0 %v604, 1
    %v624 = vpop.permute.xlu0 %623
    %625 = vrot.lane.b32.xlu0 %v605, 1
    %v626 = vpop.permute.xlu0 %625
    %627 = vrot.lane.b32.xlu0 %v606, 1
    %v628 = vpop.permute.xlu0 %627
    %629 = vrot.lane.b32.xlu0 %v607, 1
    %v630 = vpop.permute.xlu0 %629
    %631 = vrot.lane.b32.xlu0 %v608, 1
    %v632 = vpop.permute.xlu0 %631
    %vm639 = vcmask 7168
    %v640 = vsel %vm639, 0.0, %v622
    %v641 = vsel %vm639, 0.0, %v624
    %v642 = vsel %vm639, 0.0, %v626
    %v643 = vsel %vm639, 0.0, %v628
    %v644 = vsel %vm639, 0.0, %v630
    %v645 = vsel %vm639, 0.0, %v632
    %646 = vrot.lane.b32.xlu0 %v603, 127
    %v647 = vpop.permute.xlu0 %646
    %648 = vrot.lane.b32.xlu0 %v604, 127
    %v649 = vpop.permute.xlu0 %648
    %650 = vrot.lane.b32.xlu0 %v605, 127
    %v651 = vpop.permute.xlu0 %650
    %652 = vrot.lane.b32.xlu0 %v606, 127
    %v653 = vpop.permute.xlu0 %652
    %654 = vrot.lane.b32.xlu0 %v607, 127
    %v655 = vpop.permute.xlu0 %654
    %656 = vrot.lane.b32.xlu0 %v608, 127
    %v657 = vpop.permute.xlu0 %656
    %vm664 = vcmask 56320
    %v665 = vsel %vm664, %v647, 0.0
    %v666 = vsel %vm664, %v649, 0.0
    %v667 = vsel %vm664, %v651, 0.0
    %v668 = vsel %vm664, %v653, 0.0
    %v669 = vsel %vm664, %v655, 0.0
    %v670 = vsel %vm664, %v657, 0.0
    %672 = vset.pattern.permute.xlu0 0
    %673 = vperm.xlu0 %672, %v609
    %v674 = vpop.permute.xlu0 %673
    %677 = vset.pattern.permute.xlu0 0
    %678 = vperm.xlu0 %677, %v610
    %v679 = vpop.permute.xlu0 %678
    %682 = vset.pattern.permute.xlu0 0
    %683 = vperm.xlu0 %682, %v611
    %v684 = vpop.permute.xlu0 %683
    %687 = vset.pattern.permute.xlu0 0
    %688 = vperm.xlu0 %687, %v612
    %v689 = vpop.permute.xlu0 %688
    %692 = vset.pattern.permute.xlu0 0
    %693 = vperm.xlu0 %692, %v613
    %v694 = vpop.permute.xlu0 %693
    %697 = vset.pattern.permute.xlu0 0
    %698 = vperm.xlu0 %697, %v614
    %v699 = vpop.permute.xlu0 %698
    %v701 = vmul.f32 %v674, %v640
    %v702 = vmul.f32 %v679, %v641
    %v703 = vmul.f32 %v684, %v642
    %v704 = vmul.f32 %v689, %v643
    %v705 = vmul.f32 %v694, %v644
    %v706 = vmul.f32 %v699, %v645
    %707 = vset.pattern.permute.xlu0 1
    %708 = vperm.xlu0 %707, %v609
    %v709 = vpop.permute.xlu0 %708
    %711 = vset.pattern.permute.xlu0 1
    %712 = vperm.xlu0 %711, %v610
    %v713 = vpop.permute.xlu0 %712
    %715 = vset.pattern.permute.xlu0 1
    %716 = vperm.xlu0 %715, %v611
    %v717 = vpop.permute.xlu0 %716
    %719 = vset.pattern.permute.xlu0 1
    %720 = vperm.xlu0 %719, %v612
    %v721 = vpop.permute.xlu0 %720
    %723 = vset.pattern.permute.xlu0 1
    %724 = vperm.xlu0 %723, %v613
    %v725 = vpop.permute.xlu0 %724
    %727 = vset.pattern.permute.xlu0 1
    %728 = vperm.xlu0 %727, %v614
    %v729 = vpop.permute.xlu0 %728
    %v731 = vmul.f32 %v709, %v603
    %v732 = vmul.f32 %v713, %v604
    %v733 = vmul.f32 %v717, %v605
    %v734 = vmul.f32 %v721, %v606
    %v735 = vmul.f32 %v725, %v607
    %v736 = vmul.f32 %v729, %v608
    %v737 = vadd.f32 %v701, %v731
    %v738 = vadd.f32 %v702, %v732
    %v739 = vadd.f32 %v703, %v733
    %v740 = vadd.f32 %v704, %v734
    %v741 = vadd.f32 %v705, %v735
    %v742 = vadd.f32 %v706, %v736
    %743 = vset.pattern.permute.xlu0 2
    %744 = vperm.xlu0 %743, %v609
    %v745 = vpop.permute.xlu0 %744
    %747 = vset.pattern.permute.xlu0 2
    %748 = vperm.xlu0 %747, %v610
    %v749 = vpop.permute.xlu0 %748
    %751 = vset.pattern.permute.xlu0 2
    %752 = vperm.xlu0 %751, %v611
    %v753 = vpop.permute.xlu0 %752
    %755 = vset.pattern.permute.xlu0 2
    %756 = vperm.xlu0 %755, %v612
    %v757 = vpop.permute.xlu0 %756
    %759 = vset.pattern.permute.xlu0 2
    %760 = vperm.xlu0 %759, %v613
    %v761 = vpop.permute.xlu0 %760
    %763 = vset.pattern.permute.xlu0 2
    %764 = vperm.xlu0 %763, %v614
    %v765 = vpop.permute.xlu0 %764
    %v767 = vmul.f32 %v745, %v665
    %v768 = vmul.f32 %v749, %v666
    %v769 = vmul.f32 %v753, %v667
    %v770 = vmul.f32 %v757, %v668
    %v771 = vmul.f32 %v761, %v669
    %v772 = vmul.f32 %v765, %v670
    %v773 = vadd.f32 %v737, %v767
    %v774 = vadd.f32 %v738, %v768
    %v775 = vadd.f32 %v739, %v769
    %v776 = vadd.f32 %v740, %v770
    %v777 = vadd.f32 %v741, %v771
    %v778 = vadd.f32 %v742, %v772
    %779 = vset.pattern.permute.xlu0 3
    %780 = vperm.xlu0 %779, %v609
    %v781 = vpop.permute.xlu0 %780
    %783 = vset.pattern.permute.xlu0 3
    %784 = vperm.xlu0 %783, %v610
    %v785 = vpop.permute.xlu0 %784
    %787 = vset.pattern.permute.xlu0 3
    %788 = vperm.xlu0 %787, %v611
    %v789 = vpop.permute.xlu0 %788
    %791 = vset.pattern.permute.xlu0 3
    %792 = vperm.xlu0 %791, %v612
    %v793 = vpop.permute.xlu0 %792
    %795 = vset.pattern.permute.xlu0 3
    %796 = vperm.xlu0 %795, %v613
    %v797 = vpop.permute.xlu0 %796
    %799 = vset.pattern.permute.xlu0 3
    %800 = vperm.xlu0 %799, %v614
    %v801 = vpop.permute.xlu0 %800
    %v803 = vmul.f32 %v781, %v640
    %v804 = vmul.f32 %v785, %v641
    %v805 = vmul.f32 %v789, %v642
    %v806 = vmul.f32 %v793, %v643
    %v807 = vmul.f32 %v797, %v644
    %v808 = vmul.f32 %v801, %v645
    %809 = vset.pattern.permute.xlu0 4
    %810 = vperm.xlu0 %809, %v609
    %v811 = vpop.permute.xlu0 %810
    %813 = vset.pattern.permute.xlu0 4
    %814 = vperm.xlu0 %813, %v610
    %v815 = vpop.permute.xlu0 %814
    %817 = vset.pattern.permute.xlu0 4
    %818 = vperm.xlu0 %817, %v611
    %v819 = vpop.permute.xlu0 %818
    %821 = vset.pattern.permute.xlu0 4
    %822 = vperm.xlu0 %821, %v612
    %v823 = vpop.permute.xlu0 %822
    %825 = vset.pattern.permute.xlu0 4
    %826 = vperm.xlu0 %825, %v613
    %v827 = vpop.permute.xlu0 %826
    %829 = vset.pattern.permute.xlu0 4
    %830 = vperm.xlu0 %829, %v614
    %v831 = vpop.permute.xlu0 %830
    %v833 = vmul.f32 %v811, %v603
    %v834 = vmul.f32 %v815, %v604
    %v835 = vmul.f32 %v819, %v605
    %v836 = vmul.f32 %v823, %v606
    %v837 = vmul.f32 %v827, %v607
    %v838 = vmul.f32 %v831, %v608
    %v839 = vadd.f32 %v803, %v833
    %v840 = vadd.f32 %v804, %v834
    %v841 = vadd.f32 %v805, %v835
    %v842 = vadd.f32 %v806, %v836
    %v843 = vadd.f32 %v807, %v837
    %v844 = vadd.f32 %v808, %v838
    %845 = vset.pattern.permute.xlu0 5
    %846 = vperm.xlu0 %845, %v609
    %v847 = vpop.permute.xlu0 %846
    %849 = vset.pattern.permute.xlu0 5
    %850 = vperm.xlu0 %849, %v610
    %v851 = vpop.permute.xlu0 %850
    %853 = vset.pattern.permute.xlu0 5
    %854 = vperm.xlu0 %853, %v611
    %v855 = vpop.permute.xlu0 %854
    %857 = vset.pattern.permute.xlu0 5
    %858 = vperm.xlu0 %857, %v612
    %v859 = vpop.permute.xlu0 %858
    %861 = vset.pattern.permute.xlu0 5
    %862 = vperm.xlu0 %861, %v613
    %v863 = vpop.permute.xlu0 %862
    %865 = vset.pattern.permute.xlu0 5
    %866 = vperm.xlu0 %865, %v614
    %v867 = vpop.permute.xlu0 %866
    %v869 = vmul.f32 %v847, %v665
    %v870 = vmul.f32 %v851, %v666
    %v871 = vmul.f32 %v855, %v667
    %v872 = vmul.f32 %v859, %v668
    %v873 = vmul.f32 %v863, %v669
    %v874 = vmul.f32 %v867, %v670
    %v875 = vadd.f32 %v839, %v869
    %v876 = vadd.f32 %v840, %v870
    %v877 = vadd.f32 %v841, %v871
    %v878 = vadd.f32 %v842, %v872
    %v879 = vadd.f32 %v843, %v873
    %v880 = vadd.f32 %v844, %v874
    %881 = vset.pattern.permute.xlu0 6
    %882 = vperm.xlu0 %881, %v609
    %v883 = vpop.permute.xlu0 %882
    %885 = vset.pattern.permute.xlu0 6
    %886 = vperm.xlu0 %885, %v610
    %v887 = vpop.permute.xlu0 %886
    %889 = vset.pattern.permute.xlu0 6
    %890 = vperm.xlu0 %889, %v611
    %v891 = vpop.permute.xlu0 %890
    %893 = vset.pattern.permute.xlu0 6
    %894 = vperm.xlu0 %893, %v612
    %v895 = vpop.permute.xlu0 %894
    %897 = vset.pattern.permute.xlu0 6
    %898 = vperm.xlu0 %897, %v613
    %v899 = vpop.permute.xlu0 %898
    %901 = vset.pattern.permute.xlu0 6
    %902 = vperm.xlu0 %901, %v614
    %v903 = vpop.permute.xlu0 %902
    %v905 = vmul.f32 %v883, %v640
    %v906 = vmul.f32 %v887, %v641
    %v907 = vmul.f32 %v891, %v642
    %v908 = vmul.f32 %v895, %v643
    %v909 = vmul.f32 %v899, %v644
    %v910 = vmul.f32 %v903, %v645
    %911 = vset.pattern.permute.xlu0 7
    %912 = vperm.xlu0 %911, %v609
    %v913 = vpop.permute.xlu0 %912
    %915 = vset.pattern.permute.xlu0 7
    %916 = vperm.xlu0 %915, %v610
    %v917 = vpop.permute.xlu0 %916
    %919 = vset.pattern.permute.xlu0 7
    %920 = vperm.xlu0 %919, %v611
    %v921 = vpop.permute.xlu0 %920
    %923 = vset.pattern.permute.xlu0 7
    %924 = vperm.xlu0 %923, %v612
    %v925 = vpop.permute.xlu0 %924
    %927 = vset.pattern.permute.xlu0 7
    %928 = vperm.xlu0 %927, %v613
    %v929 = vpop.permute.xlu0 %928
    %931 = vset.pattern.permute.xlu0 7
    %932 = vperm.xlu0 %931, %v614
    %v933 = vpop.permute.xlu0 %932
    %v935 = vmul.f32 %v913, %v603
    %v936 = vmul.f32 %v917, %v604
    %v937 = vmul.f32 %v921, %v605
    %v938 = vmul.f32 %v925, %v606
    %v939 = vmul.f32 %v929, %v607
    %v940 = vmul.f32 %v933, %v608
    %v941 = vadd.f32 %v905, %v935
    %v942 = vadd.f32 %v906, %v936
    %v943 = vadd.f32 %v907, %v937
    %v944 = vadd.f32 %v908, %v938
    %v945 = vadd.f32 %v909, %v939
    %v946 = vadd.f32 %v910, %v940
    %947 = vset.pattern.permute.xlu0 8
    %948 = vperm.xlu0 %947, %v609
    %v949 = vpop.permute.xlu0 %948
    %951 = vset.pattern.permute.xlu0 8
    %952 = vperm.xlu0 %951, %v610
    %v953 = vpop.permute.xlu0 %952
    %955 = vset.pattern.permute.xlu0 8
    %956 = vperm.xlu0 %955, %v611
    %v957 = vpop.permute.xlu0 %956
    %959 = vset.pattern.permute.xlu0 8
    %960 = vperm.xlu0 %959, %v612
    %v961 = vpop.permute.xlu0 %960
    %963 = vset.pattern.permute.xlu0 8
    %964 = vperm.xlu0 %963, %v613
    %v965 = vpop.permute.xlu0 %964
    %967 = vset.pattern.permute.xlu0 8
    %968 = vperm.xlu0 %967, %v614
    %v969 = vpop.permute.xlu0 %968
    %v971 = vmul.f32 %v949, %v665
    %v972 = vmul.f32 %v953, %v666
    %v973 = vmul.f32 %v957, %v667
    %v974 = vmul.f32 %v961, %v668
    %v975 = vmul.f32 %v965, %v669
    %v976 = vmul.f32 %v969, %v670
    %v977 = vadd.f32 %v941, %v971
    %v978 = vadd.f32 %v942, %v972
    %v979 = vadd.f32 %v943, %v973
    %v980 = vadd.f32 %v944, %v974
    %v981 = vadd.f32 %v945, %v975
    %v982 = vadd.f32 %v946, %v976
    %vm989 = vcmask 1040384
    %v990 = vrot.slane %v773, 7
    %v991 = vrot.slane %v774, 7
    %v992 = vsel %vm989, %v990, %v991
    %v993 = vrot.slane %v775, 7
    %v994 = vsel %vm989, %v991, %v993
    %v995 = vrot.slane %v776, 7
    %v996 = vsel %vm989, %v993, %v995
    %v997 = vrot.slane %v777, 7
    %v998 = vsel %vm989, %v995, %v997
    %v999 = vrot.slane %v778, 7
    %v1000 = vsel %vm989, %v997, %v999
    %v1007 = vsel %vm989, 0.0, %v990
    %v1008 = vmul.f32 %v1007, %v172
    %v1009 = vmul.f32 %v992, %v173
    %v1010 = vmul.f32 %v994, %v174
    %v1011 = vmul.f32 %v996, %v175
    %v1012 = vmul.f32 %v998, %v176
    %v1013 = vmul.f32 %v1000, %v177
    %vm1020 = vcmask 1046528
    %v1021 = vrot.slane %v977, 1
    %v1022 = vrot.slane %v978, 1
    %v1023 = vsel %vm1020, %v1021, %v1022
    %v1024 = vrot.slane %v979, 1
    %v1025 = vsel %vm1020, %v1022, %v1024
    %v1026 = vrot.slane %v980, 1
    %v1027 = vsel %vm1020, %v1024, %v1026
    %v1028 = vrot.slane %v981, 1
    %v1029 = vsel %vm1020, %v1026, %v1028
    %v1030 = vrot.slane %v982, 1
    %v1031 = vsel %vm1020, %v1028, %v1030
    %v1038 = vsel %vm1020, %v1030, 0.0
    %v1039 = vmul.f32 %v1023, %v190
    %v1040 = vmul.f32 %v1025, %v191
    %v1041 = vmul.f32 %v1027, %v192
    %v1042 = vmul.f32 %v1029, %v193
    %v1043 = vmul.f32 %v1031, %v194
    %v1044 = vmul.f32 %v1038, %v195
    %1045 = vset.pattern.permute.xlu0 9
    %1046 = vperm.xlu0 %1045, %v609
    %v1047 = vpop.permute.xlu0 %1046
    %1049 = vset.pattern.permute.xlu0 9
    %1050 = vperm.xlu0 %1049, %v610
    %v1051 = vpop.permute.xlu0 %1050
    %1053 = vset.pattern.permute.xlu0 9
    %1054 = vperm.xlu0 %1053, %v611
    %v1055 = vpop.permute.xlu0 %1054
    %1057 = vset.pattern.permute.xlu0 9
    %1058 = vperm.xlu0 %1057, %v612
    %v1059 = vpop.permute.xlu0 %1058
    %1061 = vset.pattern.permute.xlu0 9
    %1062 = vperm.xlu0 %1061, %v613
    %v1063 = vpop.permute.xlu0 %1062
    %1065 = vset.pattern.permute.xlu0 9
    %1066 = vperm.xlu0 %1065, %v614
    %v1067 = vpop.permute.xlu0 %1066
    %v1069 = vadd.f32 %v1047, %v875
    %v1070 = vadd.f32 %v1051, %v876
    %v1071 = vadd.f32 %v1055, %v877
    %v1072 = vadd.f32 %v1059, %v878
    %v1073 = vadd.f32 %v1063, %v879
    %v1074 = vadd.f32 %v1067, %v880
    %v1075 = vadd.f32 %v1069, %v1008
    %v1076 = vadd.f32 %v1070, %v1009
    %v1077 = vadd.f32 %v1071, %v1010
    %v1078 = vadd.f32 %v1072, %v1011
    %v1079 = vadd.f32 %v1073, %v1012
    %v1080 = vadd.f32 %v1074, %v1013
    %v1081 = vadd.f32 %v1075, %v1039
    %v1082 = vadd.f32 %v1076, %v1040
    %v1083 = vadd.f32 %v1077, %v1041
    %v1084 = vadd.f32 %v1078, %v1042
    %v1085 = vadd.f32 %v1079, %v1043
    %v1086 = vadd.f32 %v1080, %v1044
    %v1087 = vmax.f32 %v1081, 0.0
    %v1088 = vmax.f32 %v1082, 0.0
    %v1089 = vmax.f32 %v1083, 0.0
    %v1090 = vmax.f32 %v1084, 0.0
    %v1091 = vmax.f32 %v1085, 0.0
    %v1092 = vmax.f32 %v1086, 0.0
    %v1093 = vld [vmem:[%s13] sm:$0xff]
    %v1094 = vld [vmem:[%s13 + $0x8] sm:$0xff]
    %v1095 = vld [vmem:[%s13 + $0x10] sm:$0xff]
    %v1096 = vld [vmem:[%s13 + $0x18] sm:$0xff]
    %v1097 = vld [vmem:[%s13 + $0x20] sm:$0xff]
    %v1098 = vld [vmem:[%s13 + $0x28] sm:$0xff]
    %1105 = vrot.lane.b32.xlu0 %v1087, 1
    %v1106 = vpop.permute.xlu0 %1105
    %1107 = vrot.lane.b32.xlu0 %v1088, 1
    %v1108 = vpop.permute.xlu0 %1107
    %1109 = vrot.lane.b32.xlu0 %v1089, 1
    %v1110 = vpop.permute.xlu0 %1109
    %1111 = vrot.lane.b32.xlu0 %v1090, 1
    %v1112 = vpop.permute.xlu0 %1111
    %1113 = vrot.lane.b32.xlu0 %v1091, 1
    %v1114 = vpop.permute.xlu0 %1113
    %1115 = vrot.lane.b32.xlu0 %v1092, 1
    %v1116 = vpop.permute.xlu0 %1115
    %v1123 = vsel %vm639, 0.0, %v1106
    %v1124 = vsel %vm639, 0.0, %v1108
    %v1125 = vsel %vm639, 0.0, %v1110
    %v1126 = vsel %vm639, 0.0, %v1112
    %v1127 = vsel %vm639, 0.0, %v1114
    %v1128 = vsel %vm639, 0.0, %v1116
    %1129 = vrot.lane.b32.xlu0 %v1087, 127
    %v1130 = vpop.permute.xlu0 %1129
    %1131 = vrot.lane.b32.xlu0 %v1088, 127
    %v1132 = vpop.permute.xlu0 %1131
    %1133 = vrot.lane.b32.xlu0 %v1089, 127
    %v1134 = vpop.permute.xlu0 %1133
    %1135 = vrot.lane.b32.xlu0 %v1090, 127
    %v1136 = vpop.permute.xlu0 %1135
    %1137 = vrot.lane.b32.xlu0 %v1091, 127
    %v1138 = vpop.permute.xlu0 %1137
    %1139 = vrot.lane.b32.xlu0 %v1092, 127
    %v1140 = vpop.permute.xlu0 %1139
    %v1147 = vsel %vm664, %v1130, 0.0
    %v1148 = vsel %vm664, %v1132, 0.0
    %v1149 = vsel %vm664, %v1134, 0.0
    %v1150 = vsel %vm664, %v1136, 0.0
    %v1151 = vsel %vm664, %v1138, 0.0
    %v1152 = vsel %vm664, %v1140, 0.0
    %1154 = vset.pattern.permute.xlu0 0
    %1155 = vperm.xlu0 %1154, %v1093
    %v1156 = vpop.permute.xlu0 %1155
    %1159 = vset.pattern.permute.xlu0 0
    %1160 = vperm.xlu0 %1159, %v1094
    %v1161 = vpop.permute.xlu0 %1160
    %1164 = vset.pattern.permute.xlu0 0
    %1165 = vperm.xlu0 %1164, %v1095
    %v1166 = vpop.permute.xlu0 %1165
    %1169 = vset.pattern.permute.xlu0 0
    %1170 = vperm.xlu0 %1169, %v1096
    %v1171 = vpop.permute.xlu0 %1170
    %1174 = vset.pattern.permute.xlu0 0
    %1175 = vperm.xlu0 %1174, %v1097
    %v1176 = vpop.permute.xlu0 %1175
    %1179 = vset.pattern.permute.xlu0 0
    %1180 = vperm.xlu0 %1179, %v1098
    %v1181 = vpop.permute.xlu0 %1180
    %v1183 = vmul.f32 %v1156, %v1123
    %v1184 = vmul.f32 %v1161, %v1124
    %v1185 = vmul.f32 %v1166, %v1125
    %v1186 = vmul.f32 %v1171, %v1126
    %v1187 = vmul.f32 %v1176, %v1127
    %v1188 = vmul.f32 %v1181, %v1128
    %1189 = vset.pattern.permute.xlu0 1
    %1190 = vperm.xlu0 %1189, %v1093
    %v1191 = vpop.permute.xlu0 %1190
    %1193 = vset.pattern.permute.xlu0 1
    %1194 = vperm.xlu0 %1193, %v1094
    %v1195 = vpop.permute.xlu0 %1194
    %1197 = vset.pattern.permute.xlu0 1
    %1198 = vperm.xlu0 %1197, %v1095
    %v1199 = vpop.permute.xlu0 %1198
    %1201 = vset.pattern.permute.xlu0 1
    %1202 = vperm.xlu0 %1201, %v1096
    %v1203 = vpop.permute.xlu0 %1202
    %1205 = vset.pattern.permute.xlu0 1
    %1206 = vperm.xlu0 %1205, %v1097
    %v1207 = vpop.permute.xlu0 %1206
    %1209 = vset.pattern.permute.xlu0 1
    %1210 = vperm.xlu0 %1209, %v1098
    %v1211 = vpop.permute.xlu0 %1210
    %v1213 = vmul.f32 %v1191, %v1087
    %v1214 = vmul.f32 %v1195, %v1088
    %v1215 = vmul.f32 %v1199, %v1089
    %v1216 = vmul.f32 %v1203, %v1090
    %v1217 = vmul.f32 %v1207, %v1091
    %v1218 = vmul.f32 %v1211, %v1092
    %v1219 = vadd.f32 %v1183, %v1213
    %v1220 = vadd.f32 %v1184, %v1214
    %v1221 = vadd.f32 %v1185, %v1215
    %v1222 = vadd.f32 %v1186, %v1216
    %v1223 = vadd.f32 %v1187, %v1217
    %v1224 = vadd.f32 %v1188, %v1218
    %1225 = vset.pattern.permute.xlu0 2
    %1226 = vperm.xlu0 %1225, %v1093
    %v1227 = vpop.permute.xlu0 %1226
    %1229 = vset.pattern.permute.xlu0 2
    %1230 = vperm.xlu0 %1229, %v1094
    %v1231 = vpop.permute.xlu0 %1230
    %1233 = vset.pattern.permute.xlu0 2
    %1234 = vperm.xlu0 %1233, %v1095
    %v1235 = vpop.permute.xlu0 %1234
    %1237 = vset.pattern.permute.xlu0 2
    %1238 = vperm.xlu0 %1237, %v1096
    %v1239 = vpop.permute.xlu0 %1238
    %1241 = vset.pattern.permute.xlu0 2
    %1242 = vperm.xlu0 %1241, %v1097
    %v1243 = vpop.permute.xlu0 %1242
    %1245 = vset.pattern.permute.xlu0 2
    %1246 = vperm.xlu0 %1245, %v1098
    %v1247 = vpop.permute.xlu0 %1246
    %v1249 = vmul.f32 %v1227, %v1147
    %v1250 = vmul.f32 %v1231, %v1148
    %v1251 = vmul.f32 %v1235, %v1149
    %v1252 = vmul.f32 %v1239, %v1150
    %v1253 = vmul.f32 %v1243, %v1151
    %v1254 = vmul.f32 %v1247, %v1152
    %v1255 = vadd.f32 %v1219, %v1249
    %v1256 = vadd.f32 %v1220, %v1250
    %v1257 = vadd.f32 %v1221, %v1251
    %v1258 = vadd.f32 %v1222, %v1252
    %v1259 = vadd.f32 %v1223, %v1253
    %v1260 = vadd.f32 %v1224, %v1254
    %1261 = vset.pattern.permute.xlu0 3
    %1262 = vperm.xlu0 %1261, %v1093
    %v1263 = vpop.permute.xlu0 %1262
    %1265 = vset.pattern.permute.xlu0 3
    %1266 = vperm.xlu0 %1265, %v1094
    %v1267 = vpop.permute.xlu0 %1266
    %1269 = vset.pattern.permute.xlu0 3
    %1270 = vperm.xlu0 %1269, %v1095
    %v1271 = vpop.permute.xlu0 %1270
    %1273 = vset.pattern.permute.xlu0 3
    %1274 = vperm.xlu0 %1273, %v1096
    %v1275 = vpop.permute.xlu0 %1274
    %1277 = vset.pattern.permute.xlu0 3
    %1278 = vperm.xlu0 %1277, %v1097
    %v1279 = vpop.permute.xlu0 %1278
    %1281 = vset.pattern.permute.xlu0 3
    %1282 = vperm.xlu0 %1281, %v1098
    %v1283 = vpop.permute.xlu0 %1282
    %v1285 = vmul.f32 %v1263, %v1123
    %v1286 = vmul.f32 %v1267, %v1124
    %v1287 = vmul.f32 %v1271, %v1125
    %v1288 = vmul.f32 %v1275, %v1126
    %v1289 = vmul.f32 %v1279, %v1127
    %v1290 = vmul.f32 %v1283, %v1128
    %1291 = vset.pattern.permute.xlu0 4
    %1292 = vperm.xlu0 %1291, %v1093
    %v1293 = vpop.permute.xlu0 %1292
    %1295 = vset.pattern.permute.xlu0 4
    %1296 = vperm.xlu0 %1295, %v1094
    %v1297 = vpop.permute.xlu0 %1296
    %1299 = vset.pattern.permute.xlu0 4
    %1300 = vperm.xlu0 %1299, %v1095
    %v1301 = vpop.permute.xlu0 %1300
    %1303 = vset.pattern.permute.xlu0 4
    %1304 = vperm.xlu0 %1303, %v1096
    %v1305 = vpop.permute.xlu0 %1304
    %1307 = vset.pattern.permute.xlu0 4
    %1308 = vperm.xlu0 %1307, %v1097
    %v1309 = vpop.permute.xlu0 %1308
    %1311 = vset.pattern.permute.xlu0 4
    %1312 = vperm.xlu0 %1311, %v1098
    %v1313 = vpop.permute.xlu0 %1312
    %v1315 = vmul.f32 %v1293, %v1087
    %v1316 = vmul.f32 %v1297, %v1088
    %v1317 = vmul.f32 %v1301, %v1089
    %v1318 = vmul.f32 %v1305, %v1090
    %v1319 = vmul.f32 %v1309, %v1091
    %v1320 = vmul.f32 %v1313, %v1092
    %v1321 = vadd.f32 %v1285, %v1315
    %v1322 = vadd.f32 %v1286, %v1316
    %v1323 = vadd.f32 %v1287, %v1317
    %v1324 = vadd.f32 %v1288, %v1318
    %v1325 = vadd.f32 %v1289, %v1319
    %v1326 = vadd.f32 %v1290, %v1320
    %1327 = vset.pattern.permute.xlu0 5
    %1328 = vperm.xlu0 %1327, %v1093
    %v1329 = vpop.permute.xlu0 %1328
    %1331 = vset.pattern.permute.xlu0 5
    %1332 = vperm.xlu0 %1331, %v1094
    %v1333 = vpop.permute.xlu0 %1332
    %1335 = vset.pattern.permute.xlu0 5
    %1336 = vperm.xlu0 %1335, %v1095
    %v1337 = vpop.permute.xlu0 %1336
    %1339 = vset.pattern.permute.xlu0 5
    %1340 = vperm.xlu0 %1339, %v1096
    %v1341 = vpop.permute.xlu0 %1340
    %1343 = vset.pattern.permute.xlu0 5
    %1344 = vperm.xlu0 %1343, %v1097
    %v1345 = vpop.permute.xlu0 %1344
    %1347 = vset.pattern.permute.xlu0 5
    %1348 = vperm.xlu0 %1347, %v1098
    %v1349 = vpop.permute.xlu0 %1348
    %v1351 = vmul.f32 %v1329, %v1147
    %v1352 = vmul.f32 %v1333, %v1148
    %v1353 = vmul.f32 %v1337, %v1149
    %v1354 = vmul.f32 %v1341, %v1150
    %v1355 = vmul.f32 %v1345, %v1151
    %v1356 = vmul.f32 %v1349, %v1152
    %v1357 = vadd.f32 %v1321, %v1351
    %v1358 = vadd.f32 %v1322, %v1352
    %v1359 = vadd.f32 %v1323, %v1353
    %v1360 = vadd.f32 %v1324, %v1354
    %v1361 = vadd.f32 %v1325, %v1355
    %v1362 = vadd.f32 %v1326, %v1356
    %1363 = vset.pattern.permute.xlu0 6
    %1364 = vperm.xlu0 %1363, %v1093
    %v1365 = vpop.permute.xlu0 %1364
    %1367 = vset.pattern.permute.xlu0 6
    %1368 = vperm.xlu0 %1367, %v1094
    %v1369 = vpop.permute.xlu0 %1368
    %1371 = vset.pattern.permute.xlu0 6
    %1372 = vperm.xlu0 %1371, %v1095
    %v1373 = vpop.permute.xlu0 %1372
    %1375 = vset.pattern.permute.xlu0 6
    %1376 = vperm.xlu0 %1375, %v1096
    %v1377 = vpop.permute.xlu0 %1376
    %1379 = vset.pattern.permute.xlu0 6
    %1380 = vperm.xlu0 %1379, %v1097
    %v1381 = vpop.permute.xlu0 %1380
    %1383 = vset.pattern.permute.xlu0 6
    %1384 = vperm.xlu0 %1383, %v1098
    %v1385 = vpop.permute.xlu0 %1384
    %v1387 = vmul.f32 %v1365, %v1123
    %v1388 = vmul.f32 %v1369, %v1124
    %v1389 = vmul.f32 %v1373, %v1125
    %v1390 = vmul.f32 %v1377, %v1126
    %v1391 = vmul.f32 %v1381, %v1127
    %v1392 = vmul.f32 %v1385, %v1128
    %1393 = vset.pattern.permute.xlu0 7
    %1394 = vperm.xlu0 %1393, %v1093
    %v1395 = vpop.permute.xlu0 %1394
    %1397 = vset.pattern.permute.xlu0 7
    %1398 = vperm.xlu0 %1397, %v1094
    %v1399 = vpop.permute.xlu0 %1398
    %1401 = vset.pattern.permute.xlu0 7
    %1402 = vperm.xlu0 %1401, %v1095
    %v1403 = vpop.permute.xlu0 %1402
    %1405 = vset.pattern.permute.xlu0 7
    %1406 = vperm.xlu0 %1405, %v1096
    %v1407 = vpop.permute.xlu0 %1406
    %1409 = vset.pattern.permute.xlu0 7
    %1410 = vperm.xlu0 %1409, %v1097
    %v1411 = vpop.permute.xlu0 %1410
    %1413 = vset.pattern.permute.xlu0 7
    %1414 = vperm.xlu0 %1413, %v1098
    %v1415 = vpop.permute.xlu0 %1414
    %v1417 = vmul.f32 %v1395, %v1087
    %v1418 = vmul.f32 %v1399, %v1088
    %v1419 = vmul.f32 %v1403, %v1089
    %v1420 = vmul.f32 %v1407, %v1090
    %v1421 = vmul.f32 %v1411, %v1091
    %v1422 = vmul.f32 %v1415, %v1092
    %v1423 = vadd.f32 %v1387, %v1417
    %v1424 = vadd.f32 %v1388, %v1418
    %v1425 = vadd.f32 %v1389, %v1419
    %v1426 = vadd.f32 %v1390, %v1420
    %v1427 = vadd.f32 %v1391, %v1421
    %v1428 = vadd.f32 %v1392, %v1422
    %1429 = vset.pattern.permute.xlu0 8
    %1430 = vperm.xlu0 %1429, %v1093
    %v1431 = vpop.permute.xlu0 %1430
    %1433 = vset.pattern.permute.xlu0 8
    %1434 = vperm.xlu0 %1433, %v1094
    %v1435 = vpop.permute.xlu0 %1434
    %1437 = vset.pattern.permute.xlu0 8
    %1438 = vperm.xlu0 %1437, %v1095
    %v1439 = vpop.permute.xlu0 %1438
    %1441 = vset.pattern.permute.xlu0 8
    %1442 = vperm.xlu0 %1441, %v1096
    %v1443 = vpop.permute.xlu0 %1442
    %1445 = vset.pattern.permute.xlu0 8
    %1446 = vperm.xlu0 %1445, %v1097
    %v1447 = vpop.permute.xlu0 %1446
    %1449 = vset.pattern.permute.xlu0 8
    %1450 = vperm.xlu0 %1449, %v1098
    %v1451 = vpop.permute.xlu0 %1450
    %v1453 = vmul.f32 %v1431, %v1147
    %v1454 = vmul.f32 %v1435, %v1148
    %v1455 = vmul.f32 %v1439, %v1149
    %v1456 = vmul.f32 %v1443, %v1150
    %v1457 = vmul.f32 %v1447, %v1151
    %v1458 = vmul.f32 %v1451, %v1152
    %v1459 = vadd.f32 %v1423, %v1453
    %v1460 = vadd.f32 %v1424, %v1454
    %v1461 = vadd.f32 %v1425, %v1455
    %v1462 = vadd.f32 %v1426, %v1456
    %v1463 = vadd.f32 %v1427, %v1457
    %v1464 = vadd.f32 %v1428, %v1458
    %v1471 = vrot.slane %v1255, 7
    %v1472 = vrot.slane %v1256, 7
    %v1473 = vsel %vm989, %v1471, %v1472
    %v1474 = vrot.slane %v1257, 7
    %v1475 = vsel %vm989, %v1472, %v1474
    %v1476 = vrot.slane %v1258, 7
    %v1477 = vsel %vm989, %v1474, %v1476
    %v1478 = vrot.slane %v1259, 7
    %v1479 = vsel %vm989, %v1476, %v1478
    %v1480 = vrot.slane %v1260, 7
    %v1481 = vsel %vm989, %v1478, %v1480
    %v1488 = vsel %vm989, 0.0, %v1471
    %v1489 = vmul.f32 %v1488, %v172
    %v1490 = vmul.f32 %v1473, %v173
    %v1491 = vmul.f32 %v1475, %v174
    %v1492 = vmul.f32 %v1477, %v175
    %v1493 = vmul.f32 %v1479, %v176
    %v1494 = vmul.f32 %v1481, %v177
    %v1501 = vrot.slane %v1459, 1
    %v1502 = vrot.slane %v1460, 1
    %v1503 = vsel %vm1020, %v1501, %v1502
    %v1504 = vrot.slane %v1461, 1
    %v1505 = vsel %vm1020, %v1502, %v1504
    %v1506 = vrot.slane %v1462, 1
    %v1507 = vsel %vm1020, %v1504, %v1506
    %v1508 = vrot.slane %v1463, 1
    %v1509 = vsel %vm1020, %v1506, %v1508
    %v1510 = vrot.slane %v1464, 1
    %v1511 = vsel %vm1020, %v1508, %v1510
    %v1518 = vsel %vm1020, %v1510, 0.0
    %v1519 = vmul.f32 %v1503, %v190
    %v1520 = vmul.f32 %v1505, %v191
    %v1521 = vmul.f32 %v1507, %v192
    %v1522 = vmul.f32 %v1509, %v193
    %v1523 = vmul.f32 %v1511, %v194
    %v1524 = vmul.f32 %v1518, %v195
    %1525 = vset.pattern.permute.xlu0 9
    %1526 = vperm.xlu0 %1525, %v1093
    %v1527 = vpop.permute.xlu0 %1526
    %1529 = vset.pattern.permute.xlu0 9
    %1530 = vperm.xlu0 %1529, %v1094
    %v1531 = vpop.permute.xlu0 %1530
    %1533 = vset.pattern.permute.xlu0 9
    %1534 = vperm.xlu0 %1533, %v1095
    %v1535 = vpop.permute.xlu0 %1534
    %1537 = vset.pattern.permute.xlu0 9
    %1538 = vperm.xlu0 %1537, %v1096
    %v1539 = vpop.permute.xlu0 %1538
    %1541 = vset.pattern.permute.xlu0 9
    %1542 = vperm.xlu0 %1541, %v1097
    %v1543 = vpop.permute.xlu0 %1542
    %1545 = vset.pattern.permute.xlu0 9
    %1546 = vperm.xlu0 %1545, %v1098
    %v1547 = vpop.permute.xlu0 %1546
    %v1549 = vadd.f32 %v1527, %v1357
    %v1550 = vadd.f32 %v1531, %v1358
    %v1551 = vadd.f32 %v1535, %v1359
    %v1552 = vadd.f32 %v1539, %v1360
    %v1553 = vadd.f32 %v1543, %v1361
    %v1554 = vadd.f32 %v1547, %v1362
    %v1555 = vadd.f32 %v1549, %v1489
    %v1556 = vadd.f32 %v1550, %v1490
    %v1557 = vadd.f32 %v1551, %v1491
    %v1558 = vadd.f32 %v1552, %v1492
    %v1559 = vadd.f32 %v1553, %v1493
    %v1560 = vadd.f32 %v1554, %v1494
    %v1561 = vadd.f32 %v1555, %v1519
    %v1562 = vadd.f32 %v1556, %v1520
    %v1563 = vadd.f32 %v1557, %v1521
    %v1564 = vadd.f32 %v1558, %v1522
    %v1565 = vadd.f32 %v1559, %v1523
    %v1566 = vadd.f32 %v1560, %v1524
    %v1567 = vmax.f32 %v1561, 0.0
    %v1568 = vmax.f32 %v1562, 0.0
    %v1569 = vmax.f32 %v1563, 0.0
    %v1570 = vmax.f32 %v1564, 0.0
    %v1571 = vmax.f32 %v1565, 0.0
    %v1572 = vmax.f32 %v1566, 0.0
    %vm1573 = vcmask 64512
    %v1574 = vsel %vm1573, %v1567, 0.0
    %1575 = vadd.xlane.f32.xlu0 %v1574
    %v1576 = vpop.xlane.xlu0 %1575
    %v1577 = vsel %vm1573, %v1568, 0.0
    %1578 = vadd.xlane.f32.xlu0 %v1577
    %v1579 = vpop.xlane.xlu0 %1578
    %v1580 = vsel %vm1573, %v1569, 0.0
    %1581 = vadd.xlane.f32.xlu0 %v1580
    %v1582 = vpop.xlane.xlu0 %1581
    %v1583 = vsel %vm1573, %v1570, 0.0
    %1584 = vadd.xlane.f32.xlu0 %v1583
    %v1585 = vpop.xlane.xlu0 %1584
    %v1586 = vsel %vm1573, %v1571, 0.0
    %1587 = vadd.xlane.f32.xlu0 %v1586
    %v1588 = vpop.xlane.xlu0 %1587
    %v1589 = vsel %vm1573, %v1572, 0.0
    %1590 = vadd.xlane.f32.xlu0 %v1589
    %v1591 = vpop.xlane.xlu0 %1590
    %v1592 = vrcp.pop 8.0
    %v1593 = vmul.f32 %v1576, %v1592
    %v1594 = vmul.f32 %v1579, %v1592
    %v1595 = vmul.f32 %v1582, %v1592
    %v1596 = vmul.f32 %v1585, %v1592
    %v1597 = vmul.f32 %v1588, %v1592
    %v1598 = vmul.f32 %v1591, %v1592
    %v1599 = vld [vmem:[%s14] sm:$0xff]
    %v1600 = vld [vmem:[%s14 + $0x8] sm:$0xff]
    %v1601 = vld [vmem:[%s14 + $0x10] sm:$0xff]
    %v1602 = vld [vmem:[%s14 + $0x18] sm:$0xff]
    %v1603 = vld [vmem:[%s14 + $0x20] sm:$0xff]
    %v1604 = vld [vmem:[%s14 + $0x28] sm:$0xff]
    %v1605 = vld [vmem:[%s15] sm:$0xff]
    %v1606 = vld [vmem:[%s15 + $0x8] sm:$0xff]
    %v1607 = vld [vmem:[%s15 + $0x10] sm:$0xff]
    %v1608 = vld [vmem:[%s15 + $0x18] sm:$0xff]
    %v1609 = vld [vmem:[%s15 + $0x20] sm:$0xff]
    %v1610 = vld [vmem:[%s15 + $0x28] sm:$0xff]
    %1612 = vset.pattern.permute.xlu0 0
    %1613 = vperm.xlu0 %1612, %v1605
    %v1614 = vpop.permute.xlu0 %1613
    %1617 = vset.pattern.permute.xlu0 0
    %1618 = vperm.xlu0 %1617, %v1606
    %v1619 = vpop.permute.xlu0 %1618
    %1622 = vset.pattern.permute.xlu0 0
    %1623 = vperm.xlu0 %1622, %v1607
    %v1624 = vpop.permute.xlu0 %1623
    %1627 = vset.pattern.permute.xlu0 0
    %1628 = vperm.xlu0 %1627, %v1608
    %v1629 = vpop.permute.xlu0 %1628
    %1632 = vset.pattern.permute.xlu0 0
    %1633 = vperm.xlu0 %1632, %v1609
    %v1634 = vpop.permute.xlu0 %1633
    %1637 = vset.pattern.permute.xlu0 0
    %1638 = vperm.xlu0 %1637, %v1610
    %v1639 = vpop.permute.xlu0 %1638
    %v1642 = vsel %vm79, %v1599, 0
    %v1645 = vsel %vm79, %v1600, 0
    %v1648 = vsel %vm79, %v1601, 0
    %v1651 = vsel %vm79, %v1602, 0
    %v1654 = vsel %vm79, %v1603, 0
    %v1657 = vsel %vm79, %v1604, 0
    %1659 = vmatprep.subr.mxu0 0.0
    %1660 = vmatpush1.msra.mxu0 %v1593
    %1661 = vmatprep.subr.mxu0 0.0
    %1662 = vmatpush1.msra.mxu0 %v1594
    %1663 = vmatprep.subr.mxu0 0.0
    %1664 = vmatpush1.msra.mxu0 %v1595
    %1665 = vmatprep.subr.mxu0 0.0
    %1666 = vmatpush1.msra.mxu0 %v1596
    %1667 = vmatprep.subr.mxu0 0.0
    %1668 = vmatpush1.msra.mxu0 %v1597
    %1669 = vmatprep.subr.mxu0 0.0
    %1670 = vmatpush1.msra.mxu0 %v1598
    %1671 = vmatprep.subr.mxu0 0.0
    %1672 = vmatpush1.msra.mxu0 0.0
    %1673 = vmatprep.subr.mxu0 0.0
    %1674 = vmatpush1.msra.mxu0 0.0
    %1675 = vmatprep.subr.mxu0 0.0
    %1676 = vmatpush1.msra.mxu0 0.0
    %1677 = vmatprep.subr.mxu0 0.0
    %1678 = vmatpush1.msra.mxu0 0.0
    %1679 = vmatprep.subr.mxu0 0.0
    %1680 = vmatpush1.msra.mxu0 0.0
    %1681 = vmatprep.subr.mxu0 0.0
    %1682 = vmatpush1.msra.mxu0 0.0
    %1683 = vmatprep.subr.mxu0 0.0
    %1684 = vmatpush1.msra.mxu0 0.0
    %1685 = vmatprep.subr.mxu0 0.0
    %1686 = vmatpush1.msra.mxu0 0.0
    %1687 = vmatprep.subr.mxu0 0.0
    %1688 = vmatpush1.msra.mxu0 0.0
    %1689 = vmatprep.subr.mxu0 0.0
    %1690 = vmatpush1.msra.mxu0 0.0
    %1691 = vmatprep.subr.mxu0 0.0
    %1692 = vmatpush1.msra.mxu0 0.0
    %1693 = vmatprep.subr.mxu0 0.0
    %1694 = vmatpush1.msra.mxu0 0.0
    %1695 = vmatprep.subr.mxu0 0.0
    %1696 = vmatpush1.msra.mxu0 0.0
    %1697 = vmatprep.subr.mxu0 0.0
    %1698 = vmatpush1.msra.mxu0 0.0
    %1699 = vmatprep.subr.mxu0 0.0
    %1700 = vmatpush1.msra.mxu0 0.0
    %1701 = vmatprep.subr.mxu0 0.0
    %1702 = vmatpush1.msra.mxu0 0.0
    %1703 = vmatprep.subr.mxu0 0.0
    %1704 = vmatpush1.msra.mxu0 0.0
    %1705 = vmatprep.subr.mxu0 0.0
    %1706 = vmatpush1.msra.mxu0 0.0
    %1707 = vmatprep.subr.mxu0 0.0
    %1708 = vmatpush1.msra.mxu0 0.0
    %1709 = vmatprep.subr.mxu0 0.0
    %1710 = vmatpush1.msra.mxu0 0.0
    %1711 = vmatprep.subr.mxu0 0.0
    %1712 = vmatpush1.msra.mxu0 0.0
    %1713 = vmatprep.subr.mxu0 0.0
    %1714 = vmatpush1.msra.mxu0 0.0
    %1715 = vmatprep.subr.mxu0 0.0
    %1716 = vmatpush1.msra.mxu0 0.0
    %1717 = vmatprep.subr.mxu0 0.0
    %1718 = vmatpush1.msra.mxu0 0.0
    %1719 = vmatprep.subr.mxu0 0.0
    %1720 = vmatpush1.msra.mxu0 0.0
    %1721 = vmatprep.subr.mxu0 0.0
    %1722 = vmatpush1.msra.mxu0 0.0
    %1723 = vmatprep.mubr.f32.mxu0 0.0
    %1724 = vmatmul.mubr.f32.gmra.mrb[0].mxu0 %v1642
    %v1725 = vpop.f32.mrb[0].mxu0
    %v1726 = vadd.f32 %v1614, %v1725
    %v1727 = vpop.f32.mrb[0].mxu0
    %1728 = vmatprep.mubr.f32.mxu0 0.0
    %1729 = vmatmul.mubr.f32.gmra.mrb[0].mxu0 %v1645
    %v1730 = vpop.f32.mrb[0].mxu0
    %v1731 = vadd.f32 %v1619, %v1730
    %v1732 = vpop.f32.mrb[0].mxu0
    %1733 = vmatprep.mubr.f32.mxu0 0.0
    %1734 = vmatmul.mubr.f32.gmra.mrb[0].mxu0 %v1648
    %v1735 = vpop.f32.mrb[0].mxu0
    %v1736 = vadd.f32 %v1624, %v1735
    %v1737 = vpop.f32.mrb[0].mxu0
    %1738 = vmatprep.mubr.f32.mxu0 0.0
    %1739 = vmatmul.mubr.f32.gmra.mrb[0].mxu0 %v1651
    %v1740 = vpop.f32.mrb[0].mxu0
    %v1741 = vadd.f32 %v1629, %v1740
    %v1742 = vpop.f32.mrb[0].mxu0
    %1743 = vmatprep.mubr.f32.mxu0 0.0
    %1744 = vmatmul.mubr.f32.gmra.mrb[0].mxu0 %v1654
    %v1745 = vpop.f32.mrb[0].mxu0
    %v1746 = vadd.f32 %v1634, %v1745
    %v1747 = vpop.f32.mrb[0].mxu0
    %1748 = vmatprep.mubr.f32.mxu0 0.0
    %1749 = vmatmul.mubr.f32.gmra.mrb[0].mxu0 %v1657
    %v1750 = vpop.f32.mrb[0].mxu0
    %v1751 = vadd.f32 %v1639, %v1750
    %v1752 = vpop.f32.mrb[0].mxu0
    %1753 = vdwg.mxu0
    %v1754 = vmax.f32 %v1726, 0.0
    %v1755 = vmax.f32 %v1731, 0.0
    %v1756 = vmax.f32 %v1736, 0.0
    %v1757 = vmax.f32 %v1741, 0.0
    %v1758 = vmax.f32 %v1746, 0.0
    %v1759 = vmax.f32 %v1751, 0.0
    %v1760 = vld [vmem:[%s16] sm:$0xff]
    %v1761 = vld [vmem:[%s16 + $0x8] sm:$0xff]
    %v1762 = vld [vmem:[%s16 + $0x10] sm:$0xff]
    %v1763 = vld [vmem:[%s16 + $0x18] sm:$0xff]
    %v1764 = vld [vmem:[%s16 + $0x20] sm:$0xff]
    %v1765 = vld [vmem:[%s16 + $0x28] sm:$0xff]
    %v1766 = vld [vmem:[%s17] sm:$0xff]
    %v1767 = vld [vmem:[%s17 + $0x8] sm:$0xff]
    %v1768 = vld [vmem:[%s17 + $0x10] sm:$0xff]
    %v1769 = vld [vmem:[%s17 + $0x18] sm:$0xff]
    %v1770 = vld [vmem:[%s17 + $0x20] sm:$0xff]
    %v1771 = vld [vmem:[%s17 + $0x28] sm:$0xff]
    %1773 = vset.pattern.permute.xlu0 0
    %1774 = vperm.xlu0 %1773, %v1766
    %v1775 = vpop.permute.xlu0 %1774
    %1778 = vset.pattern.permute.xlu0 0
    %1779 = vperm.xlu0 %1778, %v1767
    %v1780 = vpop.permute.xlu0 %1779
    %1783 = vset.pattern.permute.xlu0 0
    %1784 = vperm.xlu0 %1783, %v1768
    %v1785 = vpop.permute.xlu0 %1784
    %1788 = vset.pattern.permute.xlu0 0
    %1789 = vperm.xlu0 %1788, %v1769
    %v1790 = vpop.permute.xlu0 %1789
    %1793 = vset.pattern.permute.xlu0 0
    %1794 = vperm.xlu0 %1793, %v1770
    %v1795 = vpop.permute.xlu0 %1794
    %1798 = vset.pattern.permute.xlu0 0
    %1799 = vperm.xlu0 %1798, %v1771
    %v1800 = vpop.permute.xlu0 %1799
    %v1803 = vsel %vm79, %v1760, 0
    %v1806 = vsel %vm79, %v1761, 0
    %v1809 = vsel %vm79, %v1762, 0
    %v1812 = vsel %vm79, %v1763, 0
    %v1815 = vsel %vm79, %v1764, 0
    %v1818 = vsel %vm79, %v1765, 0
    %1820 = vmatprep.subr.mxu0 0.0
    %1821 = vmatpush1.msra.mxu0 %v1754
    %1822 = vmatprep.subr.mxu0 0.0
    %1823 = vmatpush1.msra.mxu0 %v1755
    %1824 = vmatprep.subr.mxu0 0.0
    %1825 = vmatpush1.msra.mxu0 %v1756
    %1826 = vmatprep.subr.mxu0 0.0
    %1827 = vmatpush1.msra.mxu0 %v1757
    %1828 = vmatprep.subr.mxu0 0.0
    %1829 = vmatpush1.msra.mxu0 %v1758
    %1830 = vmatprep.subr.mxu0 0.0
    %1831 = vmatpush1.msra.mxu0 %v1759
    %1832 = vmatprep.subr.mxu0 0.0
    %1833 = vmatpush1.msra.mxu0 0.0
    %1834 = vmatprep.subr.mxu0 0.0
    %1835 = vmatpush1.msra.mxu0 0.0
    %1836 = vmatprep.subr.mxu0 0.0
    %1837 = vmatpush1.msra.mxu0 0.0
    %1838 = vmatprep.subr.mxu0 0.0
    %1839 = vmatpush1.msra.mxu0 0.0
    %1840 = vmatprep.subr.mxu0 0.0
    %1841 = vmatpush1.msra.mxu0 0.0
    %1842 = vmatprep.subr.mxu0 0.0
    %1843 = vmatpush1.msra.mxu0 0.0
    %1844 = vmatprep.subr.mxu0 0.0
    %1845 = vmatpush1.msra.mxu0 0.0
    %1846 = vmatprep.subr.mxu0 0.0
    %1847 = vmatpush1.msra.mxu0 0.0
    %1848 = vmatprep.subr.mxu0 0.0
    %1849 = vmatpush1.msra.mxu0 0.0
    %1850 = vmatprep.subr.mxu0 0.0
    %1851 = vmatpush1.msra.mxu0 0.0
    %1852 = vmatprep.subr.mxu0 0.0
    %1853 = vmatpush1.msra.mxu0 0.0
    %1854 = vmatprep.subr.mxu0 0.0
    %1855 = vmatpush1.msra.mxu0 0.0
    %1856 = vmatprep.subr.mxu0 0.0
    %1857 = vmatpush1.msra.mxu0 0.0
    %1858 = vmatprep.subr.mxu0 0.0
    %1859 = vmatpush1.msra.mxu0 0.0
    %1860 = vmatprep.subr.mxu0 0.0
    %1861 = vmatpush1.msra.mxu0 0.0
    %1862 = vmatprep.subr.mxu0 0.0
    %1863 = vmatpush1.msra.mxu0 0.0
    %1864 = vmatprep.subr.mxu0 0.0
    %1865 = vmatpush1.msra.mxu0 0.0
    %1866 = vmatprep.subr.mxu0 0.0
    %1867 = vmatpush1.msra.mxu0 0.0
    %1868 = vmatprep.subr.mxu0 0.0
    %1869 = vmatpush1.msra.mxu0 0.0
    %1870 = vmatprep.subr.mxu0 0.0
    %1871 = vmatpush1.msra.mxu0 0.0
    %1872 = vmatprep.subr.mxu0 0.0
    %1873 = vmatpush1.msra.mxu0 0.0
    %1874 = vmatprep.subr.mxu0 0.0
    %1875 = vmatpush1.msra.mxu0 0.0
    %1876 = vmatprep.subr.mxu0 0.0
    %1877 = vmatpush1.msra.mxu0 0.0
    %1878 = vmatprep.subr.mxu0 0.0
    %1879 = vmatpush1.msra.mxu0 0.0
    %1880 = vmatprep.subr.mxu0 0.0
    %1881 = vmatpush1.msra.mxu0 0.0
    %1882 = vmatprep.subr.mxu0 0.0
    %1883 = vmatpush1.msra.mxu0 0.0
    %1884 = vmatprep.mubr.f32.mxu0 0.0
    %1885 = vmatmul.mubr.f32.gmra.mrb[0].mxu0 %v1803
    %v1886 = vpop.f32.mrb[0].mxu0
    %v1887 = vadd.f32 %v1775, %v1886
    %v1888 = vpop.f32.mrb[0].mxu0
    %1889 = vmatprep.mubr.f32.mxu0 0.0
    %1890 = vmatmul.mubr.f32.gmra.mrb[0].mxu0 %v1806
    %v1891 = vpop.f32.mrb[0].mxu0
    %v1892 = vadd.f32 %v1780, %v1891
    %v1893 = vpop.f32.mrb[0].mxu0
    %1894 = vmatprep.mubr.f32.mxu0 0.0
    %1895 = vmatmul.mubr.f32.gmra.mrb[0].mxu0 %v1809
    %v1896 = vpop.f32.mrb[0].mxu0
    %v1897 = vadd.f32 %v1785, %v1896
    %v1898 = vpop.f32.mrb[0].mxu0
    %1899 = vmatprep.mubr.f32.mxu0 0.0
    %1900 = vmatmul.mubr.f32.gmra.mrb[0].mxu0 %v1812
    %v1901 = vpop.f32.mrb[0].mxu0
    %v1902 = vadd.f32 %v1790, %v1901
    %v1903 = vpop.f32.mrb[0].mxu0
    %1904 = vmatprep.mubr.f32.mxu0 0.0
    %1905 = vmatmul.mubr.f32.gmra.mrb[0].mxu0 %v1815
    %v1906 = vpop.f32.mrb[0].mxu0
    %v1907 = vadd.f32 %v1795, %v1906
    %v1908 = vpop.f32.mrb[0].mxu0
    %1909 = vmatprep.mubr.f32.mxu0 0.0
    %1910 = vmatmul.mubr.f32.gmra.mrb[0].mxu0 %v1818
    %v1911 = vpop.f32.mrb[0].mxu0
    %v1912 = vadd.f32 %v1800, %v1911
    %v1913 = vpop.f32.mrb[0].mxu0
    %1914 = vdwg.mxu0
    %v1915 = vxor.u32 %v1887, 2147483648
    %v1916 = vxor.u32 %v1892, 2147483648
    %v1917 = vxor.u32 %v1897, 2147483648
    %v1918 = vxor.u32 %v1902, 2147483648
    %v1919 = vxor.u32 %v1907, 2147483648
    %v1920 = vxor.u32 %v1912, 2147483648
    %v1921 = vmul.f32 %v1915, 1.442695
    %v1922 = vpow.pop %v1921
    %v1923 = vmul.f32 %v1916, 1.442695
    %v1924 = vpow.pop %v1923
    %v1925 = vmul.f32 %v1917, 1.442695
    %v1926 = vpow.pop %v1925
    %v1927 = vmul.f32 %v1918, 1.442695
    %v1928 = vpow.pop %v1927
    %v1929 = vmul.f32 %v1919, 1.442695
    %v1930 = vpow.pop %v1929
    %v1931 = vmul.f32 %v1920, 1.442695
    %v1932 = vpow.pop %v1931
    %v1933 = vadd.f32 %v1922, 1.0
    %v1934 = vadd.f32 %v1924, 1.0
    %v1935 = vadd.f32 %v1926, 1.0
    %v1936 = vadd.f32 %v1928, 1.0
    %v1937 = vadd.f32 %v1930, 1.0
    %v1938 = vadd.f32 %v1932, 1.0
    %v1939 = vrcp.pop %v1933
    %v1940 = vmul.f32 1.0, %v1939
    %v1941 = vrcp.pop %v1934
    %v1942 = vmul.f32 1.0, %v1941
    %v1943 = vrcp.pop %v1935
    %v1944 = vmul.f32 1.0, %v1943
    %v1945 = vrcp.pop %v1936
    %v1946 = vmul.f32 1.0, %v1945
    %v1947 = vrcp.pop %v1937
    %v1948 = vmul.f32 1.0, %v1947
    %v1949 = vrcp.pop %v1938
    %v1950 = vmul.f32 1.0, %v1949
    %v1951 = vmul.f32 %v1567, %v1940
    %v1952 = vmul.f32 %v1568, %v1942
    %v1953 = vmul.f32 %v1569, %v1944
    %v1954 = vmul.f32 %v1570, %v1946
    %v1955 = vmul.f32 %v1571, %v1948
    %v1956 = vmul.f32 %v1572, %v1950
    %v1957 = vsel %vm1573, %v1951, -inf
    %1958 = vmax.xlane.f32.xlu0 %v1957
    %v1959 = vpop.xlane.xlu0 %1958
    %v1960 = vsel %vm1573, %v1952, -inf
    %1961 = vmax.xlane.f32.xlu0 %v1960
    %v1962 = vpop.xlane.xlu0 %1961
    %v1963 = vsel %vm1573, %v1953, -inf
    %1964 = vmax.xlane.f32.xlu0 %v1963
    %v1965 = vpop.xlane.xlu0 %1964
    %v1966 = vsel %vm1573, %v1954, -inf
    %1967 = vmax.xlane.f32.xlu0 %v1966
    %v1968 = vpop.xlane.xlu0 %1967
    %v1969 = vsel %vm1573, %v1955, -inf
    %1970 = vmax.xlane.f32.xlu0 %v1969
    %v1971 = vpop.xlane.xlu0 %1970
    %v1972 = vsel %vm1573, %v1956, -inf
    %1973 = vmax.xlane.f32.xlu0 %v1972
    %v1974 = vpop.xlane.xlu0 %1973
    %v1975 = vsub.f32 %v1951, %v1959
    %v1976 = vsub.f32 %v1952, %v1962
    %v1977 = vsub.f32 %v1953, %v1965
    %v1978 = vsub.f32 %v1954, %v1968
    %v1979 = vsub.f32 %v1955, %v1971
    %v1980 = vsub.f32 %v1956, %v1974
    %v1981 = vmul.f32 %v1975, 1.442695
    %v1982 = vpow.pop %v1981
    %v1983 = vmul.f32 %v1976, 1.442695
    %v1984 = vpow.pop %v1983
    %v1985 = vmul.f32 %v1977, 1.442695
    %v1986 = vpow.pop %v1985
    %v1987 = vmul.f32 %v1978, 1.442695
    %v1988 = vpow.pop %v1987
    %v1989 = vmul.f32 %v1979, 1.442695
    %v1990 = vpow.pop %v1989
    %v1991 = vmul.f32 %v1980, 1.442695
    %v1992 = vpow.pop %v1991
    %v1993 = vsel %vm1573, %v1982, 0.0
    %1994 = vadd.xlane.f32.xlu0 %v1993
    %v1995 = vpop.xlane.xlu0 %1994
    %v1996 = vsel %vm1573, %v1984, 0.0
    %1997 = vadd.xlane.f32.xlu0 %v1996
    %v1998 = vpop.xlane.xlu0 %1997
    %v1999 = vsel %vm1573, %v1986, 0.0
    %2000 = vadd.xlane.f32.xlu0 %v1999
    %v2001 = vpop.xlane.xlu0 %2000
    %v2002 = vsel %vm1573, %v1988, 0.0
    %2003 = vadd.xlane.f32.xlu0 %v2002
    %v2004 = vpop.xlane.xlu0 %2003
    %v2005 = vsel %vm1573, %v1990, 0.0
    %2006 = vadd.xlane.f32.xlu0 %v2005
    %v2007 = vpop.xlane.xlu0 %2006
    %v2008 = vsel %vm1573, %v1992, 0.0
    %2009 = vadd.xlane.f32.xlu0 %v2008
    %v2010 = vpop.xlane.xlu0 %2009
    %v2011 = vrcp.pop %v1995
    %v2012 = vrcp.pop %v1998
    %v2013 = vrcp.pop %v2001
    %v2014 = vrcp.pop %v2004
    %v2015 = vrcp.pop %v2007
    %v2016 = vrcp.pop %v2010
    %v2017 = vmul.f32 %v1982, %v2011
    %v2018 = vmul.f32 %v1984, %v2012
    %v2019 = vmul.f32 %v1986, %v2013
    %v2020 = vmul.f32 %v1988, %v2014
    %v2021 = vmul.f32 %v1990, %v2015
    %v2022 = vmul.f32 %v1992, %v2016
    %v2023 = vpack.c.bf16 %v2017, %v2017
    %vm2024 = vcmask 60416
    %2025 = vst.msk [vmem:[#allocation4] sm:$0xf] %vm2024, %v2023
    %v2026 = vpack.c.bf16 %v2018, %v2018
    %2028 = vrot.lane.b32.xlu0 %v2026, 16
    %v2029 = vpop.permute.xlu0 %2028
    %vm2031 = vcmask 191616
    %2032 = vst.msk [vmem:[#allocation4] sm:$0xf] %vm2031, %v2029
    %v2033 = vpack.c.bf16 %v2019, %v2019
    %2035 = vrot.lane.b32.xlu0 %v2033, 32
    %v2036 = vpop.permute.xlu0 %2035
    %vm2038 = vcmask 322816
    %2039 = vst.msk [vmem:[#allocation4] sm:$0xf] %vm2038, %v2036
    %v2040 = vpack.c.bf16 %v2020, %v2020
    %v2042 = vrot.slane %v2040, 4
    %2043 = vrot.lane.b32.xlu0 %v2042, 8
    %v2044 = vpop.permute.xlu0 %2043
    %vm2046 = vcmask 130116
    %2047 = vst.msk [vmem:[#allocation4] sm:$0xf0] %vm2046, %v2044
    %v2048 = vpack.c.bf16 %v2021, %v2021
    %v2050 = vrot.slane %v2048, 4
    %2051 = vrot.lane.b32.xlu0 %v2050, 24
    %v2052 = vpop.permute.xlu0 %2051
    %vm2054 = vcmask 261316
    %2055 = vst.msk [vmem:[#allocation4] sm:$0xf0] %vm2054, %v2052
    %v2056 = vpack.c.bf16 %v2022, %v2022
    %v2058 = vrot.slane %v2056, 4
    %2059 = vrot.lane.b32.xlu0 %v2058, 40
    %v2060 = vpop.permute.xlu0 %2059
    %vm2062 = vcmask 392516
    %2063 = vst.msk [vmem:[#allocation4] sm:$0xf0] %vm2062, %v2060
    %v2064 = vld [vmem:[#allocation4] sm:$0xff]
    %v2065 = vld [vmem:[#allocation3] sm:$0xff]
    %v2066 = vld [vmem:[#allocation3 + $0x8] sm:$0xff]
    %v2067 = vld [vmem:[#allocation3 + $0x10] sm:$0xff]
    %v2068 = vld [vmem:[#allocation3 + $0x18] sm:$0xff]
    %v2069 = vld [vmem:[#allocation3 + $0x20] sm:$0xff]
    %v2070 = vld [vmem:[#allocation3 + $0x28] sm:$0xff]
    %v2072 = vsel %vm79, %v2064, 0
    %2074 = vmatprep.subr.bf16.mxu0 %v2066
    %2075 = vmatpush1.bf16.msra.mxu0 %v2065
    %2076 = vmatprep.subr.bf16.mxu0 %v2068
    %2077 = vmatpush1.bf16.msra.mxu0 %v2067
    %2078 = vmatprep.subr.bf16.mxu0 %v2070
    %2079 = vmatpush1.bf16.msra.mxu0 %v2069
    %2080 = vmatprep.subr.bf16.mxu0 0
    %2081 = vmatpush1.bf16.msra.mxu0 0
    %2082 = vmatprep.subr.bf16.mxu0 0
    %2083 = vmatpush1.bf16.msra.mxu0 0
    %2084 = vmatprep.subr.bf16.mxu0 0
    %2085 = vmatpush1.bf16.msra.mxu0 0
    %2086 = vmatprep.subr.bf16.mxu0 0
    %2087 = vmatpush1.bf16.msra.mxu0 0
    %2088 = vmatprep.subr.bf16.mxu0 0
    %2089 = vmatpush1.bf16.msra.mxu0 0
    %2090 = vmatprep.subr.bf16.mxu0 0
    %2091 = vmatpush1.bf16.msra.mxu0 0
    %2092 = vmatprep.subr.bf16.mxu0 0
    %2093 = vmatpush1.bf16.msra.mxu0 0
    %2094 = vmatprep.subr.bf16.mxu0 0
    %2095 = vmatpush1.bf16.msra.mxu0 0
    %2096 = vmatprep.subr.bf16.mxu0 0
    %2097 = vmatpush1.bf16.msra.mxu0 0
    %2098 = vmatprep.subr.bf16.mxu0 0
    %2099 = vmatpush1.bf16.msra.mxu0 0
    %2100 = vmatprep.subr.bf16.mxu0 0
    %2101 = vmatpush1.bf16.msra.mxu0 0
    %2102 = vmatprep.subr.bf16.mxu0 0
    %2103 = vmatpush1.bf16.msra.mxu0 0
    %2104 = vmatprep.subr.bf16.mxu0 0
    %2105 = vmatpush1.bf16.msra.mxu0 0
    %2106 = vmatprep.mubr.bf16.mxu0 0
    %2107 = vmatmul.mubr.bf16.gmra.mrb[0].mxu0 %v2072
    %v2108 = vpop.f32.mrb[0].mxu0
    %v2109 = vadd.f32 0.0, %v2108
    %v2110 = vpop.f32.mrb[0].mxu0
    %v2111 = vadd.f32 0.0, %v2110
    %v2112 = vpop.f32.mrb[0].mxu0
    %v2113 = vadd.f32 0.0, %v2112
    %v2114 = vpop.f32.mrb[0].mxu0
    %v2115 = vadd.f32 0.0, %v2114
    %2116 = vdwg.mxu0
    %v2117 = vpack.c.bf16 %v2113, %v2109
    %v2118 = vpack.c.bf16 %v2115, %v2111
    %v2119 = vld [vmem:[%s4] sm:$0xf]
    %v2120 = vld [vmem:[%s4 + $0x4] sm:$0xf]
    %v2121 = vld [vmem:[%s4 + $0x8] sm:$0xf]
    %v2122 = vld [vmem:[%s4 + $0xc] sm:$0xf]
    %v2123 = vld [vmem:[%s4 + $0x10] sm:$0xf]
    %v2124 = vld [vmem:[%s4 + $0x14] sm:$0xf]
    %v2125 = vld [vmem:[%s4 + $0x18] sm:$0xf]
    %v2126 = vld [vmem:[%s4 + $0x1c] sm:$0xf]
    %v2127 = vld [vmem:[%s4 + $0x20] sm:$0xf]
    %v2128 = vld [vmem:[%s4 + $0x24] sm:$0xf]
    %v2129 = vld [vmem:[%s4 + $0x28] sm:$0xf]
    %v2130 = vld [vmem:[%s4 + $0x2c] sm:$0xf]
    %v2131 = vld [vmem:[%s4 + $0x30] sm:$0xf]
    %v2132 = vld [vmem:[%s4 + $0x34] sm:$0xf]
    %v2133 = vld [vmem:[%s4 + $0x38] sm:$0xf]
    %v2134 = vld [vmem:[%s4 + $0x3c] sm:$0xf]
    %v2135 = vld [vmem:[%s4 + $0x40] sm:$0xf]
    %v2136 = vld [vmem:[%s4 + $0x44] sm:$0xf]
    %v2137 = vld [vmem:[%s4 + $0x48] sm:$0xf]
    %v2138 = vld [vmem:[%s4 + $0x4c] sm:$0xf]
    %v2139 = vld [vmem:[%s4 + $0x50] sm:$0xf]
    %v2140 = vld [vmem:[%s4 + $0x54] sm:$0xf]
    %v2141 = vld [vmem:[%s4 + $0x58] sm:$0xf]
    %v2142 = vld [vmem:[%s4 + $0x5c] sm:$0xf]
    %v2143 = vld [vmem:[%s5] sm:$0x1]
    %v2145 = vlaneseq
    %v2146 = vshrl.u32 %v2145, 7
    %v2147 = vsub.s32 0, %v2146
    %v2148 = vrot.slane %v2143, %v2147
    %v2174 = vunpack.c.l.b16 %v2119
    %v2175 = vunpack.c.l.b16 %v2120
    %v2176 = vunpack.c.l.b16 %v2121
    %v2177 = vunpack.c.l.b16 %v2122
    %v2178 = vunpack.c.l.b16 %v2123
    %v2179 = vunpack.c.l.b16 %v2124
    %v2180 = vunpack.c.l.b16 %v2125
    %v2181 = vunpack.c.l.b16 %v2126
    %v2182 = vunpack.c.l.b16 %v2127
    %v2183 = vunpack.c.l.b16 %v2128
    %v2184 = vunpack.c.l.b16 %v2129
    %v2185 = vunpack.c.l.b16 %v2130
    %v2186 = vunpack.c.l.b16 %v2131
    %v2187 = vunpack.c.l.b16 %v2132
    %v2188 = vunpack.c.l.b16 %v2133
    %v2189 = vunpack.c.l.b16 %v2134
    %v2190 = vunpack.c.l.b16 %v2135
    %v2191 = vunpack.c.l.b16 %v2136
    %v2192 = vunpack.c.l.b16 %v2137
    %v2193 = vunpack.c.l.b16 %v2138
    %v2194 = vunpack.c.l.b16 %v2139
    %v2195 = vunpack.c.l.b16 %v2140
    %v2196 = vunpack.c.l.b16 %v2141
    %v2197 = vunpack.c.l.b16 %v2142
    %v2198 = vpack.c.b16 %v2175, %v2174
    %v2199 = vpack.c.b16 %v2177, %v2176
    %v2200 = vpack.c.b16 %v2179, %v2178
    %v2201 = vpack.c.b16 %v2181, %v2180
    %v2202 = vpack.c.b16 %v2183, %v2182
    %v2203 = vpack.c.b16 %v2185, %v2184
    %v2204 = vpack.c.b16 %v2187, %v2186
    %v2205 = vpack.c.b16 %v2189, %v2188
    %v2206 = vpack.c.b16 %v2191, %v2190
    %v2207 = vpack.c.b16 %v2193, %v2192
    %v2208 = vpack.c.b16 %v2195, %v2194
    %v2209 = vpack.c.b16 %v2197, %v2196
    %v2223 = vsel %vm73, %v2118, 0
    %2225 = vmatprep.subr.bf16.mxu0 0
    %2226 = vmatpush1.bf16.msra.mxu0 %v2198
    %2227 = vmatprep.subr.bf16.mxu0 0
    %2228 = vmatpush1.bf16.msra.mxu0 %v2199
    %2229 = vmatprep.subr.bf16.mxu0 0
    %2230 = vmatpush1.bf16.msra.mxu0 %v2200
    %2231 = vmatprep.subr.bf16.mxu0 0
    %2232 = vmatpush1.bf16.msra.mxu0 %v2201
    %2233 = vmatprep.subr.bf16.mxu0 0
    %2234 = vmatpush1.bf16.msra.mxu0 %v2202
    %2235 = vmatprep.subr.bf16.mxu0 0
    %2236 = vmatpush1.bf16.msra.mxu0 %v2203
    %2237 = vmatprep.subr.bf16.mxu0 0
    %2238 = vmatpush1.bf16.msra.mxu0 %v2204
    %2239 = vmatprep.subr.bf16.mxu0 0
    %2240 = vmatpush1.bf16.msra.mxu0 %v2205
    %2241 = vmatprep.subr.bf16.mxu0 0
    %2242 = vmatpush1.bf16.msra.mxu0 %v2206
    %2243 = vmatprep.subr.bf16.mxu0 0
    %2244 = vmatpush1.bf16.msra.mxu0 %v2207
    %2245 = vmatprep.subr.bf16.mxu0 0
    %2246 = vmatpush1.bf16.msra.mxu0 %v2208
    %2247 = vmatprep.subr.bf16.mxu0 0
    %2248 = vmatpush1.bf16.msra.mxu0 %v2209
    %2249 = vmatprep.subr.bf16.mxu0 0
    %2250 = vmatpush1.bf16.msra.mxu0 0
    %2251 = vmatprep.subr.bf16.mxu0 0
    %2252 = vmatpush1.bf16.msra.mxu0 0
    %2253 = vmatprep.subr.bf16.mxu0 0
    %2254 = vmatpush1.bf16.msra.mxu0 0
    %2255 = vmatprep.subr.bf16.mxu0 0
    %2256 = vmatpush1.bf16.msra.mxu0 0
    %2257 = vmatprep.mubr.bf16.mxu0 %v2223
    %2258 = vmatmul.mubr.bf16.gmra.mrb[0].mxu0 %v2117
    %v2259 = vpop.f32.mrb[0].mxu0
    %v2260 = vadd.f32 %v2148, %v2259
    %v2261 = vpop.f32.mrb[0].mxu0
    %v2262 = vpop.f32.mrb[0].mxu0
    %v2263 = vadd.f32 %v2148, %v2262
    %v2264 = vpop.f32.mrb[0].mxu0
    %2265 = vdwg.mxu0
    %v2266 = vadd.f32 %v61, %v2260
    %v2267 = vadd.f32 %v62, %v2263
    %v2268 = vld [vmem:[%s6] sm:$0x1]
    %v2269 = vld [vmem:[%s7] sm:$0x1]
    %v2270 = vsel %vm198, %v2266, 0.0
    %2271 = vadd.xlane.f32.xlu0 %v2270
    %v2272 = vpop.xlane.xlu0 %2271
    %v2273 = vsel %vm198, %v2267, 0.0
    %2274 = vadd.xlane.f32.xlu0 %v2273
    %v2275 = vpop.xlane.xlu0 %2274
    %v2276 = vmul.f32 %v2272, %v205
    %v2277 = vmul.f32 %v2275, %v205
    %v2278 = vsub.f32 %v2266, %v2276
    %v2279 = vsub.f32 %v2267, %v2277
    %v2280 = vmul.f32 %v2278, %v2278
    %v2281 = vmul.f32 %v2279, %v2279
    %v2282 = vsel %vm198, %v2280, 0.0
    %2283 = vadd.xlane.f32.xlu0 %v2282
    %v2284 = vpop.xlane.xlu0 %2283
    %v2285 = vsel %vm198, %v2281, 0.0
    %2286 = vadd.xlane.f32.xlu0 %v2285
    %v2287 = vpop.xlane.xlu0 %2286
    %v2288 = vmul.f32 %v2284, %v205
    %v2289 = vmul.f32 %v2287, %v205
    %v2290 = vadd.f32 %v2288, 1e-05
    %v2291 = vadd.f32 %v2289, 1e-05
    %v2292 = vrsqrt.pop %v2290
    %v2293 = vrsqrt.pop %v2291
    %v2294 = vmul.f32 %v2278, %v2292
    %v2295 = vmul.f32 %v2279, %v2293
    %v2297 = vlaneseq
    %v2298 = vshrl.u32 %v2297, 7
    %v2299 = vsub.s32 0, %v2298
    %v2300 = vrot.slane %v2268, %v2299
    %v2302 = vmul.f32 %v2294, %v2300
    %v2303 = vmul.f32 %v2295, %v2300
    %v2305 = vlaneseq
    %v2306 = vshrl.u32 %v2305, 7
    %v2307 = vsub.s32 0, %v2306
    %v2308 = vrot.slane %v2269, %v2307
    %v2310 = vadd.f32 %v2302, %v2308
    %v2311 = vadd.f32 %v2303, %v2308
    %v2312 = vpack.c.bf16 %v2311, %v2310
    %v2313 = vld [vmem:[%s8] sm:$0xff]
    %v2314 = vld [vmem:[%s8 + $0x8] sm:$0xff]
    %v2315 = vld [vmem:[%s8 + $0x10] sm:$0xff]
    %v2316 = vld [vmem:[%s8 + $0x18] sm:$0xff]
    %v2317 = vld [vmem:[%s9] sm:$0x3]
    %v2319 = vlaneseq
    %v2320 = vshrl.u32 %v2319, 7
    %v2321 = vsub.s32 0, %v2320
    %v2322 = vrot.slane %v2317, %v2321
    %v2323 = vlaneseq
    %v2324 = vshrl.u32 %v2323, 7
    %v2325 = vsub.s32 1, %v2324
    %v2326 = vrot.slane %v2317, %v2325
    %v2333 = vunpack.c.l.b16 %v2313
    %v2334 = vunpack.c.h.b16 %v2313
    %v2335 = vunpack.c.l.b16 %v2314
    %v2336 = vunpack.c.h.b16 %v2314
    %v2337 = vunpack.c.l.b16 %v2315
    %v2338 = vunpack.c.h.b16 %v2315
    %v2339 = vunpack.c.l.b16 %v2316
    %v2340 = vunpack.c.h.b16 %v2316
    %v2341 = vpack.c.b16 %v2335, %v2333
    %v2342 = vpack.c.b16 %v2336, %v2334
    %v2343 = vpack.c.b16 %v2339, %v2337
    %v2344 = vpack.c.b16 %v2340, %v2338
    %v2350 = vsel %vm198, %v2312, 0
    %2352 = vmatprep.subr.bf16.mxu0 %v2342
    %2353 = vmatpush1.bf16.msra.mxu0 %v2341
    %2354 = vmatprep.subr.bf16.mxu0 %v2344
    %2355 = vmatpush1.bf16.msra.mxu0 %v2343
    %2356 = vmatprep.subr.bf16.mxu0 0
    %2357 = vmatpush1.bf16.msra.mxu0 0
    %2358 = vmatprep.subr.bf16.mxu0 0
    %2359 = vmatpush1.bf16.msra.mxu0 0
    %2360 = vmatprep.subr.bf16.mxu0 0
    %2361 = vmatpush1.bf16.msra.mxu0 0
    %2362 = vmatprep.subr.bf16.mxu0 0
    %2363 = vmatpush1.bf16.msra.mxu0 0
    %2364 = vmatprep.subr.bf16.mxu0 0
    %2365 = vmatpush1.bf16.msra.mxu0 0
    %2366 = vmatprep.subr.bf16.mxu0 0
    %2367 = vmatpush1.bf16.msra.mxu0 0
    %2368 = vmatprep.subr.bf16.mxu0 0
    %2369 = vmatpush1.bf16.msra.mxu0 0
    %2370 = vmatprep.subr.bf16.mxu0 0
    %2371 = vmatpush1.bf16.msra.mxu0 0
    %2372 = vmatprep.subr.bf16.mxu0 0
    %2373 = vmatpush1.bf16.msra.mxu0 0
    %2374 = vmatprep.subr.bf16.mxu0 0
    %2375 = vmatpush1.bf16.msra.mxu0 0
    %2376 = vmatprep.subr.bf16.mxu0 0
    %2377 = vmatpush1.bf16.msra.mxu0 0
    %2378 = vmatprep.subr.bf16.mxu0 0
    %2379 = vmatpush1.bf16.msra.mxu0 0
    %2380 = vmatprep.subr.bf16.mxu0 0
    %2381 = vmatpush1.bf16.msra.mxu0 0
    %2382 = vmatprep.subr.bf16.mxu0 0
    %2383 = vmatpush1.bf16.msra.mxu0 0
    %2384 = vmatprep.mubr.bf16.mxu0 0
    %2385 = vmatmul.mubr.bf16.gmra.mrb[0].mxu0 %v2350
    %v2386 = vpop.f32.mrb[0].mxu0
    %v2387 = vadd.f32 %v2322, %v2386
    %v2388 = vpop.f32.mrb[0].mxu0
    %v2389 = vadd.f32 %v2326, %v2388
    %v2390 = vpop.f32.mrb[0].mxu0
    %v2391 = vadd.f32 %v2322, %v2390
    %v2392 = vpop.f32.mrb[0].mxu0
    %v2393 = vadd.f32 %v2326, %v2392
    %2394 = vdwg.mxu0
    %v2395 = vmul.f32 %v2387, 0.5
    %v2396 = vmul.f32 %v2389, 0.5
    %v2397 = vmul.f32 %v2391, 0.5
    %v2398 = vmul.f32 %v2393, 0.5
    %v2399 = vmul.f32 %v2387, 0.044715
    %v2400 = vmul.f32 %v2389, 0.044715
    %v2401 = vmul.f32 %v2391, 0.044715
    %v2402 = vmul.f32 %v2393, 0.044715
    %v2403 = vmul.f32 %v2399, %v2387
    %v2404 = vmul.f32 %v2400, %v2389
    %v2405 = vmul.f32 %v2401, %v2391
    %v2406 = vmul.f32 %v2402, %v2393
    %v2407 = vmul.f32 %v2403, %v2387
    %v2408 = vmul.f32 %v2404, %v2389
    %v2409 = vmul.f32 %v2405, %v2391
    %v2410 = vmul.f32 %v2406, %v2393
    %v2411 = vadd.f32 %v2387, %v2407
    %v2412 = vadd.f32 %v2389, %v2408
    %v2413 = vadd.f32 %v2391, %v2409
    %v2414 = vadd.f32 %v2393, %v2410
    %v2415 = vmul.f32 %v2411, 0.7978846
    %v2416 = vmul.f32 %v2412, 0.7978846
    %v2417 = vmul.f32 %v2413, 0.7978846
    %v2418 = vmul.f32 %v2414, 0.7978846
    %v2419 = vtanh.pop %v2415
    %v2420 = vtanh.pop %v2416
    %v2421 = vtanh.pop %v2417
    %v2422 = vtanh.pop %v2418
    %v2423 = vadd.f32 %v2419, 1.0
    %v2424 = vadd.f32 %v2420, 1.0
    %v2425 = vadd.f32 %v2421, 1.0
    %v2426 = vadd.f32 %v2422, 1.0
    %v2427 = vmul.f32 %v2395, %v2423
    %v2428 = vmul.f32 %v2396, %v2424
    %v2429 = vmul.f32 %v2397, %v2425
    %v2430 = vmul.f32 %v2398, %v2426
    %v2431 = vpack.c.bf16 %v2429, %v2427
    %v2432 = vpack.c.bf16 %v2430, %v2428
    %v2433 = vld [vmem:[%s10] sm:$0xf]
    %v2434 = vld [vmem:[%s10 + $0x4] sm:$0xf]
    %v2435 = vld [vmem:[%s10 + $0x8] sm:$0xf]
    %v2436 = vld [vmem:[%s10 + $0xc] sm:$0xf]
    %v2437 = vld [vmem:[%s10 + $0x10] sm:$0xf]
    %v2438 = vld [vmem:[%s10 + $0x14] sm:$0xf]
    %v2439 = vld [vmem:[%s10 + $0x18] sm:$0xf]
    %v2440 = vld [vmem:[%s10 + $0x1c] sm:$0xf]
    %v2441 = vld [vmem:[%s10 + $0x20] sm:$0xf]
    %v2442 = vld [vmem:[%s10 + $0x24] sm:$0xf]
    %v2443 = vld [vmem:[%s10 + $0x28] sm:$0xf]
    %v2444 = vld [vmem:[%s10 + $0x2c] sm:$0xf]
    %v2445 = vld [vmem:[%s10 + $0x30] sm:$0xf]
    %v2446 = vld [vmem:[%s10 + $0x34] sm:$0xf]
    %v2447 = vld [vmem:[%s10 + $0x38] sm:$0xf]
    %v2448 = vld [vmem:[%s10 + $0x3c] sm:$0xf]
    %v2449 = vld [vmem:[%s10 + $0x40] sm:$0xf]
    %v2450 = vld [vmem:[%s10 + $0x44] sm:$0xf]
    %v2451 = vld [vmem:[%s10 + $0x48] sm:$0xf]
    %v2452 = vld [vmem:[%s10 + $0x4c] sm:$0xf]
    %v2453 = vld [vmem:[%s10 + $0x50] sm:$0xf]
    %v2454 = vld [vmem:[%s10 + $0x54] sm:$0xf]
    %v2455 = vld [vmem:[%s10 + $0x58] sm:$0xf]
    %v2456 = vld [vmem:[%s10 + $0x5c] sm:$0xf]
    %v2457 = vld [vmem:[%s10 + $0x60] sm:$0xf]
    %v2458 = vld [vmem:[%s10 + $0x64] sm:$0xf]
    %v2459 = vld [vmem:[%s10 + $0x68] sm:$0xf]
    %v2460 = vld [vmem:[%s10 + $0x6c] sm:$0xf]
    %v2461 = vld [vmem:[%s10 + $0x70] sm:$0xf]
    %v2462 = vld [vmem:[%s10 + $0x74] sm:$0xf]
    %v2463 = vld [vmem:[%s10 + $0x78] sm:$0xf]
    %v2464 = vld [vmem:[%s10 + $0x7c] sm:$0xf]
    %v2465 = vld [vmem:[%s11] sm:$0x1]
    %v2467 = vlaneseq
    %v2468 = vshrl.u32 %v2467, 7
    %v2469 = vsub.s32 0, %v2468
    %v2470 = vrot.slane %v2465, %v2469
    %v2504 = vunpack.c.l.b16 %v2433
    %v2505 = vunpack.c.l.b16 %v2434
    %v2506 = vunpack.c.l.b16 %v2435
    %v2507 = vunpack.c.l.b16 %v2436
    %v2508 = vunpack.c.l.b16 %v2437
    %v2509 = vunpack.c.l.b16 %v2438
    %v2510 = vunpack.c.l.b16 %v2439
    %v2511 = vunpack.c.l.b16 %v2440
    %v2512 = vunpack.c.l.b16 %v2441
    %v2513 = vunpack.c.l.b16 %v2442
    %v2514 = vunpack.c.l.b16 %v2443
    %v2515 = vunpack.c.l.b16 %v2444
    %v2516 = vunpack.c.l.b16 %v2445
    %v2517 = vunpack.c.l.b16 %v2446
    %v2518 = vunpack.c.l.b16 %v2447
    %v2519 = vunpack.c.l.b16 %v2448
    %v2520 = vunpack.c.l.b16 %v2449
    %v2521 = vunpack.c.l.b16 %v2450
    %v2522 = vunpack.c.l.b16 %v2451
    %v2523 = vunpack.c.l.b16 %v2452
    %v2524 = vunpack.c.l.b16 %v2453
    %v2525 = vunpack.c.l.b16 %v2454
    %v2526 = vunpack.c.l.b16 %v2455
    %v2527 = vunpack.c.l.b16 %v2456
    %v2528 = vunpack.c.l.b16 %v2457
    %v2529 = vunpack.c.l.b16 %v2458
    %v2530 = vunpack.c.l.b16 %v2459
    %v2531 = vunpack.c.l.b16 %v2460
    %v2532 = vunpack.c.l.b16 %v2461
    %v2533 = vunpack.c.l.b16 %v2462
    %v2534 = vunpack.c.l.b16 %v2463
    %v2535 = vunpack.c.l.b16 %v2464
    %v2536 = vpack.c.b16 %v2505, %v2504
    %v2537 = vpack.c.b16 %v2507, %v2506
    %v2538 = vpack.c.b16 %v2509, %v2508
    %v2539 = vpack.c.b16 %v2511, %v2510
    %v2540 = vpack.c.b16 %v2513, %v2512
    %v2541 = vpack.c.b16 %v2515, %v2514
    %v2542 = vpack.c.b16 %v2517, %v2516
    %v2543 = vpack.c.b16 %v2519, %v2518
    %v2544 = vpack.c.b16 %v2521, %v2520
    %v2545 = vpack.c.b16 %v2523, %v2522
    %v2546 = vpack.c.b16 %v2525, %v2524
    %v2547 = vpack.c.b16 %v2527, %v2526
    %v2548 = vpack.c.b16 %v2529, %v2528
    %v2549 = vpack.c.b16 %v2531, %v2530
    %v2550 = vpack.c.b16 %v2533, %v2532
    %v2551 = vpack.c.b16 %v2535, %v2534
    %2568 = vmatprep.subr.bf16.mxu0 0
    %2569 = vmatpush1.bf16.msra.mxu0 %v2536
    %2570 = vmatprep.subr.bf16.mxu0 0
    %2571 = vmatpush1.bf16.msra.mxu0 %v2537
    %2572 = vmatprep.subr.bf16.mxu0 0
    %2573 = vmatpush1.bf16.msra.mxu0 %v2538
    %2574 = vmatprep.subr.bf16.mxu0 0
    %2575 = vmatpush1.bf16.msra.mxu0 %v2539
    %2576 = vmatprep.subr.bf16.mxu0 0
    %2577 = vmatpush1.bf16.msra.mxu0 %v2540
    %2578 = vmatprep.subr.bf16.mxu0 0
    %2579 = vmatpush1.bf16.msra.mxu0 %v2541
    %2580 = vmatprep.subr.bf16.mxu0 0
    %2581 = vmatpush1.bf16.msra.mxu0 %v2542
    %2582 = vmatprep.subr.bf16.mxu0 0
    %2583 = vmatpush1.bf16.msra.mxu0 %v2543
    %2584 = vmatprep.subr.bf16.mxu0 0
    %2585 = vmatpush1.bf16.msra.mxu0 %v2544
    %2586 = vmatprep.subr.bf16.mxu0 0
    %2587 = vmatpush1.bf16.msra.mxu0 %v2545
    %2588 = vmatprep.subr.bf16.mxu0 0
    %2589 = vmatpush1.bf16.msra.mxu0 %v2546
    %2590 = vmatprep.subr.bf16.mxu0 0
    %2591 = vmatpush1.bf16.msra.mxu0 %v2547
    %2592 = vmatprep.subr.bf16.mxu0 0
    %2593 = vmatpush1.bf16.msra.mxu0 %v2548
    %2594 = vmatprep.subr.bf16.mxu0 0
    %2595 = vmatpush1.bf16.msra.mxu0 %v2549
    %2596 = vmatprep.subr.bf16.mxu0 0
    %2597 = vmatpush1.bf16.msra.mxu0 %v2550
    %2598 = vmatprep.subr.bf16.mxu0 0
    %2599 = vmatpush1.bf16.msra.mxu0 %v2551
    %2600 = vmatprep.mubr.bf16.mxu0 %v2432
    %2601 = vmatmul.mubr.bf16.gmra.mrb[0].mxu0 %v2431
    %v2602 = vpop.f32.mrb[0].mxu0
    %v2603 = vadd.f32 %v2470, %v2602
    %v2604 = vpop.f32.mrb[0].mxu0
    %v2605 = vpop.f32.mrb[0].mxu0
    %v2606 = vadd.f32 %v2470, %v2605
    %v2607 = vpop.f32.mrb[0].mxu0
    %2608 = vdwg.mxu0
    %v2609 = vadd.f32 %v2266, %v2603
    %v2610 = vadd.f32 %v2267, %v2606
    %s2611 = scalar_lea.vmem %s1, 1
    %v2612 = vld [vmem:[%s2611] sm:$0x1]
    %s2613 = scalar_lea.vmem %s2, 1
    %v2614 = vld [vmem:[%s2613] sm:$0x1]
    %v2615 = vsel %vm198, %v2609, 0.0
    %2616 = vadd.xlane.f32.xlu0 %v2615
    %v2617 = vpop.xlane.xlu0 %2616
    %v2618 = vsel %vm198, %v2610, 0.0
    %2619 = vadd.xlane.f32.xlu0 %v2618
    %v2620 = vpop.xlane.xlu0 %2619
    %v2621 = vmul.f32 %v2617, %v205
    %v2622 = vmul.f32 %v2620, %v205
    %v2623 = vsub.f32 %v2609, %v2621
    %v2624 = vsub.f32 %v2610, %v2622
    %v2625 = vmul.f32 %v2623, %v2623
    %v2626 = vmul.f32 %v2624, %v2624
    %v2627 = vsel %vm198, %v2625, 0.0
    %2628 = vadd.xlane.f32.xlu0 %v2627
    %v2629 = vpop.xlane.xlu0 %2628
    %v2630 = vsel %vm198, %v2626, 0.0
    %2631 = vadd.xlane.f32.xlu0 %v2630
    %v2632 = vpop.xlane.xlu0 %2631
    %v2633 = vmul.f32 %v2629, %v205
    %v2634 = vmul.f32 %v2632, %v205
    %v2635 = vadd.f32 %v2633, 1e-05
    %v2636 = vadd.f32 %v2634, 1e-05
    %v2637 = vrsqrt.pop %v2635
    %v2638 = vrsqrt.pop %v2636
    %v2639 = vmul.f32 %v2623, %v2637
    %v2640 = vmul.f32 %v2624, %v2638
    %v2642 = vlaneseq
    %v2643 = vshrl.u32 %v2642, 7
    %v2644 = vsub.s32 0, %v2643
    %v2645 = vrot.slane %v2612, %v2644
    %v2647 = vmul.f32 %v2639, %v2645
    %v2648 = vmul.f32 %v2640, %v2645
    %v2650 = vlaneseq
    %v2651 = vshrl.u32 %v2650, 7
    %v2652 = vsub.s32 0, %v2651
    %v2653 = vrot.slane %v2614, %v2652
    %v2655 = vadd.f32 %v2647, %v2653
    %v2656 = vadd.f32 %v2648, %v2653
    %v2657 = vpack.c.bf16 %v2656, %v2655
    %s2658 = scalar_lea.vmem %s3, 80
    %v2659 = vld [vmem:[%s2658] sm:$0xff]
    %v2660 = vld [vmem:[%s2658 + $0x8] sm:$0xff]
    %v2661 = vld [vmem:[%s2658 + $0x10] sm:$0xf]
    %v2662 = vld [vmem:[%s2658 + $0x14] sm:$0xff]
    %v2663 = vld [vmem:[%s2658 + $0x1c] sm:$0xff]
    %v2664 = vld [vmem:[%s2658 + $0x24] sm:$0xf]
    %v2665 = vld [vmem:[%s2658 + $0x28] sm:$0xff]
    %v2666 = vld [vmem:[%s2658 + $0x30] sm:$0xff]
    %v2667 = vld [vmem:[%s2658 + $0x38] sm:$0xf]
    %v2668 = vld [vmem:[%s2658 + $0x3c] sm:$0xff]
    %v2669 = vld [vmem:[%s2658 + $0x44] sm:$0xff]
    %v2670 = vld [vmem:[%s2658 + $0x4c] sm:$0xf]
    %v2683 = vunpack.c.l.b16 %v2659
    %v2684 = vunpack.c.h.b16 %v2659
    %v2685 = vunpack.c.l.b16 %v2660
    %v2686 = vunpack.c.h.b16 %v2660
    %v2687 = vunpack.c.l.b16 %v2661
    %v2688 = vunpack.c.l.b16 %v2662
    %v2689 = vunpack.c.h.b16 %v2662
    %v2690 = vunpack.c.l.b16 %v2663
    %v2691 = vunpack.c.h.b16 %v2663
    %v2692 = vunpack.c.l.b16 %v2664
    %v2693 = vunpack.c.l.b16 %v2665
    %v2694 = vunpack.c.h.b16 %v2665
    %v2695 = vunpack.c.l.b16 %v2666
    %v2696 = vunpack.c.h.b16 %v2666
    %v2697 = vunpack.c.l.b16 %v2667
    %v2698 = vunpack.c.l.b16 %v2668
    %v2699 = vunpack.c.h.b16 %v2668
    %v2700 = vunpack.c.l.b16 %v2669
    %v2701 = vunpack.c.h.b16 %v2669
    %v2702 = vunpack.c.l.b16 %v2670
    %v2703 = vpack.c.b16 %v2688, %v2683
    %v2704 = vpack.c.b16 %v2689, %v2684
    %v2705 = vpack.c.b16 %v2690, %v2685
    %v2706 = vpack.c.b16 %v2691, %v2686
    %v2707 = vpack.c.b16 %v2692, %v2687
    %v2708 = vpack.c.b16 %v2698, %v2693
    %v2709 = vpack.c.b16 %v2699, %v2694
    %v2710 = vpack.c.b16 %v2700, %v2695
    %v2711 = vpack.c.b16 %v2701, %v2696
    %v2712 = vpack.c.b16 %v2702, %v2697
    %v2724 = vsel %vm198, %v2657, 0
    %2726 = vmatprep.subr.bf16.mxu0 %v2704
    %2727 = vmatpush1.bf16.msra.mxu0 %v2703
    %2728 = vmatprep.subr.bf16.mxu0 %v2709
    %2729 = vmatpush1.bf16.msra.mxu0 %v2708
    %2730 = vmatprep.subr.bf16.mxu0 0
    %2731 = vmatpush1.bf16.msra.mxu0 0
    %2732 = vmatprep.subr.bf16.mxu0 0
    %2733 = vmatpush1.bf16.msra.mxu0 0
    %2734 = vmatprep.subr.bf16.mxu0 0
    %2735 = vmatpush1.bf16.msra.mxu0 0
    %2736 = vmatprep.subr.bf16.mxu0 0
    %2737 = vmatpush1.bf16.msra.mxu0 0
    %2738 = vmatprep.subr.bf16.mxu0 0
    %2739 = vmatpush1.bf16.msra.mxu0 0
    %2740 = vmatprep.subr.bf16.mxu0 0
    %2741 = vmatpush1.bf16.msra.mxu0 0
    %2742 = vmatprep.subr.bf16.mxu0 0
    %2743 = vmatpush1.bf16.msra.mxu0 0
    %2744 = vmatprep.subr.bf16.mxu0 0
    %2745 = vmatpush1.bf16.msra.mxu0 0
    %2746 = vmatprep.subr.bf16.mxu0 0
    %2747 = vmatpush1.bf16.msra.mxu0 0
    %2748 = vmatprep.subr.bf16.mxu0 0
    %2749 = vmatpush1.bf16.msra.mxu0 0
    %2750 = vmatprep.subr.bf16.mxu0 0
    %2751 = vmatpush1.bf16.msra.mxu0 0
    %2752 = vmatprep.subr.bf16.mxu0 0
    %2753 = vmatpush1.bf16.msra.mxu0 0
    %2754 = vmatprep.subr.bf16.mxu0 0
    %2755 = vmatpush1.bf16.msra.mxu0 0
    %2756 = vmatprep.subr.bf16.mxu0 0
    %2757 = vmatpush1.bf16.msra.mxu0 0
    %2758 = vmatprep.mubr.bf16.mxu0 0
    %2759 = vmatmul.mubr.bf16.gmra.mrb[0].mxu0 %v2724
    %v2760 = vpop.f32.mrb[0].mxu0
    %v2761 = vadd.f32 0.0, %v2760
    %v2762 = vpop.f32.mrb[0].mxu0
    %v2763 = vadd.f32 0.0, %v2762
    %v2764 = vpop.f32.mrb[0].mxu0
    %v2765 = vadd.f32 0.0, %v2764
    %v2766 = vpop.f32.mrb[0].mxu0
    %v2767 = vadd.f32 0.0, %v2766
    %2768 = vdwg.mxu0
    %2769 = vmatprep.subr.bf16.mxu0 %v2706
    %2770 = vmatpush1.bf16.msra.mxu0 %v2705
    %2771 = vmatprep.subr.bf16.mxu0 %v2711
    %2772 = vmatpush1.bf16.msra.mxu0 %v2710
    %2773 = vmatprep.subr.bf16.mxu0 0
    %2774 = vmatpush1.bf16.msra.mxu0 0
    %2775 = vmatprep.subr.bf16.mxu0 0
    %2776 = vmatpush1.bf16.msra.mxu0 0
    %2777 = vmatprep.subr.bf16.mxu0 0
    %2778 = vmatpush1.bf16.msra.mxu0 0
    %2779 = vmatprep.subr.bf16.mxu0 0
    %2780 = vmatpush1.bf16.msra.mxu0 0
    %2781 = vmatprep.subr.bf16.mxu0 0
    %2782 = vmatpush1.bf16.msra.mxu0 0
    %2783 = vmatprep.subr.bf16.mxu0 0
    %2784 = vmatpush1.bf16.msra.mxu0 0
    %2785 = vmatprep.subr.bf16.mxu0 0
    %2786 = vmatpush1.bf16.msra.mxu0 0
    %2787 = vmatprep.subr.bf16.mxu0 0
    %2788 = vmatpush1.bf16.msra.mxu0 0
    %2789 = vmatprep.subr.bf16.mxu0 0
    %2790 = vmatpush1.bf16.msra.mxu0 0
    %2791 = vmatprep.subr.bf16.mxu0 0
    %2792 = vmatpush1.bf16.msra.mxu0 0
    %2793 = vmatprep.subr.bf16.mxu0 0
    %2794 = vmatpush1.bf16.msra.mxu0 0
    %2795 = vmatprep.subr.bf16.mxu0 0
    %2796 = vmatpush1.bf16.msra.mxu0 0
    %2797 = vmatprep.subr.bf16.mxu0 0
    %2798 = vmatpush1.bf16.msra.mxu0 0
    %2799 = vmatprep.subr.bf16.mxu0 0
    %2800 = vmatpush1.bf16.msra.mxu0 0
    %2801 = vmatprep.mubr.bf16.mxu0 0
    %2802 = vmatmul.mubr.bf16.gmra.mrb[0].mxu0 %v2724
    %v2803 = vpop.f32.mrb[0].mxu0
    %v2804 = vadd.f32 0.0, %v2803
    %v2805 = vpop.f32.mrb[0].mxu0
    %v2806 = vadd.f32 0.0, %v2805
    %v2807 = vpop.f32.mrb[0].mxu0
    %v2808 = vadd.f32 0.0, %v2807
    %v2809 = vpop.f32.mrb[0].mxu0
    %v2810 = vadd.f32 0.0, %v2809
    %2811 = vdwg.mxu0
    %2812 = vmatprep.subr.bf16.mxu0 0
    %2813 = vmatpush1.bf16.msra.mxu0 %v2707
    %2814 = vmatprep.subr.bf16.mxu0 0
    %2815 = vmatpush1.bf16.msra.mxu0 %v2712
    %2816 = vmatprep.subr.bf16.mxu0 0
    %2817 = vmatpush1.bf16.msra.mxu0 0
    %2818 = vmatprep.subr.bf16.mxu0 0
    %2819 = vmatpush1.bf16.msra.mxu0 0
    %2820 = vmatprep.subr.bf16.mxu0 0
    %2821 = vmatpush1.bf16.msra.mxu0 0
    %2822 = vmatprep.subr.bf16.mxu0 0
    %2823 = vmatpush1.bf16.msra.mxu0 0
    %2824 = vmatprep.subr.bf16.mxu0 0
    %2825 = vmatpush1.bf16.msra.mxu0 0
    %2826 = vmatprep.subr.bf16.mxu0 0
    %2827 = vmatpush1.bf16.msra.mxu0 0
    %2828 = vmatprep.subr.bf16.mxu0 0
    %2829 = vmatpush1.bf16.msra.mxu0 0
    %2830 = vmatprep.subr.bf16.mxu0 0
    %2831 = vmatpush1.bf16.msra.mxu0 0
    %2832 = vmatprep.subr.bf16.mxu0 0
    %2833 = vmatpush1.bf16.msra.mxu0 0
    %2834 = vmatprep.subr.bf16.mxu0 0
    %2835 = vmatpush1.bf16.msra.mxu0 0
    %2836 = vmatprep.subr.bf16.mxu0 0
    %2837 = vmatpush1.bf16.msra.mxu0 0
    %2838 = vmatprep.subr.bf16.mxu0 0
    %2839 = vmatpush1.bf16.msra.mxu0 0
    %2840 = vmatprep.subr.bf16.mxu0 0
    %2841 = vmatpush1.bf16.msra.mxu0 0
    %2842 = vmatprep.subr.bf16.mxu0 0
    %2843 = vmatpush1.bf16.msra.mxu0 0
    %2844 = vmatprep.mubr.bf16.mxu0 0
    %2845 = vmatmul.mubr.bf16.gmra.mrb[0].mxu0 %v2724
    %v2846 = vpop.f32.mrb[0].mxu0
    %v2847 = vadd.f32 0.0, %v2846
    %v2848 = vpop.f32.mrb[0].mxu0
    %v2849 = vpop.f32.mrb[0].mxu0
    %v2850 = vadd.f32 0.0, %v2849
    %v2851 = vpop.f32.mrb[0].mxu0
    %2852 = vdwg.mxu0
    %v2853 = vpack.c.bf16 %v2765, %v2761
    %v2854 = vpack.c.bf16 %v2767, %v2763
    %v2855 = vpack.c.bf16 %v2808, %v2804
    %v2856 = vpack.c.bf16 %v2810, %v2806
    %v2857 = vpack.c.bf16 %v2850, %v2847
    %2858 = vst.msk [vmem:[#allocation2] sm:$0xf] %vm442, %v2853
    %v2860 = vrot.slane %v2853, 4
    %2862 = vst.msk [vmem:[#allocation2] sm:$0xf0] %vm447, %v2860
    %2863 = vst.msk [vmem:[#allocation2 + $0x20] sm:$0xf] %vm442, %v2854
    %2864 = vrot.lane.b32.xlu0 %v2853, 64
    %v2865 = vpop.permute.xlu0 %2864
    %2867 = vst.msk [vmem:[#allocation2 + $0x20] sm:$0xf0] %vm447, %v2865
    %2868 = vrot.lane.b32.xlu0 %v2860, 64
    %v2869 = vpop.permute.xlu0 %2868
    %2871 = vst.msk [vmem:[#allocation2 + $0x40] sm:$0xf] %vm442, %v2869
    %2873 = vrot.lane.b32.xlu0 %v2854, 64
    %v2874 = vpop.permute.xlu0 %2873
    %2876 = vst.msk [vmem:[#allocation2 + $0x40] sm:$0xf0] %vm447, %v2874
    %2877 = vst.msk [vmem:[#allocation3] sm:$0xff] %vm73, %v2856
    %2878 = vst.msk [vmem:[#allocation3 + $0x10] sm:$0xff] %vm464, %v2856
    %2879 = vst.msk [vmem:[#allocation3 + $0x28] sm:$0xff] %vm73, %v2857
    %2881 = vrot.lane.b32.xlu0 %v2855, 64
    %v2882 = vpop.permute.xlu0 %2881
    %v2883 = vsel %vm470, %v2874, %v2882
    %v2885 = vrot.slane %v2854, 4
    %v2886 = vrot.slane %v2855, 4
    %v2890 = vsel %vm73, %v2882, %v2885
    %v2892 = vld [vmem:[#allocation2] sm:$0xff]
    %v2893 = vld [vmem:[#allocation2 + $0x8] sm:$0xff]
    %v2894 = vld [vmem:[#allocation2 + $0x10] sm:$0xff]
    %v2895 = vld [vmem:[#allocation2 + $0x18] sm:$0xff]
    %v2896 = vld [vmem:[#allocation2 + $0x20] sm:$0xff]
    %v2897 = vld [vmem:[#allocation2 + $0x28] sm:$0xff]
    %v2898 = vld [vmem:[#allocation2 + $0x30] sm:$0xff]
    %v2899 = vld [vmem:[#allocation2 + $0x38] sm:$0xff]
    %v2900 = vld [vmem:[#allocation2 + $0x40] sm:$0xff]
    %2901 = vmatprep.subr.bf16.mxu0 %v2890
    %2902 = vmatpush1.bf16.xpose.msra.mxu0 %v2883
    %2903 = vmatprep.subr.bf16.mxu0 0
    %2904 = vmatpush1.bf16.xpose.msra.mxu0 0
    %2905 = vmatprep.subr.bf16.mxu0 0
    %2906 = vmatpush1.bf16.xpose.msra.mxu0 0
    %2907 = vmatprep.subr.bf16.mxu0 0
    %2908 = vmatpush1.bf16.xpose.msra.mxu0 0
    %2909 = vmatprep.subr.bf16.mxu0 0
    %2910 = vmatpush1.bf16.xpose.msra.mxu0 0
    %2911 = vmatprep.subr.bf16.mxu0 0
    %2912 = vmatpush1.bf16.xpose.msra.mxu0 0
    %2913 = vmatprep.subr.bf16.mxu0 0
    %2914 = vmatpush1.bf16.xpose.msra.mxu0 0
    %2915 = vmatprep.subr.bf16.mxu0 0
    %2916 = vmatpush1.bf16.xpose.msra.mxu0 0
    %2917 = vmatprep.subr.bf16.mxu0 0
    %2918 = vmatpush1.bf16.xpose.msra.mxu0 0
    %2919 = vmatprep.subr.bf16.mxu0 0
    %2920 = vmatpush1.bf16.xpose.msra.mxu0 0
    %2921 = vmatprep.subr.bf16.mxu0 0
    %2922 = vmatpush1.bf16.xpose.msra.mxu0 0
    %2923 = vmatprep.subr.bf16.mxu0 0
    %2924 = vmatpush1.bf16.xpose.msra.mxu0 0
    %2925 = vmatprep.subr.bf16.mxu0 0
    %2926 = vmatpush1.bf16.xpose.msra.mxu0 0
    %2927 = vmatprep.subr.bf16.mxu0 0
    %2928 = vmatpush1.bf16.xpose.msra.mxu0 0
    %2929 = vmatprep.subr.bf16.mxu0 0
    %2930 = vmatpush1.bf16.xpose.msra.mxu0 0
    %2931 = vmatprep.subr.bf16.mxu0 0
    %2932 = vmatpush1.bf16.xpose.msra.mxu0 0
    %2933 = vmatprep.mubr.bf16.mxu0 %v2893
    %2934 = vmatmul.mubr.bf16.gmra.mrb[0].mxu0 %v2892
    %v2935 = vpop.f32.mrb[0].mxu0
    %v2936 = vadd.f32 0.0, %v2935
    %v2937 = vpop.f32.mrb[0].mxu0
    %v2938 = vpop.f32.mrb[0].mxu0
    %v2939 = vadd.f32 0.0, %v2938
    %v2940 = vpop.f32.mrb[0].mxu0
    %2941 = vmatprep.mubr.bf16.mxu0 %v2896
    %2942 = vmatmul.mubr.bf16.gmra.mrb[0].mxu0 %v2895
    %v2943 = vpop.f32.mrb[0].mxu0
    %v2944 = vadd.f32 0.0, %v2943
    %v2945 = vpop.f32.mrb[0].mxu0
    %v2946 = vpop.f32.mrb[0].mxu0
    %v2947 = vadd.f32 0.0, %v2946
    %v2948 = vpop.f32.mrb[0].mxu0
    %2949 = vmatprep.mubr.bf16.mxu0 %v2899
    %2950 = vmatmul.mubr.bf16.gmra.mrb[0].mxu0 %v2898
    %v2951 = vpop.f32.mrb[0].mxu0
    %v2952 = vadd.f32 0.0, %v2951
    %v2953 = vpop.f32.mrb[0].mxu0
    %v2954 = vpop.f32.mrb[0].mxu0
    %v2955 = vadd.f32 0.0, %v2954
    %v2956 = vpop.f32.mrb[0].mxu0
    %2957 = vdwg.mxu0
    %2958 = vmatprep.subr.bf16.mxu0 0
    %2959 = vmatpush1.bf16.xpose.msra.mxu0 %v2886
    %2960 = vmatprep.subr.bf16.mxu0 0
    %2961 = vmatpush1.bf16.xpose.msra.mxu0 0
    %2962 = vmatprep.subr.bf16.mxu0 0
    %2963 = vmatpush1.bf16.xpose.msra.mxu0 0
    %2964 = vmatprep.subr.bf16.mxu0 0
    %2965 = vmatpush1.bf16.xpose.msra.mxu0 0
    %2966 = vmatprep.subr.bf16.mxu0 0
    %2967 = vmatpush1.bf16.xpose.msra.mxu0 0
    %2968 = vmatprep.subr.bf16.mxu0 0
    %2969 = vmatpush1.bf16.xpose.msra.mxu0 0
    %2970 = vmatprep.subr.bf16.mxu0 0
    %2971 = vmatpush1.bf16.xpose.msra.mxu0 0
    %2972 = vmatprep.subr.bf16.mxu0 0
    %2973 = vmatpush1.bf16.xpose.msra.mxu0 0
    %2974 = vmatprep.subr.bf16.mxu0 0
    %2975 = vmatpush1.bf16.xpose.msra.mxu0 0
    %2976 = vmatprep.subr.bf16.mxu0 0
    %2977 = vmatpush1.bf16.xpose.msra.mxu0 0
    %2978 = vmatprep.subr.bf16.mxu0 0
    %2979 = vmatpush1.bf16.xpose.msra.mxu0 0
    %2980 = vmatprep.subr.bf16.mxu0 0
    %2981 = vmatpush1.bf16.xpose.msra.mxu0 0
    %2982 = vmatprep.subr.bf16.mxu0 0
    %2983 = vmatpush1.bf16.xpose.msra.mxu0 0
    %2984 = vmatprep.subr.bf16.mxu0 0
    %2985 = vmatpush1.bf16.xpose.msra.mxu0 0
    %2986 = vmatprep.subr.bf16.mxu0 0
    %2987 = vmatpush1.bf16.xpose.msra.mxu0 0
    %2988 = vmatprep.subr.bf16.mxu0 0
    %2989 = vmatpush1.bf16.xpose.msra.mxu0 0
    %2990 = vmatprep.mubr.bf16.mxu0 0
    %2991 = vmatmul.mubr.bf16.gmra.mrb[0].mxu0 %v2894
    %v2992 = vpop.f32.mrb[0].mxu0
    %v2993 = vadd.f32 %v2936, %v2992
    %v2994 = vpop.f32.mrb[0].mxu0
    %v2995 = vpop.f32.mrb[0].mxu0
    %v2996 = vadd.f32 %v2939, %v2995
    %v2997 = vpop.f32.mrb[0].mxu0
    %2998 = vmatprep.mubr.bf16.mxu0 0
    %2999 = vmatmul.mubr.bf16.gmra.mrb[0].mxu0 %v2897
    %v3000 = vpop.f32.mrb[0].mxu0
    %v3001 = vadd.f32 %v2944, %v3000
    %v3002 = vpop.f32.mrb[0].mxu0
    %v3003 = vpop.f32.mrb[0].mxu0
    %v3004 = vadd.f32 %v2947, %v3003
    %v3005 = vpop.f32.mrb[0].mxu0
    %3006 = vmatprep.mubr.bf16.mxu0 0
    %3007 = vmatmul.mubr.bf16.gmra.mrb[0].mxu0 %v2900
    %v3008 = vpop.f32.mrb[0].mxu0
    %v3009 = vadd.f32 %v2952, %v3008
    %v3010 = vpop.f32.mrb[0].mxu0
    %v3011 = vpop.f32.mrb[0].mxu0
    %v3012 = vadd.f32 %v2955, %v3011
    %v3013 = vpop.f32.mrb[0].mxu0
    %3014 = vdwg.mxu0
    %v3015 = vmul.f32 %v2993, 0.125
    %v3016 = vmul.f32 %v2996, 0.125
    %v3017 = vmul.f32 %v3001, 0.125
    %v3018 = vmul.f32 %v3004, 0.125
    %v3019 = vmul.f32 %v3009, 0.125
    %v3020 = vmul.f32 %v3012, 0.125
    %s3021 = scalar_lea.vmem %s12, 48
    %v3022 = vld [vmem:[%s3021] sm:$0xff]
    %v3023 = vld [vmem:[%s3021 + $0x8] sm:$0xff]
    %v3024 = vld [vmem:[%s3021 + $0x10] sm:$0xff]
    %v3025 = vld [vmem:[%s3021 + $0x18] sm:$0xff]
    %v3026 = vld [vmem:[%s3021 + $0x20] sm:$0xff]
    %v3027 = vld [vmem:[%s3021 + $0x28] sm:$0xff]
    %3034 = vrot.lane.b32.xlu0 %v3015, 1
    %v3035 = vpop.permute.xlu0 %3034
    %3036 = vrot.lane.b32.xlu0 %v3016, 1
    %v3037 = vpop.permute.xlu0 %3036
    %3038 = vrot.lane.b32.xlu0 %v3017, 1
    %v3039 = vpop.permute.xlu0 %3038
    %3040 = vrot.lane.b32.xlu0 %v3018, 1
    %v3041 = vpop.permute.xlu0 %3040
    %3042 = vrot.lane.b32.xlu0 %v3019, 1
    %v3043 = vpop.permute.xlu0 %3042
    %3044 = vrot.lane.b32.xlu0 %v3020, 1
    %v3045 = vpop.permute.xlu0 %3044
    %v3052 = vsel %vm639, 0.0, %v3035
    %v3053 = vsel %vm639, 0.0, %v3037
    %v3054 = vsel %vm639, 0.0, %v3039
    %v3055 = vsel %vm639, 0.0, %v3041
    %v3056 = vsel %vm639, 0.0, %v3043
    %v3057 = vsel %vm639, 0.0, %v3045
    %3058 = vrot.lane.b32.xlu0 %v3015, 127
    %v3059 = vpop.permute.xlu0 %3058
    %3060 = vrot.lane.b32.xlu0 %v3016, 127
    %v3061 = vpop.permute.xlu0 %3060
    %3062 = vrot.lane.b32.xlu0 %v3017, 127
    %v3063 = vpop.permute.xlu0 %3062
    %3064 = vrot.lane.b32.xlu0 %v3018, 127
    %v3065 = vpop.permute.xlu0 %3064
    %3066 = vrot.lane.b32.xlu0 %v3019, 127
    %v3067 = vpop.permute.xlu0 %3066
    %3068 = vrot.lane.b32.xlu0 %v3020, 127
    %v3069 = vpop.permute.xlu0 %3068
    %v3076 = vsel %vm664, %v3059, 0.0
    %v3077 = vsel %vm664, %v3061, 0.0
    %v3078 = vsel %vm664, %v3063, 0.0
    %v3079 = vsel %vm664, %v3065, 0.0
    %v3080 = vsel %vm664, %v3067, 0.0
    %v3081 = vsel %vm664, %v3069, 0.0
    %3083 = vset.pattern.permute.xlu0 0
    %3084 = vperm.xlu0 %3083, %v3022
    %v3085 = vpop.permute.xlu0 %3084
    %3088 = vset.pattern.permute.xlu0 0
    %3089 = vperm.xlu0 %3088, %v3023
    %v3090 = vpop.permute.xlu0 %3089
    %3093 = vset.pattern.permute.xlu0 0
    %3094 = vperm.xlu0 %3093, %v3024
    %v3095 = vpop.permute.xlu0 %3094
    %3098 = vset.pattern.permute.xlu0 0
    %3099 = vperm.xlu0 %3098, %v3025
    %v3100 = vpop.permute.xlu0 %3099
    %3103 = vset.pattern.permute.xlu0 0
    %3104 = vperm.xlu0 %3103, %v3026
    %v3105 = vpop.permute.xlu0 %3104
    %3108 = vset.pattern.permute.xlu0 0
    %3109 = vperm.xlu0 %3108, %v3027
    %v3110 = vpop.permute.xlu0 %3109
    %v3112 = vmul.f32 %v3085, %v3052
    %v3113 = vmul.f32 %v3090, %v3053
    %v3114 = vmul.f32 %v3095, %v3054
    %v3115 = vmul.f32 %v3100, %v3055
    %v3116 = vmul.f32 %v3105, %v3056
    %v3117 = vmul.f32 %v3110, %v3057
    %3118 = vset.pattern.permute.xlu0 1
    %3119 = vperm.xlu0 %3118, %v3022
    %v3120 = vpop.permute.xlu0 %3119
    %3122 = vset.pattern.permute.xlu0 1
    %3123 = vperm.xlu0 %3122, %v3023
    %v3124 = vpop.permute.xlu0 %3123
    %3126 = vset.pattern.permute.xlu0 1
    %3127 = vperm.xlu0 %3126, %v3024
    %v3128 = vpop.permute.xlu0 %3127
    %3130 = vset.pattern.permute.xlu0 1
    %3131 = vperm.xlu0 %3130, %v3025
    %v3132 = vpop.permute.xlu0 %3131
    %3134 = vset.pattern.permute.xlu0 1
    %3135 = vperm.xlu0 %3134, %v3026
    %v3136 = vpop.permute.xlu0 %3135
    %3138 = vset.pattern.permute.xlu0 1
    %3139 = vperm.xlu0 %3138, %v3027
    %v3140 = vpop.permute.xlu0 %3139
    %v3142 = vmul.f32 %v3120, %v3015
    %v3143 = vmul.f32 %v3124, %v3016
    %v3144 = vmul.f32 %v3128, %v3017
    %v3145 = vmul.f32 %v3132, %v3018
    %v3146 = vmul.f32 %v3136, %v3019
    %v3147 = vmul.f32 %v3140, %v3020
    %v3148 = vadd.f32 %v3112, %v3142
    %v3149 = vadd.f32 %v3113, %v3143
    %v3150 = vadd.f32 %v3114, %v3144
    %v3151 = vadd.f32 %v3115, %v3145
    %v3152 = vadd.f32 %v3116, %v3146
    %v3153 = vadd.f32 %v3117, %v3147
    %3154 = vset.pattern.permute.xlu0 2
    %3155 = vperm.xlu0 %3154, %v3022
    %v3156 = vpop.permute.xlu0 %3155
    %3158 = vset.pattern.permute.xlu0 2
    %3159 = vperm.xlu0 %3158, %v3023
    %v3160 = vpop.permute.xlu0 %3159
    %3162 = vset.pattern.permute.xlu0 2
    %3163 = vperm.xlu0 %3162, %v3024
    %v3164 = vpop.permute.xlu0 %3163
    %3166 = vset.pattern.permute.xlu0 2
    %3167 = vperm.xlu0 %3166, %v3025
    %v3168 = vpop.permute.xlu0 %3167
    %3170 = vset.pattern.permute.xlu0 2
    %3171 = vperm.xlu0 %3170, %v3026
    %v3172 = vpop.permute.xlu0 %3171
    %3174 = vset.pattern.permute.xlu0 2
    %3175 = vperm.xlu0 %3174, %v3027
    %v3176 = vpop.permute.xlu0 %3175
    %v3178 = vmul.f32 %v3156, %v3076
    %v3179 = vmul.f32 %v3160, %v3077
    %v3180 = vmul.f32 %v3164, %v3078
    %v3181 = vmul.f32 %v3168, %v3079
    %v3182 = vmul.f32 %v3172, %v3080
    %v3183 = vmul.f32 %v3176, %v3081
    %v3184 = vadd.f32 %v3148, %v3178
    %v3185 = vadd.f32 %v3149, %v3179
    %v3186 = vadd.f32 %v3150, %v3180
    %v3187 = vadd.f32 %v3151, %v3181
    %v3188 = vadd.f32 %v3152, %v3182
    %v3189 = vadd.f32 %v3153, %v3183
    %3190 = vset.pattern.permute.xlu0 3
    %3191 = vperm.xlu0 %3190, %v3022
    %v3192 = vpop.permute.xlu0 %3191
    %3194 = vset.pattern.permute.xlu0 3
    %3195 = vperm.xlu0 %3194, %v3023
    %v3196 = vpop.permute.xlu0 %3195
    %3198 = vset.pattern.permute.xlu0 3
    %3199 = vperm.xlu0 %3198, %v3024
    %v3200 = vpop.permute.xlu0 %3199
    %3202 = vset.pattern.permute.xlu0 3
    %3203 = vperm.xlu0 %3202, %v3025
    %v3204 = vpop.permute.xlu0 %3203
    %3206 = vset.pattern.permute.xlu0 3
    %3207 = vperm.xlu0 %3206, %v3026
    %v3208 = vpop.permute.xlu0 %3207
    %3210 = vset.pattern.permute.xlu0 3
    %3211 = vperm.xlu0 %3210, %v3027
    %v3212 = vpop.permute.xlu0 %3211
    %v3214 = vmul.f32 %v3192, %v3052
    %v3215 = vmul.f32 %v3196, %v3053
    %v3216 = vmul.f32 %v3200, %v3054
    %v3217 = vmul.f32 %v3204, %v3055
    %v3218 = vmul.f32 %v3208, %v3056
    %v3219 = vmul.f32 %v3212, %v3057
    %3220 = vset.pattern.permute.xlu0 4
    %3221 = vperm.xlu0 %3220, %v3022
    %v3222 = vpop.permute.xlu0 %3221
    %3224 = vset.pattern.permute.xlu0 4
    %3225 = vperm.xlu0 %3224, %v3023
    %v3226 = vpop.permute.xlu0 %3225
    %3228 = vset.pattern.permute.xlu0 4
    %3229 = vperm.xlu0 %3228, %v3024
    %v3230 = vpop.permute.xlu0 %3229
    %3232 = vset.pattern.permute.xlu0 4
    %3233 = vperm.xlu0 %3232, %v3025
    %v3234 = vpop.permute.xlu0 %3233
    %3236 = vset.pattern.permute.xlu0 4
    %3237 = vperm.xlu0 %3236, %v3026
    %v3238 = vpop.permute.xlu0 %3237
    %3240 = vset.pattern.permute.xlu0 4
    %3241 = vperm.xlu0 %3240, %v3027
    %v3242 = vpop.permute.xlu0 %3241
    %v3244 = vmul.f32 %v3222, %v3015
    %v3245 = vmul.f32 %v3226, %v3016
    %v3246 = vmul.f32 %v3230, %v3017
    %v3247 = vmul.f32 %v3234, %v3018
    %v3248 = vmul.f32 %v3238, %v3019
    %v3249 = vmul.f32 %v3242, %v3020
    %v3250 = vadd.f32 %v3214, %v3244
    %v3251 = vadd.f32 %v3215, %v3245
    %v3252 = vadd.f32 %v3216, %v3246
    %v3253 = vadd.f32 %v3217, %v3247
    %v3254 = vadd.f32 %v3218, %v3248
    %v3255 = vadd.f32 %v3219, %v3249
    %3256 = vset.pattern.permute.xlu0 5
    %3257 = vperm.xlu0 %3256, %v3022
    %v3258 = vpop.permute.xlu0 %3257
    %3260 = vset.pattern.permute.xlu0 5
    %3261 = vperm.xlu0 %3260, %v3023
    %v3262 = vpop.permute.xlu0 %3261
    %3264 = vset.pattern.permute.xlu0 5
    %3265 = vperm.xlu0 %3264, %v3024
    %v3266 = vpop.permute.xlu0 %3265
    %3268 = vset.pattern.permute.xlu0 5
    %3269 = vperm.xlu0 %3268, %v3025
    %v3270 = vpop.permute.xlu0 %3269
    %3272 = vset.pattern.permute.xlu0 5
    %3273 = vperm.xlu0 %3272, %v3026
    %v3274 = vpop.permute.xlu0 %3273
    %3276 = vset.pattern.permute.xlu0 5
    %3277 = vperm.xlu0 %3276, %v3027
    %v3278 = vpop.permute.xlu0 %3277
    %v3280 = vmul.f32 %v3258, %v3076
    %v3281 = vmul.f32 %v3262, %v3077
    %v3282 = vmul.f32 %v3266, %v3078
    %v3283 = vmul.f32 %v3270, %v3079
    %v3284 = vmul.f32 %v3274, %v3080
    %v3285 = vmul.f32 %v3278, %v3081
    %v3286 = vadd.f32 %v3250, %v3280
    %v3287 = vadd.f32 %v3251, %v3281
    %v3288 = vadd.f32 %v3252, %v3282
    %v3289 = vadd.f32 %v3253, %v3283
    %v3290 = vadd.f32 %v3254, %v3284
    %v3291 = vadd.f32 %v3255, %v3285
    %3292 = vset.pattern.permute.xlu0 6
    %3293 = vperm.xlu0 %3292, %v3022
    %v3294 = vpop.permute.xlu0 %3293
    %3296 = vset.pattern.permute.xlu0 6
    %3297 = vperm.xlu0 %3296, %v3023
    %v3298 = vpop.permute.xlu0 %3297
    %3300 = vset.pattern.permute.xlu0 6
    %3301 = vperm.xlu0 %3300, %v3024
    %v3302 = vpop.permute.xlu0 %3301
    %3304 = vset.pattern.permute.xlu0 6
    %3305 = vperm.xlu0 %3304, %v3025
    %v3306 = vpop.permute.xlu0 %3305
    %3308 = vset.pattern.permute.xlu0 6
    %3309 = vperm.xlu0 %3308, %v3026
    %v3310 = vpop.permute.xlu0 %3309
    %3312 = vset.pattern.permute.xlu0 6
    %3313 = vperm.xlu0 %3312, %v3027
    %v3314 = vpop.permute.xlu0 %3313
    %v3316 = vmul.f32 %v3294, %v3052
    %v3317 = vmul.f32 %v3298, %v3053
    %v3318 = vmul.f32 %v3302, %v3054
    %v3319 = vmul.f32 %v3306, %v3055
    %v3320 = vmul.f32 %v3310, %v3056
    %v3321 = vmul.f32 %v3314, %v3057
    %3322 = vset.pattern.permute.xlu0 7
    %3323 = vperm.xlu0 %3322, %v3022
    %v3324 = vpop.permute.xlu0 %3323
    %3326 = vset.pattern.permute.xlu0 7
    %3327 = vperm.xlu0 %3326, %v3023
    %v3328 = vpop.permute.xlu0 %3327
    %3330 = vset.pattern.permute.xlu0 7
    %3331 = vperm.xlu0 %3330, %v3024
    %v3332 = vpop.permute.xlu0 %3331
    %3334 = vset.pattern.permute.xlu0 7
    %3335 = vperm.xlu0 %3334, %v3025
    %v3336 = vpop.permute.xlu0 %3335
    %3338 = vset.pattern.permute.xlu0 7
    %3339 = vperm.xlu0 %3338, %v3026
    %v3340 = vpop.permute.xlu0 %3339
    %3342 = vset.pattern.permute.xlu0 7
    %3343 = vperm.xlu0 %3342, %v3027
    %v3344 = vpop.permute.xlu0 %3343
    %v3346 = vmul.f32 %v3324, %v3015
    %v3347 = vmul.f32 %v3328, %v3016
    %v3348 = vmul.f32 %v3332, %v3017
    %v3349 = vmul.f32 %v3336, %v3018
    %v3350 = vmul.f32 %v3340, %v3019
    %v3351 = vmul.f32 %v3344, %v3020
    %v3352 = vadd.f32 %v3316, %v3346
    %v3353 = vadd.f32 %v3317, %v3347
    %v3354 = vadd.f32 %v3318, %v3348
    %v3355 = vadd.f32 %v3319, %v3349
    %v3356 = vadd.f32 %v3320, %v3350
    %v3357 = vadd.f32 %v3321, %v3351
    %3358 = vset.pattern.permute.xlu0 8
    %3359 = vperm.xlu0 %3358, %v3022
    %v3360 = vpop.permute.xlu0 %3359
    %3362 = vset.pattern.permute.xlu0 8
    %3363 = vperm.xlu0 %3362, %v3023
    %v3364 = vpop.permute.xlu0 %3363
    %3366 = vset.pattern.permute.xlu0 8
    %3367 = vperm.xlu0 %3366, %v3024
    %v3368 = vpop.permute.xlu0 %3367
    %3370 = vset.pattern.permute.xlu0 8
    %3371 = vperm.xlu0 %3370, %v3025
    %v3372 = vpop.permute.xlu0 %3371
    %3374 = vset.pattern.permute.xlu0 8
    %3375 = vperm.xlu0 %3374, %v3026
    %v3376 = vpop.permute.xlu0 %3375
    %3378 = vset.pattern.permute.xlu0 8
    %3379 = vperm.xlu0 %3378, %v3027
    %v3380 = vpop.permute.xlu0 %3379
    %v3382 = vmul.f32 %v3360, %v3076
    %v3383 = vmul.f32 %v3364, %v3077
    %v3384 = vmul.f32 %v3368, %v3078
    %v3385 = vmul.f32 %v3372, %v3079
    %v3386 = vmul.f32 %v3376, %v3080
    %v3387 = vmul.f32 %v3380, %v3081
    %v3388 = vadd.f32 %v3352, %v3382
    %v3389 = vadd.f32 %v3353, %v3383
    %v3390 = vadd.f32 %v3354, %v3384
    %v3391 = vadd.f32 %v3355, %v3385
    %v3392 = vadd.f32 %v3356, %v3386
    %v3393 = vadd.f32 %v3357, %v3387
    %v3400 = vrot.slane %v3184, 7
    %v3401 = vrot.slane %v3185, 7
    %v3402 = vsel %vm989, %v3400, %v3401
    %v3403 = vrot.slane %v3186, 7
    %v3404 = vsel %vm989, %v3401, %v3403
    %v3405 = vrot.slane %v3187, 7
    %v3406 = vsel %vm989, %v3403, %v3405
    %v3407 = vrot.slane %v3188, 7
    %v3408 = vsel %vm989, %v3405, %v3407
    %v3409 = vrot.slane %v3189, 7
    %v3410 = vsel %vm989, %v3407, %v3409
    %v3417 = vsel %vm989, 0.0, %v3400
    %v3418 = vmul.f32 %v3417, %v172
    %v3419 = vmul.f32 %v3402, %v173
    %v3420 = vmul.f32 %v3404, %v174
    %v3421 = vmul.f32 %v3406, %v175
    %v3422 = vmul.f32 %v3408, %v176
    %v3423 = vmul.f32 %v3410, %v177
    %v3430 = vrot.slane %v3388, 1
    %v3431 = vrot.slane %v3389, 1
    %v3432 = vsel %vm1020, %v3430, %v3431
    %v3433 = vrot.slane %v3390, 1
    %v3434 = vsel %vm1020, %v3431, %v3433
    %v3435 = vrot.slane %v3391, 1
    %v3436 = vsel %vm1020, %v3433, %v3435
    %v3437 = vrot.slane %v3392, 1
    %v3438 = vsel %vm1020, %v3435, %v3437
    %v3439 = vrot.slane %v3393, 1
    %v3440 = vsel %vm1020, %v3437, %v3439
    %v3447 = vsel %vm1020, %v3439, 0.0
    %v3448 = vmul.f32 %v3432, %v190
    %v3449 = vmul.f32 %v3434, %v191
    %v3450 = vmul.f32 %v3436, %v192
    %v3451 = vmul.f32 %v3438, %v193
    %v3452 = vmul.f32 %v3440, %v194
    %v3453 = vmul.f32 %v3447, %v195
    %3454 = vset.pattern.permute.xlu0 9
    %3455 = vperm.xlu0 %3454, %v3022
    %v3456 = vpop.permute.xlu0 %3455
    %3458 = vset.pattern.permute.xlu0 9
    %3459 = vperm.xlu0 %3458, %v3023
    %v3460 = vpop.permute.xlu0 %3459
    %3462 = vset.pattern.permute.xlu0 9
    %3463 = vperm.xlu0 %3462, %v3024
    %v3464 = vpop.permute.xlu0 %3463
    %3466 = vset.pattern.permute.xlu0 9
    %3467 = vperm.xlu0 %3466, %v3025
    %v3468 = vpop.permute.xlu0 %3467
    %3470 = vset.pattern.permute.xlu0 9
    %3471 = vperm.xlu0 %3470, %v3026
    %v3472 = vpop.permute.xlu0 %3471
    %3474 = vset.pattern.permute.xlu0 9
    %3475 = vperm.xlu0 %3474, %v3027
    %v3476 = vpop.permute.xlu0 %3475
    %v3478 = vadd.f32 %v3456, %v3286
    %v3479 = vadd.f32 %v3460, %v3287
    %v3480 = vadd.f32 %v3464, %v3288
    %v3481 = vadd.f32 %v3468, %v3289
    %v3482 = vadd.f32 %v3472, %v3290
    %v3483 = vadd.f32 %v3476, %v3291
    %v3484 = vadd.f32 %v3478, %v3418
    %v3485 = vadd.f32 %v3479, %v3419
    %v3486 = vadd.f32 %v3480, %v3420
    %v3487 = vadd.f32 %v3481, %v3421
    %v3488 = vadd.f32 %v3482, %v3422
    %v3489 = vadd.f32 %v3483, %v3423
    %v3490 = vadd.f32 %v3484, %v3448
    %v3491 = vadd.f32 %v3485, %v3449
    %v3492 = vadd.f32 %v3486, %v3450
    %v3493 = vadd.f32 %v3487, %v3451
    %v3494 = vadd.f32 %v3488, %v3452
    %v3495 = vadd.f32 %v3489, %v3453
    %v3496 = vmax.f32 %v3490, 0.0
    %v3497 = vmax.f32 %v3491, 0.0
    %v3498 = vmax.f32 %v3492, 0.0
    %v3499 = vmax.f32 %v3493, 0.0
    %v3500 = vmax.f32 %v3494, 0.0
    %v3501 = vmax.f32 %v3495, 0.0
    %s3502 = scalar_lea.vmem %s13, 48
    %v3503 = vld [vmem:[%s3502] sm:$0xff]
    %v3504 = vld [vmem:[%s3502 + $0x8] sm:$0xff]
    %v3505 = vld [vmem:[%s3502 + $0x10] sm:$0xff]
    %v3506 = vld [vmem:[%s3502 + $0x18] sm:$0xff]
    %v3507 = vld [vmem:[%s3502 + $0x20] sm:$0xff]
    %v3508 = vld [vmem:[%s3502 + $0x28] sm:$0xff]
    %3515 = vrot.lane.b32.xlu0 %v3496, 1
    %v3516 = vpop.permute.xlu0 %3515
    %3517 = vrot.lane.b32.xlu0 %v3497, 1
    %v3518 = vpop.permute.xlu0 %3517
    %3519 = vrot.lane.b32.xlu0 %v3498, 1
    %v3520 = vpop.permute.xlu0 %3519
    %3521 = vrot.lane.b32.xlu0 %v3499, 1
    %v3522 = vpop.permute.xlu0 %3521
    %3523 = vrot.lane.b32.xlu0 %v3500, 1
    %v3524 = vpop.permute.xlu0 %3523
    %3525 = vrot.lane.b32.xlu0 %v3501, 1
    %v3526 = vpop.permute.xlu0 %3525
    %v3533 = vsel %vm639, 0.0, %v3516
    %v3534 = vsel %vm639, 0.0, %v3518
    %v3535 = vsel %vm639, 0.0, %v3520
    %v3536 = vsel %vm639, 0.0, %v3522
    %v3537 = vsel %vm639, 0.0, %v3524
    %v3538 = vsel %vm639, 0.0, %v3526
    %3539 = vrot.lane.b32.xlu0 %v3496, 127
    %v3540 = vpop.permute.xlu0 %3539
    %3541 = vrot.lane.b32.xlu0 %v3497, 127
    %v3542 = vpop.permute.xlu0 %3541
    %3543 = vrot.lane.b32.xlu0 %v3498, 127
    %v3544 = vpop.permute.xlu0 %3543
    %3545 = vrot.lane.b32.xlu0 %v3499, 127
    %v3546 = vpop.permute.xlu0 %3545
    %3547 = vrot.lane.b32.xlu0 %v3500, 127
    %v3548 = vpop.permute.xlu0 %3547
    %3549 = vrot.lane.b32.xlu0 %v3501, 127
    %v3550 = vpop.permute.xlu0 %3549
    %v3557 = vsel %vm664, %v3540, 0.0
    %v3558 = vsel %vm664, %v3542, 0.0
    %v3559 = vsel %vm664, %v3544, 0.0
    %v3560 = vsel %vm664, %v3546, 0.0
    %v3561 = vsel %vm664, %v3548, 0.0
    %v3562 = vsel %vm664, %v3550, 0.0
    %3564 = vset.pattern.permute.xlu0 0
    %3565 = vperm.xlu0 %3564, %v3503
    %v3566 = vpop.permute.xlu0 %3565
    %3569 = vset.pattern.permute.xlu0 0
    %3570 = vperm.xlu0 %3569, %v3504
    %v3571 = vpop.permute.xlu0 %3570
    %3574 = vset.pattern.permute.xlu0 0
    %3575 = vperm.xlu0 %3574, %v3505
    %v3576 = vpop.permute.xlu0 %3575
    %3579 = vset.pattern.permute.xlu0 0
    %3580 = vperm.xlu0 %3579, %v3506
    %v3581 = vpop.permute.xlu0 %3580
    %3584 = vset.pattern.permute.xlu0 0
    %3585 = vperm.xlu0 %3584, %v3507
    %v3586 = vpop.permute.xlu0 %3585
    %3589 = vset.pattern.permute.xlu0 0
    %3590 = vperm.xlu0 %3589, %v3508
    %v3591 = vpop.permute.xlu0 %3590
    %v3593 = vmul.f32 %v3566, %v3533
    %v3594 = vmul.f32 %v3571, %v3534
    %v3595 = vmul.f32 %v3576, %v3535
    %v3596 = vmul.f32 %v3581, %v3536
    %v3597 = vmul.f32 %v3586, %v3537
    %v3598 = vmul.f32 %v3591, %v3538
    %3599 = vset.pattern.permute.xlu0 1
    %3600 = vperm.xlu0 %3599, %v3503
    %v3601 = vpop.permute.xlu0 %3600
    %3603 = vset.pattern.permute.xlu0 1
    %3604 = vperm.xlu0 %3603, %v3504
    %v3605 = vpop.permute.xlu0 %3604
    %3607 = vset.pattern.permute.xlu0 1
    %3608 = vperm.xlu0 %3607, %v3505
    %v3609 = vpop.permute.xlu0 %3608
    %3611 = vset.pattern.permute.xlu0 1
    %3612 = vperm.xlu0 %3611, %v3506
    %v3613 = vpop.permute.xlu0 %3612
    %3615 = vset.pattern.permute.xlu0 1
    %3616 = vperm.xlu0 %3615, %v3507
    %v3617 = vpop.permute.xlu0 %3616
    %3619 = vset.pattern.permute.xlu0 1
    %3620 = vperm.xlu0 %3619, %v3508
    %v3621 = vpop.permute.xlu0 %3620
    %v3623 = vmul.f32 %v3601, %v3496
    %v3624 = vmul.f32 %v3605, %v3497
    %v3625 = vmul.f32 %v3609, %v3498
    %v3626 = vmul.f32 %v3613, %v3499
    %v3627 = vmul.f32 %v3617, %v3500
    %v3628 = vmul.f32 %v3621, %v3501
    %v3629 = vadd.f32 %v3593, %v3623
    %v3630 = vadd.f32 %v3594, %v3624
    %v3631 = vadd.f32 %v3595, %v3625
    %v3632 = vadd.f32 %v3596, %v3626
    %v3633 = vadd.f32 %v3597, %v3627
    %v3634 = vadd.f32 %v3598, %v3628
    %3635 = vset.pattern.permute.xlu0 2
    %3636 = vperm.xlu0 %3635, %v3503
    %v3637 = vpop.permute.xlu0 %3636
    %3639 = vset.pattern.permute.xlu0 2
    %3640 = vperm.xlu0 %3639, %v3504
    %v3641 = vpop.permute.xlu0 %3640
    %3643 = vset.pattern.permute.xlu0 2
    %3644 = vperm.xlu0 %3643, %v3505
    %v3645 = vpop.permute.xlu0 %3644
    %3647 = vset.pattern.permute.xlu0 2
    %3648 = vperm.xlu0 %3647, %v3506
    %v3649 = vpop.permute.xlu0 %3648
    %3651 = vset.pattern.permute.xlu0 2
    %3652 = vperm.xlu0 %3651, %v3507
    %v3653 = vpop.permute.xlu0 %3652
    %3655 = vset.pattern.permute.xlu0 2
    %3656 = vperm.xlu0 %3655, %v3508
    %v3657 = vpop.permute.xlu0 %3656
    %v3659 = vmul.f32 %v3637, %v3557
    %v3660 = vmul.f32 %v3641, %v3558
    %v3661 = vmul.f32 %v3645, %v3559
    %v3662 = vmul.f32 %v3649, %v3560
    %v3663 = vmul.f32 %v3653, %v3561
    %v3664 = vmul.f32 %v3657, %v3562
    %v3665 = vadd.f32 %v3629, %v3659
    %v3666 = vadd.f32 %v3630, %v3660
    %v3667 = vadd.f32 %v3631, %v3661
    %v3668 = vadd.f32 %v3632, %v3662
    %v3669 = vadd.f32 %v3633, %v3663
    %v3670 = vadd.f32 %v3634, %v3664
    %3671 = vset.pattern.permute.xlu0 3
    %3672 = vperm.xlu0 %3671, %v3503
    %v3673 = vpop.permute.xlu0 %3672
    %3675 = vset.pattern.permute.xlu0 3
    %3676 = vperm.xlu0 %3675, %v3504
    %v3677 = vpop.permute.xlu0 %3676
    %3679 = vset.pattern.permute.xlu0 3
    %3680 = vperm.xlu0 %3679, %v3505
    %v3681 = vpop.permute.xlu0 %3680
    %3683 = vset.pattern.permute.xlu0 3
    %3684 = vperm.xlu0 %3683, %v3506
    %v3685 = vpop.permute.xlu0 %3684
    %3687 = vset.pattern.permute.xlu0 3
    %3688 = vperm.xlu0 %3687, %v3507
    %v3689 = vpop.permute.xlu0 %3688
    %3691 = vset.pattern.permute.xlu0 3
    %3692 = vperm.xlu0 %3691, %v3508
    %v3693 = vpop.permute.xlu0 %3692
    %v3695 = vmul.f32 %v3673, %v3533
    %v3696 = vmul.f32 %v3677, %v3534
    %v3697 = vmul.f32 %v3681, %v3535
    %v3698 = vmul.f32 %v3685, %v3536
    %v3699 = vmul.f32 %v3689, %v3537
    %v3700 = vmul.f32 %v3693, %v3538
    %3701 = vset.pattern.permute.xlu0 4
    %3702 = vperm.xlu0 %3701, %v3503
    %v3703 = vpop.permute.xlu0 %3702
    %3705 = vset.pattern.permute.xlu0 4
    %3706 = vperm.xlu0 %3705, %v3504
    %v3707 = vpop.permute.xlu0 %3706
    %3709 = vset.pattern.permute.xlu0 4
    %3710 = vperm.xlu0 %3709, %v3505
    %v3711 = vpop.permute.xlu0 %3710
    %3713 = vset.pattern.permute.xlu0 4
    %3714 = vperm.xlu0 %3713, %v3506
    %v3715 = vpop.permute.xlu0 %3714
    %3717 = vset.pattern.permute.xlu0 4
    %3718 = vperm.xlu0 %3717, %v3507
    %v3719 = vpop.permute.xlu0 %3718
    %3721 = vset.pattern.permute.xlu0 4
    %3722 = vperm.xlu0 %3721, %v3508
    %v3723 = vpop.permute.xlu0 %3722
    %v3725 = vmul.f32 %v3703, %v3496
    %v3726 = vmul.f32 %v3707, %v3497
    %v3727 = vmul.f32 %v3711, %v3498
    %v3728 = vmul.f32 %v3715, %v3499
    %v3729 = vmul.f32 %v3719, %v3500
    %v3730 = vmul.f32 %v3723, %v3501
    %v3731 = vadd.f32 %v3695, %v3725
    %v3732 = vadd.f32 %v3696, %v3726
    %v3733 = vadd.f32 %v3697, %v3727
    %v3734 = vadd.f32 %v3698, %v3728
    %v3735 = vadd.f32 %v3699, %v3729
    %v3736 = vadd.f32 %v3700, %v3730
    %3737 = vset.pattern.permute.xlu0 5
    %3738 = vperm.xlu0 %3737, %v3503
    %v3739 = vpop.permute.xlu0 %3738
    %3741 = vset.pattern.permute.xlu0 5
    %3742 = vperm.xlu0 %3741, %v3504
    %v3743 = vpop.permute.xlu0 %3742
    %3745 = vset.pattern.permute.xlu0 5
    %3746 = vperm.xlu0 %3745, %v3505
    %v3747 = vpop.permute.xlu0 %3746
    %3749 = vset.pattern.permute.xlu0 5
    %3750 = vperm.xlu0 %3749, %v3506
    %v3751 = vpop.permute.xlu0 %3750
    %3753 = vset.pattern.permute.xlu0 5
    %3754 = vperm.xlu0 %3753, %v3507
    %v3755 = vpop.permute.xlu0 %3754
    %3757 = vset.pattern.permute.xlu0 5
    %3758 = vperm.xlu0 %3757, %v3508
    %v3759 = vpop.permute.xlu0 %3758
    %v3761 = vmul.f32 %v3739, %v3557
    %v3762 = vmul.f32 %v3743, %v3558
    %v3763 = vmul.f32 %v3747, %v3559
    %v3764 = vmul.f32 %v3751, %v3560
    %v3765 = vmul.f32 %v3755, %v3561
    %v3766 = vmul.f32 %v3759, %v3562
    %v3767 = vadd.f32 %v3731, %v3761
    %v3768 = vadd.f32 %v3732, %v3762
    %v3769 = vadd.f32 %v3733, %v3763
    %v3770 = vadd.f32 %v3734, %v3764
    %v3771 = vadd.f32 %v3735, %v3765
    %v3772 = vadd.f32 %v3736, %v3766
    %3773 = vset.pattern.permute.xlu0 6
    %3774 = vperm.xlu0 %3773, %v3503
    %v3775 = vpop.permute.xlu0 %3774
    %3777 = vset.pattern.permute.xlu0 6
    %3778 = vperm.xlu0 %3777, %v3504
    %v3779 = vpop.permute.xlu0 %3778
    %3781 = vset.pattern.permute.xlu0 6
    %3782 = vperm.xlu0 %3781, %v3505
    %v3783 = vpop.permute.xlu0 %3782
    %3785 = vset.pattern.permute.xlu0 6
    %3786 = vperm.xlu0 %3785, %v3506
    %v3787 = vpop.permute.xlu0 %3786
    %3789 = vset.pattern.permute.xlu0 6
    %3790 = vperm.xlu0 %3789, %v3507
    %v3791 = vpop.permute.xlu0 %3790
    %3793 = vset.pattern.permute.xlu0 6
    %3794 = vperm.xlu0 %3793, %v3508
    %v3795 = vpop.permute.xlu0 %3794
    %v3797 = vmul.f32 %v3775, %v3533
    %v3798 = vmul.f32 %v3779, %v3534
    %v3799 = vmul.f32 %v3783, %v3535
    %v3800 = vmul.f32 %v3787, %v3536
    %v3801 = vmul.f32 %v3791, %v3537
    %v3802 = vmul.f32 %v3795, %v3538
    %3803 = vset.pattern.permute.xlu0 7
    %3804 = vperm.xlu0 %3803, %v3503
    %v3805 = vpop.permute.xlu0 %3804
    %3807 = vset.pattern.permute.xlu0 7
    %3808 = vperm.xlu0 %3807, %v3504
    %v3809 = vpop.permute.xlu0 %3808
    %3811 = vset.pattern.permute.xlu0 7
    %3812 = vperm.xlu0 %3811, %v3505
    %v3813 = vpop.permute.xlu0 %3812
    %3815 = vset.pattern.permute.xlu0 7
    %3816 = vperm.xlu0 %3815, %v3506
    %v3817 = vpop.permute.xlu0 %3816
    %3819 = vset.pattern.permute.xlu0 7
    %3820 = vperm.xlu0 %3819, %v3507
    %v3821 = vpop.permute.xlu0 %3820
    %3823 = vset.pattern.permute.xlu0 7
    %3824 = vperm.xlu0 %3823, %v3508
    %v3825 = vpop.permute.xlu0 %3824
    %v3827 = vmul.f32 %v3805, %v3496
    %v3828 = vmul.f32 %v3809, %v3497
    %v3829 = vmul.f32 %v3813, %v3498
    %v3830 = vmul.f32 %v3817, %v3499
    %v3831 = vmul.f32 %v3821, %v3500
    %v3832 = vmul.f32 %v3825, %v3501
    %v3833 = vadd.f32 %v3797, %v3827
    %v3834 = vadd.f32 %v3798, %v3828
    %v3835 = vadd.f32 %v3799, %v3829
    %v3836 = vadd.f32 %v3800, %v3830
    %v3837 = vadd.f32 %v3801, %v3831
    %v3838 = vadd.f32 %v3802, %v3832
    %3839 = vset.pattern.permute.xlu0 8
    %3840 = vperm.xlu0 %3839, %v3503
    %v3841 = vpop.permute.xlu0 %3840
    %3843 = vset.pattern.permute.xlu0 8
    %3844 = vperm.xlu0 %3843, %v3504
    %v3845 = vpop.permute.xlu0 %3844
    %3847 = vset.pattern.permute.xlu0 8
    %3848 = vperm.xlu0 %3847, %v3505
    %v3849 = vpop.permute.xlu0 %3848
    %3851 = vset.pattern.permute.xlu0 8
    %3852 = vperm.xlu0 %3851, %v3506
    %v3853 = vpop.permute.xlu0 %3852
    %3855 = vset.pattern.permute.xlu0 8
    %3856 = vperm.xlu0 %3855, %v3507
    %v3857 = vpop.permute.xlu0 %3856
    %3859 = vset.pattern.permute.xlu0 8
    %3860 = vperm.xlu0 %3859, %v3508
    %v3861 = vpop.permute.xlu0 %3860
    %v3863 = vmul.f32 %v3841, %v3557
    %v3864 = vmul.f32 %v3845, %v3558
    %v3865 = vmul.f32 %v3849, %v3559
    %v3866 = vmul.f32 %v3853, %v3560
    %v3867 = vmul.f32 %v3857, %v3561
    %v3868 = vmul.f32 %v3861, %v3562
    %v3869 = vadd.f32 %v3833, %v3863
    %v3870 = vadd.f32 %v3834, %v3864
    %v3871 = vadd.f32 %v3835, %v3865
    %v3872 = vadd.f32 %v3836, %v3866
    %v3873 = vadd.f32 %v3837, %v3867
    %v3874 = vadd.f32 %v3838, %v3868
    %v3881 = vrot.slane %v3665, 7
    %v3882 = vrot.slane %v3666, 7
    %v3883 = vsel %vm989, %v3881, %v3882
    %v3884 = vrot.slane %v3667, 7
    %v3885 = vsel %vm989, %v3882, %v3884
    %v3886 = vrot.slane %v3668, 7
    %v3887 = vsel %vm989, %v3884, %v3886
    %v3888 = vrot.slane %v3669, 7
    %v3889 = vsel %vm989, %v3886, %v3888
    %v3890 = vrot.slane %v3670, 7
    %v3891 = vsel %vm989, %v3888, %v3890
    %v3898 = vsel %vm989, 0.0, %v3881
    %v3899 = vmul.f32 %v3898, %v172
    %v3900 = vmul.f32 %v3883, %v173
    %v3901 = vmul.f32 %v3885, %v174
    %v3902 = vmul.f32 %v3887, %v175
    %v3903 = vmul.f32 %v3889, %v176
    %v3904 = vmul.f32 %v3891, %v177
    %v3911 = vrot.slane %v3869, 1
    %v3912 = vrot.slane %v3870, 1
    %v3913 = vsel %vm1020, %v3911, %v3912
    %v3914 = vrot.slane %v3871, 1
    %v3915 = vsel %vm1020, %v3912, %v3914
    %v3916 = vrot.slane %v3872, 1
    %v3917 = vsel %vm1020, %v3914, %v3916
    %v3918 = vrot.slane %v3873, 1
    %v3919 = vsel %vm1020, %v3916, %v3918
    %v3920 = vrot.slane %v3874, 1
    %v3921 = vsel %vm1020, %v3918, %v3920
    %v3928 = vsel %vm1020, %v3920, 0.0
    %v3929 = vmul.f32 %v3913, %v190
    %v3930 = vmul.f32 %v3915, %v191
    %v3931 = vmul.f32 %v3917, %v192
    %v3932 = vmul.f32 %v3919, %v193
    %v3933 = vmul.f32 %v3921, %v194
    %v3934 = vmul.f32 %v3928, %v195
    %3935 = vset.pattern.permute.xlu0 9
    %3936 = vperm.xlu0 %3935, %v3503
    %v3937 = vpop.permute.xlu0 %3936
    %3939 = vset.pattern.permute.xlu0 9
    %3940 = vperm.xlu0 %3939, %v3504
    %v3941 = vpop.permute.xlu0 %3940
    %3943 = vset.pattern.permute.xlu0 9
    %3944 = vperm.xlu0 %3943, %v3505
    %v3945 = vpop.permute.xlu0 %3944
    %3947 = vset.pattern.permute.xlu0 9
    %3948 = vperm.xlu0 %3947, %v3506
    %v3949 = vpop.permute.xlu0 %3948
    %3951 = vset.pattern.permute.xlu0 9
    %3952 = vperm.xlu0 %3951, %v3507
    %v3953 = vpop.permute.xlu0 %3952
    %3955 = vset.pattern.permute.xlu0 9
    %3956 = vperm.xlu0 %3955, %v3508
    %v3957 = vpop.permute.xlu0 %3956
    %v3959 = vadd.f32 %v3937, %v3767
    %v3960 = vadd.f32 %v3941, %v3768
    %v3961 = vadd.f32 %v3945, %v3769
    %v3962 = vadd.f32 %v3949, %v3770
    %v3963 = vadd.f32 %v3953, %v3771
    %v3964 = vadd.f32 %v3957, %v3772
    %v3965 = vadd.f32 %v3959, %v3899
    %v3966 = vadd.f32 %v3960, %v3900
    %v3967 = vadd.f32 %v3961, %v3901
    %v3968 = vadd.f32 %v3962, %v3902
    %v3969 = vadd.f32 %v3963, %v3903
    %v3970 = vadd.f32 %v3964, %v3904
    %v3971 = vadd.f32 %v3965, %v3929
    %v3972 = vadd.f32 %v3966, %v3930
    %v3973 = vadd.f32 %v3967, %v3931
    %v3974 = vadd.f32 %v3968, %v3932
    %v3975 = vadd.f32 %v3969, %v3933
    %v3976 = vadd.f32 %v3970, %v3934
    %v3977 = vmax.f32 %v3971, 0.0
    %v3978 = vmax.f32 %v3972, 0.0
    %v3979 = vmax.f32 %v3973, 0.0
    %v3980 = vmax.f32 %v3974, 0.0
    %v3981 = vmax.f32 %v3975, 0.0
    %v3982 = vmax.f32 %v3976, 0.0
    %v3983 = vsel %vm1573, %v3977, 0.0
    %3984 = vadd.xlane.f32.xlu0 %v3983
    %v3985 = vpop.xlane.xlu0 %3984
    %v3986 = vsel %vm1573, %v3978, 0.0
    %3987 = vadd.xlane.f32.xlu0 %v3986
    %v3988 = vpop.xlane.xlu0 %3987
    %v3989 = vsel %vm1573, %v3979, 0.0
    %3990 = vadd.xlane.f32.xlu0 %v3989
    %v3991 = vpop.xlane.xlu0 %3990
    %v3992 = vsel %vm1573, %v3980, 0.0
    %3993 = vadd.xlane.f32.xlu0 %v3992
    %v3994 = vpop.xlane.xlu0 %3993
    %v3995 = vsel %vm1573, %v3981, 0.0
    %3996 = vadd.xlane.f32.xlu0 %v3995
    %v3997 = vpop.xlane.xlu0 %3996
    %v3998 = vsel %vm1573, %v3982, 0.0
    %3999 = vadd.xlane.f32.xlu0 %v3998
    %v4000 = vpop.xlane.xlu0 %3999
    %v4001 = vmul.f32 %v3985, %v1592
    %v4002 = vmul.f32 %v3988, %v1592
    %v4003 = vmul.f32 %v3991, %v1592
    %v4004 = vmul.f32 %v3994, %v1592
    %v4005 = vmul.f32 %v3997, %v1592
    %v4006 = vmul.f32 %v4000, %v1592
    %s4007 = scalar_lea.vmem %s14, 48
    %v4008 = vld [vmem:[%s4007] sm:$0xff]
    %v4009 = vld [vmem:[%s4007 + $0x8] sm:$0xff]
    %v4010 = vld [vmem:[%s4007 + $0x10] sm:$0xff]
    %v4011 = vld [vmem:[%s4007 + $0x18] sm:$0xff]
    %v4012 = vld [vmem:[%s4007 + $0x20] sm:$0xff]
    %v4013 = vld [vmem:[%s4007 + $0x28] sm:$0xff]
    %s4014 = scalar_lea.vmem %s15, 48
    %v4015 = vld [vmem:[%s4014] sm:$0xff]
    %v4016 = vld [vmem:[%s4014 + $0x8] sm:$0xff]
    %v4017 = vld [vmem:[%s4014 + $0x10] sm:$0xff]
    %v4018 = vld [vmem:[%s4014 + $0x18] sm:$0xff]
    %v4019 = vld [vmem:[%s4014 + $0x20] sm:$0xff]
    %v4020 = vld [vmem:[%s4014 + $0x28] sm:$0xff]
    %4022 = vset.pattern.permute.xlu0 0
    %4023 = vperm.xlu0 %4022, %v4015
    %v4024 = vpop.permute.xlu0 %4023
    %4027 = vset.pattern.permute.xlu0 0
    %4028 = vperm.xlu0 %4027, %v4016
    %v4029 = vpop.permute.xlu0 %4028
    %4032 = vset.pattern.permute.xlu0 0
    %4033 = vperm.xlu0 %4032, %v4017
    %v4034 = vpop.permute.xlu0 %4033
    %4037 = vset.pattern.permute.xlu0 0
    %4038 = vperm.xlu0 %4037, %v4018
    %v4039 = vpop.permute.xlu0 %4038
    %4042 = vset.pattern.permute.xlu0 0
    %4043 = vperm.xlu0 %4042, %v4019
    %v4044 = vpop.permute.xlu0 %4043
    %4047 = vset.pattern.permute.xlu0 0
    %4048 = vperm.xlu0 %4047, %v4020
    %v4049 = vpop.permute.xlu0 %4048
    %v4052 = vsel %vm79, %v4008, 0
    %v4055 = vsel %vm79, %v4009, 0
    %v4058 = vsel %vm79, %v4010, 0
    %v4061 = vsel %vm79, %v4011, 0
    %v4064 = vsel %vm79, %v4012, 0
    %v4067 = vsel %vm79, %v4013, 0
    %4069 = vmatprep.subr.mxu0 0.0
    %4070 = vmatpush1.msra.mxu0 %v4001
    %4071 = vmatprep.subr.mxu0 0.0
    %4072 = vmatpush1.msra.mxu0 %v4002
    %4073 = vmatprep.subr.mxu0 0.0
    %4074 = vmatpush1.msra.mxu0 %v4003
    %4075 = vmatprep.subr.mxu0 0.0
    %4076 = vmatpush1.msra.mxu0 %v4004
    %4077 = vmatprep.subr.mxu0 0.0
    %4078 = vmatpush1.msra.mxu0 %v4005
    %4079 = vmatprep.subr.mxu0 0.0
    %4080 = vmatpush1.msra.mxu0 %v4006
    %4081 = vmatprep.subr.mxu0 0.0
    %4082 = vmatpush1.msra.mxu0 0.0
    %4083 = vmatprep.subr.mxu0 0.0
    %4084 = vmatpush1.msra.mxu0 0.0
    %4085 = vmatprep.subr.mxu0 0.0
    %4086 = vmatpush1.msra.mxu0 0.0
    %4087 = vmatprep.subr.mxu0 0.0
    %4088 = vmatpush1.msra.mxu0 0.0
    %4089 = vmatprep.subr.mxu0 0.0
    %4090 = vmatpush1.msra.mxu0 0.0
    %4091 = vmatprep.subr.mxu0 0.0
    %4092 = vmatpush1.msra.mxu0 0.0
    %4093 = vmatprep.subr.mxu0 0.0
    %4094 = vmatpush1.msra.mxu0 0.0
    %4095 = vmatprep.subr.mxu0 0.0
    %4096 = vmatpush1.msra.mxu0 0.0
    %4097 = vmatprep.subr.mxu0 0.0
    %4098 = vmatpush1.msra.mxu0 0.0
    %4099 = vmatprep.subr.mxu0 0.0
    %4100 = vmatpush1.msra.mxu0 0.0
    %4101 = vmatprep.subr.mxu0 0.0
    %4102 = vmatpush1.msra.mxu0 0.0
    %4103 = vmatprep.subr.mxu0 0.0
    %4104 = vmatpush1.msra.mxu0 0.0
    %4105 = vmatprep.subr.mxu0 0.0
    %4106 = vmatpush1.msra.mxu0 0.0
    %4107 = vmatprep.subr.mxu0 0.0
    %4108 = vmatpush1.msra.mxu0 0.0
    %4109 = vmatprep.subr.mxu0 0.0
    %4110 = vmatpush1.msra.mxu0 0.0
    %4111 = vmatprep.subr.mxu0 0.0
    %4112 = vmatpush1.msra.mxu0 0.0
    %4113 = vmatprep.subr.mxu0 0.0
    %4114 = vmatpush1.msra.mxu0 0.0
    %4115 = vmatprep.subr.mxu0 0.0
    %4116 = vmatpush1.msra.mxu0 0.0
    %4117 = vmatprep.subr.mxu0 0.0
    %4118 = vmatpush1.msra.mxu0 0.0
    %4119 = vmatprep.subr.mxu0 0.0
    %4120 = vmatpush1.msra.mxu0 0.0
    %4121 = vmatprep.subr.mxu0 0.0
    %4122 = vmatpush1.msra.mxu0 0.0
    %4123 = vmatprep.subr.mxu0 0.0
    %4124 = vmatpush1.msra.mxu0 0.0
    %4125 = vmatprep.subr.mxu0 0.0
    %4126 = vmatpush1.msra.mxu0 0.0
    %4127 = vmatprep.subr.mxu0 0.0
    %4128 = vmatpush1.msra.mxu0 0.0
    %4129 = vmatprep.subr.mxu0 0.0
    %4130 = vmatpush1.msra.mxu0 0.0
    %4131 = vmatprep.subr.mxu0 0.0
    %4132 = vmatpush1.msra.mxu0 0.0
    %4133 = vmatprep.mubr.f32.mxu0 0.0
    %4134 = vmatmul.mubr.f32.gmra.mrb[0].mxu0 %v4052
    %v4135 = vpop.f32.mrb[0].mxu0
    %v4136 = vadd.f32 %v4024, %v4135
    %v4137 = vpop.f32.mrb[0].mxu0
    %4138 = vmatprep.mubr.f32.mxu0 0.0
    %4139 = vmatmul.mubr.f32.gmra.mrb[0].mxu0 %v4055
    %v4140 = vpop.f32.mrb[0].mxu0
    %v4141 = vadd.f32 %v4029, %v4140
    %v4142 = vpop.f32.mrb[0].mxu0
    %4143 = vmatprep.mubr.f32.mxu0 0.0
    %4144 = vmatmul.mubr.f32.gmra.mrb[0].mxu0 %v4058
    %v4145 = vpop.f32.mrb[0].mxu0
    %v4146 = vadd.f32 %v4034, %v4145
    %v4147 = vpop.f32.mrb[0].mxu0
    %4148 = vmatprep.mubr.f32.mxu0 0.0
    %4149 = vmatmul.mubr.f32.gmra.mrb[0].mxu0 %v4061
    %v4150 = vpop.f32.mrb[0].mxu0
    %v4151 = vadd.f32 %v4039, %v4150
    %v4152 = vpop.f32.mrb[0].mxu0
    %4153 = vmatprep.mubr.f32.mxu0 0.0
    %4154 = vmatmul.mubr.f32.gmra.mrb[0].mxu0 %v4064
    %v4155 = vpop.f32.mrb[0].mxu0
    %v4156 = vadd.f32 %v4044, %v4155
    %v4157 = vpop.f32.mrb[0].mxu0
    %4158 = vmatprep.mubr.f32.mxu0 0.0
    %4159 = vmatmul.mubr.f32.gmra.mrb[0].mxu0 %v4067
    %v4160 = vpop.f32.mrb[0].mxu0
    %v4161 = vadd.f32 %v4049, %v4160
    %v4162 = vpop.f32.mrb[0].mxu0
    %4163 = vdwg.mxu0
    %v4164 = vmax.f32 %v4136, 0.0
    %v4165 = vmax.f32 %v4141, 0.0
    %v4166 = vmax.f32 %v4146, 0.0
    %v4167 = vmax.f32 %v4151, 0.0
    %v4168 = vmax.f32 %v4156, 0.0
    %v4169 = vmax.f32 %v4161, 0.0
    %s4170 = scalar_lea.vmem %s16, 48
    %v4171 = vld [vmem:[%s4170] sm:$0xff]
    %v4172 = vld [vmem:[%s4170 + $0x8] sm:$0xff]
    %v4173 = vld [vmem:[%s4170 + $0x10] sm:$0xff]
    %v4174 = vld [vmem:[%s4170 + $0x18] sm:$0xff]
    %v4175 = vld [vmem:[%s4170 + $0x20] sm:$0xff]
    %v4176 = vld [vmem:[%s4170 + $0x28] sm:$0xff]
    %s4177 = scalar_lea.vmem %s17, 48
    %v4178 = vld [vmem:[%s4177] sm:$0xff]
    %v4179 = vld [vmem:[%s4177 + $0x8] sm:$0xff]
    %v4180 = vld [vmem:[%s4177 + $0x10] sm:$0xff]
    %v4181 = vld [vmem:[%s4177 + $0x18] sm:$0xff]
    %v4182 = vld [vmem:[%s4177 + $0x20] sm:$0xff]
    %v4183 = vld [vmem:[%s4177 + $0x28] sm:$0xff]
    %4185 = vset.pattern.permute.xlu0 0
    %4186 = vperm.xlu0 %4185, %v4178
    %v4187 = vpop.permute.xlu0 %4186
    %4190 = vset.pattern.permute.xlu0 0
    %4191 = vperm.xlu0 %4190, %v4179
    %v4192 = vpop.permute.xlu0 %4191
    %4195 = vset.pattern.permute.xlu0 0
    %4196 = vperm.xlu0 %4195, %v4180
    %v4197 = vpop.permute.xlu0 %4196
    %4200 = vset.pattern.permute.xlu0 0
    %4201 = vperm.xlu0 %4200, %v4181
    %v4202 = vpop.permute.xlu0 %4201
    %4205 = vset.pattern.permute.xlu0 0
    %4206 = vperm.xlu0 %4205, %v4182
    %v4207 = vpop.permute.xlu0 %4206
    %4210 = vset.pattern.permute.xlu0 0
    %4211 = vperm.xlu0 %4210, %v4183
    %v4212 = vpop.permute.xlu0 %4211
    %v4215 = vsel %vm79, %v4171, 0
    %v4218 = vsel %vm79, %v4172, 0
    %v4221 = vsel %vm79, %v4173, 0
    %v4224 = vsel %vm79, %v4174, 0
    %v4227 = vsel %vm79, %v4175, 0
    %v4230 = vsel %vm79, %v4176, 0
    %4232 = vmatprep.subr.mxu0 0.0
    %4233 = vmatpush1.msra.mxu0 %v4164
    %4234 = vmatprep.subr.mxu0 0.0
    %4235 = vmatpush1.msra.mxu0 %v4165
    %4236 = vmatprep.subr.mxu0 0.0
    %4237 = vmatpush1.msra.mxu0 %v4166
    %4238 = vmatprep.subr.mxu0 0.0
    %4239 = vmatpush1.msra.mxu0 %v4167
    %4240 = vmatprep.subr.mxu0 0.0
    %4241 = vmatpush1.msra.mxu0 %v4168
    %4242 = vmatprep.subr.mxu0 0.0
    %4243 = vmatpush1.msra.mxu0 %v4169
    %4244 = vmatprep.subr.mxu0 0.0
    %4245 = vmatpush1.msra.mxu0 0.0
    %4246 = vmatprep.subr.mxu0 0.0
    %4247 = vmatpush1.msra.mxu0 0.0
    %4248 = vmatprep.subr.mxu0 0.0
    %4249 = vmatpush1.msra.mxu0 0.0
    %4250 = vmatprep.subr.mxu0 0.0
    %4251 = vmatpush1.msra.mxu0 0.0
    %4252 = vmatprep.subr.mxu0 0.0
    %4253 = vmatpush1.msra.mxu0 0.0
    %4254 = vmatprep.subr.mxu0 0.0
    %4255 = vmatpush1.msra.mxu0 0.0
    %4256 = vmatprep.subr.mxu0 0.0
    %4257 = vmatpush1.msra.mxu0 0.0
    %4258 = vmatprep.subr.mxu0 0.0
    %4259 = vmatpush1.msra.mxu0 0.0
    %4260 = vmatprep.subr.mxu0 0.0
    %4261 = vmatpush1.msra.mxu0 0.0
    %4262 = vmatprep.subr.mxu0 0.0
    %4263 = vmatpush1.msra.mxu0 0.0
    %4264 = vmatprep.subr.mxu0 0.0
    %4265 = vmatpush1.msra.mxu0 0.0
    %4266 = vmatprep.subr.mxu0 0.0
    %4267 = vmatpush1.msra.mxu0 0.0
    %4268 = vmatprep.subr.mxu0 0.0
    %4269 = vmatpush1.msra.mxu0 0.0
    %4270 = vmatprep.subr.mxu0 0.0
    %4271 = vmatpush1.msra.mxu0 0.0
    %4272 = vmatprep.subr.mxu0 0.0
    %4273 = vmatpush1.msra.mxu0 0.0
    %4274 = vmatprep.subr.mxu0 0.0
    %4275 = vmatpush1.msra.mxu0 0.0
    %4276 = vmatprep.subr.mxu0 0.0
    %4277 = vmatpush1.msra.mxu0 0.0
    %4278 = vmatprep.subr.mxu0 0.0
    %4279 = vmatpush1.msra.mxu0 0.0
    %4280 = vmatprep.subr.mxu0 0.0
    %4281 = vmatpush1.msra.mxu0 0.0
    %4282 = vmatprep.subr.mxu0 0.0
    %4283 = vmatpush1.msra.mxu0 0.0
    %4284 = vmatprep.subr.mxu0 0.0
    %4285 = vmatpush1.msra.mxu0 0.0
    %4286 = vmatprep.subr.mxu0 0.0
    %4287 = vmatpush1.msra.mxu0 0.0
    %4288 = vmatprep.subr.mxu0 0.0
    %4289 = vmatpush1.msra.mxu0 0.0
    %4290 = vmatprep.subr.mxu0 0.0
    %4291 = vmatpush1.msra.mxu0 0.0
    %4292 = vmatprep.subr.mxu0 0.0
    %4293 = vmatpush1.msra.mxu0 0.0
    %4294 = vmatprep.subr.mxu0 0.0
    %4295 = vmatpush1.msra.mxu0 0.0
    %4296 = vmatprep.mubr.f32.mxu0 0.0
    %4297 = vmatmul.mubr.f32.gmra.mrb[0].mxu0 %v4215
    %v4298 = vpop.f32.mrb[0].mxu0
    %v4299 = vadd.f32 %v4187, %v4298
    %v4300 = vpop.f32.mrb[0].mxu0
    %4301 = vmatprep.mubr.f32.mxu0 0.0
    %4302 = vmatmul.mubr.f32.gmra.mrb[0].mxu0 %v4218
    %v4303 = vpop.f32.mrb[0].mxu0
    %v4304 = vadd.f32 %v4192, %v4303
    %v4305 = vpop.f32.mrb[0].mxu0
    %4306 = vmatprep.mubr.f32.mxu0 0.0
    %4307 = vmatmul.mubr.f32.gmra.mrb[0].mxu0 %v4221
    %v4308 = vpop.f32.mrb[0].mxu0
    %v4309 = vadd.f32 %v4197, %v4308
    %v4310 = vpop.f32.mrb[0].mxu0
    %4311 = vmatprep.mubr.f32.mxu0 0.0
    %4312 = vmatmul.mubr.f32.gmra.mrb[0].mxu0 %v4224
    %v4313 = vpop.f32.mrb[0].mxu0
    %v4314 = vadd.f32 %v4202, %v4313
    %v4315 = vpop.f32.mrb[0].mxu0
    %4316 = vmatprep.mubr.f32.mxu0 0.0
    %4317 = vmatmul.mubr.f32.gmra.mrb[0].mxu0 %v4227
    %v4318 = vpop.f32.mrb[0].mxu0
    %v4319 = vadd.f32 %v4207, %v4318
    %v4320 = vpop.f32.mrb[0].mxu0
    %4321 = vmatprep.mubr.f32.mxu0 0.0
    %4322 = vmatmul.mubr.f32.gmra.mrb[0].mxu0 %v4230
    %v4323 = vpop.f32.mrb[0].mxu0
    %v4324 = vadd.f32 %v4212, %v4323
    %v4325 = vpop.f32.mrb[0].mxu0
    %4326 = vdwg.mxu0
    %v4327 = vxor.u32 %v4299, 2147483648
    %v4328 = vxor.u32 %v4304, 2147483648
    %v4329 = vxor.u32 %v4309, 2147483648
    %v4330 = vxor.u32 %v4314, 2147483648
    %v4331 = vxor.u32 %v4319, 2147483648
    %v4332 = vxor.u32 %v4324, 2147483648
    %v4333 = vmul.f32 %v4327, 1.442695
    %v4334 = vpow.pop %v4333
    %v4335 = vmul.f32 %v4328, 1.442695
    %v4336 = vpow.pop %v4335
    %v4337 = vmul.f32 %v4329, 1.442695
    %v4338 = vpow.pop %v4337
    %v4339 = vmul.f32 %v4330, 1.442695
    %v4340 = vpow.pop %v4339
    %v4341 = vmul.f32 %v4331, 1.442695
    %v4342 = vpow.pop %v4341
    %v4343 = vmul.f32 %v4332, 1.442695
    %v4344 = vpow.pop %v4343
    %v4345 = vadd.f32 %v4334, 1.0
    %v4346 = vadd.f32 %v4336, 1.0
    %v4347 = vadd.f32 %v4338, 1.0
    %v4348 = vadd.f32 %v4340, 1.0
    %v4349 = vadd.f32 %v4342, 1.0
    %v4350 = vadd.f32 %v4344, 1.0
    %v4351 = vrcp.pop %v4345
    %v4352 = vmul.f32 1.0, %v4351
    %v4353 = vrcp.pop %v4346
    %v4354 = vmul.f32 1.0, %v4353
    %v4355 = vrcp.pop %v4347
    %v4356 = vmul.f32 1.0, %v4355
    %v4357 = vrcp.pop %v4348
    %v4358 = vmul.f32 1.0, %v4357
    %v4359 = vrcp.pop %v4349
    %v4360 = vmul.f32 1.0, %v4359
    %v4361 = vrcp.pop %v4350
    %v4362 = vmul.f32 1.0, %v4361
    %v4363 = vmul.f32 %v3977, %v4352
    %v4364 = vmul.f32 %v3978, %v4354
    %v4365 = vmul.f32 %v3979, %v4356
    %v4366 = vmul.f32 %v3980, %v4358
    %v4367 = vmul.f32 %v3981, %v4360
    %v4368 = vmul.f32 %v3982, %v4362
    %v4369 = vsel %vm1573, %v4363, -inf
    %4370 = vmax.xlane.f32.xlu0 %v4369
    %v4371 = vpop.xlane.xlu0 %4370
    %v4372 = vsel %vm1573, %v4364, -inf
    %4373 = vmax.xlane.f32.xlu0 %v4372
    %v4374 = vpop.xlane.xlu0 %4373
    %v4375 = vsel %vm1573, %v4365, -inf
    %4376 = vmax.xlane.f32.xlu0 %v4375
    %v4377 = vpop.xlane.xlu0 %4376
    %v4378 = vsel %vm1573, %v4366, -inf
    %4379 = vmax.xlane.f32.xlu0 %v4378
    %v4380 = vpop.xlane.xlu0 %4379
    %v4381 = vsel %vm1573, %v4367, -inf
    %4382 = vmax.xlane.f32.xlu0 %v4381
    %v4383 = vpop.xlane.xlu0 %4382
    %v4384 = vsel %vm1573, %v4368, -inf
    %4385 = vmax.xlane.f32.xlu0 %v4384
    %v4386 = vpop.xlane.xlu0 %4385
    %v4387 = vsub.f32 %v4363, %v4371
    %v4388 = vsub.f32 %v4364, %v4374
    %v4389 = vsub.f32 %v4365, %v4377
    %v4390 = vsub.f32 %v4366, %v4380
    %v4391 = vsub.f32 %v4367, %v4383
    %v4392 = vsub.f32 %v4368, %v4386
    %v4393 = vmul.f32 %v4387, 1.442695
    %v4394 = vpow.pop %v4393
    %v4395 = vmul.f32 %v4388, 1.442695
    %v4396 = vpow.pop %v4395
    %v4397 = vmul.f32 %v4389, 1.442695
    %v4398 = vpow.pop %v4397
    %v4399 = vmul.f32 %v4390, 1.442695
    %v4400 = vpow.pop %v4399
    %v4401 = vmul.f32 %v4391, 1.442695
    %v4402 = vpow.pop %v4401
    %v4403 = vmul.f32 %v4392, 1.442695
    %v4404 = vpow.pop %v4403
    %v4405 = vsel %vm1573, %v4394, 0.0
    %4406 = vadd.xlane.f32.xlu0 %v4405
    %v4407 = vpop.xlane.xlu0 %4406
    %v4408 = vsel %vm1573, %v4396, 0.0
    %4409 = vadd.xlane.f32.xlu0 %v4408
    %v4410 = vpop.xlane.xlu0 %4409
    %v4411 = vsel %vm1573, %v4398, 0.0
    %4412 = vadd.xlane.f32.xlu0 %v4411
    %v4413 = vpop.xlane.xlu0 %4412
    %v4414 = vsel %vm1573, %v4400, 0.0
    %4415 = vadd.xlane.f32.xlu0 %v4414
    %v4416 = vpop.xlane.xlu0 %4415
    %v4417 = vsel %vm1573, %v4402, 0.0
    %4418 = vadd.xlane.f32.xlu0 %v4417
    %v4419 = vpop.xlane.xlu0 %4418
    %v4420 = vsel %vm1573, %v4404, 0.0
    %4421 = vadd.xlane.f32.xlu0 %v4420
    %v4422 = vpop.xlane.xlu0 %4421
    %v4423 = vrcp.pop %v4407
    %v4424 = vrcp.pop %v4410
    %v4425 = vrcp.pop %v4413
    %v4426 = vrcp.pop %v4416
    %v4427 = vrcp.pop %v4419
    %v4428 = vrcp.pop %v4422
    %v4429 = vmul.f32 %v4394, %v4423
    %v4430 = vmul.f32 %v4396, %v4424
    %v4431 = vmul.f32 %v4398, %v4425
    %v4432 = vmul.f32 %v4400, %v4426
    %v4433 = vmul.f32 %v4402, %v4427
    %v4434 = vmul.f32 %v4404, %v4428
    %v4435 = vpack.c.bf16 %v4429, %v4429
    %4436 = vst.msk [vmem:[#allocation4] sm:$0xf] %vm2024, %v4435
    %v4437 = vpack.c.bf16 %v4430, %v4430
    %4439 = vrot.lane.b32.xlu0 %v4437, 16
    %v4440 = vpop.permute.xlu0 %4439
    %4442 = vst.msk [vmem:[#allocation4] sm:$0xf] %vm2031, %v4440
    %v4443 = vpack.c.bf16 %v4431, %v4431
    %4445 = vrot.lane.b32.xlu0 %v4443, 32
    %v4446 = vpop.permute.xlu0 %4445
    %4448 = vst.msk [vmem:[#allocation4] sm:$0xf] %vm2038, %v4446
    %v4449 = vpack.c.bf16 %v4432, %v4432
    %v4451 = vrot.slane %v4449, 4
    %4452 = vrot.lane.b32.xlu0 %v4451, 8
    %v4453 = vpop.permute.xlu0 %4452
    %4455 = vst.msk [vmem:[#allocation4] sm:$0xf0] %vm2046, %v4453
    %v4456 = vpack.c.bf16 %v4433, %v4433
    %v4458 = vrot.slane %v4456, 4
    %4459 = vrot.lane.b32.xlu0 %v4458, 24
    %v4460 = vpop.permute.xlu0 %4459
    %4462 = vst.msk [vmem:[#allocation4] sm:$0xf0] %vm2054, %v4460
    %v4463 = vpack.c.bf16 %v4434, %v4434
    %v4465 = vrot.slane %v4463, 4
    %4466 = vrot.lane.b32.xlu0 %v4465, 40
    %v4467 = vpop.permute.xlu0 %4466
    %4469 = vst.msk [vmem:[#allocation4] sm:$0xf0] %vm2062, %v4467
    %v4470 = vld [vmem:[#allocation4] sm:$0xff]
    %v4471 = vld [vmem:[#allocation3] sm:$0xff]
    %v4472 = vld [vmem:[#allocation3 + $0x8] sm:$0xff]
    %v4473 = vld [vmem:[#allocation3 + $0x10] sm:$0xff]
    %v4474 = vld [vmem:[#allocation3 + $0x18] sm:$0xff]
    %v4475 = vld [vmem:[#allocation3 + $0x20] sm:$0xff]
    %v4476 = vld [vmem:[#allocation3 + $0x28] sm:$0xff]
    %v4478 = vsel %vm79, %v4470, 0
    %4480 = vmatprep.subr.bf16.mxu0 %v4472
    %4481 = vmatpush1.bf16.msra.mxu0 %v4471
    %4482 = vmatprep.subr.bf16.mxu0 %v4474
    %4483 = vmatpush1.bf16.msra.mxu0 %v4473
    %4484 = vmatprep.subr.bf16.mxu0 %v4476
    %4485 = vmatpush1.bf16.msra.mxu0 %v4475
    %4486 = vmatprep.subr.bf16.mxu0 0
    %4487 = vmatpush1.bf16.msra.mxu0 0
    %4488 = vmatprep.subr.bf16.mxu0 0
    %4489 = vmatpush1.bf16.msra.mxu0 0
    %4490 = vmatprep.subr.bf16.mxu0 0
    %4491 = vmatpush1.bf16.msra.mxu0 0
    %4492 = vmatprep.subr.bf16.mxu0 0
    %4493 = vmatpush1.bf16.msra.mxu0 0
    %4494 = vmatprep.subr.bf16.mxu0 0
    %4495 = vmatpush1.bf16.msra.mxu0 0
    %4496 = vmatprep.subr.bf16.mxu0 0
    %4497 = vmatpush1.bf16.msra.mxu0 0
    %4498 = vmatprep.subr.bf16.mxu0 0
    %4499 = vmatpush1.bf16.msra.mxu0 0
    %4500 = vmatprep.subr.bf16.mxu0 0
    %4501 = vmatpush1.bf16.msra.mxu0 0
    %4502 = vmatprep.subr.bf16.mxu0 0
    %4503 = vmatpush1.bf16.msra.mxu0 0
    %4504 = vmatprep.subr.bf16.mxu0 0
    %4505 = vmatpush1.bf16.msra.mxu0 0
    %4506 = vmatprep.subr.bf16.mxu0 0
    %4507 = vmatpush1.bf16.msra.mxu0 0
    %4508 = vmatprep.subr.bf16.mxu0 0
    %4509 = vmatpush1.bf16.msra.mxu0 0
    %4510 = vmatprep.subr.bf16.mxu0 0
    %4511 = vmatpush1.bf16.msra.mxu0 0
    %4512 = vmatprep.mubr.bf16.mxu0 0
    %4513 = vmatmul.mubr.bf16.gmra.mrb[0].mxu0 %v4478
    %v4514 = vpop.f32.mrb[0].mxu0
    %v4515 = vadd.f32 0.0, %v4514
    %v4516 = vpop.f32.mrb[0].mxu0
    %v4517 = vadd.f32 0.0, %v4516
    %v4518 = vpop.f32.mrb[0].mxu0
    %v4519 = vadd.f32 0.0, %v4518
    %v4520 = vpop.f32.mrb[0].mxu0
    %v4521 = vadd.f32 0.0, %v4520
    %4522 = vdwg.mxu0
    %v4523 = vpack.c.bf16 %v4519, %v4515
    %v4524 = vpack.c.bf16 %v4521, %v4517
    %s4525 = scalar_lea.vmem %s4, 96
    %v4526 = vld [vmem:[%s4525] sm:$0xf]
    %v4527 = vld [vmem:[%s4525 + $0x4] sm:$0xf]
    %v4528 = vld [vmem:[%s4525 + $0x8] sm:$0xf]
    %v4529 = vld [vmem:[%s4525 + $0xc] sm:$0xf]
    %v4530 = vld [vmem:[%s4525 + $0x10] sm:$0xf]
    %v4531 = vld [vmem:[%s4525 + $0x14] sm:$0xf]
    %v4532 = vld [vmem:[%s4525 + $0x18] sm:$0xf]
    %v4533 = vld [vmem:[%s4525 + $0x1c] sm:$0xf]
    %v4534 = vld [vmem:[%s4525 + $0x20] sm:$0xf]
    %v4535 = vld [vmem:[%s4525 + $0x24] sm:$0xf]
    %v4536 = vld [vmem:[%s4525 + $0x28] sm:$0xf]
    %v4537 = vld [vmem:[%s4525 + $0x2c] sm:$0xf]
    %v4538 = vld [vmem:[%s4525 + $0x30] sm:$0xf]
    %v4539 = vld [vmem:[%s4525 + $0x34] sm:$0xf]
    %v4540 = vld [vmem:[%s4525 + $0x38] sm:$0xf]
    %v4541 = vld [vmem:[%s4525 + $0x3c] sm:$0xf]
    %v4542 = vld [vmem:[%s4525 + $0x40] sm:$0xf]
    %v4543 = vld [vmem:[%s4525 + $0x44] sm:$0xf]
    %v4544 = vld [vmem:[%s4525 + $0x48] sm:$0xf]
    %v4545 = vld [vmem:[%s4525 + $0x4c] sm:$0xf]
    %v4546 = vld [vmem:[%s4525 + $0x50] sm:$0xf]
    %v4547 = vld [vmem:[%s4525 + $0x54] sm:$0xf]
    %v4548 = vld [vmem:[%s4525 + $0x58] sm:$0xf]
    %v4549 = vld [vmem:[%s4525 + $0x5c] sm:$0xf]
    %s4550 = scalar_lea.vmem %s5, 1
    %v4551 = vld [vmem:[%s4550] sm:$0x1]
    %v4553 = vlaneseq
    %v4554 = vshrl.u32 %v4553, 7
    %v4555 = vsub.s32 0, %v4554
    %v4556 = vrot.slane %v4551, %v4555
    %v4582 = vunpack.c.l.b16 %v4526
    %v4583 = vunpack.c.l.b16 %v4527
    %v4584 = vunpack.c.l.b16 %v4528
    %v4585 = vunpack.c.l.b16 %v4529
    %v4586 = vunpack.c.l.b16 %v4530
    %v4587 = vunpack.c.l.b16 %v4531
    %v4588 = vunpack.c.l.b16 %v4532
    %v4589 = vunpack.c.l.b16 %v4533
    %v4590 = vunpack.c.l.b16 %v4534
    %v4591 = vunpack.c.l.b16 %v4535
    %v4592 = vunpack.c.l.b16 %v4536
    %v4593 = vunpack.c.l.b16 %v4537
    %v4594 = vunpack.c.l.b16 %v4538
    %v4595 = vunpack.c.l.b16 %v4539
    %v4596 = vunpack.c.l.b16 %v4540
    %v4597 = vunpack.c.l.b16 %v4541
    %v4598 = vunpack.c.l.b16 %v4542
    %v4599 = vunpack.c.l.b16 %v4543
    %v4600 = vunpack.c.l.b16 %v4544
    %v4601 = vunpack.c.l.b16 %v4545
    %v4602 = vunpack.c.l.b16 %v4546
    %v4603 = vunpack.c.l.b16 %v4547
    %v4604 = vunpack.c.l.b16 %v4548
    %v4605 = vunpack.c.l.b16 %v4549
    %v4606 = vpack.c.b16 %v4583, %v4582
    %v4607 = vpack.c.b16 %v4585, %v4584
    %v4608 = vpack.c.b16 %v4587, %v4586
    %v4609 = vpack.c.b16 %v4589, %v4588
    %v4610 = vpack.c.b16 %v4591, %v4590
    %v4611 = vpack.c.b16 %v4593, %v4592
    %v4612 = vpack.c.b16 %v4595, %v4594
    %v4613 = vpack.c.b16 %v4597, %v4596
    %v4614 = vpack.c.b16 %v4599, %v4598
    %v4615 = vpack.c.b16 %v4601, %v4600
    %v4616 = vpack.c.b16 %v4603, %v4602
    %v4617 = vpack.c.b16 %v4605, %v4604
    %v4631 = vsel %vm73, %v4524, 0
    %4633 = vmatprep.subr.bf16.mxu0 0
    %4634 = vmatpush1.bf16.msra.mxu0 %v4606
    %4635 = vmatprep.subr.bf16.mxu0 0
    %4636 = vmatpush1.bf16.msra.mxu0 %v4607
    %4637 = vmatprep.subr.bf16.mxu0 0
    %4638 = vmatpush1.bf16.msra.mxu0 %v4608
    %4639 = vmatprep.subr.bf16.mxu0 0
    %4640 = vmatpush1.bf16.msra.mxu0 %v4609
    %4641 = vmatprep.subr.bf16.mxu0 0
    %4642 = vmatpush1.bf16.msra.mxu0 %v4610
    %4643 = vmatprep.subr.bf16.mxu0 0
    %4644 = vmatpush1.bf16.msra.mxu0 %v4611
    %4645 = vmatprep.subr.bf16.mxu0 0
    %4646 = vmatpush1.bf16.msra.mxu0 %v4612
    %4647 = vmatprep.subr.bf16.mxu0 0
    %4648 = vmatpush1.bf16.msra.mxu0 %v4613
    %4649 = vmatprep.subr.bf16.mxu0 0
    %4650 = vmatpush1.bf16.msra.mxu0 %v4614
    %4651 = vmatprep.subr.bf16.mxu0 0
    %4652 = vmatpush1.bf16.msra.mxu0 %v4615
    %4653 = vmatprep.subr.bf16.mxu0 0
    %4654 = vmatpush1.bf16.msra.mxu0 %v4616
    %4655 = vmatprep.subr.bf16.mxu0 0
    %4656 = vmatpush1.bf16.msra.mxu0 %v4617
    %4657 = vmatprep.subr.bf16.mxu0 0
    %4658 = vmatpush1.bf16.msra.mxu0 0
    %4659 = vmatprep.subr.bf16.mxu0 0
    %4660 = vmatpush1.bf16.msra.mxu0 0
    %4661 = vmatprep.subr.bf16.mxu0 0
    %4662 = vmatpush1.bf16.msra.mxu0 0
    %4663 = vmatprep.subr.bf16.mxu0 0
    %4664 = vmatpush1.bf16.msra.mxu0 0
    %4665 = vmatprep.mubr.bf16.mxu0 %v4631
    %4666 = vmatmul.mubr.bf16.gmra.mrb[0].mxu0 %v4523
    %v4667 = vpop.f32.mrb[0].mxu0
    %v4668 = vadd.f32 %v4556, %v4667
    %v4669 = vpop.f32.mrb[0].mxu0
    %v4670 = vpop.f32.mrb[0].mxu0
    %v4671 = vadd.f32 %v4556, %v4670
    %v4672 = vpop.f32.mrb[0].mxu0
    %4673 = vdwg.mxu0
    %v4674 = vadd.f32 %v2609, %v4668
    %v4675 = vadd.f32 %v2610, %v4671
    %s4676 = scalar_lea.vmem %s6, 1
    %v4677 = vld [vmem:[%s4676] sm:$0x1]
    %s4678 = scalar_lea.vmem %s7, 1
    %v4679 = vld [vmem:[%s4678] sm:$0x1]
    %v4680 = vsel %vm198, %v4674, 0.0
    %4681 = vadd.xlane.f32.xlu0 %v4680
    %v4682 = vpop.xlane.xlu0 %4681
    %v4683 = vsel %vm198, %v4675, 0.0
    %4684 = vadd.xlane.f32.xlu0 %v4683
    %v4685 = vpop.xlane.xlu0 %4684
    %v4686 = vmul.f32 %v4682, %v205
    %v4687 = vmul.f32 %v4685, %v205
    %v4688 = vsub.f32 %v4674, %v4686
    %v4689 = vsub.f32 %v4675, %v4687
    %v4690 = vmul.f32 %v4688, %v4688
    %v4691 = vmul.f32 %v4689, %v4689
    %v4692 = vsel %vm198, %v4690, 0.0
    %4693 = vadd.xlane.f32.xlu0 %v4692
    %v4694 = vpop.xlane.xlu0 %4693
    %v4695 = vsel %vm198, %v4691, 0.0
    %4696 = vadd.xlane.f32.xlu0 %v4695
    %v4697 = vpop.xlane.xlu0 %4696
    %v4698 = vmul.f32 %v4694, %v205
    %v4699 = vmul.f32 %v4697, %v205
    %v4700 = vadd.f32 %v4698, 1e-05
    %v4701 = vadd.f32 %v4699, 1e-05
    %v4702 = vrsqrt.pop %v4700
    %v4703 = vrsqrt.pop %v4701
    %v4704 = vmul.f32 %v4688, %v4702
    %v4705 = vmul.f32 %v4689, %v4703
    %v4707 = vlaneseq
    %v4708 = vshrl.u32 %v4707, 7
    %v4709 = vsub.s32 0, %v4708
    %v4710 = vrot.slane %v4677, %v4709
    %v4712 = vmul.f32 %v4704, %v4710
    %v4713 = vmul.f32 %v4705, %v4710
    %v4715 = vlaneseq
    %v4716 = vshrl.u32 %v4715, 7
    %v4717 = vsub.s32 0, %v4716
    %v4718 = vrot.slane %v4679, %v4717
    %v4720 = vadd.f32 %v4712, %v4718
    %v4721 = vadd.f32 %v4713, %v4718
    %v4722 = vpack.c.bf16 %v4721, %v4720
    %s4723 = scalar_lea.vmem %s8, 32
    %v4724 = vld [vmem:[%s4723] sm:$0xff]
    %v4725 = vld [vmem:[%s4723 + $0x8] sm:$0xff]
    %v4726 = vld [vmem:[%s4723 + $0x10] sm:$0xff]
    %v4727 = vld [vmem:[%s4723 + $0x18] sm:$0xff]
    %s4728 = scalar_lea.vmem %s9, 2
    %v4729 = vld [vmem:[%s4728] sm:$0x3]
    %v4731 = vlaneseq
    %v4732 = vshrl.u32 %v4731, 7
    %v4733 = vsub.s32 0, %v4732
    %v4734 = vrot.slane %v4729, %v4733
    %v4735 = vlaneseq
    %v4736 = vshrl.u32 %v4735, 7
    %v4737 = vsub.s32 1, %v4736
    %v4738 = vrot.slane %v4729, %v4737
    %v4745 = vunpack.c.l.b16 %v4724
    %v4746 = vunpack.c.h.b16 %v4724
    %v4747 = vunpack.c.l.b16 %v4725
    %v4748 = vunpack.c.h.b16 %v4725
    %v4749 = vunpack.c.l.b16 %v4726
    %v4750 = vunpack.c.h.b16 %v4726
    %v4751 = vunpack.c.l.b16 %v4727
    %v4752 = vunpack.c.h.b16 %v4727
    %v4753 = vpack.c.b16 %v4747, %v4745
    %v4754 = vpack.c.b16 %v4748, %v4746
    %v4755 = vpack.c.b16 %v4751, %v4749
    %v4756 = vpack.c.b16 %v4752, %v4750
    %v4762 = vsel %vm198, %v4722, 0
    %4764 = vmatprep.subr.bf16.mxu0 %v4754
    %4765 = vmatpush1.bf16.msra.mxu0 %v4753
    %4766 = vmatprep.subr.bf16.mxu0 %v4756
    %4767 = vmatpush1.bf16.msra.mxu0 %v4755
    %4768 = vmatprep.subr.bf16.mxu0 0
    %4769 = vmatpush1.bf16.msra.mxu0 0
    %4770 = vmatprep.subr.bf16.mxu0 0
    %4771 = vmatpush1.bf16.msra.mxu0 0
    %4772 = vmatprep.subr.bf16.mxu0 0
    %4773 = vmatpush1.bf16.msra.mxu0 0
    %4774 = vmatprep.subr.bf16.mxu0 0
    %4775 = vmatpush1.bf16.msra.mxu0 0
    %4776 = vmatprep.subr.bf16.mxu0 0
    %4777 = vmatpush1.bf16.msra.mxu0 0
    %4778 = vmatprep.subr.bf16.mxu0 0
    %4779 = vmatpush1.bf16.msra.mxu0 0
    %4780 = vmatprep.subr.bf16.mxu0 0
    %4781 = vmatpush1.bf16.msra.mxu0 0
    %4782 = vmatprep.subr.bf16.mxu0 0
    %4783 = vmatpush1.bf16.msra.mxu0 0
    %4784 = vmatprep.subr.bf16.mxu0 0
    %4785 = vmatpush1.bf16.msra.mxu0 0
    %4786 = vmatprep.subr.bf16.mxu0 0
    %4787 = vmatpush1.bf16.msra.mxu0 0
    %4788 = vmatprep.subr.bf16.mxu0 0
    %4789 = vmatpush1.bf16.msra.mxu0 0
    %4790 = vmatprep.subr.bf16.mxu0 0
    %4791 = vmatpush1.bf16.msra.mxu0 0
    %4792 = vmatprep.subr.bf16.mxu0 0
    %4793 = vmatpush1.bf16.msra.mxu0 0
    %4794 = vmatprep.subr.bf16.mxu0 0
    %4795 = vmatpush1.bf16.msra.mxu0 0
    %4796 = vmatprep.mubr.bf16.mxu0 0
    %4797 = vmatmul.mubr.bf16.gmra.mrb[0].mxu0 %v4762
    %v4798 = vpop.f32.mrb[0].mxu0
    %v4799 = vadd.f32 %v4734, %v4798
    %v4800 = vpop.f32.mrb[0].mxu0
    %v4801 = vadd.f32 %v4738, %v4800
    %v4802 = vpop.f32.mrb[0].mxu0
    %v4803 = vadd.f32 %v4734, %v4802
    %v4804 = vpop.f32.mrb[0].mxu0
    %v4805 = vadd.f32 %v4738, %v4804
    %4806 = vdwg.mxu0
    %v4807 = vmul.f32 %v4799, 0.5
    %v4808 = vmul.f32 %v4801, 0.5
    %v4809 = vmul.f32 %v4803, 0.5
    %v4810 = vmul.f32 %v4805, 0.5
    %v4811 = vmul.f32 %v4799, 0.044715
    %v4812 = vmul.f32 %v4801, 0.044715
    %v4813 = vmul.f32 %v4803, 0.044715
    %v4814 = vmul.f32 %v4805, 0.044715
    %v4815 = vmul.f32 %v4811, %v4799
    %v4816 = vmul.f32 %v4812, %v4801
    %v4817 = vmul.f32 %v4813, %v4803
    %v4818 = vmul.f32 %v4814, %v4805
    %v4819 = vmul.f32 %v4815, %v4799
    %v4820 = vmul.f32 %v4816, %v4801
    %v4821 = vmul.f32 %v4817, %v4803
    %v4822 = vmul.f32 %v4818, %v4805
    %v4823 = vadd.f32 %v4799, %v4819
    %v4824 = vadd.f32 %v4801, %v4820
    %v4825 = vadd.f32 %v4803, %v4821
    %v4826 = vadd.f32 %v4805, %v4822
    %v4827 = vmul.f32 %v4823, 0.7978846
    %v4828 = vmul.f32 %v4824, 0.7978846
    %v4829 = vmul.f32 %v4825, 0.7978846
    %v4830 = vmul.f32 %v4826, 0.7978846
    %v4831 = vtanh.pop %v4827
    %v4832 = vtanh.pop %v4828
    %v4833 = vtanh.pop %v4829
    %v4834 = vtanh.pop %v4830
    %v4835 = vadd.f32 %v4831, 1.0
    %v4836 = vadd.f32 %v4832, 1.0
    %v4837 = vadd.f32 %v4833, 1.0
    %v4838 = vadd.f32 %v4834, 1.0
    %v4839 = vmul.f32 %v4807, %v4835
    %v4840 = vmul.f32 %v4808, %v4836
    %v4841 = vmul.f32 %v4809, %v4837
    %v4842 = vmul.f32 %v4810, %v4838
    %v4843 = vpack.c.bf16 %v4841, %v4839
    %v4844 = vpack.c.bf16 %v4842, %v4840
    %s4845 = scalar_lea.vmem %s10, 128
    %v4846 = vld [vmem:[%s4845] sm:$0xf]
    %v4847 = vld [vmem:[%s4845 + $0x4] sm:$0xf]
    %v4848 = vld [vmem:[%s4845 + $0x8] sm:$0xf]
    %v4849 = vld [vmem:[%s4845 + $0xc] sm:$0xf]
    %v4850 = vld [vmem:[%s4845 + $0x10] sm:$0xf]
    %v4851 = vld [vmem:[%s4845 + $0x14] sm:$0xf]
    %v4852 = vld [vmem:[%s4845 + $0x18] sm:$0xf]
    %v4853 = vld [vmem:[%s4845 + $0x1c] sm:$0xf]
    %v4854 = vld [vmem:[%s4845 + $0x20] sm:$0xf]
    %v4855 = vld [vmem:[%s4845 + $0x24] sm:$0xf]
    %v4856 = vld [vmem:[%s4845 + $0x28] sm:$0xf]
    %v4857 = vld [vmem:[%s4845 + $0x2c] sm:$0xf]
    %v4858 = vld [vmem:[%s4845 + $0x30] sm:$0xf]
    %v4859 = vld [vmem:[%s4845 + $0x34] sm:$0xf]
    %v4860 = vld [vmem:[%s4845 + $0x38] sm:$0xf]
    %v4861 = vld [vmem:[%s4845 + $0x3c] sm:$0xf]
    %v4862 = vld [vmem:[%s4845 + $0x40] sm:$0xf]
    %v4863 = vld [vmem:[%s4845 + $0x44] sm:$0xf]
    %v4864 = vld [vmem:[%s4845 + $0x48] sm:$0xf]
    %v4865 = vld [vmem:[%s4845 + $0x4c] sm:$0xf]
    %v4866 = vld [vmem:[%s4845 + $0x50] sm:$0xf]
    %v4867 = vld [vmem:[%s4845 + $0x54] sm:$0xf]
    %v4868 = vld [vmem:[%s4845 + $0x58] sm:$0xf]
    %v4869 = vld [vmem:[%s4845 + $0x5c] sm:$0xf]
    %v4870 = vld [vmem:[%s4845 + $0x60] sm:$0xf]
    %v4871 = vld [vmem:[%s4845 + $0x64] sm:$0xf]
    %v4872 = vld [vmem:[%s4845 + $0x68] sm:$0xf]
    %v4873 = vld [vmem:[%s4845 + $0x6c] sm:$0xf]
    %v4874 = vld [vmem:[%s4845 + $0x70] sm:$0xf]
    %v4875 = vld [vmem:[%s4845 + $0x74] sm:$0xf]
    %v4876 = vld [vmem:[%s4845 + $0x78] sm:$0xf]
    %v4877 = vld [vmem:[%s4845 + $0x7c] sm:$0xf]
    %s4878 = scalar_lea.vmem %s11, 1
    %v4879 = vld [vmem:[%s4878] sm:$0x1]
    %v4881 = vlaneseq
    %v4882 = vshrl.u32 %v4881, 7
    %v4883 = vsub.s32 0, %v4882
    %v4884 = vrot.slane %v4879, %v4883
    %v4918 = vunpack.c.l.b16 %v4846
    %v4919 = vunpack.c.l.b16 %v4847
    %v4920 = vunpack.c.l.b16 %v4848
    %v4921 = vunpack.c.l.b16 %v4849
    %v4922 = vunpack.c.l.b16 %v4850
    %v4923 = vunpack.c.l.b16 %v4851
    %v4924 = vunpack.c.l.b16 %v4852
    %v4925 = vunpack.c.l.b16 %v4853
    %v4926 = vunpack.c.l.b16 %v4854
    %v4927 = vunpack.c.l.b16 %v4855
    %v4928 = vunpack.c.l.b16 %v4856
    %v4929 = vunpack.c.l.b16 %v4857
    %v4930 = vunpack.c.l.b16 %v4858
    %v4931 = vunpack.c.l.b16 %v4859
    %v4932 = vunpack.c.l.b16 %v4860
    %v4933 = vunpack.c.l.b16 %v4861
    %v4934 = vunpack.c.l.b16 %v4862
    %v4935 = vunpack.c.l.b16 %v4863
    %v4936 = vunpack.c.l.b16 %v4864
    %v4937 = vunpack.c.l.b16 %v4865
    %v4938 = vunpack.c.l.b16 %v4866
    %v4939 = vunpack.c.l.b16 %v4867
    %v4940 = vunpack.c.l.b16 %v4868
    %v4941 = vunpack.c.l.b16 %v4869
    %v4942 = vunpack.c.l.b16 %v4870
    %v4943 = vunpack.c.l.b16 %v4871
    %v4944 = vunpack.c.l.b16 %v4872
    %v4945 = vunpack.c.l.b16 %v4873
    %v4946 = vunpack.c.l.b16 %v4874
    %v4947 = vunpack.c.l.b16 %v4875
    %v4948 = vunpack.c.l.b16 %v4876
    %v4949 = vunpack.c.l.b16 %v4877
    %v4950 = vpack.c.b16 %v4919, %v4918
    %v4951 = vpack.c.b16 %v4921, %v4920
    %v4952 = vpack.c.b16 %v4923, %v4922
    %v4953 = vpack.c.b16 %v4925, %v4924
    %v4954 = vpack.c.b16 %v4927, %v4926
    %v4955 = vpack.c.b16 %v4929, %v4928
    %v4956 = vpack.c.b16 %v4931, %v4930
    %v4957 = vpack.c.b16 %v4933, %v4932
    %v4958 = vpack.c.b16 %v4935, %v4934
    %v4959 = vpack.c.b16 %v4937, %v4936
    %v4960 = vpack.c.b16 %v4939, %v4938
    %v4961 = vpack.c.b16 %v4941, %v4940
    %v4962 = vpack.c.b16 %v4943, %v4942
    %v4963 = vpack.c.b16 %v4945, %v4944
    %v4964 = vpack.c.b16 %v4947, %v4946
    %v4965 = vpack.c.b16 %v4949, %v4948
    %4982 = vmatprep.subr.bf16.mxu0 0
    %4983 = vmatpush1.bf16.msra.mxu0 %v4950
    %4984 = vmatprep.subr.bf16.mxu0 0
    %4985 = vmatpush1.bf16.msra.mxu0 %v4951
    %4986 = vmatprep.subr.bf16.mxu0 0
    %4987 = vmatpush1.bf16.msra.mxu0 %v4952
    %4988 = vmatprep.subr.bf16.mxu0 0
    %4989 = vmatpush1.bf16.msra.mxu0 %v4953
    %4990 = vmatprep.subr.bf16.mxu0 0
    %4991 = vmatpush1.bf16.msra.mxu0 %v4954
    %4992 = vmatprep.subr.bf16.mxu0 0
    %4993 = vmatpush1.bf16.msra.mxu0 %v4955
    %4994 = vmatprep.subr.bf16.mxu0 0
    %4995 = vmatpush1.bf16.msra.mxu0 %v4956
    %4996 = vmatprep.subr.bf16.mxu0 0
    %4997 = vmatpush1.bf16.msra.mxu0 %v4957
    %4998 = vmatprep.subr.bf16.mxu0 0
    %4999 = vmatpush1.bf16.msra.mxu0 %v4958
    %5000 = vmatprep.subr.bf16.mxu0 0
    %5001 = vmatpush1.bf16.msra.mxu0 %v4959
    %5002 = vmatprep.subr.bf16.mxu0 0
    %5003 = vmatpush1.bf16.msra.mxu0 %v4960
    %5004 = vmatprep.subr.bf16.mxu0 0
    %5005 = vmatpush1.bf16.msra.mxu0 %v4961
    %5006 = vmatprep.subr.bf16.mxu0 0
    %5007 = vmatpush1.bf16.msra.mxu0 %v4962
    %5008 = vmatprep.subr.bf16.mxu0 0
    %5009 = vmatpush1.bf16.msra.mxu0 %v4963
    %5010 = vmatprep.subr.bf16.mxu0 0
    %5011 = vmatpush1.bf16.msra.mxu0 %v4964
    %5012 = vmatprep.subr.bf16.mxu0 0
    %5013 = vmatpush1.bf16.msra.mxu0 %v4965
    %5014 = vmatprep.mubr.bf16.mxu0 %v4844
    %5015 = vmatmul.mubr.bf16.gmra.mrb[0].mxu0 %v4843
    %v5016 = vpop.f32.mrb[0].mxu0
    %v5017 = vadd.f32 %v4884, %v5016
    %v5018 = vpop.f32.mrb[0].mxu0
    %v5019 = vpop.f32.mrb[0].mxu0
    %v5020 = vadd.f32 %v4884, %v5019
    %v5021 = vpop.f32.mrb[0].mxu0
    %5022 = vdwg.mxu0
    %v5023 = vadd.f32 %v4674, %v5017
    %v5024 = vadd.f32 %v4675, %v5020
    %s5025 = scalar_lea.vmem %s1, 2
    %v5026 = vld [vmem:[%s5025] sm:$0x1]
    %s5027 = scalar_lea.vmem %s2, 2
    %v5028 = vld [vmem:[%s5027] sm:$0x1]
    %v5029 = vsel %vm198, %v5023, 0.0
    %5030 = vadd.xlane.f32.xlu0 %v5029
    %v5031 = vpop.xlane.xlu0 %5030
    %v5032 = vsel %vm198, %v5024, 0.0
    %5033 = vadd.xlane.f32.xlu0 %v5032
    %v5034 = vpop.xlane.xlu0 %5033
    %v5035 = vmul.f32 %v5031, %v205
    %v5036 = vmul.f32 %v5034, %v205
    %v5037 = vsub.f32 %v5023, %v5035
    %v5038 = vsub.f32 %v5024, %v5036
    %v5039 = vmul.f32 %v5037, %v5037
    %v5040 = vmul.f32 %v5038, %v5038
    %v5041 = vsel %vm198, %v5039, 0.0
    %5042 = vadd.xlane.f32.xlu0 %v5041
    %v5043 = vpop.xlane.xlu0 %5042
    %v5044 = vsel %vm198, %v5040, 0.0
    %5045 = vadd.xlane.f32.xlu0 %v5044
    %v5046 = vpop.xlane.xlu0 %5045
    %v5047 = vmul.f32 %v5043, %v205
    %v5048 = vmul.f32 %v5046, %v205
    %v5049 = vadd.f32 %v5047, 1e-05
    %v5050 = vadd.f32 %v5048, 1e-05
    %v5051 = vrsqrt.pop %v5049
    %v5052 = vrsqrt.pop %v5050
    %v5053 = vmul.f32 %v5037, %v5051
    %v5054 = vmul.f32 %v5038, %v5052
    %v5056 = vlaneseq
    %v5057 = vshrl.u32 %v5056, 7
    %v5058 = vsub.s32 0, %v5057
    %v5059 = vrot.slane %v5026, %v5058
    %v5061 = vmul.f32 %v5053, %v5059
    %v5062 = vmul.f32 %v5054, %v5059
    %v5064 = vlaneseq
    %v5065 = vshrl.u32 %v5064, 7
    %v5066 = vsub.s32 0, %v5065
    %v5067 = vrot.slane %v5028, %v5066
    %v5069 = vadd.f32 %v5061, %v5067
    %v5070 = vadd.f32 %v5062, %v5067
    %v5071 = vpack.c.bf16 %v5070, %v5069
    %s5072 = scalar_lea.vmem %s3, 160
    %v5073 = vld [vmem:[%s5072] sm:$0xff]
    %v5074 = vld [vmem:[%s5072 + $0x8] sm:$0xff]
    %v5075 = vld [vmem:[%s5072 + $0x10] sm:$0xf]
    %v5076 = vld [vmem:[%s5072 + $0x14] sm:$0xff]
    %v5077 = vld [vmem:[%s5072 + $0x1c] sm:$0xff]
    %v5078 = vld [vmem:[%s5072 + $0x24] sm:$0xf]
    %v5079 = vld [vmem:[%s5072 + $0x28] sm:$0xff]
    %v5080 = vld [vmem:[%s5072 + $0x30] sm:$0xff]
    %v5081 = vld [vmem:[%s5072 + $0x38] sm:$0xf]
    %v5082 = vld [vmem:[%s5072 + $0x3c] sm:$0xff]
    %v5083 = vld [vmem:[%s5072 + $0x44] sm:$0xff]
    %v5084 = vld [vmem:[%s5072 + $0x4c] sm:$0xf]
    %v5097 = vunpack.c.l.b16 %v5073
    %v5098 = vunpack.c.h.b16 %v5073
    %v5099 = vunpack.c.l.b16 %v5074
    %v5100 = vunpack.c.h.b16 %v5074
    %v5101 = vunpack.c.l.b16 %v5075
    %v5102 = vunpack.c.l.b16 %v5076
    %v5103 = vunpack.c.h.b16 %v5076
    %v5104 = vunpack.c.l.b16 %v5077
    %v5105 = vunpack.c.h.b16 %v5077
    %v5106 = vunpack.c.l.b16 %v5078
    %v5107 = vunpack.c.l.b16 %v5079
    %v5108 = vunpack.c.h.b16 %v5079
    %v5109 = vunpack.c.l.b16 %v5080
    %v5110 = vunpack.c.h.b16 %v5080
    %v5111 = vunpack.c.l.b16 %v5081
    %v5112 = vunpack.c.l.b16 %v5082
    %v5113 = vunpack.c.h.b16 %v5082
    %v5114 = vunpack.c.l.b16 %v5083
    %v5115 = vunpack.c.h.b16 %v5083
    %v5116 = vunpack.c.l.b16 %v5084
    %v5117 = vpack.c.b16 %v5102, %v5097
    %v5118 = vpack.c.b16 %v5103, %v5098
    %v5119 = vpack.c.b16 %v5104, %v5099
    %v5120 = vpack.c.b16 %v5105, %v5100
    %v5121 = vpack.c.b16 %v5106, %v5101
    %v5122 = vpack.c.b16 %v5112, %v5107
    %v5123 = vpack.c.b16 %v5113, %v5108
    %v5124 = vpack.c.b16 %v5114, %v5109
    %v5125 = vpack.c.b16 %v5115, %v5110
    %v5126 = vpack.c.b16 %v5116, %v5111
    %v5138 = vsel %vm198, %v5071, 0
    %5140 = vmatprep.subr.bf16.mxu0 %v5118
    %5141 = vmatpush1.bf16.msra.mxu0 %v5117
    %5142 = vmatprep.subr.bf16.mxu0 %v5123
    %5143 = vmatpush1.bf16.msra.mxu0 %v5122
    %5144 = vmatprep.subr.bf16.mxu0 0
    %5145 = vmatpush1.bf16.msra.mxu0 0
    %5146 = vmatprep.subr.bf16.mxu0 0
    %5147 = vmatpush1.bf16.msra.mxu0 0
    %5148 = vmatprep.subr.bf16.mxu0 0
    %5149 = vmatpush1.bf16.msra.mxu0 0
    %5150 = vmatprep.subr.bf16.mxu0 0
    %5151 = vmatpush1.bf16.msra.mxu0 0
    %5152 = vmatprep.subr.bf16.mxu0 0
    %5153 = vmatpush1.bf16.msra.mxu0 0
    %5154 = vmatprep.subr.bf16.mxu0 0
    %5155 = vmatpush1.bf16.msra.mxu0 0
    %5156 = vmatprep.subr.bf16.mxu0 0
    %5157 = vmatpush1.bf16.msra.mxu0 0
    %5158 = vmatprep.subr.bf16.mxu0 0
    %5159 = vmatpush1.bf16.msra.mxu0 0
    %5160 = vmatprep.subr.bf16.mxu0 0
    %5161 = vmatpush1.bf16.msra.mxu0 0
    %5162 = vmatprep.subr.bf16.mxu0 0
    %5163 = vmatpush1.bf16.msra.mxu0 0
    %5164 = vmatprep.subr.bf16.mxu0 0
    %5165 = vmatpush1.bf16.msra.mxu0 0
    %5166 = vmatprep.subr.bf16.mxu0 0
    %5167 = vmatpush1.bf16.msra.mxu0 0
    %5168 = vmatprep.subr.bf16.mxu0 0
    %5169 = vmatpush1.bf16.msra.mxu0 0
    %5170 = vmatprep.subr.bf16.mxu0 0
    %5171 = vmatpush1.bf16.msra.mxu0 0
    %5172 = vmatprep.mubr.bf16.mxu0 0
    %5173 = vmatmul.mubr.bf16.gmra.mrb[0].mxu0 %v5138
    %v5174 = vpop.f32.mrb[0].mxu0
    %v5175 = vadd.f32 0.0, %v5174
    %v5176 = vpop.f32.mrb[0].mxu0
    %v5177 = vadd.f32 0.0, %v5176
    %v5178 = vpop.f32.mrb[0].mxu0
    %v5179 = vadd.f32 0.0, %v5178
    %v5180 = vpop.f32.mrb[0].mxu0
    %v5181 = vadd.f32 0.0, %v5180
    %5182 = vdwg.mxu0
    %5183 = vmatprep.subr.bf16.mxu0 %v5120
    %5184 = vmatpush1.bf16.msra.mxu0 %v5119
    %5185 = vmatprep.subr.bf16.mxu0 %v5125
    %5186 = vmatpush1.bf16.msra.mxu0 %v5124
    %5187 = vmatprep.subr.bf16.mxu0 0
    %5188 = vmatpush1.bf16.msra.mxu0 0
    %5189 = vmatprep.subr.bf16.mxu0 0
    %5190 = vmatpush1.bf16.msra.mxu0 0
    %5191 = vmatprep.subr.bf16.mxu0 0
    %5192 = vmatpush1.bf16.msra.mxu0 0
    %5193 = vmatprep.subr.bf16.mxu0 0
    %5194 = vmatpush1.bf16.msra.mxu0 0
    %5195 = vmatprep.subr.bf16.mxu0 0
    %5196 = vmatpush1.bf16.msra.mxu0 0
    %5197 = vmatprep.subr.bf16.mxu0 0
    %5198 = vmatpush1.bf16.msra.mxu0 0
    %5199 = vmatprep.subr.bf16.mxu0 0
    %5200 = vmatpush1.bf16.msra.mxu0 0
    %5201 = vmatprep.subr.bf16.mxu0 0
    %5202 = vmatpush1.bf16.msra.mxu0 0
    %5203 = vmatprep.subr.bf16.mxu0 0
    %5204 = vmatpush1.bf16.msra.mxu0 0
    %5205 = vmatprep.subr.bf16.mxu0 0
    %5206 = vmatpush1.bf16.msra.mxu0 0
    %5207 = vmatprep.subr.bf16.mxu0 0
    %5208 = vmatpush1.bf16.msra.mxu0 0
    %5209 = vmatprep.subr.bf16.mxu0 0
    %5210 = vmatpush1.bf16.msra.mxu0 0
    %5211 = vmatprep.subr.bf16.mxu0 0
    %5212 = vmatpush1.bf16.msra.mxu0 0
    %5213 = vmatprep.subr.bf16.mxu0 0
    %5214 = vmatpush1.bf16.msra.mxu0 0
    %5215 = vmatprep.mubr.bf16.mxu0 0
    %5216 = vmatmul.mubr.bf16.gmra.mrb[0].mxu0 %v5138
    %v5217 = vpop.f32.mrb[0].mxu0
    %v5218 = vadd.f32 0.0, %v5217
    %v5219 = vpop.f32.mrb[0].mxu0
    %v5220 = vadd.f32 0.0, %v5219
    %v5221 = vpop.f32.mrb[0].mxu0
    %v5222 = vadd.f32 0.0, %v5221
    %v5223 = vpop.f32.mrb[0].mxu0
    %v5224 = vadd.f32 0.0, %v5223
    %5225 = vdwg.mxu0
    %5226 = vmatprep.subr.bf16.mxu0 0
    %5227 = vmatpush1.bf16.msra.mxu0 %v5121
    %5228 = vmatprep.subr.bf16.mxu0 0
    %5229 = vmatpush1.bf16.msra.mxu0 %v5126
    %5230 = vmatprep.subr.bf16.mxu0 0
    %5231 = vmatpush1.bf16.msra.mxu0 0
    %5232 = vmatprep.subr.bf16.mxu0 0
    %5233 = vmatpush1.bf16.msra.mxu0 0
    %5234 = vmatprep.subr.bf16.mxu0 0
    %5235 = vmatpush1.bf16.msra.mxu0 0
    %5236 = vmatprep.subr.bf16.mxu0 0
    %5237 = vmatpush1.bf16.msra.mxu0 0
    %5238 = vmatprep.subr.bf16.mxu0 0
    %5239 = vmatpush1.bf16.msra.mxu0 0
    %5240 = vmatprep.subr.bf16.mxu0 0
    %5241 = vmatpush1.bf16.msra.mxu0 0
    %5242 = vmatprep.subr.bf16.mxu0 0
    %5243 = vmatpush1.bf16.msra.mxu0 0
    %5244 = vmatprep.subr.bf16.mxu0 0
    %5245 = vmatpush1.bf16.msra.mxu0 0
    %5246 = vmatprep.subr.bf16.mxu0 0
    %5247 = vmatpush1.bf16.msra.mxu0 0
    %5248 = vmatprep.subr.bf16.mxu0 0
    %5249 = vmatpush1.bf16.msra.mxu0 0
    %5250 = vmatprep.subr.bf16.mxu0 0
    %5251 = vmatpush1.bf16.msra.mxu0 0
    %5252 = vmatprep.subr.bf16.mxu0 0
    %5253 = vmatpush1.bf16.msra.mxu0 0
    %5254 = vmatprep.subr.bf16.mxu0 0
    %5255 = vmatpush1.bf16.msra.mxu0 0
    %5256 = vmatprep.subr.bf16.mxu0 0
    %5257 = vmatpush1.bf16.msra.mxu0 0
    %5258 = vmatprep.mubr.bf16.mxu0 0
    %5259 = vmatmul.mubr.bf16.gmra.mrb[0].mxu0 %v5138
    %v5260 = vpop.f32.mrb[0].mxu0
    %v5261 = vadd.f32 0.0, %v5260
    %v5262 = vpop.f32.mrb[0].mxu0
    %v5263 = vpop.f32.mrb[0].mxu0
    %v5264 = vadd.f32 0.0, %v5263
    %v5265 = vpop.f32.mrb[0].mxu0
    %5266 = vdwg.mxu0
    %v5267 = vpack.c.bf16 %v5179, %v5175
    %v5268 = vpack.c.bf16 %v5181, %v5177
    %v5269 = vpack.c.bf16 %v5222, %v5218
    %v5270 = vpack.c.bf16 %v5224, %v5220
    %v5271 = vpack.c.bf16 %v5264, %v5261
    %5272 = vst.msk [vmem:[#allocation2] sm:$0xf] %vm442, %v5267
    %v5274 = vrot.slane %v5267, 4
    %5276 = vst.msk [vmem:[#allocation2] sm:$0xf0] %vm447, %v5274
    %5277 = vst.msk [vmem:[#allocation2 + $0x20] sm:$0xf] %vm442, %v5268
    %5278 = vrot.lane.b32.xlu0 %v5267, 64
    %v5279 = vpop.permute.xlu0 %5278
    %5281 = vst.msk [vmem:[#allocation2 + $0x20] sm:$0xf0] %vm447, %v5279
    %5282 = vrot.lane.b32.xlu0 %v5274, 64
    %v5283 = vpop.permute.xlu0 %5282
    %5285 = vst.msk [vmem:[#allocation2 + $0x40] sm:$0xf] %vm442, %v5283
    %5287 = vrot.lane.b32.xlu0 %v5268, 64
    %v5288 = vpop.permute.xlu0 %5287
    %5290 = vst.msk [vmem:[#allocation2 + $0x40] sm:$0xf0] %vm447, %v5288
    %5291 = vst.msk [vmem:[#allocation3] sm:$0xff] %vm73, %v5270
    %5292 = vst.msk [vmem:[#allocation3 + $0x10] sm:$0xff] %vm464, %v5270
    %5293 = vst.msk [vmem:[#allocation3 + $0x28] sm:$0xff] %vm73, %v5271
    %5295 = vrot.lane.b32.xlu0 %v5269, 64
    %v5296 = vpop.permute.xlu0 %5295
    %v5297 = vsel %vm470, %v5288, %v5296
    %v5299 = vrot.slane %v5268, 4
    %v5300 = vrot.slane %v5269, 4
    %v5304 = vsel %vm73, %v5296, %v5299
    %v5306 = vld [vmem:[#allocation2] sm:$0xff]
    %v5307 = vld [vmem:[#allocation2 + $0x8] sm:$0xff]
    %v5308 = vld [vmem:[#allocation2 + $0x10] sm:$0xff]
    %v5309 = vld [vmem:[#allocation2 + $0x18] sm:$0xff]
    %v5310 = vld [vmem:[#allocation2 + $0x20] sm:$0xff]
    %v5311 = vld [vmem:[#allocation2 + $0x28] sm:$0xff]
    %v5312 = vld [vmem:[#allocation2 + $0x30] sm:$0xff]
    %v5313 = vld [vmem:[#allocation2 + $0x38] sm:$0xff]
    %v5314 = vld [vmem:[#allocation2 + $0x40] sm:$0xff]
    %5315 = vmatprep.subr.bf16.mxu0 %v5304
    %5316 = vmatpush1.bf16.xpose.msra.mxu0 %v5297
    %5317 = vmatprep.subr.bf16.mxu0 0
    %5318 = vmatpush1.bf16.xpose.msra.mxu0 0
    %5319 = vmatprep.subr.bf16.mxu0 0
    %5320 = vmatpush1.bf16.xpose.msra.mxu0 0
    %5321 = vmatprep.subr.bf16.mxu0 0
    %5322 = vmatpush1.bf16.xpose.msra.mxu0 0
    %5323 = vmatprep.subr.bf16.mxu0 0
    %5324 = vmatpush1.bf16.xpose.msra.mxu0 0
    %5325 = vmatprep.subr.bf16.mxu0 0
    %5326 = vmatpush1.bf16.xpose.msra.mxu0 0
    %5327 = vmatprep.subr.bf16.mxu0 0
    %5328 = vmatpush1.bf16.xpose.msra.mxu0 0
    %5329 = vmatprep.subr.bf16.mxu0 0
    %5330 = vmatpush1.bf16.xpose.msra.mxu0 0
    %5331 = vmatprep.subr.bf16.mxu0 0
    %5332 = vmatpush1.bf16.xpose.msra.mxu0 0
    %5333 = vmatprep.subr.bf16.mxu0 0
    %5334 = vmatpush1.bf16.xpose.msra.mxu0 0
    %5335 = vmatprep.subr.bf16.mxu0 0
    %5336 = vmatpush1.bf16.xpose.msra.mxu0 0
    %5337 = vmatprep.subr.bf16.mxu0 0
    %5338 = vmatpush1.bf16.xpose.msra.mxu0 0
    %5339 = vmatprep.subr.bf16.mxu0 0
    %5340 = vmatpush1.bf16.xpose.msra.mxu0 0
    %5341 = vmatprep.subr.bf16.mxu0 0
    %5342 = vmatpush1.bf16.xpose.msra.mxu0 0
    %5343 = vmatprep.subr.bf16.mxu0 0
    %5344 = vmatpush1.bf16.xpose.msra.mxu0 0
    %5345 = vmatprep.subr.bf16.mxu0 0
    %5346 = vmatpush1.bf16.xpose.msra.mxu0 0
    %5347 = vmatprep.mubr.bf16.mxu0 %v5307
    %5348 = vmatmul.mubr.bf16.gmra.mrb[0].mxu0 %v5306
    %v5349 = vpop.f32.mrb[0].mxu0
    %v5350 = vadd.f32 0.0, %v5349
    %v5351 = vpop.f32.mrb[0].mxu0
    %v5352 = vpop.f32.mrb[0].mxu0
    %v5353 = vadd.f32 0.0, %v5352
    %v5354 = vpop.f32.mrb[0].mxu0
    %5355 = vmatprep.mubr.bf16.mxu0 %v5310
    %5356 = vmatmul.mubr.bf16.gmra.mrb[0].mxu0 %v5309
    %v5357 = vpop.f32.mrb[0].mxu0
    %v5358 = vadd.f32 0.0, %v5357
    %v5359 = vpop.f32.mrb[0].mxu0
    %v5360 = vpop.f32.mrb[0].mxu0
    %v5361 = vadd.f32 0.0, %v5360
    %v5362 = vpop.f32.mrb[0].mxu0
    %5363 = vmatprep.mubr.bf16.mxu0 %v5313
    %5364 = vmatmul.mubr.bf16.gmra.mrb[0].mxu0 %v5312
    %v5365 = vpop.f32.mrb[0].mxu0
    %v5366 = vadd.f32 0.0, %v5365
    %v5367 = vpop.f32.mrb[0].mxu0
    %v5368 = vpop.f32.mrb[0].mxu0
    %v5369 = vadd.f32 0.0, %v5368
    %v5370 = vpop.f32.mrb[0].mxu0
    %5371 = vdwg.mxu0
    %5372 = vmatprep.subr.bf16.mxu0 0
    %5373 = vmatpush1.bf16.xpose.msra.mxu0 %v5300
    %5374 = vmatprep.subr.bf16.mxu0 0
    %5375 = vmatpush1.bf16.xpose.msra.mxu0 0
    %5376 = vmatprep.subr.bf16.mxu0 0
    %5377 = vmatpush1.bf16.xpose.msra.mxu0 0
    %5378 = vmatprep.subr.bf16.mxu0 0
    %5379 = vmatpush1.bf16.xpose.msra.mxu0 0
    %5380 = vmatprep.subr.bf16.mxu0 0
    %5381 = vmatpush1.bf16.xpose.msra.mxu0 0
    %5382 = vmatprep.subr.bf16.mxu0 0
    %5383 = vmatpush1.bf16.xpose.msra.mxu0 0
    %5384 = vmatprep.subr.bf16.mxu0 0
    %5385 = vmatpush1.bf16.xpose.msra.mxu0 0
    %5386 = vmatprep.subr.bf16.mxu0 0
    %5387 = vmatpush1.bf16.xpose.msra.mxu0 0
    %5388 = vmatprep.subr.bf16.mxu0 0
    %5389 = vmatpush1.bf16.xpose.msra.mxu0 0
    %5390 = vmatprep.subr.bf16.mxu0 0
    %5391 = vmatpush1.bf16.xpose.msra.mxu0 0
    %5392 = vmatprep.subr.bf16.mxu0 0
    %5393 = vmatpush1.bf16.xpose.msra.mxu0 0
    %5394 = vmatprep.subr.bf16.mxu0 0
    %5395 = vmatpush1.bf16.xpose.msra.mxu0 0
    %5396 = vmatprep.subr.bf16.mxu0 0
    %5397 = vmatpush1.bf16.xpose.msra.mxu0 0
    %5398 = vmatprep.subr.bf16.mxu0 0
    %5399 = vmatpush1.bf16.xpose.msra.mxu0 0
    %5400 = vmatprep.subr.bf16.mxu0 0
    %5401 = vmatpush1.bf16.xpose.msra.mxu0 0
    %5402 = vmatprep.subr.bf16.mxu0 0
    %5403 = vmatpush1.bf16.xpose.msra.mxu0 0
    %5404 = vmatprep.mubr.bf16.mxu0 0
    %5405 = vmatmul.mubr.bf16.gmra.mrb[0].mxu0 %v5308
    %v5406 = vpop.f32.mrb[0].mxu0
    %v5407 = vadd.f32 %v5350, %v5406
    %v5408 = vpop.f32.mrb[0].mxu0
    %v5409 = vpop.f32.mrb[0].mxu0
    %v5410 = vadd.f32 %v5353, %v5409
    %v5411 = vpop.f32.mrb[0].mxu0
    %5412 = vmatprep.mubr.bf16.mxu0 0
    %5413 = vmatmul.mubr.bf16.gmra.mrb[0].mxu0 %v5311
    %v5414 = vpop.f32.mrb[0].mxu0
    %v5415 = vadd.f32 %v5358, %v5414
    %v5416 = vpop.f32.mrb[0].mxu0
    %v5417 = vpop.f32.mrb[0].mxu0
    %v5418 = vadd.f32 %v5361, %v5417
    %v5419 = vpop.f32.mrb[0].mxu0
    %5420 = vmatprep.mubr.bf16.mxu0 0
    %5421 = vmatmul.mubr.bf16.gmra.mrb[0].mxu0 %v5314
    %v5422 = vpop.f32.mrb[0].mxu0
    %v5423 = vadd.f32 %v5366, %v5422
    %v5424 = vpop.f32.mrb[0].mxu0
    %v5425 = vpop.f32.mrb[0].mxu0
    %v5426 = vadd.f32 %v5369, %v5425
    %v5427 = vpop.f32.mrb[0].mxu0
    %5428 = vdwg.mxu0
    %v5429 = vmul.f32 %v5407, 0.125
    %v5430 = vmul.f32 %v5410, 0.125
    %v5431 = vmul.f32 %v5415, 0.125
    %v5432 = vmul.f32 %v5418, 0.125
    %v5433 = vmul.f32 %v5423, 0.125
    %v5434 = vmul.f32 %v5426, 0.125
    %s5435 = scalar_lea.vmem %s12, 96
    %v5436 = vld [vmem:[%s5435] sm:$0xff]
    %v5437 = vld [vmem:[%s5435 + $0x8] sm:$0xff]
    %v5438 = vld [vmem:[%s5435 + $0x10] sm:$0xff]
    %v5439 = vld [vmem:[%s5435 + $0x18] sm:$0xff]
    %v5440 = vld [vmem:[%s5435 + $0x20] sm:$0xff]
    %v5441 = vld [vmem:[%s5435 + $0x28] sm:$0xff]
    %5448 = vrot.lane.b32.xlu0 %v5429, 1
    %v5449 = vpop.permute.xlu0 %5448
    %5450 = vrot.lane.b32.xlu0 %v5430, 1
    %v5451 = vpop.permute.xlu0 %5450
    %5452 = vrot.lane.b32.xlu0 %v5431, 1
    %v5453 = vpop.permute.xlu0 %5452
    %5454 = vrot.lane.b32.xlu0 %v5432, 1
    %v5455 = vpop.permute.xlu0 %5454
    %5456 = vrot.lane.b32.xlu0 %v5433, 1
    %v5457 = vpop.permute.xlu0 %5456
    %5458 = vrot.lane.b32.xlu0 %v5434, 1
    %v5459 = vpop.permute.xlu0 %5458
    %v5466 = vsel %vm639, 0.0, %v5449
    %v5467 = vsel %vm639, 0.0, %v5451
    %v5468 = vsel %vm639, 0.0, %v5453
    %v5469 = vsel %vm639, 0.0, %v5455
    %v5470 = vsel %vm639, 0.0, %v5457
    %v5471 = vsel %vm639, 0.0, %v5459
    %5472 = vrot.lane.b32.xlu0 %v5429, 127
    %v5473 = vpop.permute.xlu0 %5472
    %5474 = vrot.lane.b32.xlu0 %v5430, 127
    %v5475 = vpop.permute.xlu0 %5474
    %5476 = vrot.lane.b32.xlu0 %v5431, 127
    %v5477 = vpop.permute.xlu0 %5476
    %5478 = vrot.lane.b32.xlu0 %v5432, 127
    %v5479 = vpop.permute.xlu0 %5478
    %5480 = vrot.lane.b32.xlu0 %v5433, 127
    %v5481 = vpop.permute.xlu0 %5480
    %5482 = vrot.lane.b32.xlu0 %v5434, 127
    %v5483 = vpop.permute.xlu0 %5482
    %v5490 = vsel %vm664, %v5473, 0.0
    %v5491 = vsel %vm664, %v5475, 0.0
    %v5492 = vsel %vm664, %v5477, 0.0
    %v5493 = vsel %vm664, %v5479, 0.0
    %v5494 = vsel %vm664, %v5481, 0.0
    %v5495 = vsel %vm664, %v5483, 0.0
    %5497 = vset.pattern.permute.xlu0 0
    %5498 = vperm.xlu0 %5497, %v5436
    %v5499 = vpop.permute.xlu0 %5498
    %5502 = vset.pattern.permute.xlu0 0
    %5503 = vperm.xlu0 %5502, %v5437
    %v5504 = vpop.permute.xlu0 %5503
    %5507 = vset.pattern.permute.xlu0 0
    %5508 = vperm.xlu0 %5507, %v5438
    %v5509 = vpop.permute.xlu0 %5508
    %5512 = vset.pattern.permute.xlu0 0
    %5513 = vperm.xlu0 %5512, %v5439
    %v5514 = vpop.permute.xlu0 %5513
    %5517 = vset.pattern.permute.xlu0 0
    %5518 = vperm.xlu0 %5517, %v5440
    %v5519 = vpop.permute.xlu0 %5518
    %5522 = vset.pattern.permute.xlu0 0
    %5523 = vperm.xlu0 %5522, %v5441
    %v5524 = vpop.permute.xlu0 %5523
    %v5526 = vmul.f32 %v5499, %v5466
    %v5527 = vmul.f32 %v5504, %v5467
    %v5528 = vmul.f32 %v5509, %v5468
    %v5529 = vmul.f32 %v5514, %v5469
    %v5530 = vmul.f32 %v5519, %v5470
    %v5531 = vmul.f32 %v5524, %v5471
    %5532 = vset.pattern.permute.xlu0 1
    %5533 = vperm.xlu0 %5532, %v5436
    %v5534 = vpop.permute.xlu0 %5533
    %5536 = vset.pattern.permute.xlu0 1
    %5537 = vperm.xlu0 %5536, %v5437
    %v5538 = vpop.permute.xlu0 %5537
    %5540 = vset.pattern.permute.xlu0 1
    %5541 = vperm.xlu0 %5540, %v5438
    %v5542 = vpop.permute.xlu0 %5541
    %5544 = vset.pattern.permute.xlu0 1
    %5545 = vperm.xlu0 %5544, %v5439
    %v5546 = vpop.permute.xlu0 %5545
    %5548 = vset.pattern.permute.xlu0 1
    %5549 = vperm.xlu0 %5548, %v5440
    %v5550 = vpop.permute.xlu0 %5549
    %5552 = vset.pattern.permute.xlu0 1
    %5553 = vperm.xlu0 %5552, %v5441
    %v5554 = vpop.permute.xlu0 %5553
    %v5556 = vmul.f32 %v5534, %v5429
    %v5557 = vmul.f32 %v5538, %v5430
    %v5558 = vmul.f32 %v5542, %v5431
    %v5559 = vmul.f32 %v5546, %v5432
    %v5560 = vmul.f32 %v5550, %v5433
    %v5561 = vmul.f32 %v5554, %v5434
    %v5562 = vadd.f32 %v5526, %v5556
    %v5563 = vadd.f32 %v5527, %v5557
    %v5564 = vadd.f32 %v5528, %v5558
    %v5565 = vadd.f32 %v5529, %v5559
    %v5566 = vadd.f32 %v5530, %v5560
    %v5567 = vadd.f32 %v5531, %v5561
    %5568 = vset.pattern.permute.xlu0 2
    %5569 = vperm.xlu0 %5568, %v5436
    %v5570 = vpop.permute.xlu0 %5569
    %5572 = vset.pattern.permute.xlu0 2
    %5573 = vperm.xlu0 %5572, %v5437
    %v5574 = vpop.permute.xlu0 %5573
    %5576 = vset.pattern.permute.xlu0 2
    %5577 = vperm.xlu0 %5576, %v5438
    %v5578 = vpop.permute.xlu0 %5577
    %5580 = vset.pattern.permute.xlu0 2
    %5581 = vperm.xlu0 %5580, %v5439
    %v5582 = vpop.permute.xlu0 %5581
    %5584 = vset.pattern.permute.xlu0 2
    %5585 = vperm.xlu0 %5584, %v5440
    %v5586 = vpop.permute.xlu0 %5585
    %5588 = vset.pattern.permute.xlu0 2
    %5589 = vperm.xlu0 %5588, %v5441
    %v5590 = vpop.permute.xlu0 %5589
    %v5592 = vmul.f32 %v5570, %v5490
    %v5593 = vmul.f32 %v5574, %v5491
    %v5594 = vmul.f32 %v5578, %v5492
    %v5595 = vmul.f32 %v5582, %v5493
    %v5596 = vmul.f32 %v5586, %v5494
    %v5597 = vmul.f32 %v5590, %v5495
    %v5598 = vadd.f32 %v5562, %v5592
    %v5599 = vadd.f32 %v5563, %v5593
    %v5600 = vadd.f32 %v5564, %v5594
    %v5601 = vadd.f32 %v5565, %v5595
    %v5602 = vadd.f32 %v5566, %v5596
    %v5603 = vadd.f32 %v5567, %v5597
    %5604 = vset.pattern.permute.xlu0 3
    %5605 = vperm.xlu0 %5604, %v5436
    %v5606 = vpop.permute.xlu0 %5605
    %5608 = vset.pattern.permute.xlu0 3
    %5609 = vperm.xlu0 %5608, %v5437
    %v5610 = vpop.permute.xlu0 %5609
    %5612 = vset.pattern.permute.xlu0 3
    %5613 = vperm.xlu0 %5612, %v5438
    %v5614 = vpop.permute.xlu0 %5613
    %5616 = vset.pattern.permute.xlu0 3
    %5617 = vperm.xlu0 %5616, %v5439
    %v5618 = vpop.permute.xlu0 %5617
    %5620 = vset.pattern.permute.xlu0 3
    %5621 = vperm.xlu0 %5620, %v5440
    %v5622 = vpop.permute.xlu0 %5621
    %5624 = vset.pattern.permute.xlu0 3
    %5625 = vperm.xlu0 %5624, %v5441
    %v5626 = vpop.permute.xlu0 %5625
    %v5628 = vmul.f32 %v5606, %v5466
    %v5629 = vmul.f32 %v5610, %v5467
    %v5630 = vmul.f32 %v5614, %v5468
    %v5631 = vmul.f32 %v5618, %v5469
    %v5632 = vmul.f32 %v5622, %v5470
    %v5633 = vmul.f32 %v5626, %v5471
    %5634 = vset.pattern.permute.xlu0 4
    %5635 = vperm.xlu0 %5634, %v5436
    %v5636 = vpop.permute.xlu0 %5635
    %5638 = vset.pattern.permute.xlu0 4
    %5639 = vperm.xlu0 %5638, %v5437
    %v5640 = vpop.permute.xlu0 %5639
    %5642 = vset.pattern.permute.xlu0 4
    %5643 = vperm.xlu0 %5642, %v5438
    %v5644 = vpop.permute.xlu0 %5643
    %5646 = vset.pattern.permute.xlu0 4
    %5647 = vperm.xlu0 %5646, %v5439
    %v5648 = vpop.permute.xlu0 %5647
    %5650 = vset.pattern.permute.xlu0 4
    %5651 = vperm.xlu0 %5650, %v5440
    %v5652 = vpop.permute.xlu0 %5651
    %5654 = vset.pattern.permute.xlu0 4
    %5655 = vperm.xlu0 %5654, %v5441
    %v5656 = vpop.permute.xlu0 %5655
    %v5658 = vmul.f32 %v5636, %v5429
    %v5659 = vmul.f32 %v5640, %v5430
    %v5660 = vmul.f32 %v5644, %v5431
    %v5661 = vmul.f32 %v5648, %v5432
    %v5662 = vmul.f32 %v5652, %v5433
    %v5663 = vmul.f32 %v5656, %v5434
    %v5664 = vadd.f32 %v5628, %v5658
    %v5665 = vadd.f32 %v5629, %v5659
    %v5666 = vadd.f32 %v5630, %v5660
    %v5667 = vadd.f32 %v5631, %v5661
    %v5668 = vadd.f32 %v5632, %v5662
    %v5669 = vadd.f32 %v5633, %v5663
    %5670 = vset.pattern.permute.xlu0 5
    %5671 = vperm.xlu0 %5670, %v5436
    %v5672 = vpop.permute.xlu0 %5671
    %5674 = vset.pattern.permute.xlu0 5
    %5675 = vperm.xlu0 %5674, %v5437
    %v5676 = vpop.permute.xlu0 %5675
    %5678 = vset.pattern.permute.xlu0 5
    %5679 = vperm.xlu0 %5678, %v5438
    %v5680 = vpop.permute.xlu0 %5679
    %5682 = vset.pattern.permute.xlu0 5
    %5683 = vperm.xlu0 %5682, %v5439
    %v5684 = vpop.permute.xlu0 %5683
    %5686 = vset.pattern.permute.xlu0 5
    %5687 = vperm.xlu0 %5686, %v5440
    %v5688 = vpop.permute.xlu0 %5687
    %5690 = vset.pattern.permute.xlu0 5
    %5691 = vperm.xlu0 %5690, %v5441
    %v5692 = vpop.permute.xlu0 %5691
    %v5694 = vmul.f32 %v5672, %v5490
    %v5695 = vmul.f32 %v5676, %v5491
    %v5696 = vmul.f32 %v5680, %v5492
    %v5697 = vmul.f32 %v5684, %v5493
    %v5698 = vmul.f32 %v5688, %v5494
    %v5699 = vmul.f32 %v5692, %v5495
    %v5700 = vadd.f32 %v5664, %v5694
    %v5701 = vadd.f32 %v5665, %v5695
    %v5702 = vadd.f32 %v5666, %v5696
    %v5703 = vadd.f32 %v5667, %v5697
    %v5704 = vadd.f32 %v5668, %v5698
    %v5705 = vadd.f32 %v5669, %v5699
    %5706 = vset.pattern.permute.xlu0 6
    %5707 = vperm.xlu0 %5706, %v5436
    %v5708 = vpop.permute.xlu0 %5707
    %5710 = vset.pattern.permute.xlu0 6
    %5711 = vperm.xlu0 %5710, %v5437
    %v5712 = vpop.permute.xlu0 %5711
    %5714 = vset.pattern.permute.xlu0 6
    %5715 = vperm.xlu0 %5714, %v5438
    %v5716 = vpop.permute.xlu0 %5715
    %5718 = vset.pattern.permute.xlu0 6
    %5719 = vperm.xlu0 %5718, %v5439
    %v5720 = vpop.permute.xlu0 %5719
    %5722 = vset.pattern.permute.xlu0 6
    %5723 = vperm.xlu0 %5722, %v5440
    %v5724 = vpop.permute.xlu0 %5723
    %5726 = vset.pattern.permute.xlu0 6
    %5727 = vperm.xlu0 %5726, %v5441
    %v5728 = vpop.permute.xlu0 %5727
    %v5730 = vmul.f32 %v5708, %v5466
    %v5731 = vmul.f32 %v5712, %v5467
    %v5732 = vmul.f32 %v5716, %v5468
    %v5733 = vmul.f32 %v5720, %v5469
    %v5734 = vmul.f32 %v5724, %v5470
    %v5735 = vmul.f32 %v5728, %v5471
    %5736 = vset.pattern.permute.xlu0 7
    %5737 = vperm.xlu0 %5736, %v5436
    %v5738 = vpop.permute.xlu0 %5737
    %5740 = vset.pattern.permute.xlu0 7
    %5741 = vperm.xlu0 %5740, %v5437
    %v5742 = vpop.permute.xlu0 %5741
    %5744 = vset.pattern.permute.xlu0 7
    %5745 = vperm.xlu0 %5744, %v5438
    %v5746 = vpop.permute.xlu0 %5745
    %5748 = vset.pattern.permute.xlu0 7
    %5749 = vperm.xlu0 %5748, %v5439
    %v5750 = vpop.permute.xlu0 %5749
    %5752 = vset.pattern.permute.xlu0 7
    %5753 = vperm.xlu0 %5752, %v5440
    %v5754 = vpop.permute.xlu0 %5753
    %5756 = vset.pattern.permute.xlu0 7
    %5757 = vperm.xlu0 %5756, %v5441
    %v5758 = vpop.permute.xlu0 %5757
    %v5760 = vmul.f32 %v5738, %v5429
    %v5761 = vmul.f32 %v5742, %v5430
    %v5762 = vmul.f32 %v5746, %v5431
    %v5763 = vmul.f32 %v5750, %v5432
    %v5764 = vmul.f32 %v5754, %v5433
    %v5765 = vmul.f32 %v5758, %v5434
    %v5766 = vadd.f32 %v5730, %v5760
    %v5767 = vadd.f32 %v5731, %v5761
    %v5768 = vadd.f32 %v5732, %v5762
    %v5769 = vadd.f32 %v5733, %v5763
    %v5770 = vadd.f32 %v5734, %v5764
    %v5771 = vadd.f32 %v5735, %v5765
    %5772 = vset.pattern.permute.xlu0 8
    %5773 = vperm.xlu0 %5772, %v5436
    %v5774 = vpop.permute.xlu0 %5773
    %5776 = vset.pattern.permute.xlu0 8
    %5777 = vperm.xlu0 %5776, %v5437
    %v5778 = vpop.permute.xlu0 %5777
    %5780 = vset.pattern.permute.xlu0 8
    %5781 = vperm.xlu0 %5780, %v5438
    %v5782 = vpop.permute.xlu0 %5781
    %5784 = vset.pattern.permute.xlu0 8
    %5785 = vperm.xlu0 %5784, %v5439
    %v5786 = vpop.permute.xlu0 %5785
    %5788 = vset.pattern.permute.xlu0 8
    %5789 = vperm.xlu0 %5788, %v5440
    %v5790 = vpop.permute.xlu0 %5789
    %5792 = vset.pattern.permute.xlu0 8
    %5793 = vperm.xlu0 %5792, %v5441
    %v5794 = vpop.permute.xlu0 %5793
    %v5796 = vmul.f32 %v5774, %v5490
    %v5797 = vmul.f32 %v5778, %v5491
    %v5798 = vmul.f32 %v5782, %v5492
    %v5799 = vmul.f32 %v5786, %v5493
    %v5800 = vmul.f32 %v5790, %v5494
    %v5801 = vmul.f32 %v5794, %v5495
    %v5802 = vadd.f32 %v5766, %v5796
    %v5803 = vadd.f32 %v5767, %v5797
    %v5804 = vadd.f32 %v5768, %v5798
    %v5805 = vadd.f32 %v5769, %v5799
    %v5806 = vadd.f32 %v5770, %v5800
    %v5807 = vadd.f32 %v5771, %v5801
    %v5814 = vrot.slane %v5598, 7
    %v5815 = vrot.slane %v5599, 7
    %v5816 = vsel %vm989, %v5814, %v5815
    %v5817 = vrot.slane %v5600, 7
    %v5818 = vsel %vm989, %v5815, %v5817
    %v5819 = vrot.slane %v5601, 7
    %v5820 = vsel %vm989, %v5817, %v5819
    %v5821 = vrot.slane %v5602, 7
    %v5822 = vsel %vm989, %v5819, %v5821
    %v5823 = vrot.slane %v5603, 7
    %v5824 = vsel %vm989, %v5821, %v5823
    %v5831 = vsel %vm989, 0.0, %v5814
    %v5832 = vmul.f32 %v5831, %v172
    %v5833 = vmul.f32 %v5816, %v173
    %v5834 = vmul.f32 %v5818, %v174
    %v5835 = vmul.f32 %v5820, %v175
    %v5836 = vmul.f32 %v5822, %v176
    %v5837 = vmul.f32 %v5824, %v177
    %v5844 = vrot.slane %v5802, 1
    %v5845 = vrot.slane %v5803, 1
    %v5846 = vsel %vm1020, %v5844, %v5845
    %v5847 = vrot.slane %v5804, 1
    %v5848 = vsel %vm1020, %v5845, %v5847
    %v5849 = vrot.slane %v5805, 1
    %v5850 = vsel %vm1020, %v5847, %v5849
    %v5851 = vrot.slane %v5806, 1
    %v5852 = vsel %vm1020, %v5849, %v5851
    %v5853 = vrot.slane %v5807, 1
    %v5854 = vsel %vm1020, %v5851, %v5853
    %v5861 = vsel %vm1020, %v5853, 0.0
    %v5862 = vmul.f32 %v5846, %v190
    %v5863 = vmul.f32 %v5848, %v191
    %v5864 = vmul.f32 %v5850, %v192
    %v5865 = vmul.f32 %v5852, %v193
    %v5866 = vmul.f32 %v5854, %v194
    %v5867 = vmul.f32 %v5861, %v195
    %5868 = vset.pattern.permute.xlu0 9
    %5869 = vperm.xlu0 %5868, %v5436
    %v5870 = vpop.permute.xlu0 %5869
    %5872 = vset.pattern.permute.xlu0 9
    %5873 = vperm.xlu0 %5872, %v5437
    %v5874 = vpop.permute.xlu0 %5873
    %5876 = vset.pattern.permute.xlu0 9
    %5877 = vperm.xlu0 %5876, %v5438
    %v5878 = vpop.permute.xlu0 %5877
    %5880 = vset.pattern.permute.xlu0 9
    %5881 = vperm.xlu0 %5880, %v5439
    %v5882 = vpop.permute.xlu0 %5881
    %5884 = vset.pattern.permute.xlu0 9
    %5885 = vperm.xlu0 %5884, %v5440
    %v5886 = vpop.permute.xlu0 %5885
    %5888 = vset.pattern.permute.xlu0 9
    %5889 = vperm.xlu0 %5888, %v5441
    %v5890 = vpop.permute.xlu0 %5889
    %v5892 = vadd.f32 %v5870, %v5700
    %v5893 = vadd.f32 %v5874, %v5701
    %v5894 = vadd.f32 %v5878, %v5702
    %v5895 = vadd.f32 %v5882, %v5703
    %v5896 = vadd.f32 %v5886, %v5704
    %v5897 = vadd.f32 %v5890, %v5705
    %v5898 = vadd.f32 %v5892, %v5832
    %v5899 = vadd.f32 %v5893, %v5833
    %v5900 = vadd.f32 %v5894, %v5834
    %v5901 = vadd.f32 %v5895, %v5835
    %v5902 = vadd.f32 %v5896, %v5836
    %v5903 = vadd.f32 %v5897, %v5837
    %v5904 = vadd.f32 %v5898, %v5862
    %v5905 = vadd.f32 %v5899, %v5863
    %v5906 = vadd.f32 %v5900, %v5864
    %v5907 = vadd.f32 %v5901, %v5865
    %v5908 = vadd.f32 %v5902, %v5866
    %v5909 = vadd.f32 %v5903, %v5867
    %v5910 = vmax.f32 %v5904, 0.0
    %v5911 = vmax.f32 %v5905, 0.0
    %v5912 = vmax.f32 %v5906, 0.0
    %v5913 = vmax.f32 %v5907, 0.0
    %v5914 = vmax.f32 %v5908, 0.0
    %v5915 = vmax.f32 %v5909, 0.0
    %s5916 = scalar_lea.vmem %s13, 96
    %v5917 = vld [vmem:[%s5916] sm:$0xff]
    %v5918 = vld [vmem:[%s5916 + $0x8] sm:$0xff]
    %v5919 = vld [vmem:[%s5916 + $0x10] sm:$0xff]
    %v5920 = vld [vmem:[%s5916 + $0x18] sm:$0xff]
    %v5921 = vld [vmem:[%s5916 + $0x20] sm:$0xff]
    %v5922 = vld [vmem:[%s5916 + $0x28] sm:$0xff]
    %5929 = vrot.lane.b32.xlu0 %v5910, 1
    %v5930 = vpop.permute.xlu0 %5929
    %5931 = vrot.lane.b32.xlu0 %v5911, 1
    %v5932 = vpop.permute.xlu0 %5931
    %5933 = vrot.lane.b32.xlu0 %v5912, 1
    %v5934 = vpop.permute.xlu0 %5933
    %5935 = vrot.lane.b32.xlu0 %v5913, 1
    %v5936 = vpop.permute.xlu0 %5935
    %5937 = vrot.lane.b32.xlu0 %v5914, 1
    %v5938 = vpop.permute.xlu0 %5937
    %5939 = vrot.lane.b32.xlu0 %v5915, 1
    %v5940 = vpop.permute.xlu0 %5939
    %v5947 = vsel %vm639, 0.0, %v5930
    %v5948 = vsel %vm639, 0.0, %v5932
    %v5949 = vsel %vm639, 0.0, %v5934
    %v5950 = vsel %vm639, 0.0, %v5936
    %v5951 = vsel %vm639, 0.0, %v5938
    %v5952 = vsel %vm639, 0.0, %v5940
    %5953 = vrot.lane.b32.xlu0 %v5910, 127
    %v5954 = vpop.permute.xlu0 %5953
    %5955 = vrot.lane.b32.xlu0 %v5911, 127
    %v5956 = vpop.permute.xlu0 %5955
    %5957 = vrot.lane.b32.xlu0 %v5912, 127
    %v5958 = vpop.permute.xlu0 %5957
    %5959 = vrot.lane.b32.xlu0 %v5913, 127
    %v5960 = vpop.permute.xlu0 %5959
    %5961 = vrot.lane.b32.xlu0 %v5914, 127
    %v5962 = vpop.permute.xlu0 %5961
    %5963 = vrot.lane.b32.xlu0 %v5915, 127
    %v5964 = vpop.permute.xlu0 %5963
    %v5971 = vsel %vm664, %v5954, 0.0
    %v5972 = vsel %vm664, %v5956, 0.0
    %v5973 = vsel %vm664, %v5958, 0.0
    %v5974 = vsel %vm664, %v5960, 0.0
    %v5975 = vsel %vm664, %v5962, 0.0
    %v5976 = vsel %vm664, %v5964, 0.0
    %5978 = vset.pattern.permute.xlu0 0
    %5979 = vperm.xlu0 %5978, %v5917
    %v5980 = vpop.permute.xlu0 %5979
    %5983 = vset.pattern.permute.xlu0 0
    %5984 = vperm.xlu0 %5983, %v5918
    %v5985 = vpop.permute.xlu0 %5984
    %5988 = vset.pattern.permute.xlu0 0
    %5989 = vperm.xlu0 %5988, %v5919
    %v5990 = vpop.permute.xlu0 %5989
    %5993 = vset.pattern.permute.xlu0 0
    %5994 = vperm.xlu0 %5993, %v5920
    %v5995 = vpop.permute.xlu0 %5994
    %5998 = vset.pattern.permute.xlu0 0
    %5999 = vperm.xlu0 %5998, %v5921
    %v6000 = vpop.permute.xlu0 %5999
    %6003 = vset.pattern.permute.xlu0 0
    %6004 = vperm.xlu0 %6003, %v5922
    %v6005 = vpop.permute.xlu0 %6004
    %v6007 = vmul.f32 %v5980, %v5947
    %v6008 = vmul.f32 %v5985, %v5948
    %v6009 = vmul.f32 %v5990, %v5949
    %v6010 = vmul.f32 %v5995, %v5950
    %v6011 = vmul.f32 %v6000, %v5951
    %v6012 = vmul.f32 %v6005, %v5952
    %6013 = vset.pattern.permute.xlu0 1
    %6014 = vperm.xlu0 %6013, %v5917
    %v6015 = vpop.permute.xlu0 %6014
    %6017 = vset.pattern.permute.xlu0 1
    %6018 = vperm.xlu0 %6017, %v5918
    %v6019 = vpop.permute.xlu0 %6018
    %6021 = vset.pattern.permute.xlu0 1
    %6022 = vperm.xlu0 %6021, %v5919
    %v6023 = vpop.permute.xlu0 %6022
    %6025 = vset.pattern.permute.xlu0 1
    %6026 = vperm.xlu0 %6025, %v5920
    %v6027 = vpop.permute.xlu0 %6026
    %6029 = vset.pattern.permute.xlu0 1
    %6030 = vperm.xlu0 %6029, %v5921
    %v6031 = vpop.permute.xlu0 %6030
    %6033 = vset.pattern.permute.xlu0 1
    %6034 = vperm.xlu0 %6033, %v5922
    %v6035 = vpop.permute.xlu0 %6034
    %v6037 = vmul.f32 %v6015, %v5910
    %v6038 = vmul.f32 %v6019, %v5911
    %v6039 = vmul.f32 %v6023, %v5912
    %v6040 = vmul.f32 %v6027, %v5913
    %v6041 = vmul.f32 %v6031, %v5914
    %v6042 = vmul.f32 %v6035, %v5915
    %v6043 = vadd.f32 %v6007, %v6037
    %v6044 = vadd.f32 %v6008, %v6038
    %v6045 = vadd.f32 %v6009, %v6039
    %v6046 = vadd.f32 %v6010, %v6040
    %v6047 = vadd.f32 %v6011, %v6041
    %v6048 = vadd.f32 %v6012, %v6042
    %6049 = vset.pattern.permute.xlu0 2
    %6050 = vperm.xlu0 %6049, %v5917
    %v6051 = vpop.permute.xlu0 %6050
    %6053 = vset.pattern.permute.xlu0 2
    %6054 = vperm.xlu0 %6053, %v5918
    %v6055 = vpop.permute.xlu0 %6054
    %6057 = vset.pattern.permute.xlu0 2
    %6058 = vperm.xlu0 %6057, %v5919
    %v6059 = vpop.permute.xlu0 %6058
    %6061 = vset.pattern.permute.xlu0 2
    %6062 = vperm.xlu0 %6061, %v5920
    %v6063 = vpop.permute.xlu0 %6062
    %6065 = vset.pattern.permute.xlu0 2
    %6066 = vperm.xlu0 %6065, %v5921
    %v6067 = vpop.permute.xlu0 %6066
    %6069 = vset.pattern.permute.xlu0 2
    %6070 = vperm.xlu0 %6069, %v5922
    %v6071 = vpop.permute.xlu0 %6070
    %v6073 = vmul.f32 %v6051, %v5971
    %v6074 = vmul.f32 %v6055, %v5972
    %v6075 = vmul.f32 %v6059, %v5973
    %v6076 = vmul.f32 %v6063, %v5974
    %v6077 = vmul.f32 %v6067, %v5975
    %v6078 = vmul.f32 %v6071, %v5976
    %v6079 = vadd.f32 %v6043, %v6073
    %v6080 = vadd.f32 %v6044, %v6074
    %v6081 = vadd.f32 %v6045, %v6075
    %v6082 = vadd.f32 %v6046, %v6076
    %v6083 = vadd.f32 %v6047, %v6077
    %v6084 = vadd.f32 %v6048, %v6078
    %6085 = vset.pattern.permute.xlu0 3
    %6086 = vperm.xlu0 %6085, %v5917
    %v6087 = vpop.permute.xlu0 %6086
    %6089 = vset.pattern.permute.xlu0 3
    %6090 = vperm.xlu0 %6089, %v5918
    %v6091 = vpop.permute.xlu0 %6090
    %6093 = vset.pattern.permute.xlu0 3
    %6094 = vperm.xlu0 %6093, %v5919
    %v6095 = vpop.permute.xlu0 %6094
    %6097 = vset.pattern.permute.xlu0 3
    %6098 = vperm.xlu0 %6097, %v5920
    %v6099 = vpop.permute.xlu0 %6098
    %6101 = vset.pattern.permute.xlu0 3
    %6102 = vperm.xlu0 %6101, %v5921
    %v6103 = vpop.permute.xlu0 %6102
    %6105 = vset.pattern.permute.xlu0 3
    %6106 = vperm.xlu0 %6105, %v5922
    %v6107 = vpop.permute.xlu0 %6106
    %v6109 = vmul.f32 %v6087, %v5947
    %v6110 = vmul.f32 %v6091, %v5948
    %v6111 = vmul.f32 %v6095, %v5949
    %v6112 = vmul.f32 %v6099, %v5950
    %v6113 = vmul.f32 %v6103, %v5951
    %v6114 = vmul.f32 %v6107, %v5952
    %6115 = vset.pattern.permute.xlu0 4
    %6116 = vperm.xlu0 %6115, %v5917
    %v6117 = vpop.permute.xlu0 %6116
    %6119 = vset.pattern.permute.xlu0 4
    %6120 = vperm.xlu0 %6119, %v5918
    %v6121 = vpop.permute.xlu0 %6120
    %6123 = vset.pattern.permute.xlu0 4
    %6124 = vperm.xlu0 %6123, %v5919
    %v6125 = vpop.permute.xlu0 %6124
    %6127 = vset.pattern.permute.xlu0 4
    %6128 = vperm.xlu0 %6127, %v5920
    %v6129 = vpop.permute.xlu0 %6128
    %6131 = vset.pattern.permute.xlu0 4
    %6132 = vperm.xlu0 %6131, %v5921
    %v6133 = vpop.permute.xlu0 %6132
    %6135 = vset.pattern.permute.xlu0 4
    %6136 = vperm.xlu0 %6135, %v5922
    %v6137 = vpop.permute.xlu0 %6136
    %v6139 = vmul.f32 %v6117, %v5910
    %v6140 = vmul.f32 %v6121, %v5911
    %v6141 = vmul.f32 %v6125, %v5912
    %v6142 = vmul.f32 %v6129, %v5913
    %v6143 = vmul.f32 %v6133, %v5914
    %v6144 = vmul.f32 %v6137, %v5915
    %v6145 = vadd.f32 %v6109, %v6139
    %v6146 = vadd.f32 %v6110, %v6140
    %v6147 = vadd.f32 %v6111, %v6141
    %v6148 = vadd.f32 %v6112, %v6142
    %v6149 = vadd.f32 %v6113, %v6143
    %v6150 = vadd.f32 %v6114, %v6144
    %6151 = vset.pattern.permute.xlu0 5
    %6152 = vperm.xlu0 %6151, %v5917
    %v6153 = vpop.permute.xlu0 %6152
    %6155 = vset.pattern.permute.xlu0 5
    %6156 = vperm.xlu0 %6155, %v5918
    %v6157 = vpop.permute.xlu0 %6156
    %6159 = vset.pattern.permute.xlu0 5
    %6160 = vperm.xlu0 %6159, %v5919
    %v6161 = vpop.permute.xlu0 %6160
    %6163 = vset.pattern.permute.xlu0 5
    %6164 = vperm.xlu0 %6163, %v5920
    %v6165 = vpop.permute.xlu0 %6164
    %6167 = vset.pattern.permute.xlu0 5
    %6168 = vperm.xlu0 %6167, %v5921
    %v6169 = vpop.permute.xlu0 %6168
    %6171 = vset.pattern.permute.xlu0 5
    %6172 = vperm.xlu0 %6171, %v5922
    %v6173 = vpop.permute.xlu0 %6172
    %v6175 = vmul.f32 %v6153, %v5971
    %v6176 = vmul.f32 %v6157, %v5972
    %v6177 = vmul.f32 %v6161, %v5973
    %v6178 = vmul.f32 %v6165, %v5974
    %v6179 = vmul.f32 %v6169, %v5975
    %v6180 = vmul.f32 %v6173, %v5976
    %v6181 = vadd.f32 %v6145, %v6175
    %v6182 = vadd.f32 %v6146, %v6176
    %v6183 = vadd.f32 %v6147, %v6177
    %v6184 = vadd.f32 %v6148, %v6178
    %v6185 = vadd.f32 %v6149, %v6179
    %v6186 = vadd.f32 %v6150, %v6180
    %6187 = vset.pattern.permute.xlu0 6
    %6188 = vperm.xlu0 %6187, %v5917
    %v6189 = vpop.permute.xlu0 %6188
    %6191 = vset.pattern.permute.xlu0 6
    %6192 = vperm.xlu0 %6191, %v5918
    %v6193 = vpop.permute.xlu0 %6192
    %6195 = vset.pattern.permute.xlu0 6
    %6196 = vperm.xlu0 %6195, %v5919
    %v6197 = vpop.permute.xlu0 %6196
    %6199 = vset.pattern.permute.xlu0 6
    %6200 = vperm.xlu0 %6199, %v5920
    %v6201 = vpop.permute.xlu0 %6200
    %6203 = vset.pattern.permute.xlu0 6
    %6204 = vperm.xlu0 %6203, %v5921
    %v6205 = vpop.permute.xlu0 %6204
    %6207 = vset.pattern.permute.xlu0 6
    %6208 = vperm.xlu0 %6207, %v5922
    %v6209 = vpop.permute.xlu0 %6208
    %v6211 = vmul.f32 %v6189, %v5947
    %v6212 = vmul.f32 %v6193, %v5948
    %v6213 = vmul.f32 %v6197, %v5949
    %v6214 = vmul.f32 %v6201, %v5950
    %v6215 = vmul.f32 %v6205, %v5951
    %v6216 = vmul.f32 %v6209, %v5952
    %6217 = vset.pattern.permute.xlu0 7
    %6218 = vperm.xlu0 %6217, %v5917
    %v6219 = vpop.permute.xlu0 %6218
    %6221 = vset.pattern.permute.xlu0 7
    %6222 = vperm.xlu0 %6221, %v5918
    %v6223 = vpop.permute.xlu0 %6222
    %6225 = vset.pattern.permute.xlu0 7
    %6226 = vperm.xlu0 %6225, %v5919
    %v6227 = vpop.permute.xlu0 %6226
    %6229 = vset.pattern.permute.xlu0 7
    %6230 = vperm.xlu0 %6229, %v5920
    %v6231 = vpop.permute.xlu0 %6230
    %6233 = vset.pattern.permute.xlu0 7
    %6234 = vperm.xlu0 %6233, %v5921
    %v6235 = vpop.permute.xlu0 %6234
    %6237 = vset.pattern.permute.xlu0 7
    %6238 = vperm.xlu0 %6237, %v5922
    %v6239 = vpop.permute.xlu0 %6238
    %v6241 = vmul.f32 %v6219, %v5910
    %v6242 = vmul.f32 %v6223, %v5911
    %v6243 = vmul.f32 %v6227, %v5912
    %v6244 = vmul.f32 %v6231, %v5913
    %v6245 = vmul.f32 %v6235, %v5914
    %v6246 = vmul.f32 %v6239, %v5915
    %v6247 = vadd.f32 %v6211, %v6241
    %v6248 = vadd.f32 %v6212, %v6242
    %v6249 = vadd.f32 %v6213, %v6243
    %v6250 = vadd.f32 %v6214, %v6244
    %v6251 = vadd.f32 %v6215, %v6245
    %v6252 = vadd.f32 %v6216, %v6246
    %6253 = vset.pattern.permute.xlu0 8
    %6254 = vperm.xlu0 %6253, %v5917
    %v6255 = vpop.permute.xlu0 %6254
    %6257 = vset.pattern.permute.xlu0 8
    %6258 = vperm.xlu0 %6257, %v5918
    %v6259 = vpop.permute.xlu0 %6258
    %6261 = vset.pattern.permute.xlu0 8
    %6262 = vperm.xlu0 %6261, %v5919
    %v6263 = vpop.permute.xlu0 %6262
    %6265 = vset.pattern.permute.xlu0 8
    %6266 = vperm.xlu0 %6265, %v5920
    %v6267 = vpop.permute.xlu0 %6266
    %6269 = vset.pattern.permute.xlu0 8
    %6270 = vperm.xlu0 %6269, %v5921
    %v6271 = vpop.permute.xlu0 %6270
    %6273 = vset.pattern.permute.xlu0 8
    %6274 = vperm.xlu0 %6273, %v5922
    %v6275 = vpop.permute.xlu0 %6274
    %v6277 = vmul.f32 %v6255, %v5971
    %v6278 = vmul.f32 %v6259, %v5972
    %v6279 = vmul.f32 %v6263, %v5973
    %v6280 = vmul.f32 %v6267, %v5974
    %v6281 = vmul.f32 %v6271, %v5975
    %v6282 = vmul.f32 %v6275, %v5976
    %v6283 = vadd.f32 %v6247, %v6277
    %v6284 = vadd.f32 %v6248, %v6278
    %v6285 = vadd.f32 %v6249, %v6279
    %v6286 = vadd.f32 %v6250, %v6280
    %v6287 = vadd.f32 %v6251, %v6281
    %v6288 = vadd.f32 %v6252, %v6282
    %v6295 = vrot.slane %v6079, 7
    %v6296 = vrot.slane %v6080, 7
    %v6297 = vsel %vm989, %v6295, %v6296
    %v6298 = vrot.slane %v6081, 7
    %v6299 = vsel %vm989, %v6296, %v6298
    %v6300 = vrot.slane %v6082, 7
    %v6301 = vsel %vm989, %v6298, %v6300
    %v6302 = vrot.slane %v6083, 7
    %v6303 = vsel %vm989, %v6300, %v6302
    %v6304 = vrot.slane %v6084, 7
    %v6305 = vsel %vm989, %v6302, %v6304
    %v6312 = vsel %vm989, 0.0, %v6295
    %v6313 = vmul.f32 %v6312, %v172
    %v6314 = vmul.f32 %v6297, %v173
    %v6315 = vmul.f32 %v6299, %v174
    %v6316 = vmul.f32 %v6301, %v175
    %v6317 = vmul.f32 %v6303, %v176
    %v6318 = vmul.f32 %v6305, %v177
    %v6325 = vrot.slane %v6283, 1
    %v6326 = vrot.slane %v6284, 1
    %v6327 = vsel %vm1020, %v6325, %v6326
    %v6328 = vrot.slane %v6285, 1
    %v6329 = vsel %vm1020, %v6326, %v6328
    %v6330 = vrot.slane %v6286, 1
    %v6331 = vsel %vm1020, %v6328, %v6330
    %v6332 = vrot.slane %v6287, 1
    %v6333 = vsel %vm1020, %v6330, %v6332
    %v6334 = vrot.slane %v6288, 1
    %v6335 = vsel %vm1020, %v6332, %v6334
    %v6342 = vsel %vm1020, %v6334, 0.0
    %v6343 = vmul.f32 %v6327, %v190
    %v6344 = vmul.f32 %v6329, %v191
    %v6345 = vmul.f32 %v6331, %v192
    %v6346 = vmul.f32 %v6333, %v193
    %v6347 = vmul.f32 %v6335, %v194
    %v6348 = vmul.f32 %v6342, %v195
    %6349 = vset.pattern.permute.xlu0 9
    %6350 = vperm.xlu0 %6349, %v5917
    %v6351 = vpop.permute.xlu0 %6350
    %6353 = vset.pattern.permute.xlu0 9
    %6354 = vperm.xlu0 %6353, %v5918
    %v6355 = vpop.permute.xlu0 %6354
    %6357 = vset.pattern.permute.xlu0 9
    %6358 = vperm.xlu0 %6357, %v5919
    %v6359 = vpop.permute.xlu0 %6358
    %6361 = vset.pattern.permute.xlu0 9
    %6362 = vperm.xlu0 %6361, %v5920
    %v6363 = vpop.permute.xlu0 %6362
    %6365 = vset.pattern.permute.xlu0 9
    %6366 = vperm.xlu0 %6365, %v5921
    %v6367 = vpop.permute.xlu0 %6366
    %6369 = vset.pattern.permute.xlu0 9
    %6370 = vperm.xlu0 %6369, %v5922
    %v6371 = vpop.permute.xlu0 %6370
    %v6373 = vadd.f32 %v6351, %v6181
    %v6374 = vadd.f32 %v6355, %v6182
    %v6375 = vadd.f32 %v6359, %v6183
    %v6376 = vadd.f32 %v6363, %v6184
    %v6377 = vadd.f32 %v6367, %v6185
    %v6378 = vadd.f32 %v6371, %v6186
    %v6379 = vadd.f32 %v6373, %v6313
    %v6380 = vadd.f32 %v6374, %v6314
    %v6381 = vadd.f32 %v6375, %v6315
    %v6382 = vadd.f32 %v6376, %v6316
    %v6383 = vadd.f32 %v6377, %v6317
    %v6384 = vadd.f32 %v6378, %v6318
    %v6385 = vadd.f32 %v6379, %v6343
    %v6386 = vadd.f32 %v6380, %v6344
    %v6387 = vadd.f32 %v6381, %v6345
    %v6388 = vadd.f32 %v6382, %v6346
    %v6389 = vadd.f32 %v6383, %v6347
    %v6390 = vadd.f32 %v6384, %v6348
    %v6391 = vmax.f32 %v6385, 0.0
    %v6392 = vmax.f32 %v6386, 0.0
    %v6393 = vmax.f32 %v6387, 0.0
    %v6394 = vmax.f32 %v6388, 0.0
    %v6395 = vmax.f32 %v6389, 0.0
    %v6396 = vmax.f32 %v6390, 0.0
    %v6397 = vsel %vm1573, %v6391, 0.0
    %6398 = vadd.xlane.f32.xlu0 %v6397
    %v6399 = vpop.xlane.xlu0 %6398
    %v6400 = vsel %vm1573, %v6392, 0.0
    %6401 = vadd.xlane.f32.xlu0 %v6400
    %v6402 = vpop.xlane.xlu0 %6401
    %v6403 = vsel %vm1573, %v6393, 0.0
    %6404 = vadd.xlane.f32.xlu0 %v6403
    %v6405 = vpop.xlane.xlu0 %6404
    %v6406 = vsel %vm1573, %v6394, 0.0
    %6407 = vadd.xlane.f32.xlu0 %v6406
    %v6408 = vpop.xlane.xlu0 %6407
    %v6409 = vsel %vm1573, %v6395, 0.0
    %6410 = vadd.xlane.f32.xlu0 %v6409
    %v6411 = vpop.xlane.xlu0 %6410
    %v6412 = vsel %vm1573, %v6396, 0.0
    %6413 = vadd.xlane.f32.xlu0 %v6412
    %v6414 = vpop.xlane.xlu0 %6413
    %v6415 = vmul.f32 %v6399, %v1592
    %v6416 = vmul.f32 %v6402, %v1592
    %v6417 = vmul.f32 %v6405, %v1592
    %v6418 = vmul.f32 %v6408, %v1592
    %v6419 = vmul.f32 %v6411, %v1592
    %v6420 = vmul.f32 %v6414, %v1592
    %s6421 = scalar_lea.vmem %s14, 96
    %v6422 = vld [vmem:[%s6421] sm:$0xff]
    %v6423 = vld [vmem:[%s6421 + $0x8] sm:$0xff]
    %v6424 = vld [vmem:[%s6421 + $0x10] sm:$0xff]
    %v6425 = vld [vmem:[%s6421 + $0x18] sm:$0xff]
    %v6426 = vld [vmem:[%s6421 + $0x20] sm:$0xff]
    %v6427 = vld [vmem:[%s6421 + $0x28] sm:$0xff]
    %s6428 = scalar_lea.vmem %s15, 96
    %v6429 = vld [vmem:[%s6428] sm:$0xff]
    %v6430 = vld [vmem:[%s6428 + $0x8] sm:$0xff]
    %v6431 = vld [vmem:[%s6428 + $0x10] sm:$0xff]
    %v6432 = vld [vmem:[%s6428 + $0x18] sm:$0xff]
    %v6433 = vld [vmem:[%s6428 + $0x20] sm:$0xff]
    %v6434 = vld [vmem:[%s6428 + $0x28] sm:$0xff]
    %6436 = vset.pattern.permute.xlu0 0
    %6437 = vperm.xlu0 %6436, %v6429
    %v6438 = vpop.permute.xlu0 %6437
    %6441 = vset.pattern.permute.xlu0 0
    %6442 = vperm.xlu0 %6441, %v6430
    %v6443 = vpop.permute.xlu0 %6442
    %6446 = vset.pattern.permute.xlu0 0
    %6447 = vperm.xlu0 %6446, %v6431
    %v6448 = vpop.permute.xlu0 %6447
    %6451 = vset.pattern.permute.xlu0 0
    %6452 = vperm.xlu0 %6451, %v6432
    %v6453 = vpop.permute.xlu0 %6452
    %6456 = vset.pattern.permute.xlu0 0
    %6457 = vperm.xlu0 %6456, %v6433
    %v6458 = vpop.permute.xlu0 %6457
    %6461 = vset.pattern.permute.xlu0 0
    %6462 = vperm.xlu0 %6461, %v6434
    %v6463 = vpop.permute.xlu0 %6462
    %v6466 = vsel %vm79, %v6422, 0
    %v6469 = vsel %vm79, %v6423, 0
    %v6472 = vsel %vm79, %v6424, 0
    %v6475 = vsel %vm79, %v6425, 0
    %v6478 = vsel %vm79, %v6426, 0
    %v6481 = vsel %vm79, %v6427, 0
    %6483 = vmatprep.subr.mxu0 0.0
    %6484 = vmatpush1.msra.mxu0 %v6415
    %6485 = vmatprep.subr.mxu0 0.0
    %6486 = vmatpush1.msra.mxu0 %v6416
    %6487 = vmatprep.subr.mxu0 0.0
    %6488 = vmatpush1.msra.mxu0 %v6417
    %6489 = vmatprep.subr.mxu0 0.0
    %6490 = vmatpush1.msra.mxu0 %v6418
    %6491 = vmatprep.subr.mxu0 0.0
    %6492 = vmatpush1.msra.mxu0 %v6419
    %6493 = vmatprep.subr.mxu0 0.0
    %6494 = vmatpush1.msra.mxu0 %v6420
    %6495 = vmatprep.subr.mxu0 0.0
    %6496 = vmatpush1.msra.mxu0 0.0
    %6497 = vmatprep.subr.mxu0 0.0
    %6498 = vmatpush1.msra.mxu0 0.0
    %6499 = vmatprep.subr.mxu0 0.0
    %6500 = vmatpush1.msra.mxu0 0.0
    %6501 = vmatprep.subr.mxu0 0.0
    %6502 = vmatpush1.msra.mxu0 0.0
    %6503 = vmatprep.subr.mxu0 0.0
    %6504 = vmatpush1.msra.mxu0 0.0
    %6505 = vmatprep.subr.mxu0 0.0
    %6506 = vmatpush1.msra.mxu0 0.0
    %6507 = vmatprep.subr.mxu0 0.0
    %6508 = vmatpush1.msra.mxu0 0.0
    %6509 = vmatprep.subr.mxu0 0.0
    %6510 = vmatpush1.msra.mxu0 0.0
    %6511 = vmatprep.subr.mxu0 0.0
    %6512 = vmatpush1.msra.mxu0 0.0
    %6513 = vmatprep.subr.mxu0 0.0
    %6514 = vmatpush1.msra.mxu0 0.0
    %6515 = vmatprep.subr.mxu0 0.0
    %6516 = vmatpush1.msra.mxu0 0.0
    %6517 = vmatprep.subr.mxu0 0.0
    %6518 = vmatpush1.msra.mxu0 0.0
    %6519 = vmatprep.subr.mxu0 0.0
    %6520 = vmatpush1.msra.mxu0 0.0
    %6521 = vmatprep.subr.mxu0 0.0
    %6522 = vmatpush1.msra.mxu0 0.0
    %6523 = vmatprep.subr.mxu0 0.0
    %6524 = vmatpush1.msra.mxu0 0.0
    %6525 = vmatprep.subr.mxu0 0.0
    %6526 = vmatpush1.msra.mxu0 0.0
    %6527 = vmatprep.subr.mxu0 0.0
    %6528 = vmatpush1.msra.mxu0 0.0
    %6529 = vmatprep.subr.mxu0 0.0
    %6530 = vmatpush1.msra.mxu0 0.0
    %6531 = vmatprep.subr.mxu0 0.0
    %6532 = vmatpush1.msra.mxu0 0.0
    %6533 = vmatprep.subr.mxu0 0.0
    %6534 = vmatpush1.msra.mxu0 0.0
    %6535 = vmatprep.subr.mxu0 0.0
    %6536 = vmatpush1.msra.mxu0 0.0
    %6537 = vmatprep.subr.mxu0 0.0
    %6538 = vmatpush1.msra.mxu0 0.0
    %6539 = vmatprep.subr.mxu0 0.0
    %6540 = vmatpush1.msra.mxu0 0.0
    %6541 = vmatprep.subr.mxu0 0.0
    %6542 = vmatpush1.msra.mxu0 0.0
    %6543 = vmatprep.subr.mxu0 0.0
    %6544 = vmatpush1.msra.mxu0 0.0
    %6545 = vmatprep.subr.mxu0 0.0
    %6546 = vmatpush1.msra.mxu0 0.0
    %6547 = vmatprep.mubr.f32.mxu0 0.0
    %6548 = vmatmul.mubr.f32.gmra.mrb[0].mxu0 %v6466
    %v6549 = vpop.f32.mrb[0].mxu0
    %v6550 = vadd.f32 %v6438, %v6549
    %v6551 = vpop.f32.mrb[0].mxu0
    %6552 = vmatprep.mubr.f32.mxu0 0.0
    %6553 = vmatmul.mubr.f32.gmra.mrb[0].mxu0 %v6469
    %v6554 = vpop.f32.mrb[0].mxu0
    %v6555 = vadd.f32 %v6443, %v6554
    %v6556 = vpop.f32.mrb[0].mxu0
    %6557 = vmatprep.mubr.f32.mxu0 0.0
    %6558 = vmatmul.mubr.f32.gmra.mrb[0].mxu0 %v6472
    %v6559 = vpop.f32.mrb[0].mxu0
    %v6560 = vadd.f32 %v6448, %v6559
    %v6561 = vpop.f32.mrb[0].mxu0
    %6562 = vmatprep.mubr.f32.mxu0 0.0
    %6563 = vmatmul.mubr.f32.gmra.mrb[0].mxu0 %v6475
    %v6564 = vpop.f32.mrb[0].mxu0
    %v6565 = vadd.f32 %v6453, %v6564
    %v6566 = vpop.f32.mrb[0].mxu0
    %6567 = vmatprep.mubr.f32.mxu0 0.0
    %6568 = vmatmul.mubr.f32.gmra.mrb[0].mxu0 %v6478
    %v6569 = vpop.f32.mrb[0].mxu0
    %v6570 = vadd.f32 %v6458, %v6569
    %v6571 = vpop.f32.mrb[0].mxu0
    %6572 = vmatprep.mubr.f32.mxu0 0.0
    %6573 = vmatmul.mubr.f32.gmra.mrb[0].mxu0 %v6481
    %v6574 = vpop.f32.mrb[0].mxu0
    %v6575 = vadd.f32 %v6463, %v6574
    %v6576 = vpop.f32.mrb[0].mxu0
    %6577 = vdwg.mxu0
    %v6578 = vmax.f32 %v6550, 0.0
    %v6579 = vmax.f32 %v6555, 0.0
    %v6580 = vmax.f32 %v6560, 0.0
    %v6581 = vmax.f32 %v6565, 0.0
    %v6582 = vmax.f32 %v6570, 0.0
    %v6583 = vmax.f32 %v6575, 0.0
    %s6584 = scalar_lea.vmem %s16, 96
    %v6585 = vld [vmem:[%s6584] sm:$0xff]
    %v6586 = vld [vmem:[%s6584 + $0x8] sm:$0xff]
    %v6587 = vld [vmem:[%s6584 + $0x10] sm:$0xff]
    %v6588 = vld [vmem:[%s6584 + $0x18] sm:$0xff]
    %v6589 = vld [vmem:[%s6584 + $0x20] sm:$0xff]
    %v6590 = vld [vmem:[%s6584 + $0x28] sm:$0xff]
    %s6591 = scalar_lea.vmem %s17, 96
    %v6592 = vld [vmem:[%s6591] sm:$0xff]
    %v6593 = vld [vmem:[%s6591 + $0x8] sm:$0xff]
    %v6594 = vld [vmem:[%s6591 + $0x10] sm:$0xff]
    %v6595 = vld [vmem:[%s6591 + $0x18] sm:$0xff]
    %v6596 = vld [vmem:[%s6591 + $0x20] sm:$0xff]
    %v6597 = vld [vmem:[%s6591 + $0x28] sm:$0xff]
    %6599 = vset.pattern.permute.xlu0 0
    %6600 = vperm.xlu0 %6599, %v6592
    %v6601 = vpop.permute.xlu0 %6600
    %6604 = vset.pattern.permute.xlu0 0
    %6605 = vperm.xlu0 %6604, %v6593
    %v6606 = vpop.permute.xlu0 %6605
    %6609 = vset.pattern.permute.xlu0 0
    %6610 = vperm.xlu0 %6609, %v6594
    %v6611 = vpop.permute.xlu0 %6610
    %6614 = vset.pattern.permute.xlu0 0
    %6615 = vperm.xlu0 %6614, %v6595
    %v6616 = vpop.permute.xlu0 %6615
    %6619 = vset.pattern.permute.xlu0 0
    %6620 = vperm.xlu0 %6619, %v6596
    %v6621 = vpop.permute.xlu0 %6620
    %6624 = vset.pattern.permute.xlu0 0
    %6625 = vperm.xlu0 %6624, %v6597
    %v6626 = vpop.permute.xlu0 %6625
    %v6629 = vsel %vm79, %v6585, 0
    %v6632 = vsel %vm79, %v6586, 0
    %v6635 = vsel %vm79, %v6587, 0
    %v6638 = vsel %vm79, %v6588, 0
    %v6641 = vsel %vm79, %v6589, 0
    %v6644 = vsel %vm79, %v6590, 0
    %6646 = vmatprep.subr.mxu0 0.0
    %6647 = vmatpush1.msra.mxu0 %v6578
    %6648 = vmatprep.subr.mxu0 0.0
    %6649 = vmatpush1.msra.mxu0 %v6579
    %6650 = vmatprep.subr.mxu0 0.0
    %6651 = vmatpush1.msra.mxu0 %v6580
    %6652 = vmatprep.subr.mxu0 0.0
    %6653 = vmatpush1.msra.mxu0 %v6581
    %6654 = vmatprep.subr.mxu0 0.0
    %6655 = vmatpush1.msra.mxu0 %v6582
    %6656 = vmatprep.subr.mxu0 0.0
    %6657 = vmatpush1.msra.mxu0 %v6583
    %6658 = vmatprep.subr.mxu0 0.0
    %6659 = vmatpush1.msra.mxu0 0.0
    %6660 = vmatprep.subr.mxu0 0.0
    %6661 = vmatpush1.msra.mxu0 0.0
    %6662 = vmatprep.subr.mxu0 0.0
    %6663 = vmatpush1.msra.mxu0 0.0
    %6664 = vmatprep.subr.mxu0 0.0
    %6665 = vmatpush1.msra.mxu0 0.0
    %6666 = vmatprep.subr.mxu0 0.0
    %6667 = vmatpush1.msra.mxu0 0.0
    %6668 = vmatprep.subr.mxu0 0.0
    %6669 = vmatpush1.msra.mxu0 0.0
    %6670 = vmatprep.subr.mxu0 0.0
    %6671 = vmatpush1.msra.mxu0 0.0
    %6672 = vmatprep.subr.mxu0 0.0
    %6673 = vmatpush1.msra.mxu0 0.0
    %6674 = vmatprep.subr.mxu0 0.0
    %6675 = vmatpush1.msra.mxu0 0.0
    %6676 = vmatprep.subr.mxu0 0.0
    %6677 = vmatpush1.msra.mxu0 0.0
    %6678 = vmatprep.subr.mxu0 0.0
    %6679 = vmatpush1.msra.mxu0 0.0
    %6680 = vmatprep.subr.mxu0 0.0
    %6681 = vmatpush1.msra.mxu0 0.0
    %6682 = vmatprep.subr.mxu0 0.0
    %6683 = vmatpush1.msra.mxu0 0.0
    %6684 = vmatprep.subr.mxu0 0.0
    %6685 = vmatpush1.msra.mxu0 0.0
    %6686 = vmatprep.subr.mxu0 0.0
    %6687 = vmatpush1.msra.mxu0 0.0
    %6688 = vmatprep.subr.mxu0 0.0
    %6689 = vmatpush1.msra.mxu0 0.0
    %6690 = vmatprep.subr.mxu0 0.0
    %6691 = vmatpush1.msra.mxu0 0.0
    %6692 = vmatprep.subr.mxu0 0.0
    %6693 = vmatpush1.msra.mxu0 0.0
    %6694 = vmatprep.subr.mxu0 0.0
    %6695 = vmatpush1.msra.mxu0 0.0
    %6696 = vmatprep.subr.mxu0 0.0
    %6697 = vmatpush1.msra.mxu0 0.0
    %6698 = vmatprep.subr.mxu0 0.0
    %6699 = vmatpush1.msra.mxu0 0.0
    %6700 = vmatprep.subr.mxu0 0.0
    %6701 = vmatpush1.msra.mxu0 0.0
    %6702 = vmatprep.subr.mxu0 0.0
    %6703 = vmatpush1.msra.mxu0 0.0
    %6704 = vmatprep.subr.mxu0 0.0
    %6705 = vmatpush1.msra.mxu0 0.0
    %6706 = vmatprep.subr.mxu0 0.0
    %6707 = vmatpush1.msra.mxu0 0.0
    %6708 = vmatprep.subr.mxu0 0.0
    %6709 = vmatpush1.msra.mxu0 0.0
    %6710 = vmatprep.mubr.f32.mxu0 0.0
    %6711 = vmatmul.mubr.f32.gmra.mrb[0].mxu0 %v6629
    %v6712 = vpop.f32.mrb[0].mxu0
    %v6713 = vadd.f32 %v6601, %v6712
    %v6714 = vpop.f32.mrb[0].mxu0
    %6715 = vmatprep.mubr.f32.mxu0 0.0
    %6716 = vmatmul.mubr.f32.gmra.mrb[0].mxu0 %v6632
    %v6717 = vpop.f32.mrb[0].mxu0
    %v6718 = vadd.f32 %v6606, %v6717
    %v6719 = vpop.f32.mrb[0].mxu0
    %6720 = vmatprep.mubr.f32.mxu0 0.0
    %6721 = vmatmul.mubr.f32.gmra.mrb[0].mxu0 %v6635
    %v6722 = vpop.f32.mrb[0].mxu0
    %v6723 = vadd.f32 %v6611, %v6722
    %v6724 = vpop.f32.mrb[0].mxu0
    %6725 = vmatprep.mubr.f32.mxu0 0.0
    %6726 = vmatmul.mubr.f32.gmra.mrb[0].mxu0 %v6638
    %v6727 = vpop.f32.mrb[0].mxu0
    %v6728 = vadd.f32 %v6616, %v6727
    %v6729 = vpop.f32.mrb[0].mxu0
    %6730 = vmatprep.mubr.f32.mxu0 0.0
    %6731 = vmatmul.mubr.f32.gmra.mrb[0].mxu0 %v6641
    %v6732 = vpop.f32.mrb[0].mxu0
    %v6733 = vadd.f32 %v6621, %v6732
    %v6734 = vpop.f32.mrb[0].mxu0
    %6735 = vmatprep.mubr.f32.mxu0 0.0
    %6736 = vmatmul.mubr.f32.gmra.mrb[0].mxu0 %v6644
    %v6737 = vpop.f32.mrb[0].mxu0
    %v6738 = vadd.f32 %v6626, %v6737
    %v6739 = vpop.f32.mrb[0].mxu0
    %6740 = vdwg.mxu0
    %v6741 = vxor.u32 %v6713, 2147483648
    %v6742 = vxor.u32 %v6718, 2147483648
    %v6743 = vxor.u32 %v6723, 2147483648
    %v6744 = vxor.u32 %v6728, 2147483648
    %v6745 = vxor.u32 %v6733, 2147483648
    %v6746 = vxor.u32 %v6738, 2147483648
    %v6747 = vmul.f32 %v6741, 1.442695
    %v6748 = vpow.pop %v6747
    %v6749 = vmul.f32 %v6742, 1.442695
    %v6750 = vpow.pop %v6749
    %v6751 = vmul.f32 %v6743, 1.442695
    %v6752 = vpow.pop %v6751
    %v6753 = vmul.f32 %v6744, 1.442695
    %v6754 = vpow.pop %v6753
    %v6755 = vmul.f32 %v6745, 1.442695
    %v6756 = vpow.pop %v6755
    %v6757 = vmul.f32 %v6746, 1.442695
    %v6758 = vpow.pop %v6757
    %v6759 = vadd.f32 %v6748, 1.0
    %v6760 = vadd.f32 %v6750, 1.0
    %v6761 = vadd.f32 %v6752, 1.0
    %v6762 = vadd.f32 %v6754, 1.0
    %v6763 = vadd.f32 %v6756, 1.0
    %v6764 = vadd.f32 %v6758, 1.0
    %v6765 = vrcp.pop %v6759
    %v6766 = vmul.f32 1.0, %v6765
    %v6767 = vrcp.pop %v6760
    %v6768 = vmul.f32 1.0, %v6767
    %v6769 = vrcp.pop %v6761
    %v6770 = vmul.f32 1.0, %v6769
    %v6771 = vrcp.pop %v6762
    %v6772 = vmul.f32 1.0, %v6771
    %v6773 = vrcp.pop %v6763
    %v6774 = vmul.f32 1.0, %v6773
    %v6775 = vrcp.pop %v6764
    %v6776 = vmul.f32 1.0, %v6775
    %v6777 = vmul.f32 %v6391, %v6766
    %v6778 = vmul.f32 %v6392, %v6768
    %v6779 = vmul.f32 %v6393, %v6770
    %v6780 = vmul.f32 %v6394, %v6772
    %v6781 = vmul.f32 %v6395, %v6774
    %v6782 = vmul.f32 %v6396, %v6776
    %v6783 = vsel %vm1573, %v6777, -inf
    %6784 = vmax.xlane.f32.xlu0 %v6783
    %v6785 = vpop.xlane.xlu0 %6784
    %v6786 = vsel %vm1573, %v6778, -inf
    %6787 = vmax.xlane.f32.xlu0 %v6786
    %v6788 = vpop.xlane.xlu0 %6787
    %v6789 = vsel %vm1573, %v6779, -inf
    %6790 = vmax.xlane.f32.xlu0 %v6789
    %v6791 = vpop.xlane.xlu0 %6790
    %v6792 = vsel %vm1573, %v6780, -inf
    %6793 = vmax.xlane.f32.xlu0 %v6792
    %v6794 = vpop.xlane.xlu0 %6793
    %v6795 = vsel %vm1573, %v6781, -inf
    %6796 = vmax.xlane.f32.xlu0 %v6795
    %v6797 = vpop.xlane.xlu0 %6796
    %v6798 = vsel %vm1573, %v6782, -inf
    %6799 = vmax.xlane.f32.xlu0 %v6798
    %v6800 = vpop.xlane.xlu0 %6799
    %v6801 = vsub.f32 %v6777, %v6785
    %v6802 = vsub.f32 %v6778, %v6788
    %v6803 = vsub.f32 %v6779, %v6791
    %v6804 = vsub.f32 %v6780, %v6794
    %v6805 = vsub.f32 %v6781, %v6797
    %v6806 = vsub.f32 %v6782, %v6800
    %v6807 = vmul.f32 %v6801, 1.442695
    %v6808 = vpow.pop %v6807
    %v6809 = vmul.f32 %v6802, 1.442695
    %v6810 = vpow.pop %v6809
    %v6811 = vmul.f32 %v6803, 1.442695
    %v6812 = vpow.pop %v6811
    %v6813 = vmul.f32 %v6804, 1.442695
    %v6814 = vpow.pop %v6813
    %v6815 = vmul.f32 %v6805, 1.442695
    %v6816 = vpow.pop %v6815
    %v6817 = vmul.f32 %v6806, 1.442695
    %v6818 = vpow.pop %v6817
    %v6819 = vsel %vm1573, %v6808, 0.0
    %6820 = vadd.xlane.f32.xlu0 %v6819
    %v6821 = vpop.xlane.xlu0 %6820
    %v6822 = vsel %vm1573, %v6810, 0.0
    %6823 = vadd.xlane.f32.xlu0 %v6822
    %v6824 = vpop.xlane.xlu0 %6823
    %v6825 = vsel %vm1573, %v6812, 0.0
    %6826 = vadd.xlane.f32.xlu0 %v6825
    %v6827 = vpop.xlane.xlu0 %6826
    %v6828 = vsel %vm1573, %v6814, 0.0
    %6829 = vadd.xlane.f32.xlu0 %v6828
    %v6830 = vpop.xlane.xlu0 %6829
    %v6831 = vsel %vm1573, %v6816, 0.0
    %6832 = vadd.xlane.f32.xlu0 %v6831
    %v6833 = vpop.xlane.xlu0 %6832
    %v6834 = vsel %vm1573, %v6818, 0.0
    %6835 = vadd.xlane.f32.xlu0 %v6834
    %v6836 = vpop.xlane.xlu0 %6835
    %v6837 = vrcp.pop %v6821
    %v6838 = vrcp.pop %v6824
    %v6839 = vrcp.pop %v6827
    %v6840 = vrcp.pop %v6830
    %v6841 = vrcp.pop %v6833
    %v6842 = vrcp.pop %v6836
    %v6843 = vmul.f32 %v6808, %v6837
    %v6844 = vmul.f32 %v6810, %v6838
    %v6845 = vmul.f32 %v6812, %v6839
    %v6846 = vmul.f32 %v6814, %v6840
    %v6847 = vmul.f32 %v6816, %v6841
    %v6848 = vmul.f32 %v6818, %v6842
    %v6849 = vpack.c.bf16 %v6843, %v6843
    %6850 = vst.msk [vmem:[#allocation4] sm:$0xf] %vm2024, %v6849
    %v6851 = vpack.c.bf16 %v6844, %v6844
    %6853 = vrot.lane.b32.xlu0 %v6851, 16
    %v6854 = vpop.permute.xlu0 %6853
    %6856 = vst.msk [vmem:[#allocation4] sm:$0xf] %vm2031, %v6854
    %v6857 = vpack.c.bf16 %v6845, %v6845
    %6859 = vrot.lane.b32.xlu0 %v6857, 32
    %v6860 = vpop.permute.xlu0 %6859
    %6862 = vst.msk [vmem:[#allocation4] sm:$0xf] %vm2038, %v6860
    %v6863 = vpack.c.bf16 %v6846, %v6846
    %v6865 = vrot.slane %v6863, 4
    %6866 = vrot.lane.b32.xlu0 %v6865, 8
    %v6867 = vpop.permute.xlu0 %6866
    %6869 = vst.msk [vmem:[#allocation4] sm:$0xf0] %vm2046, %v6867
    %v6870 = vpack.c.bf16 %v6847, %v6847
    %v6872 = vrot.slane %v6870, 4
    %6873 = vrot.lane.b32.xlu0 %v6872, 24
    %v6874 = vpop.permute.xlu0 %6873
    %6876 = vst.msk [vmem:[#allocation4] sm:$0xf0] %vm2054, %v6874
    %v6877 = vpack.c.bf16 %v6848, %v6848
    %v6879 = vrot.slane %v6877, 4
    %6880 = vrot.lane.b32.xlu0 %v6879, 40
    %v6881 = vpop.permute.xlu0 %6880
    %6883 = vst.msk [vmem:[#allocation4] sm:$0xf0] %vm2062, %v6881
    %v6884 = vld [vmem:[#allocation4] sm:$0xff]
    %v6885 = vld [vmem:[#allocation3] sm:$0xff]
    %v6886 = vld [vmem:[#allocation3 + $0x8] sm:$0xff]
    %v6887 = vld [vmem:[#allocation3 + $0x10] sm:$0xff]
    %v6888 = vld [vmem:[#allocation3 + $0x18] sm:$0xff]
    %v6889 = vld [vmem:[#allocation3 + $0x20] sm:$0xff]
    %v6890 = vld [vmem:[#allocation3 + $0x28] sm:$0xff]
    %v6892 = vsel %vm79, %v6884, 0
    %6894 = vmatprep.subr.bf16.mxu0 %v6886
    %6895 = vmatpush1.bf16.msra.mxu0 %v6885
    %6896 = vmatprep.subr.bf16.mxu0 %v6888
    %6897 = vmatpush1.bf16.msra.mxu0 %v6887
    %6898 = vmatprep.subr.bf16.mxu0 %v6890
    %6899 = vmatpush1.bf16.msra.mxu0 %v6889
    %6900 = vmatprep.subr.bf16.mxu0 0
    %6901 = vmatpush1.bf16.msra.mxu0 0
    %6902 = vmatprep.subr.bf16.mxu0 0
    %6903 = vmatpush1.bf16.msra.mxu0 0
    %6904 = vmatprep.subr.bf16.mxu0 0
    %6905 = vmatpush1.bf16.msra.mxu0 0
    %6906 = vmatprep.subr.bf16.mxu0 0
    %6907 = vmatpush1.bf16.msra.mxu0 0
    %6908 = vmatprep.subr.bf16.mxu0 0
    %6909 = vmatpush1.bf16.msra.mxu0 0
    %6910 = vmatprep.subr.bf16.mxu0 0
    %6911 = vmatpush1.bf16.msra.mxu0 0
    %6912 = vmatprep.subr.bf16.mxu0 0
    %6913 = vmatpush1.bf16.msra.mxu0 0
    %6914 = vmatprep.subr.bf16.mxu0 0
    %6915 = vmatpush1.bf16.msra.mxu0 0
    %6916 = vmatprep.subr.bf16.mxu0 0
    %6917 = vmatpush1.bf16.msra.mxu0 0
    %6918 = vmatprep.subr.bf16.mxu0 0
    %6919 = vmatpush1.bf16.msra.mxu0 0
    %6920 = vmatprep.subr.bf16.mxu0 0
    %6921 = vmatpush1.bf16.msra.mxu0 0
    %6922 = vmatprep.subr.bf16.mxu0 0
    %6923 = vmatpush1.bf16.msra.mxu0 0
    %6924 = vmatprep.subr.bf16.mxu0 0
    %6925 = vmatpush1.bf16.msra.mxu0 0
    %6926 = vmatprep.mubr.bf16.mxu0 0
    %6927 = vmatmul.mubr.bf16.gmra.mrb[0].mxu0 %v6892
    %v6928 = vpop.f32.mrb[0].mxu0
    %v6929 = vadd.f32 0.0, %v6928
    %v6930 = vpop.f32.mrb[0].mxu0
    %v6931 = vadd.f32 0.0, %v6930
    %v6932 = vpop.f32.mrb[0].mxu0
    %v6933 = vadd.f32 0.0, %v6932
    %v6934 = vpop.f32.mrb[0].mxu0
    %v6935 = vadd.f32 0.0, %v6934
    %6936 = vdwg.mxu0
    %v6937 = vpack.c.bf16 %v6933, %v6929
    %v6938 = vpack.c.bf16 %v6935, %v6931
    %s6939 = scalar_lea.vmem %s4, 192
    %v6940 = vld [vmem:[%s6939] sm:$0xf]
    %v6941 = vld [vmem:[%s6939 + $0x4] sm:$0xf]
    %v6942 = vld [vmem:[%s6939 + $0x8] sm:$0xf]
    %v6943 = vld [vmem:[%s6939 + $0xc] sm:$0xf]
    %v6944 = vld [vmem:[%s6939 + $0x10] sm:$0xf]
    %v6945 = vld [vmem:[%s6939 + $0x14] sm:$0xf]
    %v6946 = vld [vmem:[%s6939 + $0x18] sm:$0xf]
    %v6947 = vld [vmem:[%s6939 + $0x1c] sm:$0xf]
    %v6948 = vld [vmem:[%s6939 + $0x20] sm:$0xf]
    %v6949 = vld [vmem:[%s6939 + $0x24] sm:$0xf]
    %v6950 = vld [vmem:[%s6939 + $0x28] sm:$0xf]
    %v6951 = vld [vmem:[%s6939 + $0x2c] sm:$0xf]
    %v6952 = vld [vmem:[%s6939 + $0x30] sm:$0xf]
    %v6953 = vld [vmem:[%s6939 + $0x34] sm:$0xf]
    %v6954 = vld [vmem:[%s6939 + $0x38] sm:$0xf]
    %v6955 = vld [vmem:[%s6939 + $0x3c] sm:$0xf]
    %v6956 = vld [vmem:[%s6939 + $0x40] sm:$0xf]
    %v6957 = vld [vmem:[%s6939 + $0x44] sm:$0xf]
    %v6958 = vld [vmem:[%s6939 + $0x48] sm:$0xf]
    %v6959 = vld [vmem:[%s6939 + $0x4c] sm:$0xf]
    %v6960 = vld [vmem:[%s6939 + $0x50] sm:$0xf]
    %v6961 = vld [vmem:[%s6939 + $0x54] sm:$0xf]
    %v6962 = vld [vmem:[%s6939 + $0x58] sm:$0xf]
    %v6963 = vld [vmem:[%s6939 + $0x5c] sm:$0xf]
    %s6964 = scalar_lea.vmem %s5, 2
    %v6965 = vld [vmem:[%s6964] sm:$0x1]
    %v6967 = vlaneseq
    %v6968 = vshrl.u32 %v6967, 7
    %v6969 = vsub.s32 0, %v6968
    %v6970 = vrot.slane %v6965, %v6969
    %v6996 = vunpack.c.l.b16 %v6940
    %v6997 = vunpack.c.l.b16 %v6941
    %v6998 = vunpack.c.l.b16 %v6942
    %v6999 = vunpack.c.l.b16 %v6943
    %v7000 = vunpack.c.l.b16 %v6944
    %v7001 = vunpack.c.l.b16 %v6945
    %v7002 = vunpack.c.l.b16 %v6946
    %v7003 = vunpack.c.l.b16 %v6947
    %v7004 = vunpack.c.l.b16 %v6948
    %v7005 = vunpack.c.l.b16 %v6949
    %v7006 = vunpack.c.l.b16 %v6950
    %v7007 = vunpack.c.l.b16 %v6951
    %v7008 = vunpack.c.l.b16 %v6952
    %v7009 = vunpack.c.l.b16 %v6953
    %v7010 = vunpack.c.l.b16 %v6954
    %v7011 = vunpack.c.l.b16 %v6955
    %v7012 = vunpack.c.l.b16 %v6956
    %v7013 = vunpack.c.l.b16 %v6957
    %v7014 = vunpack.c.l.b16 %v6958
    %v7015 = vunpack.c.l.b16 %v6959
    %v7016 = vunpack.c.l.b16 %v6960
    %v7017 = vunpack.c.l.b16 %v6961
    %v7018 = vunpack.c.l.b16 %v6962
    %v7019 = vunpack.c.l.b16 %v6963
    %v7020 = vpack.c.b16 %v6997, %v6996
    %v7021 = vpack.c.b16 %v6999, %v6998
    %v7022 = vpack.c.b16 %v7001, %v7000
    %v7023 = vpack.c.b16 %v7003, %v7002
    %v7024 = vpack.c.b16 %v7005, %v7004
    %v7025 = vpack.c.b16 %v7007, %v7006
    %v7026 = vpack.c.b16 %v7009, %v7008
    %v7027 = vpack.c.b16 %v7011, %v7010
    %v7028 = vpack.c.b16 %v7013, %v7012
    %v7029 = vpack.c.b16 %v7015, %v7014
    %v7030 = vpack.c.b16 %v7017, %v7016
    %v7031 = vpack.c.b16 %v7019, %v7018
    %v7045 = vsel %vm73, %v6938, 0
    %7047 = vmatprep.subr.bf16.mxu0 0
    %7048 = vmatpush1.bf16.msra.mxu0 %v7020
    %7049 = vmatprep.subr.bf16.mxu0 0
    %7050 = vmatpush1.bf16.msra.mxu0 %v7021
    %7051 = vmatprep.subr.bf16.mxu0 0
    %7052 = vmatpush1.bf16.msra.mxu0 %v7022
    %7053 = vmatprep.subr.bf16.mxu0 0
    %7054 = vmatpush1.bf16.msra.mxu0 %v7023
    %7055 = vmatprep.subr.bf16.mxu0 0
    %7056 = vmatpush1.bf16.msra.mxu0 %v7024
    %7057 = vmatprep.subr.bf16.mxu0 0
    %7058 = vmatpush1.bf16.msra.mxu0 %v7025
    %7059 = vmatprep.subr.bf16.mxu0 0
    %7060 = vmatpush1.bf16.msra.mxu0 %v7026
    %7061 = vmatprep.subr.bf16.mxu0 0
    %7062 = vmatpush1.bf16.msra.mxu0 %v7027
    %7063 = vmatprep.subr.bf16.mxu0 0
    %7064 = vmatpush1.bf16.msra.mxu0 %v7028
    %7065 = vmatprep.subr.bf16.mxu0 0
    %7066 = vmatpush1.bf16.msra.mxu0 %v7029
    %7067 = vmatprep.subr.bf16.mxu0 0
    %7068 = vmatpush1.bf16.msra.mxu0 %v7030
    %7069 = vmatprep.subr.bf16.mxu0 0
    %7070 = vmatpush1.bf16.msra.mxu0 %v7031
    %7071 = vmatprep.subr.bf16.mxu0 0
    %7072 = vmatpush1.bf16.msra.mxu0 0
    %7073 = vmatprep.subr.bf16.mxu0 0
    %7074 = vmatpush1.bf16.msra.mxu0 0
    %7075 = vmatprep.subr.bf16.mxu0 0
    %7076 = vmatpush1.bf16.msra.mxu0 0
    %7077 = vmatprep.subr.bf16.mxu0 0
    %7078 = vmatpush1.bf16.msra.mxu0 0
    %7079 = vmatprep.mubr.bf16.mxu0 %v7045
    %7080 = vmatmul.mubr.bf16.gmra.mrb[0].mxu0 %v6937
    %v7081 = vpop.f32.mrb[0].mxu0
    %v7082 = vadd.f32 %v6970, %v7081
    %v7083 = vpop.f32.mrb[0].mxu0
    %v7084 = vpop.f32.mrb[0].mxu0
    %v7085 = vadd.f32 %v6970, %v7084
    %v7086 = vpop.f32.mrb[0].mxu0
    %7087 = vdwg.mxu0
    %v7088 = vadd.f32 %v5023, %v7082
    %v7089 = vadd.f32 %v5024, %v7085
    %s7090 = scalar_lea.vmem %s6, 2
    %v7091 = vld [vmem:[%s7090] sm:$0x1]
    %s7092 = scalar_lea.vmem %s7, 2
    %v7093 = vld [vmem:[%s7092] sm:$0x1]
    %v7094 = vsel %vm198, %v7088, 0.0
    %7095 = vadd.xlane.f32.xlu0 %v7094
    %v7096 = vpop.xlane.xlu0 %7095
    %v7097 = vsel %vm198, %v7089, 0.0
    %7098 = vadd.xlane.f32.xlu0 %v7097
    %v7099 = vpop.xlane.xlu0 %7098
    %v7100 = vmul.f32 %v7096, %v205
    %v7101 = vmul.f32 %v7099, %v205
    %v7102 = vsub.f32 %v7088, %v7100
    %v7103 = vsub.f32 %v7089, %v7101
    %v7104 = vmul.f32 %v7102, %v7102
    %v7105 = vmul.f32 %v7103, %v7103
    %v7106 = vsel %vm198, %v7104, 0.0
    %7107 = vadd.xlane.f32.xlu0 %v7106
    %v7108 = vpop.xlane.xlu0 %7107
    %v7109 = vsel %vm198, %v7105, 0.0
    %7110 = vadd.xlane.f32.xlu0 %v7109
    %v7111 = vpop.xlane.xlu0 %7110
    %v7112 = vmul.f32 %v7108, %v205
    %v7113 = vmul.f32 %v7111, %v205
    %v7114 = vadd.f32 %v7112, 1e-05
    %v7115 = vadd.f32 %v7113, 1e-05
    %v7116 = vrsqrt.pop %v7114
    %v7117 = vrsqrt.pop %v7115
    %v7118 = vmul.f32 %v7102, %v7116
    %v7119 = vmul.f32 %v7103, %v7117
    %v7121 = vlaneseq
    %v7122 = vshrl.u32 %v7121, 7
    %v7123 = vsub.s32 0, %v7122
    %v7124 = vrot.slane %v7091, %v7123
    %v7126 = vmul.f32 %v7118, %v7124
    %v7127 = vmul.f32 %v7119, %v7124
    %v7129 = vlaneseq
    %v7130 = vshrl.u32 %v7129, 7
    %v7131 = vsub.s32 0, %v7130
    %v7132 = vrot.slane %v7093, %v7131
    %v7134 = vadd.f32 %v7126, %v7132
    %v7135 = vadd.f32 %v7127, %v7132
    %v7136 = vpack.c.bf16 %v7135, %v7134
    %s7137 = scalar_lea.vmem %s8, 64
    %v7138 = vld [vmem:[%s7137] sm:$0xff]
    %v7139 = vld [vmem:[%s7137 + $0x8] sm:$0xff]
    %v7140 = vld [vmem:[%s7137 + $0x10] sm:$0xff]
    %v7141 = vld [vmem:[%s7137 + $0x18] sm:$0xff]
    %s7142 = scalar_lea.vmem %s9, 4
    %v7143 = vld [vmem:[%s7142] sm:$0x3]
    %v7145 = vlaneseq
    %v7146 = vshrl.u32 %v7145, 7
    %v7147 = vsub.s32 0, %v7146
    %v7148 = vrot.slane %v7143, %v7147
    %v7149 = vlaneseq
    %v7150 = vshrl.u32 %v7149, 7
    %v7151 = vsub.s32 1, %v7150
    %v7152 = vrot.slane %v7143, %v7151
    %v7159 = vunpack.c.l.b16 %v7138
    %v7160 = vunpack.c.h.b16 %v7138
    %v7161 = vunpack.c.l.b16 %v7139
    %v7162 = vunpack.c.h.b16 %v7139
    %v7163 = vunpack.c.l.b16 %v7140
    %v7164 = vunpack.c.h.b16 %v7140
    %v7165 = vunpack.c.l.b16 %v7141
    %v7166 = vunpack.c.h.b16 %v7141
    %v7167 = vpack.c.b16 %v7161, %v7159
    %v7168 = vpack.c.b16 %v7162, %v7160
    %v7169 = vpack.c.b16 %v7165, %v7163
    %v7170 = vpack.c.b16 %v7166, %v7164
    %v7176 = vsel %vm198, %v7136, 0
    %7178 = vmatprep.subr.bf16.mxu0 %v7168
    %7179 = vmatpush1.bf16.msra.mxu0 %v7167
    %7180 = vmatprep.subr.bf16.mxu0 %v7170
    %7181 = vmatpush1.bf16.msra.mxu0 %v7169
    %7182 = vmatprep.subr.bf16.mxu0 0
    %7183 = vmatpush1.bf16.msra.mxu0 0
    %7184 = vmatprep.subr.bf16.mxu0 0
    %7185 = vmatpush1.bf16.msra.mxu0 0
    %7186 = vmatprep.subr.bf16.mxu0 0
    %7187 = vmatpush1.bf16.msra.mxu0 0
    %7188 = vmatprep.subr.bf16.mxu0 0
    %7189 = vmatpush1.bf16.msra.mxu0 0
    %7190 = vmatprep.subr.bf16.mxu0 0
    %7191 = vmatpush1.bf16.msra.mxu0 0
    %7192 = vmatprep.subr.bf16.mxu0 0
    %7193 = vmatpush1.bf16.msra.mxu0 0
    %7194 = vmatprep.subr.bf16.mxu0 0
    %7195 = vmatpush1.bf16.msra.mxu0 0
    %7196 = vmatprep.subr.bf16.mxu0 0
    %7197 = vmatpush1.bf16.msra.mxu0 0
    %7198 = vmatprep.subr.bf16.mxu0 0
    %7199 = vmatpush1.bf16.msra.mxu0 0
    %7200 = vmatprep.subr.bf16.mxu0 0
    %7201 = vmatpush1.bf16.msra.mxu0 0
    %7202 = vmatprep.subr.bf16.mxu0 0
    %7203 = vmatpush1.bf16.msra.mxu0 0
    %7204 = vmatprep.subr.bf16.mxu0 0
    %7205 = vmatpush1.bf16.msra.mxu0 0
    %7206 = vmatprep.subr.bf16.mxu0 0
    %7207 = vmatpush1.bf16.msra.mxu0 0
    %7208 = vmatprep.subr.bf16.mxu0 0
    %7209 = vmatpush1.bf16.msra.mxu0 0
    %7210 = vmatprep.mubr.bf16.mxu0 0
    %7211 = vmatmul.mubr.bf16.gmra.mrb[0].mxu0 %v7176
    %v7212 = vpop.f32.mrb[0].mxu0
    %v7213 = vadd.f32 %v7148, %v7212
    %v7214 = vpop.f32.mrb[0].mxu0
    %v7215 = vadd.f32 %v7152, %v7214
    %v7216 = vpop.f32.mrb[0].mxu0
    %v7217 = vadd.f32 %v7148, %v7216
    %v7218 = vpop.f32.mrb[0].mxu0
    %v7219 = vadd.f32 %v7152, %v7218
    %7220 = vdwg.mxu0
    %v7221 = vmul.f32 %v7213, 0.5
    %v7222 = vmul.f32 %v7215, 0.5
    %v7223 = vmul.f32 %v7217, 0.5
    %v7224 = vmul.f32 %v7219, 0.5
    %v7225 = vmul.f32 %v7213, 0.044715
    %v7226 = vmul.f32 %v7215, 0.044715
    %v7227 = vmul.f32 %v7217, 0.044715
    %v7228 = vmul.f32 %v7219, 0.044715
    %v7229 = vmul.f32 %v7225, %v7213
    %v7230 = vmul.f32 %v7226, %v7215
    %v7231 = vmul.f32 %v7227, %v7217
    %v7232 = vmul.f32 %v7228, %v7219
    %v7233 = vmul.f32 %v7229, %v7213
    %v7234 = vmul.f32 %v7230, %v7215
    %v7235 = vmul.f32 %v7231, %v7217
    %v7236 = vmul.f32 %v7232, %v7219
    %v7237 = vadd.f32 %v7213, %v7233
    %v7238 = vadd.f32 %v7215, %v7234
    %v7239 = vadd.f32 %v7217, %v7235
    %v7240 = vadd.f32 %v7219, %v7236
    %v7241 = vmul.f32 %v7237, 0.7978846
    %v7242 = vmul.f32 %v7238, 0.7978846
    %v7243 = vmul.f32 %v7239, 0.7978846
    %v7244 = vmul.f32 %v7240, 0.7978846
    %v7245 = vtanh.pop %v7241
    %v7246 = vtanh.pop %v7242
    %v7247 = vtanh.pop %v7243
    %v7248 = vtanh.pop %v7244
    %v7249 = vadd.f32 %v7245, 1.0
    %v7250 = vadd.f32 %v7246, 1.0
    %v7251 = vadd.f32 %v7247, 1.0
    %v7252 = vadd.f32 %v7248, 1.0
    %v7253 = vmul.f32 %v7221, %v7249
    %v7254 = vmul.f32 %v7222, %v7250
    %v7255 = vmul.f32 %v7223, %v7251
    %v7256 = vmul.f32 %v7224, %v7252
    %v7257 = vpack.c.bf16 %v7255, %v7253
    %v7258 = vpack.c.bf16 %v7256, %v7254
    %s7259 = scalar_lea.vmem %s10, 256
    %v7260 = vld [vmem:[%s7259] sm:$0xf]
    %v7261 = vld [vmem:[%s7259 + $0x4] sm:$0xf]
    %v7262 = vld [vmem:[%s7259 + $0x8] sm:$0xf]
    %v7263 = vld [vmem:[%s7259 + $0xc] sm:$0xf]
    %v7264 = vld [vmem:[%s7259 + $0x10] sm:$0xf]
    %v7265 = vld [vmem:[%s7259 + $0x14] sm:$0xf]
    %v7266 = vld [vmem:[%s7259 + $0x18] sm:$0xf]
    %v7267 = vld [vmem:[%s7259 + $0x1c] sm:$0xf]
    %v7268 = vld [vmem:[%s7259 + $0x20] sm:$0xf]
    %v7269 = vld [vmem:[%s7259 + $0x24] sm:$0xf]
    %v7270 = vld [vmem:[%s7259 + $0x28] sm:$0xf]
    %v7271 = vld [vmem:[%s7259 + $0x2c] sm:$0xf]
    %v7272 = vld [vmem:[%s7259 + $0x30] sm:$0xf]
    %v7273 = vld [vmem:[%s7259 + $0x34] sm:$0xf]
    %v7274 = vld [vmem:[%s7259 + $0x38] sm:$0xf]
    %v7275 = vld [vmem:[%s7259 + $0x3c] sm:$0xf]
    %v7276 = vld [vmem:[%s7259 + $0x40] sm:$0xf]
    %v7277 = vld [vmem:[%s7259 + $0x44] sm:$0xf]
    %v7278 = vld [vmem:[%s7259 + $0x48] sm:$0xf]
    %v7279 = vld [vmem:[%s7259 + $0x4c] sm:$0xf]
    %v7280 = vld [vmem:[%s7259 + $0x50] sm:$0xf]
    %v7281 = vld [vmem:[%s7259 + $0x54] sm:$0xf]
    %v7282 = vld [vmem:[%s7259 + $0x58] sm:$0xf]
    %v7283 = vld [vmem:[%s7259 + $0x5c] sm:$0xf]
    %v7284 = vld [vmem:[%s7259 + $0x60] sm:$0xf]
    %v7285 = vld [vmem:[%s7259 + $0x64] sm:$0xf]
    %v7286 = vld [vmem:[%s7259 + $0x68] sm:$0xf]
    %v7287 = vld [vmem:[%s7259 + $0x6c] sm:$0xf]
    %v7288 = vld [vmem:[%s7259 + $0x70] sm:$0xf]
    %v7289 = vld [vmem:[%s7259 + $0x74] sm:$0xf]
    %v7290 = vld [vmem:[%s7259 + $0x78] sm:$0xf]
    %v7291 = vld [vmem:[%s7259 + $0x7c] sm:$0xf]
    %s7292 = scalar_lea.vmem %s11, 2
    %v7293 = vld [vmem:[%s7292] sm:$0x1]
    %v7295 = vlaneseq
    %v7296 = vshrl.u32 %v7295, 7
    %v7297 = vsub.s32 0, %v7296
    %v7298 = vrot.slane %v7293, %v7297
    %v7332 = vunpack.c.l.b16 %v7260
    %v7333 = vunpack.c.l.b16 %v7261
    %v7334 = vunpack.c.l.b16 %v7262
    %v7335 = vunpack.c.l.b16 %v7263
    %v7336 = vunpack.c.l.b16 %v7264
    %v7337 = vunpack.c.l.b16 %v7265
    %v7338 = vunpack.c.l.b16 %v7266
    %v7339 = vunpack.c.l.b16 %v7267
    %v7340 = vunpack.c.l.b16 %v7268
    %v7341 = vunpack.c.l.b16 %v7269
    %v7342 = vunpack.c.l.b16 %v7270
    %v7343 = vunpack.c.l.b16 %v7271
    %v7344 = vunpack.c.l.b16 %v7272
    %v7345 = vunpack.c.l.b16 %v7273
    %v7346 = vunpack.c.l.b16 %v7274
    %v7347 = vunpack.c.l.b16 %v7275
    %v7348 = vunpack.c.l.b16 %v7276
    %v7349 = vunpack.c.l.b16 %v7277
    %v7350 = vunpack.c.l.b16 %v7278
    %v7351 = vunpack.c.l.b16 %v7279
    %v7352 = vunpack.c.l.b16 %v7280
    %v7353 = vunpack.c.l.b16 %v7281
    %v7354 = vunpack.c.l.b16 %v7282
    %v7355 = vunpack.c.l.b16 %v7283
    %v7356 = vunpack.c.l.b16 %v7284
    %v7357 = vunpack.c.l.b16 %v7285
    %v7358 = vunpack.c.l.b16 %v7286
    %v7359 = vunpack.c.l.b16 %v7287
    %v7360 = vunpack.c.l.b16 %v7288
    %v7361 = vunpack.c.l.b16 %v7289
    %v7362 = vunpack.c.l.b16 %v7290
    %v7363 = vunpack.c.l.b16 %v7291
    %v7364 = vpack.c.b16 %v7333, %v7332
    %v7365 = vpack.c.b16 %v7335, %v7334
    %v7366 = vpack.c.b16 %v7337, %v7336
    %v7367 = vpack.c.b16 %v7339, %v7338
    %v7368 = vpack.c.b16 %v7341, %v7340
    %v7369 = vpack.c.b16 %v7343, %v7342
    %v7370 = vpack.c.b16 %v7345, %v7344
    %v7371 = vpack.c.b16 %v7347, %v7346
    %v7372 = vpack.c.b16 %v7349, %v7348
    %v7373 = vpack.c.b16 %v7351, %v7350
    %v7374 = vpack.c.b16 %v7353, %v7352
    %v7375 = vpack.c.b16 %v7355, %v7354
    %v7376 = vpack.c.b16 %v7357, %v7356
    %v7377 = vpack.c.b16 %v7359, %v7358
    %v7378 = vpack.c.b16 %v7361, %v7360
    %v7379 = vpack.c.b16 %v7363, %v7362
    %7396 = vmatprep.subr.bf16.mxu0 0
    %7397 = vmatpush1.bf16.msra.mxu0 %v7364
    %7398 = vmatprep.subr.bf16.mxu0 0
    %7399 = vmatpush1.bf16.msra.mxu0 %v7365
    %7400 = vmatprep.subr.bf16.mxu0 0
    %7401 = vmatpush1.bf16.msra.mxu0 %v7366
    %7402 = vmatprep.subr.bf16.mxu0 0
    %7403 = vmatpush1.bf16.msra.mxu0 %v7367
    %7404 = vmatprep.subr.bf16.mxu0 0
    %7405 = vmatpush1.bf16.msra.mxu0 %v7368
    %7406 = vmatprep.subr.bf16.mxu0 0
    %7407 = vmatpush1.bf16.msra.mxu0 %v7369
    %7408 = vmatprep.subr.bf16.mxu0 0
    %7409 = vmatpush1.bf16.msra.mxu0 %v7370
    %7410 = vmatprep.subr.bf16.mxu0 0
    %7411 = vmatpush1.bf16.msra.mxu0 %v7371
    %7412 = vmatprep.subr.bf16.mxu0 0
    %7413 = vmatpush1.bf16.msra.mxu0 %v7372
    %7414 = vmatprep.subr.bf16.mxu0 0
    %7415 = vmatpush1.bf16.msra.mxu0 %v7373
    %7416 = vmatprep.subr.bf16.mxu0 0
    %7417 = vmatpush1.bf16.msra.mxu0 %v7374
    %7418 = vmatprep.subr.bf16.mxu0 0
    %7419 = vmatpush1.bf16.msra.mxu0 %v7375
    %7420 = vmatprep.subr.bf16.mxu0 0
    %7421 = vmatpush1.bf16.msra.mxu0 %v7376
    %7422 = vmatprep.subr.bf16.mxu0 0
    %7423 = vmatpush1.bf16.msra.mxu0 %v7377
    %7424 = vmatprep.subr.bf16.mxu0 0
    %7425 = vmatpush1.bf16.msra.mxu0 %v7378
    %7426 = vmatprep.subr.bf16.mxu0 0
    %7427 = vmatpush1.bf16.msra.mxu0 %v7379
    %7428 = vmatprep.mubr.bf16.mxu0 %v7258
    %7429 = vmatmul.mubr.bf16.gmra.mrb[0].mxu0 %v7257
    %v7430 = vpop.f32.mrb[0].mxu0
    %v7431 = vadd.f32 %v7298, %v7430
    %v7432 = vpop.f32.mrb[0].mxu0
    %v7433 = vpop.f32.mrb[0].mxu0
    %v7434 = vadd.f32 %v7298, %v7433
    %v7435 = vpop.f32.mrb[0].mxu0
    %7436 = vdwg.mxu0
    %v7437 = vadd.f32 %v7088, %v7431
    %v7438 = vadd.f32 %v7089, %v7434
    %7439 = vst.msk [vmem:[#allocation5] sm:$0xff] %vm198, %v7437
    %7440 = vst.msk [vmem:[#allocation5 + $0x8] sm:$0xff] %vm198, %v7438
    // Predicated region
    $region74: #{tpu_custom_call.1} parent=1 // pred_check
      _
    $region75: #{tpu_custom_call.1} parent=1 // pred_check_branch
      %7442 = sbr.rel (0) target = $region77
    $region76: #{tpu_custom_call.1} parent=1 // pred_region
      %s7444 = ssub.s32 256, 256
      %7445 = vsyncadd [#allocation6], %s7444
      %s7446 = sshll.u32 [#allocation5], 4
      %s7447 = int_to_ptr.vmem [resolvable:$true] %s7446
      %7452 = dma.vmem_to_hbm [thread:$0]  %s7447, 256, %s18, [#allocation6], 128, 128, 8
    $region77: #{tpu_custom_call.1} parent=1 // pred_fallthru
      _
    // Predicated region
    $region78: #{tpu_custom_call.1} parent=1 // pred_check
      _
    $region79: #{tpu_custom_call.1} parent=1 // pred_check_branch
      %7454 = sbr.rel (0) target = $region81
    $region80: #{tpu_custom_call.1} parent=1 // pred_region
      %7455 = dma.done [#allocation6], 256
    $region81: #{tpu_custom_call.1} parent=1 // pred_fallthru
      _
    %7456 = vsyncpa [#allocation6], 1

</llo_original>
